<compile_context>
chip_gen: v7x
topology: tpu7x:2x2x1
jax: 0.10.0
libtpu: 0.0.40
codegen_flags: <defaults>
</compile_context>

<pallas_src>
import functools
import math

import jax
import jax.numpy as jnp
from jax.experimental import pallas as pl
from jax.experimental.pallas import tpu as pltpu


def _round_up(x, m):
    return (x + m - 1) // m * m


def _row_tile(M):
    """Row tile (multiple of 16 where possible) preferring >=2 grid steps (v7x 2 TCs)."""
    Mp = _round_up(M, 8)
    for t in (256, 128, 64, 32, 16):
        if Mp % t == 0 and Mp // t >= 2:
            return t, Mp
    for t in (256, 128, 64, 32, 16, 8):
        if Mp % t == 0:
            return t, Mp
    return 8, Mp


_PARALLEL1 = pltpu.CompilerParams(dimension_semantics=("parallel",))


# ----------------------------------------------------------------------------
# Pallas kernels
# ----------------------------------------------------------------------------

# ---- plain matmul with fused bias (+ optional residual); single K block ----

def _mm_kernel(x_ref, w_ref, b_ref, o_ref):
    y = jnp.dot(x_ref[...].astype(jnp.bfloat16), w_ref[...],
                preferred_element_type=jnp.float32)
    o_ref[...] = (y + b_ref[...]).astype(o_ref.dtype)


def _mm_res_kernel(x_ref, w_ref, b_ref, r_ref, o_ref):
    y = jnp.dot(x_ref[...].astype(jnp.bfloat16), w_ref[...],
                preferred_element_type=jnp.float32)
    o_ref[...] = (y + b_ref[...] + r_ref[...]).astype(o_ref.dtype)


def matmul_pallas(x, w_t, b, residual=None, out_dtype=jnp.float32):
    """y = x @ w_t + b (+ residual).  K kept as one block (K<=256 here)."""
    M, K = x.shape
    N = w_t.shape[1]
    tm, Mp = _row_tile(M)
    if Mp != M:
        x = jnp.pad(x, ((0, Mp - M), (0, 0)))
        if residual is not None:
            residual = jnp.pad(residual, ((0, Mp - M), (0, 0)))
    bb = b.reshape(1, N).astype(jnp.float32)
    in_specs = [pl.BlockSpec((tm, K), lambda i: (i, 0)),
                pl.BlockSpec((K, N), lambda i: (0, 0)),
                pl.BlockSpec((1, N), lambda i: (0, 0))]
    args = [x, w_t, bb]
    kernel = _mm_kernel
    if residual is not None:
        in_specs.append(pl.BlockSpec((tm, N), lambda i: (i, 0)))
        args.append(residual.astype(jnp.float32))
        kernel = _mm_res_kernel
    y = pl.pallas_call(
        kernel,
        out_shape=jax.ShapeDtypeStruct((Mp, N), out_dtype),
        grid=(Mp // tm,),
        in_specs=in_specs,
        out_specs=pl.BlockSpec((tm, N), lambda i: (i, 0)),
        compiler_params=_PARALLEL1,
    )(*args)
    return y if Mp == M else y[:M]


# ---- fused LayerNorm + matmul (optionally also emits the normalized rows) ----

def _ln_mm_kernel(x_ref, g_ref, b_ref, w_ref, wb_ref, y_ref, *, eps, scale):
    x = x_ref[...]
    mu = jnp.mean(x, axis=-1, keepdims=True)
    xc = x - mu
    var = jnp.mean(xc * xc, axis=-1, keepdims=True)
    xn = xc * jax.lax.rsqrt(var + eps) * g_ref[...] + b_ref[...]
    y = jnp.dot(xn.astype(jnp.bfloat16), w_ref[...],
                preferred_element_type=jnp.float32) + wb_ref[...]
    if scale != 1.0:
        y = y * scale
    y_ref[...] = y.astype(y_ref.dtype)


def _ln_mm_norm_kernel(x_ref, g_ref, b_ref, w_ref, wb_ref, y_ref, n_ref, *, eps, scale):
    x = x_ref[...]
    mu = jnp.mean(x, axis=-1, keepdims=True)
    xc = x - mu
    var = jnp.mean(xc * xc, axis=-1, keepdims=True)
    xn = xc * jax.lax.rsqrt(var + eps) * g_ref[...] + b_ref[...]
    n_ref[...] = xn.astype(n_ref.dtype)
    y = jnp.dot(xn.astype(jnp.bfloat16), w_ref[...],
                preferred_element_type=jnp.float32) + wb_ref[...]
    if scale != 1.0:
        y = y * scale
    y_ref[...] = y.astype(y_ref.dtype)


def ln_matmul_pallas(x2d, ln_p, lin_p, scale=1.0, out_dtype=jnp.float32,
                     return_normed=False):
    """LayerNorm(x) then x @ W + b (optionally * scale), in one kernel."""
    M, C = x2d.shape
    Nout = lin_p['w'].shape[1]
    tm, Mp = _row_tile(M)
    xp = x2d if Mp == M else jnp.pad(x2d, ((0, Mp - M), (0, 0)))
    g = ln_p['g'].reshape(1, C).astype(jnp.float32)
    bb = ln_p['b'].reshape(1, C).astype(jnp.float32)
    wb = lin_p['b'].reshape(1, Nout).astype(jnp.float32)
    in_specs = [pl.BlockSpec((tm, C), lambda i: (i, 0)),
                pl.BlockSpec((1, C), lambda i: (0, 0)),
                pl.BlockSpec((1, C), lambda i: (0, 0)),
                pl.BlockSpec((C, Nout), lambda i: (0, 0)),
                pl.BlockSpec((1, Nout), lambda i: (0, 0))]
    if return_normed:
        y, xn = pl.pallas_call(
            functools.partial(_ln_mm_norm_kernel, eps=float(ln_p['eps']),
                              scale=float(scale)),
            out_shape=(jax.ShapeDtypeStruct((Mp, Nout), out_dtype),
                       jax.ShapeDtypeStruct((Mp, C), jnp.float32)),
            grid=(Mp // tm,),
            in_specs=in_specs,
            out_specs=(pl.BlockSpec((tm, Nout), lambda i: (i, 0)),
                       pl.BlockSpec((tm, C), lambda i: (i, 0))),
            compiler_params=_PARALLEL1,
        )(xp, g, bb, lin_p['w'], wb)
        if Mp != M:
            y, xn = y[:M], xn[:M]
        return y, xn
    y = pl.pallas_call(
        functools.partial(_ln_mm_kernel, eps=float(ln_p['eps']), scale=float(scale)),
        out_shape=jax.ShapeDtypeStruct((Mp, Nout), out_dtype),
        grid=(Mp // tm,),
        in_specs=in_specs,
        out_specs=pl.BlockSpec((tm, Nout), lambda i: (i, 0)),
        compiler_params=_PARALLEL1,
    )(xp, g, bb, lin_p['w'], wb)
    return y if Mp == M else y[:M]


# ---- standalone row-tiled LayerNorm (only used when x_source is not x) ------

def _ln_kernel(x_ref, g_ref, b_ref, o_ref, *, eps):
    x = x_ref[...]
    mu = jnp.mean(x, axis=-1, keepdims=True)
    xc = x - mu
    var = jnp.mean(xc * xc, axis=-1, keepdims=True)
    o_ref[...] = xc * jax.lax.rsqrt(var + eps) * g_ref[...] + b_ref[...]


def layernorm_pallas(x2d, ln_p):
    M, C = x2d.shape
    tm, Mp = _row_tile(M)
    xp = x2d if Mp == M else jnp.pad(x2d, ((0, Mp - M), (0, 0)))
    y = pl.pallas_call(
        functools.partial(_ln_kernel, eps=float(ln_p['eps'])),
        out_shape=jax.ShapeDtypeStruct((Mp, C), jnp.float32),
        grid=(Mp // tm,),
        in_specs=[pl.BlockSpec((tm, C), lambda i: (i, 0)),
                  pl.BlockSpec((1, C), lambda i: (0, 0)),
                  pl.BlockSpec((1, C), lambda i: (0, 0))],
        out_specs=pl.BlockSpec((tm, C), lambda i: (i, 0)),
        compiler_params=_PARALLEL1,
    )(xp, ln_p['g'].reshape(1, C).astype(jnp.float32),
      ln_p['b'].reshape(1, C).astype(jnp.float32))
    return y if Mp == M else y[:M]


# ---- fused sr-conv (patch matmul) + LayerNorm + kv projection --------------

def _sr_ln_kv_kernel(p_ref, wsr_ref, bsr_ref, g_ref, b_ref, wkv_ref, bkv_ref,
                     o_ref, *, eps):
    y = jnp.dot(p_ref[...].astype(jnp.bfloat16), wsr_ref[...],
                preferred_element_type=jnp.float32) + bsr_ref[...]
    mu = jnp.mean(y, axis=-1, keepdims=True)
    yc = y - mu
    var = jnp.mean(yc * yc, axis=-1, keepdims=True)
    yn = yc * jax.lax.rsqrt(var + eps) * g_ref[...] + b_ref[...]
    kv = jnp.dot(yn.astype(jnp.bfloat16), wkv_ref[...],
                 preferred_element_type=jnp.float32) + bkv_ref[...]
    o_ref[...] = kv.astype(o_ref.dtype)


def srconv_ln_kv_pallas(pcol, sr_p, ln_p, kv_p, out_dtype=jnp.bfloat16):
    M, Kp = pcol.shape
    C = sr_p['w'].shape[-1]
    wsr = sr_p['w'].reshape(Kp, C)                       # (k*k*Cin, Cout) bf16
    bsr = sr_p['b'].reshape(1, C).astype(jnp.float32)
    g = ln_p['g'].reshape(1, C).astype(jnp.float32)
    bb = ln_p['b'].reshape(1, C).astype(jnp.float32)
    N2 = kv_p['w'].shape[1]
    bkv = kv_p['b'].reshape(1, N2).astype(jnp.float32)
    tm, Mp = _row_tile(M)
    xp = pcol if Mp == M else jnp.pad(pcol, ((0, Mp - M), (0, 0)))
    y = pl.pallas_call(
        functools.partial(_sr_ln_kv_kernel, eps=float(ln_p['eps'])),
        out_shape=jax.ShapeDtypeStruct((Mp, N2), out_dtype),
        grid=(Mp // tm,),
        in_specs=[pl.BlockSpec((tm, Kp), lambda i: (i, 0)),
                  pl.BlockSpec((Kp, C), lambda i: (0, 0)),
                  pl.BlockSpec((1, C), lambda i: (0, 0)),
                  pl.BlockSpec((1, C), lambda i: (0, 0)),
                  pl.BlockSpec((1, C), lambda i: (0, 0)),
                  pl.BlockSpec((C, N2), lambda i: (0, 0)),
                  pl.BlockSpec((1, N2), lambda i: (0, 0))],
        out_specs=pl.BlockSpec((tm, N2), lambda i: (i, 0)),
        compiler_params=_PARALLEL1,
    )(xp, wsr, bsr, g, bb, kv_p['w'], bkv)
    return y if Mp == M else y[:M]


# ---- attention + proj matmul + bias + residual, heads split in-kernel --------

def _attn_core(q, kv, heads, C, wp_ref, base, cb=None):
    d = C // heads
    y = base
    for h in range(heads):
        qh = q[:, h * d:(h + 1) * d]                     # (Nq, d) bf16 (pre-scaled)
        kh = kv[:, h * d:(h + 1) * d]                    # (Nk, d) bf16
        vh = kv[:, C + h * d:C + (h + 1) * d]            # (Nk, d) bf16
        s = jax.lax.dot_general(qh, kh, (((1,), (1,)), ((), ())),
                                preferred_element_type=jnp.float32)
        if cb is not None:
            s = s + cb
        s = s - jnp.max(s, axis=-1, keepdims=True)
        e = jnp.exp(s)
        p = e * pl.reciprocal(jnp.sum(e, axis=-1, keepdims=True), approx=True)
        oh = jnp.dot(p.astype(jnp.bfloat16), vh, preferred_element_type=jnp.float32)
        # heads merged directly through the sliced proj weight rows (no concat).
        y = y + jnp.dot(oh.astype(jnp.bfloat16), wp_ref[h * d:(h + 1) * d, :],
                        preferred_element_type=jnp.float32)
    return y


def _attn_proj_kernel(q_ref, kv_ref, wp_ref, bp_ref, r_ref, o_ref, *, heads):
    C = q_ref.shape[-1]
    base = bp_ref[...] + r_ref[0]
    o_ref[0] = _attn_core(q_ref[0], kv_ref[0], heads, C, wp_ref, base)


def _attn_proj_bias_kernel(q_ref, kv_ref, cb_ref, wp_ref, bp_ref, r_ref, o_ref, *, heads):
    C = q_ref.shape[-1]
    base = bp_ref[...] + r_ref[0]
    o_ref[0] = _attn_core(q_ref[0], kv_ref[0], heads, C, wp_ref, base, cb=cb_ref[0])


def attn_proj_pallas(q, kv, conf_bias, proj_p, residual, num_heads):
    """softmax(q @ k^T + bias) @ v, then @Wproj + bproj + residual.
    q:(B,Nq,C) bf16 pre-scaled; kv:(B,Nk,2C) bf16; residual:(B,Nq,C) f32."""
    B, Nq, C = q.shape
    Nk = kv.shape[1]
    bp = proj_p['b'].reshape(1, C).astype(jnp.float32)
    res = residual.astype(jnp.float32)
    qspec = pl.BlockSpec((1, Nq, C), lambda i: (i, 0, 0))
    kvspec = pl.BlockSpec((1, Nk, 2 * C), lambda i: (i, 0, 0))
    wspec = pl.BlockSpec((C, C), lambda i: (0, 0))
    bspec = pl.BlockSpec((1, C), lambda i: (0, 0))
    rspec = pl.BlockSpec((1, Nq, C), lambda i: (i, 0, 0))
    ospec = pl.BlockSpec((1, Nq, C), lambda i: (i, 0, 0))
    if conf_bias is None:
        return pl.pallas_call(
            functools.partial(_attn_proj_kernel, heads=int(num_heads)),
            out_shape=jax.ShapeDtypeStruct((B, Nq, C), jnp.float32),
            grid=(B,),
            in_specs=[qspec, kvspec, wspec, bspec, rspec],
            out_specs=ospec,
            compiler_params=_PARALLEL1,
        )(q, kv, proj_p['w'], bp, res)
    cb = conf_bias.astype(jnp.float32).reshape(B, 1, Nk)
    return pl.pallas_call(
        functools.partial(_attn_proj_bias_kernel, heads=int(num_heads)),
        out_shape=jax.ShapeDtypeStruct((B, Nq, C), jnp.float32),
        grid=(B,),
        in_specs=[qspec, kvspec, pl.BlockSpec((1, 1, Nk), lambda i: (i, 0, 0)),
                  wspec, bspec, rspec],
        out_specs=ospec,
        compiler_params=_PARALLEL1,
    )(q, kv, cb, proj_p['w'], bp, res)


# ---- depthwise 3x3 conv: pre-shifted W slabs, strip-tiled accumulator --------

def _dwconv3x3_kernel(xs_ref, w_ref, b_ref, o_ref, *, H, HS):
    W = o_ref.shape[2]
    C = o_ref.shape[3]
    wfull = w_ref[...]                                   # (9, C) f32
    wtap = [wfull[k:k + 1, :].reshape(1, 1, C) for k in range(9)]
    bias = b_ref[...].reshape(1, 1, C)
    for h0 in range(0, H, HS):
        acc = jnp.zeros((HS, W, C), jnp.float32)
        for dj in range(3):
            for di in range(3):
                tap = xs_ref[0, dj, h0 + di:h0 + di + HS, :, :].astype(jnp.float32)
                acc = acc + tap * wtap[di * 3 + dj]
        o_ref[0, h0:h0 + HS, :, :] = acc + bias


def dwconv3x3_pallas(x_map, w33c, b):
    """Depthwise 3x3, stride 1, pad 1.  x_map:(B,H,W,C) NHWC, w33c:(3,3,C)."""
    B, H, W, C = x_map.shape
    xp = jnp.pad(x_map, ((0, 0), (1, 1), (1, 1), (0, 0))).astype(jnp.bfloat16)
    # three W-pre-shifted slabs so all 9 in-kernel taps are free H-axis offsets
    slabs = jnp.stack([xp[:, :, j:j + W, :] for j in range(3)], axis=1)  # (B,3,H+2,W,C)
    w9 = w33c.reshape(9, C).astype(jnp.float32)
    HS = next(h for h in (4, 2, 1) if H % h == 0)
    return pl.pallas_call(
        functools.partial(_dwconv3x3_kernel, H=H, HS=HS),
        out_shape=jax.ShapeDtypeStruct((B, H, W, C), jnp.float32),
        grid=(B,),
        in_specs=[pl.BlockSpec((1, 3, H + 2, W, C), lambda i: (i, 0, 0, 0, 0)),
                  pl.BlockSpec((9, C), lambda i: (0, 0)),
                  pl.BlockSpec((1, C), lambda i: (0, 0))],
        out_specs=pl.BlockSpec((1, H, W, C), lambda i: (i, 0, 0, 0)),
        compiler_params=_PARALLEL1,
    )(slabs, w9, b.reshape(1, C).astype(jnp.float32))


# ----------------------------------------------------------------------------
# JAX glue
# ----------------------------------------------------------------------------

def gelu(x):
    # exact erf GELU (matches torch.nn.GELU); applied in JAX after the
    # data-dependent map2token gather.
    return jax.nn.gelu(x, approximate=False)


def avg_pool2d_nhwc(x, k):
    B, H, W, C = x.shape
    return x.reshape(B, H // k, k, W // k, k, C).mean(axis=(2, 4))


def get_grid_loc(B, H, W):
    y = 2.0 * (jnp.arange(H, dtype=jnp.float32) + 0.5) / H - 1.0
    x = 2.0 * (jnp.arange(W, dtype=jnp.float32) + 0.5) / W - 1.0
    ym, xm = jnp.meshgrid(y, x, indexing='ij')
    loc = jnp.stack([xm, ym], axis=-1).reshape(1, H * W, 2)
    return jnp.broadcast_to(loc, (B, H * W, 2))


def _loc_to_pixel_idx(loc_orig, H, W):
    loc = jnp.clip(loc_orig, -1.0, 1.0)
    px = jnp.clip(jnp.round(0.5 * (loc[..., 0] + 1.0) * W - 0.5).astype(jnp.int32), 0, W - 1)
    py = jnp.clip(jnp.round(0.5 * (loc[..., 1] + 1.0) * H - 0.5).astype(jnp.int32), 0, H - 1)
    return py * W + px


def token2map_agg_mat(x, loc, loc_orig, idx_agg, map_size):
    # TODO(synk): data-dependent scatter-mean has no clean Pallas equivalent; JAX scatter glue.
    H, W = map_size
    B, N, C = x.shape
    N0 = idx_agg.shape[1]
    idx_hw = _loc_to_pixel_idx(loc_orig, H, W)
    bidx = jnp.broadcast_to(jnp.arange(B, dtype=jnp.int32)[:, None], (B, N0))
    tok = x[bidx, idx_agg]                                                   # (B, N0, C)
    ssum = jnp.zeros((B, H * W, C), jnp.float32).at[bidx, idx_hw].add(tok)
    cnt = jnp.zeros((B, H * W, 1), jnp.float32).at[bidx, idx_hw].add(1.0)
    x_map = (ssum / (cnt + 1e-6)).reshape(B, H, W, C)                        # NHWC
    all_weight = cnt.reshape(B, H, W, 1)
    return x_map, all_weight


def map2token_agg_fast_nearest(feature_map, N, loc_orig, idx_agg, agg_weight=None):
    # TODO(synk): data-dependent gather/scatter; JAX glue.
    B, H, W, C = feature_map.shape
    N0 = idx_agg.shape[1]
    idx_hw = _loc_to_pixel_idx(loc_orig, H, W)
    bidx = jnp.broadcast_to(jnp.arange(B, dtype=jnp.int32)[:, None], (B, N0))
    fm = feature_map.reshape(B, H * W, C)
    val = fm[bidx, idx_hw]                                                   # (B, N0, C)
    if agg_weight is None:
        w = jnp.ones((B, N0, 1), jnp.float32)
    else:
        w = agg_weight.astype(jnp.float32)
    denom = jnp.zeros((B, N, 1), jnp.float32).at[bidx, idx_agg].add(w) + 1e-6
    nw = w / denom[bidx, idx_agg]
    out = jnp.zeros((B, N, C), jnp.float32).at[bidx, idx_agg].add(val * nw)
    return out


# ----------------------------------------------------------------------------
# Deterministic parameter initialization (weights pre-transposed, bf16)
# ----------------------------------------------------------------------------

class PInit:
    def __init__(self, seed=0):
        self._key = jax.random.PRNGKey(seed)

    def _next(self):
        self._key, k = jax.random.split(self._key)
        return k

    def linear(self, in_f, out_f, bias=True):
        w = (0.02 * jax.random.normal(self._next(), (in_f, out_f), jnp.float32)
             ).astype(jnp.bfloat16)                       # stored (in, out)
        b = jnp.zeros((out_f,), jnp.float32)
        return {'w': w, 'b': b}

    def conv2d(self, in_ch, out_ch, k, bias=True):
        fan_out = k * k * out_ch
        w = (math.sqrt(2.0 / fan_out) *
             jax.random.normal(self._next(), (k, k, in_ch, out_ch), jnp.float32)
             ).astype(jnp.bfloat16)                       # stored (kh, kw, Cin, Cout)
        b = jnp.zeros((out_ch,), jnp.float32)
        return {'w': w, 'b': b}

    def dwconv3x3(self, ch):
        fan_out = 9                                       # 3*3*ch // groups(=ch)
        w = math.sqrt(2.0 / fan_out) * jax.random.normal(self._next(), (3, 3, ch), jnp.float32)
        b = jnp.zeros((ch,), jnp.float32)
        return {'w': w, 'b': b}

    def layernorm(self, dim, eps):
        return {'g': jnp.ones((dim,), jnp.float32),
                'b': jnp.zeros((dim,), jnp.float32), 'eps': float(eps)}

    def chan_scale(self, dim):   # Conv1d(dim, dim, 1, groups=dim, bias=False)
        return {'w': jax.random.uniform(self._next(), (dim,), jnp.float32, -1.0, 1.0)}


# ----------------------------------------------------------------------------
# MyAttention / MyDWConv / MyMlp / MyBlock
# ----------------------------------------------------------------------------

def init_my_attention(pi, dim, heads, sr):
    p = {'q': pi.linear(dim, dim, True), 'kv': pi.linear(dim, 2 * dim, True),
         'proj': pi.linear(dim, dim, True), 'num_heads': heads, 'sr_ratio': sr,
         'scale': (dim // heads) ** -0.5}
    if sr > 1:
        p['sr'] = pi.conv2d(dim, dim, sr, bias=True)
        p['norm'] = pi.layernorm(dim, 1e-5)
    return p


def my_attention_fwd(p, q, x_source_n, loc_orig, idx_agg_source, H, W,
                     conf_source=None, residual=None):
    """q: (B,N,C) bf16 already LayerNormed/projected/scaled.
    x_source_n: LayerNormed source tokens (B,Ns,C) f32."""
    B, N, C = q.shape
    sr = p['sr_ratio']
    if sr > 1:
        if conf_source is None:
            # reference builds a zero conf channel -> additive bias is exactly 0; skip it.
            x_map, _ = token2map_agg_mat(x_source_n, None, loc_orig, idx_agg_source, [H, W])
            conf_bias = None
        else:
            tmp = jnp.concatenate([x_source_n, conf_source.astype(x_source_n.dtype)], axis=-1)
            tmp_map, _ = token2map_agg_mat(tmp, None, loc_orig, idx_agg_source, [H, W])
            x_map = tmp_map[..., :C]
            conf_map = tmp_map[..., C:]
            conf_bias = avg_pool2d_nhwc(conf_map, sr).reshape(B, -1)          # (B, Nk)
        # stride==kernel sr conv -> non-overlapping patches: pure layout reshape
        Ho, Wo = H // sr, W // sr
        pcol = (x_map.reshape(B, Ho, sr, Wo, sr, C).transpose(0, 1, 3, 2, 4, 5)
                .reshape(B * Ho * Wo, sr * sr * C))
        kv = srconv_ln_kv_pallas(pcol, p['sr'], p['norm'], p['kv'])           # bf16
        kv = kv.reshape(B, Ho * Wo, 2 * C)
    else:
        kv = matmul_pallas(x_source_n.reshape(-1, C), p['kv']['w'], p['kv']['b'],
                           out_dtype=jnp.bfloat16).reshape(B, -1, 2 * C)
        conf_bias = None if conf_source is None else conf_source[..., 0]
    # attention + proj (+bias +residual) fused in one kernel
    return attn_proj_pallas(q, kv, conf_bias, p['proj'], residual, p['num_heads'])


def init_my_dwconv(pi, dim):
    return {'dwconv': pi.dwconv3x3(dim), 'dwconv_skip': pi.chan_scale(dim)}


def my_dwconv_fwd(p, x, loc_orig, idx_agg, agg_weight, H, W):
    B, N, C = x.shape
    x_map, _ = token2map_agg_mat(x, None, loc_orig, idx_agg, [H, W])          # NHWC f32
    x_map = dwconv3x3_pallas(x_map, p['dwconv']['w'], p['dwconv']['b'])
    skip = x * p['dwconv_skip']['w'][None, None, :]
    return map2token_agg_fast_nearest(x_map, N, loc_orig, idx_agg, agg_weight) + skip


def init_my_mlp(pi, dim, hidden):
    return {'fc1': pi.linear(dim, hidden, True),
            'dwconv': init_my_dwconv(pi, hidden),
            'fc2': pi.linear(hidden, dim, True)}


def init_my_block(pi, dim, heads, mlp_ratio, sr):
    return {'norm1': pi.layernorm(dim, 1e-6),
            'attn': init_my_attention(pi, dim, heads, sr),
            'norm2': pi.layernorm(dim, 1e-6),
            'mlp': init_my_mlp(pi, dim, int(dim * mlp_ratio))}


def my_block_fwd(p, x, idx_agg, agg_weight, loc_orig, x_source, idx_agg_source,
                 agg_weight_source, H, W, conf_source=None):
    # drop_path / dropout are identity at inference.
    B, N, C = x.shape
    attn_p = p['attn']

    # ---- attention branch: LN1 + q projection (+ softmax scale) fused; also
    #      emits normalized x for the token2map scatter path.
    q2d, xn2d = ln_matmul_pallas(x.reshape(-1, C), p['norm1'], attn_p['q'],
                                 scale=attn_p['scale'], out_dtype=jnp.bfloat16,
                                 return_normed=True)
    q = q2d.reshape(B, N, C)
    if x_source is x:
        xsn = xn2d.reshape(B, N, C)
    else:
        xsn = layernorm_pallas(x_source.reshape(-1, C), p['norm1']).reshape(x_source.shape)

    x1 = my_attention_fwd(attn_p, q, xsn, loc_orig, idx_agg_source, H, W,
                          conf_source=conf_source, residual=x)                # (B,N,C) f32

    # ---- MLP branch: LN2 + fc1 fused, dwconv, GELU, fc2 + residual fused.
    mlp_p = p['mlp']
    hidden = mlp_p['fc1']['w'].shape[1]
    h1 = ln_matmul_pallas(x1.reshape(-1, C), p['norm2'], mlp_p['fc1'],
                          out_dtype=jnp.float32).reshape(B, N, hidden)
    y = my_dwconv_fwd(mlp_p['dwconv'], h1, loc_orig, idx_agg, agg_weight, H, W)
    y = gelu(y)
    x2 = matmul_pallas(y.reshape(-1, hidden), mlp_p['fc2']['w'], mlp_p['fc2']['b'],
                       residual=x1.reshape(-1, C), out_dtype=jnp.float32)
    return x2.reshape(B, N, C)


# ----------------------------------------------------------------------------
# main
# ----------------------------------------------------------------------------

if __name__ == "__main__":
    key = jax.random.PRNGKey(0)
    B, H, W = 2, 16, 16                    # original pixel grid
    dim, num_heads, mlp_ratio, sr_ratio = 64, 2, 4.0, 2
    N0 = H * W                             # 256 original points
    Ht, Wt = H // 2, W // 2
    N = Ht * Wt                            # 64 clustered tokens

    k1, k2 = jax.random.split(key, 2)
    x = jax.random.normal(k1, (B, N, dim), jnp.float32)
    conf_source = 0.1 * jax.random.normal(k2, (B, N, 1), jnp.float32)

    # deterministic "clustering": every 2x2 pixel block -> one token
    py, px = jnp.meshgrid(jnp.arange(H), jnp.arange(W), indexing='ij')
    idx_agg = jnp.broadcast_to(
        ((py // 2) * Wt + (px // 2)).reshape(-1).astype(jnp.int32)[None], (B, N0))
    agg_weight = jnp.ones((B, N0, 1), jnp.float32)
    loc_orig = get_grid_loc(B, H, W)

    pi = PInit(seed=0)
    params = init_my_block(pi, dim, num_heads, mlp_ratio, sr_ratio)

    def run(x, idx_agg, agg_weight, loc_orig, conf):
        # x_source == x (self-attention over the same token set)
        return my_block_fwd(params, x, idx_agg, agg_weight, loc_orig,
                            x, idx_agg, agg_weight, H, W, conf_source=conf)

    out = jax.jit(run)(x, idx_agg, agg_weight, loc_orig, conf_source)
    out = jax.block_until_ready(out)

    assert out.shape == (B, N, dim), out.shape
    assert bool(jnp.all(jnp.isfinite(out)))
    print("KERNEL_OK")
</pallas_src>

<mosaic_0001>
module attributes {stable_mosaic.version = 11 : i64} {
  func.func private @main(%arg0: i32) attributes {dimension_semantics = [#tpu.dimension_semantics<core_parallel>], iteration_bounds = array<i64: 2>, tpu.core_type = #tpu.core_type<sc_scalar_subcore>, window_params = []} {
    return
  }
}

module attributes {stable_mosaic.version = 11 : i64} {
  func.func private @main(%arg0: i32) attributes {dimension_semantics = [#tpu.dimension_semantics<core_parallel>], iteration_bounds = array<i64: 2>, tpu.core_type = #tpu.core_type<sc_scalar_subcore>, window_params = []} {
    return
  }
}

module attributes {stable_mosaic.version = 11 : i64} {
  func.func @_ln_mm_norm_kernel(%arg0: i32, %arg1: memref<64x64xf32, #tpu.memory_space<vmem>>, %arg2: memref<1x64xf32, #tpu.memory_space<vmem>>, %arg3: memref<1x64xf32, #tpu.memory_space<vmem>>, %arg4: memref<64x64xbf16, #tpu.memory_space<vmem>>, %arg5: memref<1x64xf32, #tpu.memory_space<vmem>>, %arg6: memref<64x64xbf16, #tpu.memory_space<vmem>>, %arg7: memref<64x64xf32, #tpu.memory_space<vmem>>) attributes {dimension_semantics = [#tpu.dimension_semantics<parallel>], iteration_bounds = array<i64: 2>, scalar_prefetch = 0 : i64, scratch_operands = 0 : i64, tpu.core_type = #tpu.core_type<tc>, window_params = [{transform_indices = @transform_0, window_bounds = array<i64: 64, 64>}, {pipeline_mode = #tpu.pipeline_mode<synchronous>, transform_indices = @transform_1, window_bounds = array<i64: 1, 64>}, {pipeline_mode = #tpu.pipeline_mode<synchronous>, transform_indices = @transform_2, window_bounds = array<i64: 1, 64>}, {pipeline_mode = #tpu.pipeline_mode<synchronous>, transform_indices = @transform_3, window_bounds = array<i64: 64, 64>}, {pipeline_mode = #tpu.pipeline_mode<synchronous>, transform_indices = @transform_4, window_bounds = array<i64: 1, 64>}, {transform_indices = @transform_5, window_bounds = array<i64: 64, 64>}, {transform_indices = @transform_6, window_bounds = array<i64: 64, 64>}]} {
    %c0 = arith.constant 0 : index
    %c0_0 = arith.constant 0 : index
    %0 = vector.load %arg1[%c0, %c0_0] : memref<64x64xf32, #tpu.memory_space<vmem>>, vector<64x64xf32>
    %cst = arith.constant dense<0.000000e+00> : vector<64xf32>
    %1 = vector.multi_reduction <add>, %0, %cst [1] : vector<64x64xf32> to vector<64xf32>
    %2 = vector.shape_cast %1 : vector<64xf32> to vector<64x1xf32>
    %cst_1 = arith.constant 6.400000e+01 : f32
    %3 = vector.broadcast %cst_1 : f32 to vector<64x1xf32>
    %4 = arith.divf %2, %3 : vector<64x1xf32>
    %5 = vector.broadcast %4 : vector<64x1xf32> to vector<64x64xf32>
    %6 = arith.subf %0, %5 : vector<64x64xf32>
    %7 = arith.mulf %6, %6 : vector<64x64xf32>
    %cst_2 = arith.constant dense<0.000000e+00> : vector<64xf32>
    %8 = vector.multi_reduction <add>, %7, %cst_2 [1] : vector<64x64xf32> to vector<64xf32>
    %9 = vector.shape_cast %8 : vector<64xf32> to vector<64x1xf32>
    %cst_3 = arith.constant 6.400000e+01 : f32
    %10 = vector.broadcast %cst_3 : f32 to vector<64x1xf32>
    %11 = arith.divf %9, %10 : vector<64x1xf32>
    %cst_4 = arith.constant 9.99999997E-7 : f32
    %12 = vector.broadcast %cst_4 : f32 to vector<64x1xf32>
    %13 = arith.addf %11, %12 : vector<64x1xf32>
    %14 = math.rsqrt %13 : vector<64x1xf32>
    %15 = vector.broadcast %14 : vector<64x1xf32> to vector<64x64xf32>
    %16 = arith.mulf %6, %15 : vector<64x64xf32>
    %c0_5 = arith.constant 0 : index
    %c0_6 = arith.constant 0 : index
    %17 = vector.load %arg2[%c0_5, %c0_6] : memref<1x64xf32, #tpu.memory_space<vmem>>, vector<1x64xf32>
    %18 = vector.broadcast %17 : vector<1x64xf32> to vector<64x64xf32>
    %19 = arith.mulf %16, %18 : vector<64x64xf32>
    %c0_7 = arith.constant 0 : index
    %c0_8 = arith.constant 0 : index
    %20 = vector.load %arg3[%c0_7, %c0_8] : memref<1x64xf32, #tpu.memory_space<vmem>>, vector<1x64xf32>
    %21 = vector.broadcast %20 : vector<1x64xf32> to vector<64x64xf32>
    %22 = arith.addf %19, %21 : vector<64x64xf32>
    %c0_9 = arith.constant 0 : index
    %c0_10 = arith.constant 0 : index
    %23 = vector.load %arg7[%c0_9, %c0_10] : memref<64x64xf32, #tpu.memory_space<vmem>>, vector<64x64xf32>
    tpu.vector_store %arg7[%c0_9, %c0_10], %22 {strides = array<i32>} : memref<64x64xf32, #tpu.memory_space<vmem>>, vector<64x64xf32>,
    %24 = arith.truncf %22 : vector<64x64xf32> to vector<64x64xbf16>
    %c0_11 = arith.constant 0 : index
    %c0_12 = arith.constant 0 : index
    %25 = vector.load %arg4[%c0_11, %c0_12] : memref<64x64xbf16, #tpu.memory_space<vmem>>, vector<64x64xbf16>
    %cst_13 = arith.constant dense<0.000000e+00> : vector<64x64xf32>
    %26 = tpu.matmul %24, %25, %cst_13 {dimension_numbers = #tpu.dot_dimension_numbers<[1], [0], [0], [1], [0, 0, 1, 1], [], []>} : vector<64x64xbf16>, vector<64x64xbf16>, vector<64x64xf32> -> vector<64x64xf32>
    %c0_14 = arith.constant 0 : index
    %c0_15 = arith.constant 0 : index
    %27 = vector.load %arg5[%c0_14, %c0_15] : memref<1x64xf32, #tpu.memory_space<vmem>>, vector<1x64xf32>
    %28 = vector.broadcast %27 : vector<1x64xf32> to vector<64x64xf32>
    %29 = arith.addf %26, %28 : vector<64x64xf32>
    %cst_16 = arith.constant 0.176776692 : f32
    %30 = vector.broadcast %cst_16 : f32 to vector<64x64xf32>
    %31 = arith.mulf %29, %30 : vector<64x64xf32>
    %32 = arith.truncf %31 : vector<64x64xf32> to vector<64x64xbf16>
    %c0_17 = arith.constant 0 : index
    %c0_18 = arith.constant 0 : index
    %33 = vector.load %arg6[%c0_17, %c0_18] : memref<64x64xbf16, #tpu.memory_space<vmem>>, vector<64x64xbf16>
    tpu.vector_store %arg6[%c0_17, %c0_18], %32 {strides = array<i32>} : memref<64x64xbf16, #tpu.memory_space<vmem>>, vector<64x64xbf16>,
    return
  }
  func.func @transform_0(%arg0: i32) -> (i32, i32) {
    %c0_i32 = arith.constant 0 : i32
    %c0_i32_0 = arith.constant 0 : i32
    return %arg0, %c0_i32 : i32, i32
  }
  func.func @transform_1(%arg0: i32) -> (i32, i32) {
    %c0_i32 = arith.constant 0 : i32
    %c0_i32_0 = arith.constant 0 : i32
    %c0_i32_1 = arith.constant 0 : i32
    return %c0_i32, %c0_i32_0 : i32, i32
  }
  func.func @transform_2(%arg0: i32) -> (i32, i32) {
    %c0_i32 = arith.constant 0 : i32
    %c0_i32_0 = arith.constant 0 : i32
    %c0_i32_1 = arith.constant 0 : i32
    return %c0_i32, %c0_i32_0 : i32, i32
  }
  func.func @transform_3(%arg0: i32) -> (i32, i32) {
    %c0_i32 = arith.constant 0 : i32
    %c0_i32_0 = arith.constant 0 : i32
    %c0_i32_1 = arith.constant 0 : i32
    return %c0_i32, %c0_i32_0 : i32, i32
  }
  func.func @transform_4(%arg0: i32) -> (i32, i32) {
    %c0_i32 = arith.constant 0 : i32
    %c0_i32_0 = arith.constant 0 : i32
    %c0_i32_1 = arith.constant 0 : i32
    return %c0_i32, %c0_i32_0 : i32, i32
  }
  func.func @transform_5(%arg0: i32) -> (i32, i32) {
    %c0_i32 = arith.constant 0 : i32
    %c0_i32_0 = arith.constant 0 : i32
    return %arg0, %c0_i32 : i32, i32
  }
  func.func @transform_6(%arg0: i32) -> (i32, i32) {
    %c0_i32 = arith.constant 0 : i32
    %c0_i32_0 = arith.constant 0 : i32
    return %arg0, %c0_i32 : i32, i32
  }
}

module attributes {stable_mosaic.version = 11 : i64} {
  func.func @_sr_ln_kv_kernel(%arg0: i32, %arg1: memref<64x256xf32, #tpu.memory_space<vmem>>, %arg2: memref<256x64xbf16, #tpu.memory_space<vmem>>, %arg3: memref<1x64xf32, #tpu.memory_space<vmem>>, %arg4: memref<1x64xf32, #tpu.memory_space<vmem>>, %arg5: memref<1x64xf32, #tpu.memory_space<vmem>>, %arg6: memref<64x128xbf16, #tpu.memory_space<vmem>>, %arg7: memref<1x128xf32, #tpu.memory_space<vmem>>, %arg8: memref<64x128xbf16, #tpu.memory_space<vmem>>) attributes {dimension_semantics = [#tpu.dimension_semantics<parallel>], iteration_bounds = array<i64: 2>, scalar_prefetch = 0 : i64, scratch_operands = 0 : i64, tpu.core_type = #tpu.core_type<tc>, window_params = [{transform_indices = @transform_0, window_bounds = array<i64: 64, 256>}, {pipeline_mode = #tpu.pipeline_mode<synchronous>, transform_indices = @transform_1, window_bounds = array<i64: 256, 64>}, {pipeline_mode = #tpu.pipeline_mode<synchronous>, transform_indices = @transform_2, window_bounds = array<i64: 1, 64>}, {pipeline_mode = #tpu.pipeline_mode<synchronous>, transform_indices = @transform_3, window_bounds = array<i64: 1, 64>}, {pipeline_mode = #tpu.pipeline_mode<synchronous>, transform_indices = @transform_4, window_bounds = array<i64: 1, 64>}, {pipeline_mode = #tpu.pipeline_mode<synchronous>, transform_indices = @transform_5, window_bounds = array<i64: 64, 128>}, {pipeline_mode = #tpu.pipeline_mode<synchronous>, transform_indices = @transform_6, window_bounds = array<i64: 1, 128>}, {transform_indices = @transform_7, window_bounds = array<i64: 64, 128>}]} {
    %c0 = arith.constant 0 : index
    %c0_0 = arith.constant 0 : index
    %0 = vector.load %arg1[%c0, %c0_0] : memref<64x256xf32, #tpu.memory_space<vmem>>, vector<64x256xf32>
    %1 = arith.truncf %0 : vector<64x256xf32> to vector<64x256xbf16>
    %c0_1 = arith.constant 0 : index
    %c0_2 = arith.constant 0 : index
    %2 = vector.load %arg2[%c0_1, %c0_2] : memref<256x64xbf16, #tpu.memory_space<vmem>>, vector<256x64xbf16>
    %cst = arith.constant dense<0.000000e+00> : vector<64x64xf32>
    %3 = tpu.matmul %1, %2, %cst {dimension_numbers = #tpu.dot_dimension_numbers<[1], [0], [0], [1], [0, 0, 1, 1], [], []>} : vector<64x256xbf16>, vector<256x64xbf16>, vector<64x64xf32> -> vector<64x64xf32>
    %c0_3 = arith.constant 0 : index
    %c0_4 = arith.constant 0 : index
    %4 = vector.load %arg3[%c0_3, %c0_4] : memref<1x64xf32, #tpu.memory_space<vmem>>, vector<1x64xf32>
    %5 = vector.broadcast %4 : vector<1x64xf32> to vector<64x64xf32>
    %6 = arith.addf %3, %5 : vector<64x64xf32>
    %cst_5 = arith.constant dense<0.000000e+00> : vector<64xf32>
    %7 = vector.multi_reduction <add>, %6, %cst_5 [1] : vector<64x64xf32> to vector<64xf32>
    %8 = vector.shape_cast %7 : vector<64xf32> to vector<64x1xf32>
    %cst_6 = arith.constant 6.400000e+01 : f32
    %9 = vector.broadcast %cst_6 : f32 to vector<64x1xf32>
    %10 = arith.divf %8, %9 : vector<64x1xf32>
    %11 = vector.broadcast %10 : vector<64x1xf32> to vector<64x64xf32>
    %12 = arith.subf %6, %11 : vector<64x64xf32>
    %13 = arith.mulf %12, %12 : vector<64x64xf32>
    %cst_7 = arith.constant dense<0.000000e+00> : vector<64xf32>
    %14 = vector.multi_reduction <add>, %13, %cst_7 [1] : vector<64x64xf32> to vector<64xf32>
    %15 = vector.shape_cast %14 : vector<64xf32> to vector<64x1xf32>
    %cst_8 = arith.constant 6.400000e+01 : f32
    %16 = vector.broadcast %cst_8 : f32 to vector<64x1xf32>
    %17 = arith.divf %15, %16 : vector<64x1xf32>
    %cst_9 = arith.constant 9.99999974E-6 : f32
    %18 = vector.broadcast %cst_9 : f32 to vector<64x1xf32>
    %19 = arith.addf %17, %18 : vector<64x1xf32>
    %20 = math.rsqrt %19 : vector<64x1xf32>
    %21 = vector.broadcast %20 : vector<64x1xf32> to vector<64x64xf32>
    %22 = arith.mulf %12, %21 : vector<64x64xf32>
    %c0_10 = arith.constant 0 : index
    %c0_11 = arith.constant 0 : index
    %23 = vector.load %arg4[%c0_10, %c0_11] : memref<1x64xf32, #tpu.memory_space<vmem>>, vector<1x64xf32>
    %24 = vector.broadcast %23 : vector<1x64xf32> to vector<64x64xf32>
    %25 = arith.mulf %22, %24 : vector<64x64xf32>
    %c0_12 = arith.constant 0 : index
    %c0_13 = arith.constant 0 : index
    %26 = vector.load %arg5[%c0_12, %c0_13] : memref<1x64xf32, #tpu.memory_space<vmem>>, vector<1x64xf32>
    %27 = vector.broadcast %26 : vector<1x64xf32> to vector<64x64xf32>
    %28 = arith.addf %25, %27 : vector<64x64xf32>
    %29 = arith.truncf %28 : vector<64x64xf32> to vector<64x64xbf16>
    %c0_14 = arith.constant 0 : index
    %c0_15 = arith.constant 0 : index
    %30 = vector.load %arg6[%c0_14, %c0_15] : memref<64x128xbf16, #tpu.memory_space<vmem>>, vector<64x128xbf16>
    %cst_16 = arith.constant dense<0.000000e+00> : vector<64x128xf32>
    %31 = tpu.matmul %29, %30, %cst_16 {dimension_numbers = #tpu.dot_dimension_numbers<[1], [0], [0], [1], [0, 0, 1, 1], [], []>} : vector<64x64xbf16>, vector<64x128xbf16>, vector<64x128xf32> -> vector<64x128xf32>
    %c0_17 = arith.constant 0 : index
    %c0_18 = arith.constant 0 : index
    %32 = vector.load %arg7[%c0_17, %c0_18] : memref<1x128xf32, #tpu.memory_space<vmem>>, vector<1x128xf32>
    %33 = vector.broadcast %32 : vector<1x128xf32> to vector<64x128xf32>
    %34 = arith.addf %31, %33 : vector<64x128xf32>
    %35 = arith.truncf %34 : vector<64x128xf32> to vector<64x128xbf16>
    %c0_19 = arith.constant 0 : index
    %c0_20 = arith.constant 0 : index
    %36 = vector.load %arg8[%c0_19, %c0_20] : memref<64x128xbf16, #tpu.memory_space<vmem>>, vector<64x128xbf16>
    tpu.vector_store %arg8[%c0_19, %c0_20], %35 {strides = array<i32>} : memref<64x128xbf16, #tpu.memory_space<vmem>>, vector<64x128xbf16>,
    return
  }
  func.func @transform_0(%arg0: i32) -> (i32, i32) {
    %c0_i32 = arith.constant 0 : i32
    %c0_i32_0 = arith.constant 0 : i32
    return %arg0, %c0_i32 : i32, i32
  }
  func.func @transform_1(%arg0: i32) -> (i32, i32) {
    %c0_i32 = arith.constant 0 : i32
    %c0_i32_0 = arith.constant 0 : i32
    %c0_i32_1 = arith.constant 0 : i32
    return %c0_i32, %c0_i32_0 : i32, i32
  }
  func.func @transform_2(%arg0: i32) -> (i32, i32) {
    %c0_i32 = arith.constant 0 : i32
    %c0_i32_0 = arith.constant 0 : i32
    %c0_i32_1 = arith.constant 0 : i32
    return %c0_i32, %c0_i32_0 : i32, i32
  }
  func.func @transform_3(%arg0: i32) -> (i32, i32) {
    %c0_i32 = arith.constant 0 : i32
    %c0_i32_0 = arith.constant 0 : i32
    %c0_i32_1 = arith.constant 0 : i32
    return %c0_i32, %c0_i32_0 : i32, i32
  }
  func.func @transform_4(%arg0: i32) -> (i32, i32) {
    %c0_i32 = arith.constant 0 : i32
    %c0_i32_0 = arith.constant 0 : i32
    %c0_i32_1 = arith.constant 0 : i32
    return %c0_i32, %c0_i32_0 : i32, i32
  }
  func.func @transform_5(%arg0: i32) -> (i32, i32) {
    %c0_i32 = arith.constant 0 : i32
    %c0_i32_0 = arith.constant 0 : i32
    %c0_i32_1 = arith.constant 0 : i32
    return %c0_i32, %c0_i32_0 : i32, i32
  }
  func.func @transform_6(%arg0: i32) -> (i32, i32) {
    %c0_i32 = arith.constant 0 : i32
    %c0_i32_0 = arith.constant 0 : i32
    %c0_i32_1 = arith.constant 0 : i32
    return %c0_i32, %c0_i32_0 : i32, i32
  }
  func.func @transform_7(%arg0: i32) -> (i32, i32) {
    %c0_i32 = arith.constant 0 : i32
    %c0_i32_0 = arith.constant 0 : i32
    return %arg0, %c0_i32 : i32, i32
  }
}

module attributes {stable_mosaic.version = 11 : i64} {
  func.func @_attn_proj_bias_kernel(%arg0: i32, %arg1: memref<1x64x64xbf16, #tpu.memory_space<vmem>>, %arg2: memref<1x64x128xbf16, #tpu.memory_space<vmem>>, %arg3: memref<1x1x64xf32, #tpu.memory_space<vmem>>, %arg4: memref<64x64xbf16, #tpu.memory_space<vmem>>, %arg5: memref<1x64xf32, #tpu.memory_space<vmem>>, %arg6: memref<1x64x64xf32, #tpu.memory_space<vmem>>, %arg7: memref<1x64x64xf32, #tpu.memory_space<vmem>>) attributes {dimension_semantics = [#tpu.dimension_semantics<parallel>], iteration_bounds = array<i64: 2>, scalar_prefetch = 0 : i64, scratch_operands = 0 : i64, tpu.core_type = #tpu.core_type<tc>, window_params = [{transform_indices = @transform_0, window_bounds = array<i64: 1, 64, 64>}, {transform_indices = @transform_1, window_bounds = array<i64: 1, 64, 128>}, {transform_indices = @transform_2, window_bounds = array<i64: 1, 1, 64>}, {pipeline_mode = #tpu.pipeline_mode<synchronous>, transform_indices = @transform_3, window_bounds = array<i64: 64, 64>}, {pipeline_mode = #tpu.pipeline_mode<synchronous>, transform_indices = @transform_4, window_bounds = array<i64: 1, 64>}, {transform_indices = @transform_5, window_bounds = array<i64: 1, 64, 64>}, {transform_indices = @transform_6, window_bounds = array<i64: 1, 64, 64>}]} {
    %c0 = arith.constant 0 : index
    %c0_0 = arith.constant 0 : index
    %0 = vector.load %arg5[%c0, %c0_0] : memref<1x64xf32, #tpu.memory_space<vmem>>, vector<1x64xf32>
    %c0_1 = arith.constant 0 : index
    %c0_2 = arith.constant 0 : index
    %c0_3 = arith.constant 0 : index
    %1 = vector.load %arg6[%c0_1, %c0_2, %c0_3] : memref<1x64x64xf32, #tpu.memory_space<vmem>>, vector<1x64x64xf32>
    %2 = vector.shape_cast %1 : vector<1x64x64xf32> to vector<64x64xf32>
    %3 = vector.broadcast %0 : vector<1x64xf32> to vector<64x64xf32>
    %4 = arith.addf %3, %2 : vector<64x64xf32>
    %c0_4 = arith.constant 0 : index
    %c0_5 = arith.constant 0 : index
    %c0_6 = arith.constant 0 : index
    %5 = vector.load %arg1[%c0_4, %c0_5, %c0_6] : memref<1x64x64xbf16, #tpu.memory_space<vmem>>, vector<1x64x64xbf16>
    %6 = vector.shape_cast %5 : vector<1x64x64xbf16> to vector<64x64xbf16>
    %c0_7 = arith.constant 0 : index
    %c0_8 = arith.constant 0 : index
    %c0_9 = arith.constant 0 : index
    %7 = vector.load %arg2[%c0_7, %c0_8, %c0_9] : memref<1x64x128xbf16, #tpu.memory_space<vmem>>, vector<1x64x128xbf16>
    %8 = vector.shape_cast %7 : vector<1x64x128xbf16> to vector<64x128xbf16>
    %c0_10 = arith.constant 0 : index
    %c0_11 = arith.constant 0 : index
    %c0_12 = arith.constant 0 : index
    %9 = vector.load %arg3[%c0_10, %c0_11, %c0_12] : memref<1x1x64xf32, #tpu.memory_space<vmem>>, vector<1x1x64xf32>
    %10 = vector.shape_cast %9 : vector<1x1x64xf32> to vector<1x64xf32>
    %11 = vector.extract_strided_slice %6 {offsets = [0, 0], sizes = [64, 32], strides = [1, 1]} : vector<64x64xbf16> to vector<64x32xbf16>
    %12 = vector.extract_strided_slice %8 {offsets = [0, 0], sizes = [64, 32], strides = [1, 1]} : vector<64x128xbf16> to vector<64x32xbf16>
    %13 = vector.extract_strided_slice %8 {offsets = [0, 64], sizes = [64, 32], strides = [1, 1]} : vector<64x128xbf16> to vector<64x32xbf16>
    %cst = arith.constant dense<0.000000e+00> : vector<64x64xf32>
    %14 = tpu.matmul %11, %12, %cst {dimension_numbers = #tpu.dot_dimension_numbers<[1], [1], [0], [0], [0, 0, 1, 0], [], []>} : vector<64x32xbf16>, vector<64x32xbf16>, vector<64x64xf32> -> vector<64x64xf32>
    %15 = vector.broadcast %10 : vector<1x64xf32> to vector<64x64xf32>
    %16 = arith.addf %14, %15 : vector<64x64xf32>
    %cst_13 = arith.constant dense<0xFF800000> : vector<64xf32>
    %17 = vector.multi_reduction <maximumf>, %16, %cst_13 [1] : vector<64x64xf32> to vector<64xf32>
    %18 = vector.shape_cast %17 : vector<64xf32> to vector<64x1xf32>
    %19 = vector.broadcast %18 : vector<64x1xf32> to vector<64x64xf32>
    %20 = arith.subf %16, %19 : vector<64x64xf32>
    %21 = math.exp %20 : vector<64x64xf32>
    %cst_14 = arith.constant dense<0.000000e+00> : vector<64xf32>
    %22 = vector.multi_reduction <add>, %21, %cst_14 [1] : vector<64x64xf32> to vector<64xf32>
    %23 = vector.shape_cast %22 : vector<64xf32> to vector<64x1xf32>
    %24 = tpu.reciprocal %23 {approx = true} : vector<64x1xf32> -> vector<64x1xf32>
    %25 = vector.broadcast %24 : vector<64x1xf32> to vector<64x64xf32>
    %26 = arith.mulf %21, %25 : vector<64x64xf32>
    %27 = arith.truncf %26 : vector<64x64xf32> to vector<64x64xbf16>
    %cst_15 = arith.constant dense<0.000000e+00> : vector<64x32xf32>
    %28 = tpu.matmul %27, %13, %cst_15 {dimension_numbers = #tpu.dot_dimension_numbers<[1], [0], [0], [1], [0, 0, 1, 1], [], []>} : vector<64x64xbf16>, vector<64x32xbf16>, vector<64x32xf32> -> vector<64x32xf32>
    %29 = arith.truncf %28 : vector<64x32xf32> to vector<64x32xbf16>
    %c0_16 = arith.constant 0 : index
    %c0_17 = arith.constant 0 : index
    %30 = vector.load %arg4[%c0_16, %c0_17] : memref<64x64xbf16, #tpu.memory_space<vmem>>, vector<32x64xbf16>
    %cst_18 = arith.constant dense<0.000000e+00> : vector<64x64xf32>
    %31 = tpu.matmul %29, %30, %cst_18 {dimension_numbers = #tpu.dot_dimension_numbers<[1], [0], [0], [1], [0, 0, 1, 1], [], []>} : vector<64x32xbf16>, vector<32x64xbf16>, vector<64x64xf32> -> vector<64x64xf32>
    %32 = arith.addf %4, %31 : vector<64x64xf32>
    %33 = vector.extract_strided_slice %6 {offsets = [0, 32], sizes = [64, 32], strides = [1, 1]} : vector<64x64xbf16> to vector<64x32xbf16>
    %34 = vector.extract_strided_slice %8 {offsets = [0, 32], sizes = [64, 32], strides = [1, 1]} : vector<64x128xbf16> to vector<64x32xbf16>
    %35 = vector.extract_strided_slice %8 {offsets = [0, 96], sizes = [64, 32], strides = [1, 1]} : vector<64x128xbf16> to vector<64x32xbf16>
    %cst_19 = arith.constant dense<0.000000e+00> : vector<64x64xf32>
    %36 = tpu.matmul %33, %34, %cst_19 {dimension_numbers = #tpu.dot_dimension_numbers<[1], [1], [0], [0], [0, 0, 1, 0], [], []>} : vector<64x32xbf16>, vector<64x32xbf16>, vector<64x64xf32> -> vector<64x64xf32>
    %37 = vector.broadcast %10 : vector<1x64xf32> to vector<64x64xf32>
    %38 = arith.addf %36, %37 : vector<64x64xf32>
    %cst_20 = arith.constant dense<0xFF800000> : vector<64xf32>
    %39 = vector.multi_reduction <maximumf>, %38, %cst_20 [1] : vector<64x64xf32> to vector<64xf32>
    %40 = vector.shape_cast %39 : vector<64xf32> to vector<64x1xf32>
    %41 = vector.broadcast %40 : vector<64x1xf32> to vector<64x64xf32>
    %42 = arith.subf %38, %41 : vector<64x64xf32>
    %43 = math.exp %42 : vector<64x64xf32>
    %cst_21 = arith.constant dense<0.000000e+00> : vector<64xf32>
    %44 = vector.multi_reduction <add>, %43, %cst_21 [1] : vector<64x64xf32> to vector<64xf32>
    %45 = vector.shape_cast %44 : vector<64xf32> to vector<64x1xf32>
    %46 = tpu.reciprocal %45 {approx = true} : vector<64x1xf32> -> vector<64x1xf32>
    %47 = vector.broadcast %46 : vector<64x1xf32> to vector<64x64xf32>
    %48 = arith.mulf %43, %47 : vector<64x64xf32>
    %49 = arith.truncf %48 : vector<64x64xf32> to vector<64x64xbf16>
    %cst_22 = arith.constant dense<0.000000e+00> : vector<64x32xf32>
    %50 = tpu.matmul %49, %35, %cst_22 {dimension_numbers = #tpu.dot_dimension_numbers<[1], [0], [0], [1], [0, 0, 1, 1], [], []>} : vector<64x64xbf16>, vector<64x32xbf16>, vector<64x32xf32> -> vector<64x32xf32>
    %51 = arith.truncf %50 : vector<64x32xf32> to vector<64x32xbf16>
    %c32 = arith.constant 32 : index
    %c0_23 = arith.constant 0 : index
    %52 = vector.load %arg4[%c32, %c0_23] : memref<64x64xbf16, #tpu.memory_space<vmem>>, vector<32x64xbf16>
    %cst_24 = arith.constant dense<0.000000e+00> : vector<64x64xf32>
    %53 = tpu.matmul %51, %52, %cst_24 {dimension_numbers = #tpu.dot_dimension_numbers<[1], [0], [0], [1], [0, 0, 1, 1], [], []>} : vector<64x32xbf16>, vector<32x64xbf16>, vector<64x64xf32> -> vector<64x64xf32>
    %54 = arith.addf %32, %53 : vector<64x64xf32>
    %c0_25 = arith.constant 0 : index
    %c0_26 = arith.constant 0 : index
    %c0_27 = arith.constant 0 : index
    %55 = vector.load %arg7[%c0_25, %c0_26, %c0_27] : memref<1x64x64xf32, #tpu.memory_space<vmem>>, vector<1x64x64xf32>
    %56 = vector.shape_cast %55 : vector<1x64x64xf32> to vector<64x64xf32>
    %57 = vector.shape_cast %54 : vector<64x64xf32> to vector<1x64x64xf32>
    tpu.vector_store %arg7[%c0_25, %c0_26, %c0_27], %57 {strides = array<i32>} : memref<1x64x64xf32, #tpu.memory_space<vmem>>, vector<1x64x64xf32>,
    return
  }
  func.func @transform_0(%arg0: i32) -> (i32, i32, i32) {
    %c0_i32 = arith.constant 0 : i32
    %c0_i32_0 = arith.constant 0 : i32
    %c0_i32_1 = arith.constant 0 : i32
    return %arg0, %c0_i32, %c0_i32_0 : i32, i32, i32
  }
  func.func @transform_1(%arg0: i32) -> (i32, i32, i32) {
    %c0_i32 = arith.constant 0 : i32
    %c0_i32_0 = arith.constant 0 : i32
    %c0_i32_1 = arith.constant 0 : i32
    return %arg0, %c0_i32, %c0_i32_0 : i32, i32, i32
  }
  func.func @transform_2(%arg0: i32) -> (i32, i32, i32) {
    %c0_i32 = arith.constant 0 : i32
    %c0_i32_0 = arith.constant 0 : i32
    %c0_i32_1 = arith.constant 0 : i32
    return %arg0, %c0_i32, %c0_i32_0 : i32, i32, i32
  }
  func.func @transform_3(%arg0: i32) -> (i32, i32) {
    %c0_i32 = arith.constant 0 : i32
    %c0_i32_0 = arith.constant 0 : i32
    %c0_i32_1 = arith.constant 0 : i32
    return %c0_i32, %c0_i32_0 : i32, i32
  }
  func.func @transform_4(%arg0: i32) -> (i32, i32) {
    %c0_i32 = arith.constant 0 : i32
    %c0_i32_0 = arith.constant 0 : i32
    %c0_i32_1 = arith.constant 0 : i32
    return %c0_i32, %c0_i32_0 : i32, i32
  }
  func.func @transform_5(%arg0: i32) -> (i32, i32, i32) {
    %c0_i32 = arith.constant 0 : i32
    %c0_i32_0 = arith.constant 0 : i32
    %c0_i32_1 = arith.constant 0 : i32
    return %arg0, %c0_i32, %c0_i32_0 : i32, i32, i32
  }
  func.func @transform_6(%arg0: i32) -> (i32, i32, i32) {
    %c0_i32 = arith.constant 0 : i32
    %c0_i32_0 = arith.constant 0 : i32
    %c0_i32_1 = arith.constant 0 : i32
    return %arg0, %c0_i32, %c0_i32_0 : i32, i32, i32
  }
}

module attributes {stable_mosaic.version = 11 : i64} {
  func.func @_ln_mm_kernel(%arg0: i32, %arg1: memref<64x64xf32, #tpu.memory_space<vmem>>, %arg2: memref<1x64xf32, #tpu.memory_space<vmem>>, %arg3: memref<1x64xf32, #tpu.memory_space<vmem>>, %arg4: memref<64x256xbf16, #tpu.memory_space<vmem>>, %arg5: memref<1x256xf32, #tpu.memory_space<vmem>>, %arg6: memref<64x256xf32, #tpu.memory_space<vmem>>) attributes {dimension_semantics = [#tpu.dimension_semantics<parallel>], iteration_bounds = array<i64: 2>, scalar_prefetch = 0 : i64, scratch_operands = 0 : i64, tpu.core_type = #tpu.core_type<tc>, window_params = [{transform_indices = @transform_0, window_bounds = array<i64: 64, 64>}, {pipeline_mode = #tpu.pipeline_mode<synchronous>, transform_indices = @transform_1, window_bounds = array<i64: 1, 64>}, {pipeline_mode = #tpu.pipeline_mode<synchronous>, transform_indices = @transform_2, window_bounds = array<i64: 1, 64>}, {pipeline_mode = #tpu.pipeline_mode<synchronous>, transform_indices = @transform_3, window_bounds = array<i64: 64, 256>}, {pipeline_mode = #tpu.pipeline_mode<synchronous>, transform_indices = @transform_4, window_bounds = array<i64: 1, 256>}, {transform_indices = @transform_5, window_bounds = array<i64: 64, 256>}]} {
    %c0 = arith.constant 0 : index
    %c0_0 = arith.constant 0 : index
    %0 = vector.load %arg1[%c0, %c0_0] : memref<64x64xf32, #tpu.memory_space<vmem>>, vector<64x64xf32>
    %cst = arith.constant dense<0.000000e+00> : vector<64xf32>
    %1 = vector.multi_reduction <add>, %0, %cst [1] : vector<64x64xf32> to vector<64xf32>
    %2 = vector.shape_cast %1 : vector<64xf32> to vector<64x1xf32>
    %cst_1 = arith.constant 6.400000e+01 : f32
    %3 = vector.broadcast %cst_1 : f32 to vector<64x1xf32>
    %4 = arith.divf %2, %3 : vector<64x1xf32>
    %5 = vector.broadcast %4 : vector<64x1xf32> to vector<64x64xf32>
    %6 = arith.subf %0, %5 : vector<64x64xf32>
    %7 = arith.mulf %6, %6 : vector<64x64xf32>
    %cst_2 = arith.constant dense<0.000000e+00> : vector<64xf32>
    %8 = vector.multi_reduction <add>, %7, %cst_2 [1] : vector<64x64xf32> to vector<64xf32>
    %9 = vector.shape_cast %8 : vector<64xf32> to vector<64x1xf32>
    %cst_3 = arith.constant 6.400000e+01 : f32
    %10 = vector.broadcast %cst_3 : f32 to vector<64x1xf32>
    %11 = arith.divf %9, %10 : vector<64x1xf32>
    %cst_4 = arith.constant 9.99999997E-7 : f32
    %12 = vector.broadcast %cst_4 : f32 to vector<64x1xf32>
    %13 = arith.addf %11, %12 : vector<64x1xf32>
    %14 = math.rsqrt %13 : vector<64x1xf32>
    %15 = vector.broadcast %14 : vector<64x1xf32> to vector<64x64xf32>
    %16 = arith.mulf %6, %15 : vector<64x64xf32>
    %c0_5 = arith.constant 0 : index
    %c0_6 = arith.constant 0 : index
    %17 = vector.load %arg2[%c0_5, %c0_6] : memref<1x64xf32, #tpu.memory_space<vmem>>, vector<1x64xf32>
    %18 = vector.broadcast %17 : vector<1x64xf32> to vector<64x64xf32>
    %19 = arith.mulf %16, %18 : vector<64x64xf32>
    %c0_7 = arith.constant 0 : index
    %c0_8 = arith.constant 0 : index
    %20 = vector.load %arg3[%c0_7, %c0_8] : memref<1x64xf32, #tpu.memory_space<vmem>>, vector<1x64xf32>
    %21 = vector.broadcast %20 : vector<1x64xf32> to vector<64x64xf32>
    %22 = arith.addf %19, %21 : vector<64x64xf32>
    %23 = arith.truncf %22 : vector<64x64xf32> to vector<64x64xbf16>
    %c0_9 = arith.constant 0 : index
    %c0_10 = arith.constant 0 : index
    %24 = vector.load %arg4[%c0_9, %c0_10] : memref<64x256xbf16, #tpu.memory_space<vmem>>, vector<64x256xbf16>
    %cst_11 = arith.constant dense<0.000000e+00> : vector<64x256xf32>
    %25 = tpu.matmul %23, %24, %cst_11 {dimension_numbers = #tpu.dot_dimension_numbers<[1], [0], [0], [1], [0, 0, 1, 1], [], []>} : vector<64x64xbf16>, vector<64x256xbf16>, vector<64x256xf32> -> vector<64x256xf32>
    %c0_12 = arith.constant 0 : index
    %c0_13 = arith.constant 0 : index
    %26 = vector.load %arg5[%c0_12, %c0_13] : memref<1x256xf32, #tpu.memory_space<vmem>>, vector<1x256xf32>
    %27 = vector.broadcast %26 : vector<1x256xf32> to vector<64x256xf32>
    %28 = arith.addf %25, %27 : vector<64x256xf32>
    %c0_14 = arith.constant 0 : index
    %c0_15 = arith.constant 0 : index
    %29 = vector.load %arg6[%c0_14, %c0_15] : memref<64x256xf32, #tpu.memory_space<vmem>>, vector<64x256xf32>
    tpu.vector_store %arg6[%c0_14, %c0_15], %28 {strides = array<i32>} : memref<64x256xf32, #tpu.memory_space<vmem>>, vector<64x256xf32>,
    return
  }
  func.func @transform_0(%arg0: i32) -> (i32, i32) {
    %c0_i32 = arith.constant 0 : i32
    %c0_i32_0 = arith.constant 0 : i32
    return %arg0, %c0_i32 : i32, i32
  }
  func.func @transform_1(%arg0: i32) -> (i32, i32) {
    %c0_i32 = arith.constant 0 : i32
    %c0_i32_0 = arith.constant 0 : i32
    %c0_i32_1 = arith.constant 0 : i32
    return %c0_i32, %c0_i32_0 : i32, i32
  }
  func.func @transform_2(%arg0: i32) -> (i32, i32) {
    %c0_i32 = arith.constant 0 : i32
    %c0_i32_0 = arith.constant 0 : i32
    %c0_i32_1 = arith.constant 0 : i32
    return %c0_i32, %c0_i32_0 : i32, i32
  }
  func.func @transform_3(%arg0: i32) -> (i32, i32) {
    %c0_i32 = arith.constant 0 : i32
    %c0_i32_0 = arith.constant 0 : i32
    %c0_i32_1 = arith.constant 0 : i32
    return %c0_i32, %c0_i32_0 : i32, i32
  }
  func.func @transform_4(%arg0: i32) -> (i32, i32) {
    %c0_i32 = arith.constant 0 : i32
    %c0_i32_0 = arith.constant 0 : i32
    %c0_i32_1 = arith.constant 0 : i32
    return %c0_i32, %c0_i32_0 : i32, i32
  }
  func.func @transform_5(%arg0: i32) -> (i32, i32) {
    %c0_i32 = arith.constant 0 : i32
    %c0_i32_0 = arith.constant 0 : i32
    return %arg0, %c0_i32 : i32, i32
  }
}

module attributes {stable_mosaic.version = 11 : i64} {
  func.func @_dwconv3x3_kernel(%arg0: i32, %arg1: memref<1x3x18x16x256xbf16, #tpu.memory_space<vmem>>, %arg2: memref<9x256xf32, #tpu.memory_space<vmem>>, %arg3: memref<1x256xf32, #tpu.memory_space<vmem>>, %arg4: memref<1x16x16x256xf32, #tpu.memory_space<vmem>>) attributes {dimension_semantics = [#tpu.dimension_semantics<parallel>], iteration_bounds = array<i64: 2>, scalar_prefetch = 0 : i64, scratch_operands = 0 : i64, tpu.core_type = #tpu.core_type<tc>, window_params = [{transform_indices = @transform_0, window_bounds = array<i64: 1, 3, 18, 16, 256>}, {pipeline_mode = #tpu.pipeline_mode<synchronous>, transform_indices = @transform_1, window_bounds = array<i64: 9, 256>}, {pipeline_mode = #tpu.pipeline_mode<synchronous>, transform_indices = @transform_2, window_bounds = array<i64: 1, 256>}, {transform_indices = @transform_3, window_bounds = array<i64: 1, 16, 16, 256>}]} {
    %c0 = arith.constant 0 : index
    %c0_0 = arith.constant 0 : index
    %0 = vector.load %arg2[%c0, %c0_0] : memref<9x256xf32, #tpu.memory_space<vmem>>, vector<9x256xf32>
    %1 = vector.extract_strided_slice %0 {offsets = [0, 0], sizes = [1, 256], strides = [1, 1]} : vector<9x256xf32> to vector<1x256xf32>
    %2 = vector.shape_cast %1 : vector<1x256xf32> to vector<1x1x256xf32>
    %3 = vector.extract_strided_slice %0 {offsets = [1, 0], sizes = [1, 256], strides = [1, 1]} : vector<9x256xf32> to vector<1x256xf32>
    %4 = vector.shape_cast %3 : vector<1x256xf32> to vector<1x1x256xf32>
    %5 = vector.extract_strided_slice %0 {offsets = [2, 0], sizes = [1, 256], strides = [1, 1]} : vector<9x256xf32> to vector<1x256xf32>
    %6 = vector.shape_cast %5 : vector<1x256xf32> to vector<1x1x256xf32>
    %7 = vector.extract_strided_slice %0 {offsets = [3, 0], sizes = [1, 256], strides = [1, 1]} : vector<9x256xf32> to vector<1x256xf32>
    %8 = vector.shape_cast %7 : vector<1x256xf32> to vector<1x1x256xf32>
    %9 = vector.extract_strided_slice %0 {offsets = [4, 0], sizes = [1, 256], strides = [1, 1]} : vector<9x256xf32> to vector<1x256xf32>
    %10 = vector.shape_cast %9 : vector<1x256xf32> to vector<1x1x256xf32>
    %11 = vector.extract_strided_slice %0 {offsets = [5, 0], sizes = [1, 256], strides = [1, 1]} : vector<9x256xf32> to vector<1x256xf32>
    %12 = vector.shape_cast %11 : vector<1x256xf32> to vector<1x1x256xf32>
    %13 = vector.extract_strided_slice %0 {offsets = [6, 0], sizes = [1, 256], strides = [1, 1]} : vector<9x256xf32> to vector<1x256xf32>
    %14 = vector.shape_cast %13 : vector<1x256xf32> to vector<1x1x256xf32>
    %15 = vector.extract_strided_slice %0 {offsets = [7, 0], sizes = [1, 256], strides = [1, 1]} : vector<9x256xf32> to vector<1x256xf32>
    %16 = vector.shape_cast %15 : vector<1x256xf32> to vector<1x1x256xf32>
    %17 = vector.extract_strided_slice %0 {offsets = [8, 0], sizes = [1, 256], strides = [1, 1]} : vector<9x256xf32> to vector<1x256xf32>
    %18 = vector.shape_cast %17 : vector<1x256xf32> to vector<1x1x256xf32>
    %c0_1 = arith.constant 0 : index
    %c0_2 = arith.constant 0 : index
    %19 = vector.load %arg3[%c0_1, %c0_2] : memref<1x256xf32, #tpu.memory_space<vmem>>, vector<1x256xf32>
    %20 = vector.shape_cast %19 : vector<1x256xf32> to vector<1x1x256xf32>
    %cst = arith.constant 0.000000e+00 : f32
    %21 = vector.broadcast %cst : f32 to vector<4x16x256xf32>
    %c0_3 = arith.constant 0 : index
    %c0_4 = arith.constant 0 : index
    %c0_5 = arith.constant 0 : index
    %c0_6 = arith.constant 0 : index
    %c0_7 = arith.constant 0 : index
    %22 = vector.load %arg1[%c0_3, %c0_4, %c0_5, %c0_6, %c0_7] : memref<1x3x18x16x256xbf16, #tpu.memory_space<vmem>>, vector<1x1x4x16x256xbf16>
    %23 = vector.shape_cast %22 : vector<1x1x4x16x256xbf16> to vector<4x16x256xbf16>
    %24 = arith.extf %23 : vector<4x16x256xbf16> to vector<4x16x256xf32>
    %25 = vector.broadcast %2 : vector<1x1x256xf32> to vector<4x16x256xf32>
    %26 = arith.mulf %24, %25 : vector<4x16x256xf32>
    %27 = arith.addf %21, %26 : vector<4x16x256xf32>
    %c0_8 = arith.constant 0 : index
    %c0_9 = arith.constant 0 : index
    %c1 = arith.constant 1 : index
    %c0_10 = arith.constant 0 : index
    %c0_11 = arith.constant 0 : index
    %28 = vector.load %arg1[%c0_8, %c0_9, %c1, %c0_10, %c0_11] : memref<1x3x18x16x256xbf16, #tpu.memory_space<vmem>>, vector<1x1x4x16x256xbf16>
    %29 = vector.shape_cast %28 : vector<1x1x4x16x256xbf16> to vector<4x16x256xbf16>
    %30 = arith.extf %29 : vector<4x16x256xbf16> to vector<4x16x256xf32>
    %31 = vector.broadcast %8 : vector<1x1x256xf32> to vector<4x16x256xf32>
    %32 = arith.mulf %30, %31 : vector<4x16x256xf32>
    %33 = arith.addf %27, %32 : vector<4x16x256xf32>
    %c0_12 = arith.constant 0 : index
    %c0_13 = arith.constant 0 : index
    %c2 = arith.constant 2 : index
    %c0_14 = arith.constant 0 : index
    %c0_15 = arith.constant 0 : index
    %34 = vector.load %arg1[%c0_12, %c0_13, %c2, %c0_14, %c0_15] : memref<1x3x18x16x256xbf16, #tpu.memory_space<vmem>>, vector<1x1x4x16x256xbf16>
    %35 = vector.shape_cast %34 : vector<1x1x4x16x256xbf16> to vector<4x16x256xbf16>
    %36 = arith.extf %35 : vector<4x16x256xbf16> to vector<4x16x256xf32>
    %37 = vector.broadcast %14 : vector<1x1x256xf32> to vector<4x16x256xf32>
    %38 = arith.mulf %36, %37 : vector<4x16x256xf32>
    %39 = arith.addf %33, %38 : vector<4x16x256xf32>
    %c0_16 = arith.constant 0 : index
    %c1_17 = arith.constant 1 : index
    %c0_18 = arith.constant 0 : index
    %c0_19 = arith.constant 0 : index
    %c0_20 = arith.constant 0 : index
    %40 = vector.load %arg1[%c0_16, %c1_17, %c0_18, %c0_19, %c0_20] : memref<1x3x18x16x256xbf16, #tpu.memory_space<vmem>>, vector<1x1x4x16x256xbf16>
    %41 = vector.shape_cast %40 : vector<1x1x4x16x256xbf16> to vector<4x16x256xbf16>
    %42 = arith.extf %41 : vector<4x16x256xbf16> to vector<4x16x256xf32>
    %43 = vector.broadcast %4 : vector<1x1x256xf32> to vector<4x16x256xf32>
    %44 = arith.mulf %42, %43 : vector<4x16x256xf32>
    %45 = arith.addf %39, %44 : vector<4x16x256xf32>
    %c0_21 = arith.constant 0 : index
    %c1_22 = arith.constant 1 : index
    %c1_23 = arith.constant 1 : index
    %c0_24 = arith.constant 0 : index
    %c0_25 = arith.constant 0 : index
    %46 = vector.load %arg1[%c0_21, %c1_22, %c1_23, %c0_24, %c0_25] : memref<1x3x18x16x256xbf16, #tpu.memory_space<vmem>>, vector<1x1x4x16x256xbf16>
    %47 = vector.shape_cast %46 : vector<1x1x4x16x256xbf16> to vector<4x16x256xbf16>
    %48 = arith.extf %47 : vector<4x16x256xbf16> to vector<4x16x256xf32>
    %49 = vector.broadcast %10 : vector<1x1x256xf32> to vector<4x16x256xf32>
    %50 = arith.mulf %48, %49 : vector<4x16x256xf32>
    %51 = arith.addf %45, %50 : vector<4x16x256xf32>
    %c0_26 = arith.constant 0 : index
    %c1_27 = arith.constant 1 : index
    %c2_28 = arith.constant 2 : index
    %c0_29 = arith.constant 0 : index
    %c0_30 = arith.constant 0 : index
    %52 = vector.load %arg1[%c0_26, %c1_27, %c2_28, %c0_29, %c0_30] : memref<1x3x18x16x256xbf16, #tpu.memory_space<vmem>>, vector<1x1x4x16x256xbf16>
    %53 = vector.shape_cast %52 : vector<1x1x4x16x256xbf16> to vector<4x16x256xbf16>
    %54 = arith.extf %53 : vector<4x16x256xbf16> to vector<4x16x256xf32>
    %55 = vector.broadcast %16 : vector<1x1x256xf32> to vector<4x16x256xf32>
    %56 = arith.mulf %54, %55 : vector<4x16x256xf32>
    %57 = arith.addf %51, %56 : vector<4x16x256xf32>
    %c0_31 = arith.constant 0 : index
    %c2_32 = arith.constant 2 : index
    %c0_33 = arith.constant 0 : index
    %c0_34 = arith.constant 0 : index
    %c0_35 = arith.constant 0 : index
    %58 = vector.load %arg1[%c0_31, %c2_32, %c0_33, %c0_34, %c0_35] : memref<1x3x18x16x256xbf16, #tpu.memory_space<vmem>>, vector<1x1x4x16x256xbf16>
    %59 = vector.shape_cast %58 : vector<1x1x4x16x256xbf16> to vector<4x16x256xbf16>
    %60 = arith.extf %59 : vector<4x16x256xbf16> to vector<4x16x256xf32>
    %61 = vector.broadcast %6 : vector<1x1x256xf32> to vector<4x16x256xf32>
    %62 = arith.mulf %60, %61 : vector<4x16x256xf32>
    %63 = arith.addf %57, %62 : vector<4x16x256xf32>
    %c0_36 = arith.constant 0 : index
    %c2_37 = arith.constant 2 : index
    %c1_38 = arith.constant 1 : index
    %c0_39 = arith.constant 0 : index
    %c0_40 = arith.constant 0 : index
    %64 = vector.load %arg1[%c0_36, %c2_37, %c1_38, %c0_39, %c0_40] : memref<1x3x18x16x256xbf16, #tpu.memory_space<vmem>>, vector<1x1x4x16x256xbf16>
    %65 = vector.shape_cast %64 : vector<1x1x4x16x256xbf16> to vector<4x16x256xbf16>
    %66 = arith.extf %65 : vector<4x16x256xbf16> to vector<4x16x256xf32>
    %67 = vector.broadcast %12 : vector<1x1x256xf32> to vector<4x16x256xf32>
    %68 = arith.mulf %66, %67 : vector<4x16x256xf32>
    %69 = arith.addf %63, %68 : vector<4x16x256xf32>
    %c0_41 = arith.constant 0 : index
    %c2_42 = arith.constant 2 : index
    %c2_43 = arith.constant 2 : index
    %c0_44 = arith.constant 0 : index
    %c0_45 = arith.constant 0 : index
    %70 = vector.load %arg1[%c0_41, %c2_42, %c2_43, %c0_44, %c0_45] : memref<1x3x18x16x256xbf16, #tpu.memory_space<vmem>>, vector<1x1x4x16x256xbf16>
    %71 = vector.shape_cast %70 : vector<1x1x4x16x256xbf16> to vector<4x16x256xbf16>
    %72 = arith.extf %71 : vector<4x16x256xbf16> to vector<4x16x256xf32>
    %73 = vector.broadcast %18 : vector<1x1x256xf32> to vector<4x16x256xf32>
    %74 = arith.mulf %72, %73 : vector<4x16x256xf32>
    %75 = arith.addf %69, %74 : vector<4x16x256xf32>
    %76 = vector.broadcast %20 : vector<1x1x256xf32> to vector<4x16x256xf32>
    %77 = arith.addf %75, %76 : vector<4x16x256xf32>
    %c0_46 = arith.constant 0 : index
    %c0_47 = arith.constant 0 : index
    %c0_48 = arith.constant 0 : index
    %c0_49 = arith.constant 0 : index
    %78 = vector.load %arg4[%c0_46, %c0_47, %c0_48, %c0_49] : memref<1x16x16x256xf32, #tpu.memory_space<vmem>>, vector<1x4x16x256xf32>
    %79 = vector.shape_cast %78 : vector<1x4x16x256xf32> to vector<4x16x256xf32>
    %80 = vector.shape_cast %77 : vector<4x16x256xf32> to vector<1x4x16x256xf32>
    tpu.vector_store %arg4[%c0_46, %c0_47, %c0_48, %c0_49], %80 {strides = array<i32>} : memref<1x16x16x256xf32, #tpu.memory_space<vmem>>, vector<1x4x16x256xf32>,
    %cst_50 = arith.constant 0.000000e+00 : f32
    %81 = vector.broadcast %cst_50 : f32 to vector<4x16x256xf32>
    %c0_51 = arith.constant 0 : index
    %c0_52 = arith.constant 0 : index
    %c4 = arith.constant 4 : index
    %c0_53 = arith.constant 0 : index
    %c0_54 = arith.constant 0 : index
    %82 = vector.load %arg1[%c0_51, %c0_52, %c4, %c0_53, %c0_54] : memref<1x3x18x16x256xbf16, #tpu.memory_space<vmem>>, vector<1x1x4x16x256xbf16>
    %83 = vector.shape_cast %82 : vector<1x1x4x16x256xbf16> to vector<4x16x256xbf16>
    %84 = arith.extf %83 : vector<4x16x256xbf16> to vector<4x16x256xf32>
    %85 = vector.broadcast %2 : vector<1x1x256xf32> to vector<4x16x256xf32>
    %86 = arith.mulf %84, %85 : vector<4x16x256xf32>
    %87 = arith.addf %81, %86 : vector<4x16x256xf32>
    %c0_55 = arith.constant 0 : index
    %c0_56 = arith.constant 0 : index
    %c5 = arith.constant 5 : index
    %c0_57 = arith.constant 0 : index
    %c0_58 = arith.constant 0 : index
    %88 = vector.load %arg1[%c0_55, %c0_56, %c5, %c0_57, %c0_58] : memref<1x3x18x16x256xbf16, #tpu.memory_space<vmem>>, vector<1x1x4x16x256xbf16>
    %89 = vector.shape_cast %88 : vector<1x1x4x16x256xbf16> to vector<4x16x256xbf16>
    %90 = arith.extf %89 : vector<4x16x256xbf16> to vector<4x16x256xf32>
    %91 = vector.broadcast %8 : vector<1x1x256xf32> to vector<4x16x256xf32>
    %92 = arith.mulf %90, %91 : vector<4x16x256xf32>
    %93 = arith.addf %87, %92 : vector<4x16x256xf32>
    %c0_59 = arith.constant 0 : index
    %c0_60 = arith.constant 0 : index
    %c6 = arith.constant 6 : index
    %c0_61 = arith.constant 0 : index
    %c0_62 = arith.constant 0 : index
    %94 = vector.load %arg1[%c0_59, %c0_60, %c6, %c0_61, %c0_62] : memref<1x3x18x16x256xbf16, #tpu.memory_space<vmem>>, vector<1x1x4x16x256xbf16>
    %95 = vector.shape_cast %94 : vector<1x1x4x16x256xbf16> to vector<4x16x256xbf16>
    %96 = arith.extf %95 : vector<4x16x256xbf16> to vector<4x16x256xf32>
    %97 = vector.broadcast %14 : vector<1x1x256xf32> to vector<4x16x256xf32>
    %98 = arith.mulf %96, %97 : vector<4x16x256xf32>
    %99 = arith.addf %93, %98 : vector<4x16x256xf32>
    %c0_63 = arith.constant 0 : index
    %c1_64 = arith.constant 1 : index
    %c4_65 = arith.constant 4 : index
    %c0_66 = arith.constant 0 : index
    %c0_67 = arith.constant 0 : index
    %100 = vector.load %arg1[%c0_63, %c1_64, %c4_65, %c0_66, %c0_67] : memref<1x3x18x16x256xbf16, #tpu.memory_space<vmem>>, vector<1x1x4x16x256xbf16>
    %101 = vector.shape_cast %100 : vector<1x1x4x16x256xbf16> to vector<4x16x256xbf16>
    %102 = arith.extf %101 : vector<4x16x256xbf16> to vector<4x16x256xf32>
    %103 = vector.broadcast %4 : vector<1x1x256xf32> to vector<4x16x256xf32>
    %104 = arith.mulf %102, %103 : vector<4x16x256xf32>
    %105 = arith.addf %99, %104 : vector<4x16x256xf32>
    %c0_68 = arith.constant 0 : index
    %c1_69 = arith.constant 1 : index
    %c5_70 = arith.constant 5 : index
    %c0_71 = arith.constant 0 : index
    %c0_72 = arith.constant 0 : index
    %106 = vector.load %arg1[%c0_68, %c1_69, %c5_70, %c0_71, %c0_72] : memref<1x3x18x16x256xbf16, #tpu.memory_space<vmem>>, vector<1x1x4x16x256xbf16>
    %107 = vector.shape_cast %106 : vector<1x1x4x16x256xbf16> to vector<4x16x256xbf16>
    %108 = arith.extf %107 : vector<4x16x256xbf16> to vector<4x16x256xf32>
    %109 = vector.broadcast %10 : vector<1x1x256xf32> to vector<4x16x256xf32>
    %110 = arith.mulf %108, %109 : vector<4x16x256xf32>
    %111 = arith.addf %105, %110 : vector<4x16x256xf32>
    %c0_73 = arith.constant 0 : index
    %c1_74 = arith.constant 1 : index
    %c6_75 = arith.constant 6 : index
    %c0_76 = arith.constant 0 : index
    %c0_77 = arith.constant 0 : index
    %112 = vector.load %arg1[%c0_73, %c1_74, %c6_75, %c0_76, %c0_77] : memref<1x3x18x16x256xbf16, #tpu.memory_space<vmem>>, vector<1x1x4x16x256xbf16>
    %113 = vector.shape_cast %112 : vector<1x1x4x16x256xbf16> to vector<4x16x256xbf16>
    %114 = arith.extf %113 : vector<4x16x256xbf16> to vector<4x16x256xf32>
    %115 = vector.broadcast %16 : vector<1x1x256xf32> to vector<4x16x256xf32>
    %116 = arith.mulf %114, %115 : vector<4x16x256xf32>
    %117 = arith.addf %111, %116 : vector<4x16x256xf32>
    %c0_78 = arith.constant 0 : index
    %c2_79 = arith.constant 2 : index
    %c4_80 = arith.constant 4 : index
    %c0_81 = arith.constant 0 : index
    %c0_82 = arith.constant 0 : index
    %118 = vector.load %arg1[%c0_78, %c2_79, %c4_80, %c0_81, %c0_82] : memref<1x3x18x16x256xbf16, #tpu.memory_space<vmem>>, vector<1x1x4x16x256xbf16>
    %119 = vector.shape_cast %118 : vector<1x1x4x16x256xbf16> to vector<4x16x256xbf16>
    %120 = arith.extf %119 : vector<4x16x256xbf16> to vector<4x16x256xf32>
    %121 = vector.broadcast %6 : vector<1x1x256xf32> to vector<4x16x256xf32>
    %122 = arith.mulf %120, %121 : vector<4x16x256xf32>
    %123 = arith.addf %117, %122 : vector<4x16x256xf32>
    %c0_83 = arith.constant 0 : index
    %c2_84 = arith.constant 2 : index
    %c5_85 = arith.constant 5 : index
    %c0_86 = arith.constant 0 : index
    %c0_87 = arith.constant 0 : index
    %124 = vector.load %arg1[%c0_83, %c2_84, %c5_85, %c0_86, %c0_87] : memref<1x3x18x16x256xbf16, #tpu.memory_space<vmem>>, vector<1x1x4x16x256xbf16>
    %125 = vector.shape_cast %124 : vector<1x1x4x16x256xbf16> to vector<4x16x256xbf16>
    %126 = arith.extf %125 : vector<4x16x256xbf16> to vector<4x16x256xf32>
    %127 = vector.broadcast %12 : vector<1x1x256xf32> to vector<4x16x256xf32>
    %128 = arith.mulf %126, %127 : vector<4x16x256xf32>
    %129 = arith.addf %123, %128 : vector<4x16x256xf32>
    %c0_88 = arith.constant 0 : index
    %c2_89 = arith.constant 2 : index
    %c6_90 = arith.constant 6 : index
    %c0_91 = arith.constant 0 : index
    %c0_92 = arith.constant 0 : index
    %130 = vector.load %arg1[%c0_88, %c2_89, %c6_90, %c0_91, %c0_92] : memref<1x3x18x16x256xbf16, #tpu.memory_space<vmem>>, vector<1x1x4x16x256xbf16>
    %131 = vector.shape_cast %130 : vector<1x1x4x16x256xbf16> to vector<4x16x256xbf16>
    %132 = arith.extf %131 : vector<4x16x256xbf16> to vector<4x16x256xf32>
    %133 = vector.broadcast %18 : vector<1x1x256xf32> to vector<4x16x256xf32>
    %134 = arith.mulf %132, %133 : vector<4x16x256xf32>
    %135 = arith.addf %129, %134 : vector<4x16x256xf32>
    %136 = vector.broadcast %20 : vector<1x1x256xf32> to vector<4x16x256xf32>
    %137 = arith.addf %135, %136 : vector<4x16x256xf32>
    %c0_93 = arith.constant 0 : index
    %c4_94 = arith.constant 4 : index
    %c0_95 = arith.constant 0 : index
    %c0_96 = arith.constant 0 : index
    %138 = vector.load %arg4[%c0_93, %c4_94, %c0_95, %c0_96] : memref<1x16x16x256xf32, #tpu.memory_space<vmem>>, vector<1x4x16x256xf32>
    %139 = vector.shape_cast %138 : vector<1x4x16x256xf32> to vector<4x16x256xf32>
    %140 = vector.shape_cast %137 : vector<4x16x256xf32> to vector<1x4x16x256xf32>
    tpu.vector_store %arg4[%c0_93, %c4_94, %c0_95, %c0_96], %140 {strides = array<i32>} : memref<1x16x16x256xf32, #tpu.memory_space<vmem>>, vector<1x4x16x256xf32>,
    %cst_97 = arith.constant 0.000000e+00 : f32
    %141 = vector.broadcast %cst_97 : f32 to vector<4x16x256xf32>
    %c0_98 = arith.constant 0 : index
    %c0_99 = arith.constant 0 : index
    %c8 = arith.constant 8 : index
    %c0_100 = arith.constant 0 : index
    %c0_101 = arith.constant 0 : index
    %142 = vector.load %arg1[%c0_98, %c0_99, %c8, %c0_100, %c0_101] : memref<1x3x18x16x256xbf16, #tpu.memory_space<vmem>>, vector<1x1x4x16x256xbf16>
    %143 = vector.shape_cast %142 : vector<1x1x4x16x256xbf16> to vector<4x16x256xbf16>
    %144 = arith.extf %143 : vector<4x16x256xbf16> to vector<4x16x256xf32>
    %145 = vector.broadcast %2 : vector<1x1x256xf32> to vector<4x16x256xf32>
    %146 = arith.mulf %144, %145 : vector<4x16x256xf32>
    %147 = arith.addf %141, %146 : vector<4x16x256xf32>
    %c0_102 = arith.constant 0 : index
    %c0_103 = arith.constant 0 : index
    %c9 = arith.constant 9 : index
    %c0_104 = arith.constant 0 : index
    %c0_105 = arith.constant 0 : index
    %148 = vector.load %arg1[%c0_102, %c0_103, %c9, %c0_104, %c0_105] : memref<1x3x18x16x256xbf16, #tpu.memory_space<vmem>>, vector<1x1x4x16x256xbf16>
    %149 = vector.shape_cast %148 : vector<1x1x4x16x256xbf16> to vector<4x16x256xbf16>
    %150 = arith.extf %149 : vector<4x16x256xbf16> to vector<4x16x256xf32>
    %151 = vector.broadcast %8 : vector<1x1x256xf32> to vector<4x16x256xf32>
    %152 = arith.mulf %150, %151 : vector<4x16x256xf32>
    %153 = arith.addf %147, %152 : vector<4x16x256xf32>
    %c0_106 = arith.constant 0 : index
    %c0_107 = arith.constant 0 : index
    %c10 = arith.constant 10 : index
    %c0_108 = arith.constant 0 : index
    %c0_109 = arith.constant 0 : index
    %154 = vector.load %arg1[%c0_106, %c0_107, %c10, %c0_108, %c0_109] : memref<1x3x18x16x256xbf16, #tpu.memory_space<vmem>>, vector<1x1x4x16x256xbf16>
    %155 = vector.shape_cast %154 : vector<1x1x4x16x256xbf16> to vector<4x16x256xbf16>
    %156 = arith.extf %155 : vector<4x16x256xbf16> to vector<4x16x256xf32>
    %157 = vector.broadcast %14 : vector<1x1x256xf32> to vector<4x16x256xf32>
    %158 = arith.mulf %156, %157 : vector<4x16x256xf32>
    %159 = arith.addf %153, %158 : vector<4x16x256xf32>
    %c0_110 = arith.constant 0 : index
    %c1_111 = arith.constant 1 : index
    %c8_112 = arith.constant 8 : index
    %c0_113 = arith.constant 0 : index
    %c0_114 = arith.constant 0 : index
    %160 = vector.load %arg1[%c0_110, %c1_111, %c8_112, %c0_113, %c0_114] : memref<1x3x18x16x256xbf16, #tpu.memory_space<vmem>>, vector<1x1x4x16x256xbf16>
    %161 = vector.shape_cast %160 : vector<1x1x4x16x256xbf16> to vector<4x16x256xbf16>
    %162 = arith.extf %161 : vector<4x16x256xbf16> to vector<4x16x256xf32>
    %163 = vector.broadcast %4 : vector<1x1x256xf32> to vector<4x16x256xf32>
    %164 = arith.mulf %162, %163 : vector<4x16x256xf32>
    %165 = arith.addf %159, %164 : vector<4x16x256xf32>
    %c0_115 = arith.constant 0 : index
    %c1_116 = arith.constant 1 : index
    %c9_117 = arith.constant 9 : index
    %c0_118 = arith.constant 0 : index
    %c0_119 = arith.constant 0 : index
    %166 = vector.load %arg1[%c0_115, %c1_116, %c9_117, %c0_118, %c0_119] : memref<1x3x18x16x256xbf16, #tpu.memory_space<vmem>>, vector<1x1x4x16x256xbf16>
    %167 = vector.shape_cast %166 : vector<1x1x4x16x256xbf16> to vector<4x16x256xbf16>
    %168 = arith.extf %167 : vector<4x16x256xbf16> to vector<4x16x256xf32>
    %169 = vector.broadcast %10 : vector<1x1x256xf32> to vector<4x16x256xf32>
    %170 = arith.mulf %168, %169 : vector<4x16x256xf32>
    %171 = arith.addf %165, %170 : vector<4x16x256xf32>
    %c0_120 = arith.constant 0 : index
    %c1_121 = arith.constant 1 : index
    %c10_122 = arith.constant 10 : index
    %c0_123 = arith.constant 0 : index
    %c0_124 = arith.constant 0 : index
    %172 = vector.load %arg1[%c0_120, %c1_121, %c10_122, %c0_123, %c0_124] : memref<1x3x18x16x256xbf16, #tpu.memory_space<vmem>>, vector<1x1x4x16x256xbf16>
    %173 = vector.shape_cast %172 : vector<1x1x4x16x256xbf16> to vector<4x16x256xbf16>
    %174 = arith.extf %173 : vector<4x16x256xbf16> to vector<4x16x256xf32>
    %175 = vector.broadcast %16 : vector<1x1x256xf32> to vector<4x16x256xf32>
    %176 = arith.mulf %174, %175 : vector<4x16x256xf32>
    %177 = arith.addf %171, %176 : vector<4x16x256xf32>
    %c0_125 = arith.constant 0 : index
    %c2_126 = arith.constant 2 : index
    %c8_127 = arith.constant 8 : index
    %c0_128 = arith.constant 0 : index
    %c0_129 = arith.constant 0 : index
    %178 = vector.load %arg1[%c0_125, %c2_126, %c8_127, %c0_128, %c0_129] : memref<1x3x18x16x256xbf16, #tpu.memory_space<vmem>>, vector<1x1x4x16x256xbf16>
    %179 = vector.shape_cast %178 : vector<1x1x4x16x256xbf16> to vector<4x16x256xbf16>
    %180 = arith.extf %179 : vector<4x16x256xbf16> to vector<4x16x256xf32>
    %181 = vector.broadcast %6 : vector<1x1x256xf32> to vector<4x16x256xf32>
    %182 = arith.mulf %180, %181 : vector<4x16x256xf32>
    %183 = arith.addf %177, %182 : vector<4x16x256xf32>
    %c0_130 = arith.constant 0 : index
    %c2_131 = arith.constant 2 : index
    %c9_132 = arith.constant 9 : index
    %c0_133 = arith.constant 0 : index
    %c0_134 = arith.constant 0 : index
    %184 = vector.load %arg1[%c0_130, %c2_131, %c9_132, %c0_133, %c0_134] : memref<1x3x18x16x256xbf16, #tpu.memory_space<vmem>>, vector<1x1x4x16x256xbf16>
    %185 = vector.shape_cast %184 : vector<1x1x4x16x256xbf16> to vector<4x16x256xbf16>
    %186 = arith.extf %185 : vector<4x16x256xbf16> to vector<4x16x256xf32>
    %187 = vector.broadcast %12 : vector<1x1x256xf32> to vector<4x16x256xf32>
    %188 = arith.mulf %186, %187 : vector<4x16x256xf32>
    %189 = arith.addf %183, %188 : vector<4x16x256xf32>
    %c0_135 = arith.constant 0 : index
    %c2_136 = arith.constant 2 : index
    %c10_137 = arith.constant 10 : index
    %c0_138 = arith.constant 0 : index
    %c0_139 = arith.constant 0 : index
    %190 = vector.load %arg1[%c0_135, %c2_136, %c10_137, %c0_138, %c0_139] : memref<1x3x18x16x256xbf16, #tpu.memory_space<vmem>>, vector<1x1x4x16x256xbf16>
    %191 = vector.shape_cast %190 : vector<1x1x4x16x256xbf16> to vector<4x16x256xbf16>
    %192 = arith.extf %191 : vector<4x16x256xbf16> to vector<4x16x256xf32>
    %193 = vector.broadcast %18 : vector<1x1x256xf32> to vector<4x16x256xf32>
    %194 = arith.mulf %192, %193 : vector<4x16x256xf32>
    %195 = arith.addf %189, %194 : vector<4x16x256xf32>
    %196 = vector.broadcast %20 : vector<1x1x256xf32> to vector<4x16x256xf32>
    %197 = arith.addf %195, %196 : vector<4x16x256xf32>
    %c0_140 = arith.constant 0 : index
    %c8_141 = arith.constant 8 : index
    %c0_142 = arith.constant 0 : index
    %c0_143 = arith.constant 0 : index
    %198 = vector.load %arg4[%c0_140, %c8_141, %c0_142, %c0_143] : memref<1x16x16x256xf32, #tpu.memory_space<vmem>>, vector<1x4x16x256xf32>
    %199 = vector.shape_cast %198 : vector<1x4x16x256xf32> to vector<4x16x256xf32>
    %200 = vector.shape_cast %197 : vector<4x16x256xf32> to vector<1x4x16x256xf32>
    tpu.vector_store %arg4[%c0_140, %c8_141, %c0_142, %c0_143], %200 {strides = array<i32>} : memref<1x16x16x256xf32, #tpu.memory_space<vmem>>, vector<1x4x16x256xf32>,
    %cst_144 = arith.constant 0.000000e+00 : f32
    %201 = vector.broadcast %cst_144 : f32 to vector<4x16x256xf32>
    %c0_145 = arith.constant 0 : index
    %c0_146 = arith.constant 0 : index
    %c12 = arith.constant 12 : index
    %c0_147 = arith.constant 0 : index
    %c0_148 = arith.constant 0 : index
    %202 = vector.load %arg1[%c0_145, %c0_146, %c12, %c0_147, %c0_148] : memref<1x3x18x16x256xbf16, #tpu.memory_space<vmem>>, vector<1x1x4x16x256xbf16>
    %203 = vector.shape_cast %202 : vector<1x1x4x16x256xbf16> to vector<4x16x256xbf16>
    %204 = arith.extf %203 : vector<4x16x256xbf16> to vector<4x16x256xf32>
    %205 = vector.broadcast %2 : vector<1x1x256xf32> to vector<4x16x256xf32>
    %206 = arith.mulf %204, %205 : vector<4x16x256xf32>
    %207 = arith.addf %201, %206 : vector<4x16x256xf32>
    %c0_149 = arith.constant 0 : index
    %c0_150 = arith.constant 0 : index
    %c13 = arith.constant 13 : index
    %c0_151 = arith.constant 0 : index
    %c0_152 = arith.constant 0 : index
    %208 = vector.load %arg1[%c0_149, %c0_150, %c13, %c0_151, %c0_152] : memref<1x3x18x16x256xbf16, #tpu.memory_space<vmem>>, vector<1x1x4x16x256xbf16>
    %209 = vector.shape_cast %208 : vector<1x1x4x16x256xbf16> to vector<4x16x256xbf16>
    %210 = arith.extf %209 : vector<4x16x256xbf16> to vector<4x16x256xf32>
    %211 = vector.broadcast %8 : vector<1x1x256xf32> to vector<4x16x256xf32>
    %212 = arith.mulf %210, %211 : vector<4x16x256xf32>
    %213 = arith.addf %207, %212 : vector<4x16x256xf32>
    %c0_153 = arith.constant 0 : index
    %c0_154 = arith.constant 0 : index
    %c14 = arith.constant 14 : index
    %c0_155 = arith.constant 0 : index
    %c0_156 = arith.constant 0 : index
    %214 = vector.load %arg1[%c0_153, %c0_154, %c14, %c0_155, %c0_156] : memref<1x3x18x16x256xbf16, #tpu.memory_space<vmem>>, vector<1x1x4x16x256xbf16>
    %215 = vector.shape_cast %214 : vector<1x1x4x16x256xbf16> to vector<4x16x256xbf16>
    %216 = arith.extf %215 : vector<4x16x256xbf16> to vector<4x16x256xf32>
    %217 = vector.broadcast %14 : vector<1x1x256xf32> to vector<4x16x256xf32>
    %218 = arith.mulf %216, %217 : vector<4x16x256xf32>
    %219 = arith.addf %213, %218 : vector<4x16x256xf32>
    %c0_157 = arith.constant 0 : index
    %c1_158 = arith.constant 1 : index
    %c12_159 = arith.constant 12 : index
    %c0_160 = arith.constant 0 : index
    %c0_161 = arith.constant 0 : index
    %220 = vector.load %arg1[%c0_157, %c1_158, %c12_159, %c0_160, %c0_161] : memref<1x3x18x16x256xbf16, #tpu.memory_space<vmem>>, vector<1x1x4x16x256xbf16>
    %221 = vector.shape_cast %220 : vector<1x1x4x16x256xbf16> to vector<4x16x256xbf16>
    %222 = arith.extf %221 : vector<4x16x256xbf16> to vector<4x16x256xf32>
    %223 = vector.broadcast %4 : vector<1x1x256xf32> to vector<4x16x256xf32>
    %224 = arith.mulf %222, %223 : vector<4x16x256xf32>
    %225 = arith.addf %219, %224 : vector<4x16x256xf32>
    %c0_162 = arith.constant 0 : index
    %c1_163 = arith.constant 1 : index
    %c13_164 = arith.constant 13 : index
    %c0_165 = arith.constant 0 : index
    %c0_166 = arith.constant 0 : index
    %226 = vector.load %arg1[%c0_162, %c1_163, %c13_164, %c0_165, %c0_166] : memref<1x3x18x16x256xbf16, #tpu.memory_space<vmem>>, vector<1x1x4x16x256xbf16>
    %227 = vector.shape_cast %226 : vector<1x1x4x16x256xbf16> to vector<4x16x256xbf16>
    %228 = arith.extf %227 : vector<4x16x256xbf16> to vector<4x16x256xf32>
    %229 = vector.broadcast %10 : vector<1x1x256xf32> to vector<4x16x256xf32>
    %230 = arith.mulf %228, %229 : vector<4x16x256xf32>
    %231 = arith.addf %225, %230 : vector<4x16x256xf32>
    %c0_167 = arith.constant 0 : index
    %c1_168 = arith.constant 1 : index
    %c14_169 = arith.constant 14 : index
    %c0_170 = arith.constant 0 : index
    %c0_171 = arith.constant 0 : index
    %232 = vector.load %arg1[%c0_167, %c1_168, %c14_169, %c0_170, %c0_171] : memref<1x3x18x16x256xbf16, #tpu.memory_space<vmem>>, vector<1x1x4x16x256xbf16>
    %233 = vector.shape_cast %232 : vector<1x1x4x16x256xbf16> to vector<4x16x256xbf16>
    %234 = arith.extf %233 : vector<4x16x256xbf16> to vector<4x16x256xf32>
    %235 = vector.broadcast %16 : vector<1x1x256xf32> to vector<4x16x256xf32>
    %236 = arith.mulf %234, %235 : vector<4x16x256xf32>
    %237 = arith.addf %231, %236 : vector<4x16x256xf32>
    %c0_172 = arith.constant 0 : index
    %c2_173 = arith.constant 2 : index
    %c12_174 = arith.constant 12 : index
    %c0_175 = arith.constant 0 : index
    %c0_176 = arith.constant 0 : index
    %238 = vector.load %arg1[%c0_172, %c2_173, %c12_174, %c0_175, %c0_176] : memref<1x3x18x16x256xbf16, #tpu.memory_space<vmem>>, vector<1x1x4x16x256xbf16>
    %239 = vector.shape_cast %238 : vector<1x1x4x16x256xbf16> to vector<4x16x256xbf16>
    %240 = arith.extf %239 : vector<4x16x256xbf16> to vector<4x16x256xf32>
    %241 = vector.broadcast %6 : vector<1x1x256xf32> to vector<4x16x256xf32>
    %242 = arith.mulf %240, %241 : vector<4x16x256xf32>
    %243 = arith.addf %237, %242 : vector<4x16x256xf32>
    %c0_177 = arith.constant 0 : index
    %c2_178 = arith.constant 2 : index
    %c13_179 = arith.constant 13 : index
    %c0_180 = arith.constant 0 : index
    %c0_181 = arith.constant 0 : index
    %244 = vector.load %arg1[%c0_177, %c2_178, %c13_179, %c0_180, %c0_181] : memref<1x3x18x16x256xbf16, #tpu.memory_space<vmem>>, vector<1x1x4x16x256xbf16>
    %245 = vector.shape_cast %244 : vector<1x1x4x16x256xbf16> to vector<4x16x256xbf16>
    %246 = arith.extf %245 : vector<4x16x256xbf16> to vector<4x16x256xf32>
    %247 = vector.broadcast %12 : vector<1x1x256xf32> to vector<4x16x256xf32>
    %248 = arith.mulf %246, %247 : vector<4x16x256xf32>
    %249 = arith.addf %243, %248 : vector<4x16x256xf32>
    %c0_182 = arith.constant 0 : index
    %c2_183 = arith.constant 2 : index
    %c14_184 = arith.constant 14 : index
    %c0_185 = arith.constant 0 : index
    %c0_186 = arith.constant 0 : index
    %250 = vector.load %arg1[%c0_182, %c2_183, %c14_184, %c0_185, %c0_186] : memref<1x3x18x16x256xbf16, #tpu.memory_space<vmem>>, vector<1x1x4x16x256xbf16>
    %251 = vector.shape_cast %250 : vector<1x1x4x16x256xbf16> to vector<4x16x256xbf16>
    %252 = arith.extf %251 : vector<4x16x256xbf16> to vector<4x16x256xf32>
    %253 = vector.broadcast %18 : vector<1x1x256xf32> to vector<4x16x256xf32>
    %254 = arith.mulf %252, %253 : vector<4x16x256xf32>
    %255 = arith.addf %249, %254 : vector<4x16x256xf32>
    %256 = vector.broadcast %20 : vector<1x1x256xf32> to vector<4x16x256xf32>
    %257 = arith.addf %255, %256 : vector<4x16x256xf32>
    %c0_187 = arith.constant 0 : index
    %c12_188 = arith.constant 12 : index
    %c0_189 = arith.constant 0 : index
    %c0_190 = arith.constant 0 : index
    %258 = vector.load %arg4[%c0_187, %c12_188, %c0_189, %c0_190] : memref<1x16x16x256xf32, #tpu.memory_space<vmem>>, vector<1x4x16x256xf32>
    %259 = vector.shape_cast %258 : vector<1x4x16x256xf32> to vector<4x16x256xf32>
    %260 = vector.shape_cast %257 : vector<4x16x256xf32> to vector<1x4x16x256xf32>
    tpu.vector_store %arg4[%c0_187, %c12_188, %c0_189, %c0_190], %260 {strides = array<i32>} : memref<1x16x16x256xf32, #tpu.memory_space<vmem>>, vector<1x4x16x256xf32>,
    return
  }
  func.func @transform_0(%arg0: i32) -> (i32, i32, i32, i32, i32) {
    %c0_i32 = arith.constant 0 : i32
    %c0_i32_0 = arith.constant 0 : i32
    %c0_i32_1 = arith.constant 0 : i32
    %c0_i32_2 = arith.constant 0 : i32
    %c0_i32_3 = arith.constant 0 : i32
    return %arg0, %c0_i32, %c0_i32_0, %c0_i32_1, %c0_i32_2 : i32, i32, i32, i32, i32
  }
  func.func @transform_1(%arg0: i32) -> (i32, i32) {
    %c0_i32 = arith.constant 0 : i32
    %c0_i32_0 = arith.constant 0 : i32
    %c0_i32_1 = arith.constant 0 : i32
    return %c0_i32, %c0_i32_0 : i32, i32
  }
  func.func @transform_2(%arg0: i32) -> (i32, i32) {
    %c0_i32 = arith.constant 0 : i32
    %c0_i32_0 = arith.constant 0 : i32
    %c0_i32_1 = arith.constant 0 : i32
    return %c0_i32, %c0_i32_0 : i32, i32
  }
  func.func @transform_3(%arg0: i32) -> (i32, i32, i32, i32) {
    %c0_i32 = arith.constant 0 : i32
    %c0_i32_0 = arith.constant 0 : i32
    %c0_i32_1 = arith.constant 0 : i32
    %c0_i32_2 = arith.constant 0 : i32
    return %arg0, %c0_i32, %c0_i32_0, %c0_i32_1 : i32, i32, i32, i32
  }
}

module attributes {stable_mosaic.version = 11 : i64} {
  func.func @_mm_res_kernel(%arg0: i32, %arg1: memref<64x256xf32, #tpu.memory_space<vmem>>, %arg2: memref<256x64xbf16, #tpu.memory_space<vmem>>, %arg3: memref<1x64xf32, #tpu.memory_space<vmem>>, %arg4: memref<64x64xf32, #tpu.memory_space<vmem>>, %arg5: memref<64x64xf32, #tpu.memory_space<vmem>>) attributes {dimension_semantics = [#tpu.dimension_semantics<parallel>], iteration_bounds = array<i64: 2>, scalar_prefetch = 0 : i64, scratch_operands = 0 : i64, tpu.core_type = #tpu.core_type<tc>, window_params = [{transform_indices = @transform_0, window_bounds = array<i64: 64, 256>}, {pipeline_mode = #tpu.pipeline_mode<synchronous>, transform_indices = @transform_1, window_bounds = array<i64: 256, 64>}, {pipeline_mode = #tpu.pipeline_mode<synchronous>, transform_indices = @transform_2, window_bounds = array<i64: 1, 64>}, {transform_indices = @transform_3, window_bounds = array<i64: 64, 64>}, {transform_indices = @transform_4, window_bounds = array<i64: 64, 64>}]} {
    %c0 = arith.constant 0 : index
    %c0_0 = arith.constant 0 : index
    %0 = vector.load %arg1[%c0, %c0_0] : memref<64x256xf32, #tpu.memory_space<vmem>>, vector<64x256xf32>
    %1 = arith.truncf %0 : vector<64x256xf32> to vector<64x256xbf16>
    %c0_1 = arith.constant 0 : index
    %c0_2 = arith.constant 0 : index
    %2 = vector.load %arg2[%c0_1, %c0_2] : memref<256x64xbf16, #tpu.memory_space<vmem>>, vector<256x64xbf16>
    %cst = arith.constant dense<0.000000e+00> : vector<64x64xf32>
    %3 = tpu.matmul %1, %2, %cst {dimension_numbers = #tpu.dot_dimension_numbers<[1], [0], [0], [1], [0, 0, 1, 1], [], []>} : vector<64x256xbf16>, vector<256x64xbf16>, vector<64x64xf32> -> vector<64x64xf32>
    %c0_3 = arith.constant 0 : index
    %c0_4 = arith.constant 0 : index
    %4 = vector.load %arg3[%c0_3, %c0_4] : memref<1x64xf32, #tpu.memory_space<vmem>>, vector<1x64xf32>
    %5 = vector.broadcast %4 : vector<1x64xf32> to vector<64x64xf32>
    %6 = arith.addf %3, %5 : vector<64x64xf32>
    %c0_5 = arith.constant 0 : index
    %c0_6 = arith.constant 0 : index
    %7 = vector.load %arg4[%c0_5, %c0_6] : memref<64x64xf32, #tpu.memory_space<vmem>>, vector<64x64xf32>
    %8 = arith.addf %6, %7 : vector<64x64xf32>
    %c0_7 = arith.constant 0 : index
    %c0_8 = arith.constant 0 : index
    %9 = vector.load %arg5[%c0_7, %c0_8] : memref<64x64xf32, #tpu.memory_space<vmem>>, vector<64x64xf32>
    tpu.vector_store %arg5[%c0_7, %c0_8], %8 {strides = array<i32>} : memref<64x64xf32, #tpu.memory_space<vmem>>, vector<64x64xf32>,
    return
  }
  func.func @transform_0(%arg0: i32) -> (i32, i32) {
    %c0_i32 = arith.constant 0 : i32
    %c0_i32_0 = arith.constant 0 : i32
    return %arg0, %c0_i32 : i32, i32
  }
  func.func @transform_1(%arg0: i32) -> (i32, i32) {
    %c0_i32 = arith.constant 0 : i32
    %c0_i32_0 = arith.constant 0 : i32
    %c0_i32_1 = arith.constant 0 : i32
    return %c0_i32, %c0_i32_0 : i32, i32
  }
  func.func @transform_2(%arg0: i32) -> (i32, i32) {
    %c0_i32 = arith.constant 0 : i32
    %c0_i32_0 = arith.constant 0 : i32
    %c0_i32_1 = arith.constant 0 : i32
    return %c0_i32, %c0_i32_0 : i32, i32
  }
  func.func @transform_3(%arg0: i32) -> (i32, i32) {
    %c0_i32 = arith.constant 0 : i32
    %c0_i32_0 = arith.constant 0 : i32
    return %arg0, %c0_i32 : i32, i32
  }
  func.func @transform_4(%arg0: i32) -> (i32, i32) {
    %c0_i32 = arith.constant 0 : i32
    %c0_i32_0 = arith.constant 0 : i32
    return %arg0, %c0_i32 : i32, i32
  }
}

</mosaic_0001>

<llo_original>
// kernel: run.6
$region0: #{run.6}
  #allocation0 [shape = 'u32[]', space=smem, size = 0x4, offset = 0x4, fixed_abs, tag = 'smem constant byte address 0x4 - core index']
  #allocation1 [shape = 'u32[144,128]{1,0:T(1,128)}', space=vmem, size = 0x12000, scoped, tag = 'internal scratch']
  %s0 = inlined_call_operand.vmem [shape: f32[128,64], index: 0, kind: input, shape index: {}]
  %s1 = inlined_call_operand.vmem [shape: f32[1,64], index: 1, kind: input, shape index: {}]
  %s2 = inlined_call_operand.vmem [shape: f32[1,64], index: 2, kind: input, shape index: {}, may-alias: {2,4}]
  %s3 = inlined_call_operand.vmem [shape: bf16[64,64], index: 3, kind: input, shape index: {}]
  %s4 = inlined_call_operand.vmem [shape: f32[1,64], index: 4, kind: input, shape index: {}, may-alias: {2,4}]
  %s5 = inlined_call_operand.vmem [shape: bf16[128,64], index: 5, kind: output, shape index: {0}]
  %s6 = inlined_call_operand.vmem [shape: f32[128,64], index: 6, kind: output, shape index: {1}]
  %7 = xla_tuple %s5, %s6
  %s8 = sld [smem:[#allocation0]]
  $region61: #{run.6} parent=0
    _
  %s10 = ssub.s32 1, %s8
  %s11 = scalar_select 0, %s10, %s8
  loop: start=0, step=1, limit=4
  $region2: #{run.6} parent=0 // loop_pre_header
    _
  $region3: #{run.6} parent=0 // loop_header
    %s13 = sphi 0, %s17
    %p14 = scmp.ge.s32.totalorder %s13, 4
    %s23 = sphi 0, %s25
    %s26 = sphi 0, %s23
    %s27 = sphi 0, %s26
    %s43 = sphi 0, %s27
    %s47 = sphi 0, %s47
    %s49 = sphi 0, %s47
    %s50 = sphi 0, %s49
    %s64 = sphi 0, %s50
    %s68 = sphi 0, %s68
    %s70 = sphi 0, %s68
    %s71 = sphi 0, %s70
    %s85 = sphi 0, %s71
    %s89 = sphi 0, %s89
    %s91 = sphi 0, %s89
    %s92 = sphi 0, %s91
    %s106 = sphi 0, %s92
    %s110 = sphi 0, %s110
    %s112 = sphi 0, %s110
    %s113 = sphi 0, %s112
    %s127 = sphi 0, %s113
    %s133 = sphi 0, %s135
    %s136 = sphi 0, %s133
    %s137 = sphi 0, %s136
    %s153 = sphi 0, %s137
    %s159 = sphi 0, %s161
    %s162 = sphi 0, %s159
    %s163 = sphi 0, %s162
    %s179 = sphi 0, %s163
  $region4: #{run.6} parent=0 // loop_header_branch
    %16 = sbr.rel (%p14) target = $region8
  $region5: #{run.6} parent=0 // loop_body
    %s18 = ssub.s32 %s13, 1
    %s19 = ssub.s32 %s13, 2
    %s20 = sadd.s32 %s13, 1
    %s21 = ssub.s32 %s13, %s20
    %p22 = scmp.eq.s32.totalorder %s21, 0
    %s24 = sadd.s32 %s23, 1
    %s25 = scalar_select %p22, %s23, %s24
    %p28 = pneg %p22
    %p29 = scmp.eq.s32.totalorder %s13, 1
    %p30 = por %p28, %p29
    %p31 = scmp.ne.s32.totalorder %s23, %s26
    %p32 = scmp.eq.s32.totalorder %s13, 0
    %p33 = por %p31, %p32
    %p34 = scmp.ne.s32.totalorder %s23, %s26
    %p35 = scmp.eq.s32.totalorder %s18, 1
    %p36 = por %p34, %p35
    %p37 = scmp.ne.s32.totalorder %s26, %s27
    %p38 = scmp.eq.s32.totalorder %s18, 0
    %p39 = por %p37, %p38
    %p40 = scmp.ne.s32.totalorder %s26, %s27
    %p41 = scmp.eq.s32.totalorder %s19, 1
    %p42 = por %p40, %p41
    %p44 = scmp.ne.s32.totalorder %s27, %s43
    %p45 = scmp.eq.s32.totalorder %s19, 0
    %p46 = por %p44, %p45
    %s48 = sadd.s32 %s47, 1
    %p51 = scmp.eq.s32.totalorder %s13, 1
    %p52 = scmp.ne.s32.totalorder %s47, %s49
    %p53 = scmp.eq.s32.totalorder %s13, 0
    %p54 = por %p52, %p53
    %p55 = scmp.ne.s32.totalorder %s47, %s49
    %p56 = scmp.eq.s32.totalorder %s18, 1
    %p57 = por %p55, %p56
    %p58 = scmp.ne.s32.totalorder %s49, %s50
    %p59 = scmp.eq.s32.totalorder %s18, 0
    %p60 = por %p58, %p59
    %p61 = scmp.ne.s32.totalorder %s49, %s50
    %p62 = scmp.eq.s32.totalorder %s19, 1
    %p63 = por %p61, %p62
    %p65 = scmp.ne.s32.totalorder %s50, %s64
    %p66 = scmp.eq.s32.totalorder %s19, 0
    %p67 = por %p65, %p66
    %s69 = sadd.s32 %s68, 1
    %p72 = scmp.eq.s32.totalorder %s13, 1
    %p73 = scmp.ne.s32.totalorder %s68, %s70
    %p74 = scmp.eq.s32.totalorder %s13, 0
    %p75 = por %p73, %p74
    %p76 = scmp.ne.s32.totalorder %s68, %s70
    %p77 = scmp.eq.s32.totalorder %s18, 1
    %p78 = por %p76, %p77
    %p79 = scmp.ne.s32.totalorder %s70, %s71
    %p80 = scmp.eq.s32.totalorder %s18, 0
    %p81 = por %p79, %p80
    %p82 = scmp.ne.s32.totalorder %s70, %s71
    %p83 = scmp.eq.s32.totalorder %s19, 1
    %p84 = por %p82, %p83
    %p86 = scmp.ne.s32.totalorder %s71, %s85
    %p87 = scmp.eq.s32.totalorder %s19, 0
    %p88 = por %p86, %p87
    %s90 = sadd.s32 %s89, 1
    %p93 = scmp.eq.s32.totalorder %s13, 1
    %p94 = scmp.ne.s32.totalorder %s89, %s91
    %p95 = scmp.eq.s32.totalorder %s13, 0
    %p96 = por %p94, %p95
    %p97 = scmp.ne.s32.totalorder %s89, %s91
    %p98 = scmp.eq.s32.totalorder %s18, 1
    %p99 = por %p97, %p98
    %p100 = scmp.ne.s32.totalorder %s91, %s92
    %p101 = scmp.eq.s32.totalorder %s18, 0
    %p102 = por %p100, %p101
    %p103 = scmp.ne.s32.totalorder %s91, %s92
    %p104 = scmp.eq.s32.totalorder %s19, 1
    %p105 = por %p103, %p104
    %p107 = scmp.ne.s32.totalorder %s92, %s106
    %p108 = scmp.eq.s32.totalorder %s19, 0
    %p109 = por %p107, %p108
    %s111 = sadd.s32 %s110, 1
    %p114 = scmp.eq.s32.totalorder %s13, 1
    %p115 = scmp.ne.s32.totalorder %s110, %s112
    %p116 = scmp.eq.s32.totalorder %s13, 0
    %p117 = por %p115, %p116
    %p118 = scmp.ne.s32.totalorder %s110, %s112
    %p119 = scmp.eq.s32.totalorder %s18, 1
    %p120 = por %p118, %p119
    %p121 = scmp.ne.s32.totalorder %s112, %s113
    %p122 = scmp.eq.s32.totalorder %s18, 0
    %p123 = por %p121, %p122
    %p124 = scmp.ne.s32.totalorder %s112, %s113
    %p125 = scmp.eq.s32.totalorder %s19, 1
    %p126 = por %p124, %p125
    %p128 = scmp.ne.s32.totalorder %s113, %s127
    %p129 = scmp.eq.s32.totalorder %s19, 0
    %p130 = por %p128, %p129
    %s131 = ssub.s32 %s13, %s20
    %p132 = scmp.eq.s32.totalorder %s131, 0
    %s134 = sadd.s32 %s133, 1
    %s135 = scalar_select %p132, %s133, %s134
    %p138 = pneg %p132
    %p139 = scmp.eq.s32.totalorder %s13, 1
    %p140 = por %p138, %p139
    %p141 = scmp.ne.s32.totalorder %s133, %s136
    %p142 = scmp.eq.s32.totalorder %s13, 0
    %p143 = por %p141, %p142
    %p144 = scmp.ne.s32.totalorder %s133, %s136
    %p145 = scmp.eq.s32.totalorder %s18, 1
    %p146 = por %p144, %p145
    %p147 = scmp.ne.s32.totalorder %s136, %s137
    %p148 = scmp.eq.s32.totalorder %s18, 0
    %p149 = por %p147, %p148
    %p150 = scmp.ne.s32.totalorder %s136, %s137
    %p151 = scmp.eq.s32.totalorder %s19, 1
    %p152 = por %p150, %p151
    %p154 = scmp.ne.s32.totalorder %s137, %s153
    %p155 = scmp.eq.s32.totalorder %s19, 0
    %p156 = por %p154, %p155
    %s157 = ssub.s32 %s13, %s20
    %p158 = scmp.eq.s32.totalorder %s157, 0
    %s160 = sadd.s32 %s159, 1
    %s161 = scalar_select %p158, %s159, %s160
    %p164 = pneg %p158
    %p165 = scmp.eq.s32.totalorder %s13, 1
    %p166 = por %p164, %p165
    %p167 = scmp.ne.s32.totalorder %s159, %s162
    %p168 = scmp.eq.s32.totalorder %s13, 0
    %p169 = por %p167, %p168
    %p170 = scmp.ne.s32.totalorder %s159, %s162
    %p171 = scmp.eq.s32.totalorder %s18, 1
    %p172 = por %p170, %p171
    %p173 = scmp.ne.s32.totalorder %s162, %s163
    %p174 = scmp.eq.s32.totalorder %s18, 0
    %p175 = por %p173, %p174
    %p176 = scmp.ne.s32.totalorder %s162, %s163
    %p177 = scmp.eq.s32.totalorder %s19, 1
    %p178 = por %p176, %p177
    %p180 = scmp.ne.s32.totalorder %s163, %s179
    %p181 = scmp.eq.s32.totalorder %s19, 0
    %p182 = por %p180, %p181
    %p183 = scmp.le.s32.totalorder 1, %s13
    %p184 = scmp.lt.s32.totalorder %s13, 3
    %p185 = pnand %p183, %p184
    %p186 = pneg %p185
    // Predicated region
    $region9: #{run.6} parent=5 // pred_check
      _
    $region10: #{run.6} parent=5 // pred_check_branch
      %188 = sbr.rel (%p185) target = $region12
    $region11: #{run.6} parent=5 // pred_region
      %s189 = ssub.s32 %s13, 1
      // Predicated region
      $region13: #{run.6} parent=11 // pred_check
        %p190 = pneg %p60
      $region14: #{run.6} parent=11 // pred_check_branch
        %192 = sbr.rel (%p190) target = $region16
      $region15: #{run.6} parent=11 // pred_region
        _
      $region16: #{run.6} parent=11 // pred_fallthru
        _
      // Predicated region
      $region17: #{run.6} parent=11 // pred_check
        %p193 = pneg %p81
      $region18: #{run.6} parent=11 // pred_check_branch
        %195 = sbr.rel (%p193) target = $region20
      $region19: #{run.6} parent=11 // pred_region
        _
      $region20: #{run.6} parent=11 // pred_fallthru
        _
      // Predicated region
      $region21: #{run.6} parent=11 // pred_check
        %p196 = pneg %p102
      $region22: #{run.6} parent=11 // pred_check_branch
        %198 = sbr.rel (%p196) target = $region24
      $region23: #{run.6} parent=11 // pred_region
        _
      $region24: #{run.6} parent=11 // pred_fallthru
        _
      // Predicated region
      $region25: #{run.6} parent=11 // pred_check
        %p199 = pneg %p123
      $region26: #{run.6} parent=11 // pred_check_branch
        %201 = sbr.rel (%p199) target = $region28
      $region27: #{run.6} parent=11 // pred_region
        _
      $region28: #{run.6} parent=11 // pred_fallthru
        _
    $region12: #{run.6} parent=5 // pred_fallthru
      _
    %p202 = scmp.lt.s32.totalorder %s13, 2
    // Predicated region
    $region29: #{run.6} parent=5 // pred_check
      %p203 = pneg %p202
    $region30: #{run.6} parent=5 // pred_check_branch
      %205 = sbr.rel (%p203) target = $region32
    $region31: #{run.6} parent=5 // pred_region
      // Predicated region
      $region33: #{run.6} parent=31 // pred_check
        %p206 = pneg %p33
      $region34: #{run.6} parent=31 // pred_check_branch
        %208 = sbr.rel (%p206) target = $region36
      $region35: #{run.6} parent=31 // pred_region
        %s209 = smul.u32 8, %s13
        %p210 = scmp.lt.s32.totalorder %s209, 15
        %s211 = scalar_select %p210, %s209, 15
        %s212 = smul.addr %s211, 8
        %s213 = scalar_lea.vmem %s0, %s212
        %s214 = smul.u32 8, %s13
      $region36: #{run.6} parent=31 // pred_fallthru
        _
    $region32: #{run.6} parent=5 // pred_fallthru
      _
    %p215 = scmp.le.s32.totalorder 1, %s13
    %p216 = scmp.lt.s32.totalorder %s13, 3
    %p217 = pnand %p215, %p216
    %p218 = pneg %p217
    // Predicated region
    $region37: #{run.6} parent=5 // pred_check
      _
    $region38: #{run.6} parent=5 // pred_check_branch
      %220 = sbr.rel (%p217) target = $region40
    $region39: #{run.6} parent=5 // pred_region
      %s221 = ssub.s32 %s13, 1
      %s222 = smul.u32 8, %s18
      %p223 = scmp.lt.s32.totalorder %s222, 15
      %s224 = scalar_select %p223, %s222, 15
      %s225 = smul.addr %s224, 8
      %s226 = scalar_lea.vmem %s0, %s225
      %p227 = pneg %p39
      %p228 = pneg %p36
      %p229 = pneg %p60
      %p230 = pneg %p57
      %p231 = pneg %p81
      %p232 = pneg %p78
      %p233 = pneg %p102
      %p234 = pneg %p99
      %p235 = pneg %p123
      %p236 = pneg %p120
      %p237 = pneg %p149
      %p238 = pneg %p146
      %s239 = smul.u32 8, %s18
      %p240 = scmp.lt.s32.totalorder %s239, 15
      %s241 = scalar_select %p240, %s239, 15
      %s242 = smul.addr %s241, 4
      %s243 = scalar_lea.vmem %s5, %s242
      %p244 = pneg %p175
      %p245 = pneg %p172
      %s246 = smul.u32 8, %s18
      %p247 = scmp.lt.s32.totalorder %s246, 15
      %s248 = scalar_select %p247, %s246, 15
      %s249 = smul.addr %s248, 8
      %s250 = scalar_lea.vmem %s6, %s249
      %s251 = smul.u32 8, %s18
      %p252 = scmp.lt.s32.totalorder %s251, 15
      %s253 = scalar_select %p252, %s251, 15
      %s254 = smul.addr %s253, 8
      %s255 = scalar_lea.vmem %s0, %s254
      %s256 = smul.u32 8, %s18
      %s257 = smul.u32 8, %s18
      %p258 = scmp.lt.s32.totalorder %s257, 15
      %s259 = scalar_select %p258, %s257, 15
      %s260 = smul.addr %s259, 4
      %s261 = scalar_lea.vmem %s5, %s260
      %s262 = smul.u32 8, %s18
      %s263 = smul.u32 8, %s18
      %p264 = scmp.lt.s32.totalorder %s263, 15
      %s265 = scalar_select %p264, %s263, 15
      %s266 = smul.addr %s265, 8
      %s267 = scalar_lea.vmem %s6, %s266
      %s268 = smul.u32 8, %s18
      %v270 = vld [vmem:[%s255] sm:$0xff]
      %v271 = vld [vmem:[%s255 + $0x8] sm:$0xff]
      %v272 = vld [vmem:[%s255 + $0x10] sm:$0xff]
      %v273 = vld [vmem:[%s255 + $0x18] sm:$0xff]
      %v274 = vld [vmem:[%s255 + $0x20] sm:$0xff]
      %v275 = vld [vmem:[%s255 + $0x28] sm:$0xff]
      %v276 = vld [vmem:[%s255 + $0x30] sm:$0xff]
      %v277 = vld [vmem:[%s255 + $0x38] sm:$0xff]
      %vm278 = vcmask 523264
      %v279 = vsel %vm278, %v270, 0.0
      %280 = vadd.xlane.f32.xlu0 %v279
      %v281 = vpop.xlane.xlu0 %280
      %v282 = vsel %vm278, %v271, 0.0
      %283 = vadd.xlane.f32.xlu0 %v282
      %v284 = vpop.xlane.xlu0 %283
      %v285 = vsel %vm278, %v272, 0.0
      %286 = vadd.xlane.f32.xlu0 %v285
      %v287 = vpop.xlane.xlu0 %286
      %v288 = vsel %vm278, %v273, 0.0
      %289 = vadd.xlane.f32.xlu0 %v288
      %v290 = vpop.xlane.xlu0 %289
      %v291 = vsel %vm278, %v274, 0.0
      %292 = vadd.xlane.f32.xlu0 %v291
      %v293 = vpop.xlane.xlu0 %292
      %v294 = vsel %vm278, %v275, 0.0
      %295 = vadd.xlane.f32.xlu0 %v294
      %v296 = vpop.xlane.xlu0 %295
      %v297 = vsel %vm278, %v276, 0.0
      %298 = vadd.xlane.f32.xlu0 %v297
      %v299 = vpop.xlane.xlu0 %298
      %v300 = vsel %vm278, %v277, 0.0
      %301 = vadd.xlane.f32.xlu0 %v300
      %v302 = vpop.xlane.xlu0 %301
      %v303 = vrcp.pop 64.0
      %v304 = vmul.f32 %v281, %v303
      %v305 = vmul.f32 %v284, %v303
      %v306 = vmul.f32 %v287, %v303
      %v307 = vmul.f32 %v290, %v303
      %v308 = vmul.f32 %v293, %v303
      %v309 = vmul.f32 %v296, %v303
      %v310 = vmul.f32 %v299, %v303
      %v311 = vmul.f32 %v302, %v303
      %v312 = vsub.f32 %v270, %v304
      %v313 = vsub.f32 %v271, %v305
      %v314 = vsub.f32 %v272, %v306
      %v315 = vsub.f32 %v273, %v307
      %v316 = vsub.f32 %v274, %v308
      %v317 = vsub.f32 %v275, %v309
      %v318 = vsub.f32 %v276, %v310
      %v319 = vsub.f32 %v277, %v311
      %v320 = vmul.f32 %v312, %v312
      %v321 = vmul.f32 %v313, %v313
      %v322 = vmul.f32 %v314, %v314
      %v323 = vmul.f32 %v315, %v315
      %v324 = vmul.f32 %v316, %v316
      %v325 = vmul.f32 %v317, %v317
      %v326 = vmul.f32 %v318, %v318
      %v327 = vmul.f32 %v319, %v319
      %v328 = vsel %vm278, %v320, 0.0
      %329 = vadd.xlane.f32.xlu0 %v328
      %v330 = vpop.xlane.xlu0 %329
      %v331 = vsel %vm278, %v321, 0.0
      %332 = vadd.xlane.f32.xlu0 %v331
      %v333 = vpop.xlane.xlu0 %332
      %v334 = vsel %vm278, %v322, 0.0
      %335 = vadd.xlane.f32.xlu0 %v334
      %v336 = vpop.xlane.xlu0 %335
      %v337 = vsel %vm278, %v323, 0.0
      %338 = vadd.xlane.f32.xlu0 %v337
      %v339 = vpop.xlane.xlu0 %338
      %v340 = vsel %vm278, %v324, 0.0
      %341 = vadd.xlane.f32.xlu0 %v340
      %v342 = vpop.xlane.xlu0 %341
      %v343 = vsel %vm278, %v325, 0.0
      %344 = vadd.xlane.f32.xlu0 %v343
      %v345 = vpop.xlane.xlu0 %344
      %v346 = vsel %vm278, %v326, 0.0
      %347 = vadd.xlane.f32.xlu0 %v346
      %v348 = vpop.xlane.xlu0 %347
      %v349 = vsel %vm278, %v327, 0.0
      %350 = vadd.xlane.f32.xlu0 %v349
      %v351 = vpop.xlane.xlu0 %350
      %v352 = vmul.f32 %v330, %v303
      %v353 = vmul.f32 %v333, %v303
      %v354 = vmul.f32 %v336, %v303
      %v355 = vmul.f32 %v339, %v303
      %v356 = vmul.f32 %v342, %v303
      %v357 = vmul.f32 %v345, %v303
      %v358 = vmul.f32 %v348, %v303
      %v359 = vmul.f32 %v351, %v303
      %v360 = vadd.f32 %v352, 1e-06
      %v361 = vadd.f32 %v353, 1e-06
      %v362 = vadd.f32 %v354, 1e-06
      %v363 = vadd.f32 %v355, 1e-06
      %v364 = vadd.f32 %v356, 1e-06
      %v365 = vadd.f32 %v357, 1e-06
      %v366 = vadd.f32 %v358, 1e-06
      %v367 = vadd.f32 %v359, 1e-06
      %v368 = vrsqrt.pop %v360
      %v369 = vrsqrt.pop %v361
      %v370 = vrsqrt.pop %v362
      %v371 = vrsqrt.pop %v363
      %v372 = vrsqrt.pop %v364
      %v373 = vrsqrt.pop %v365
      %v374 = vrsqrt.pop %v366
      %v375 = vrsqrt.pop %v367
      %v376 = vmul.f32 %v312, %v368
      %v377 = vmul.f32 %v313, %v369
      %v378 = vmul.f32 %v314, %v370
      %v379 = vmul.f32 %v315, %v371
      %v380 = vmul.f32 %v316, %v372
      %v381 = vmul.f32 %v317, %v373
      %v382 = vmul.f32 %v318, %v374
      %v383 = vmul.f32 %v319, %v375
      %v384 = vld [vmem:[%s1] sm:$0x1]
      %v386 = vlaneseq
      %v387 = vshrl.u32 %v386, 7
      %v388 = vsub.s32 0, %v387
      %v389 = vrot.slane %v384, %v388
      %v391 = vmul.f32 %v376, %v389
      %v392 = vmul.f32 %v377, %v389
      %v393 = vmul.f32 %v378, %v389
      %v394 = vmul.f32 %v379, %v389
      %v395 = vmul.f32 %v380, %v389
      %v396 = vmul.f32 %v381, %v389
      %v397 = vmul.f32 %v382, %v389
      %v398 = vmul.f32 %v383, %v389
      %v399 = vld [vmem:[%s2] sm:$0x1]
      %v401 = vlaneseq
      %v402 = vshrl.u32 %v401, 7
      %v403 = vsub.s32 0, %v402
      %v404 = vrot.slane %v399, %v403
      %v406 = vadd.f32 %v391, %v404
      %v407 = vadd.f32 %v392, %v404
      %v408 = vadd.f32 %v393, %v404
      %v409 = vadd.f32 %v394, %v404
      %v410 = vadd.f32 %v395, %v404
      %v411 = vadd.f32 %v396, %v404
      %v412 = vadd.f32 %v397, %v404
      %v413 = vadd.f32 %v398, %v404
      %414 = vst.msk [vmem:[%s267] sm:$0xff] %vm278, %v406
      %415 = vst.msk [vmem:[%s267 + $0x8] sm:$0xff] %vm278, %v407
      %416 = vst.msk [vmem:[%s267 + $0x10] sm:$0xff] %vm278, %v408
      %417 = vst.msk [vmem:[%s267 + $0x18] sm:$0xff] %vm278, %v409
      %418 = vst.msk [vmem:[%s267 + $0x20] sm:$0xff] %vm278, %v410
      %419 = vst.msk [vmem:[%s267 + $0x28] sm:$0xff] %vm278, %v411
      %420 = vst.msk [vmem:[%s267 + $0x30] sm:$0xff] %vm278, %v412
      %421 = vst.msk [vmem:[%s267 + $0x38] sm:$0xff] %vm278, %v413
      %v422 = vpack.c.bf16 %v407, %v406
      %v423 = vpack.c.bf16 %v409, %v408
      %v424 = vpack.c.bf16 %v411, %v410
      %v425 = vpack.c.bf16 %v413, %v412
      %v426 = vld [vmem:[%s3] sm:$0xf]
      %v427 = vld [vmem:[%s3 + $0x4] sm:$0xf]
      %v428 = vld [vmem:[%s3 + $0x8] sm:$0xf]
      %v429 = vld [vmem:[%s3 + $0xc] sm:$0xf]
      %v430 = vld [vmem:[%s3 + $0x10] sm:$0xf]
      %v431 = vld [vmem:[%s3 + $0x14] sm:$0xf]
      %v432 = vld [vmem:[%s3 + $0x18] sm:$0xf]
      %v433 = vld [vmem:[%s3 + $0x1c] sm:$0xf]
      %v434 = vld [vmem:[%s4] sm:$0x1]
      %v436 = vlaneseq
      %v437 = vshrl.u32 %v436, 7
      %v438 = vsub.s32 0, %v437
      %v439 = vrot.slane %v434, %v438
      %v449 = vunpack.c.l.b16 %v426
      %v450 = vunpack.c.l.b16 %v427
      %v451 = vunpack.c.l.b16 %v428
      %v452 = vunpack.c.l.b16 %v429
      %v453 = vunpack.c.l.b16 %v430
      %v454 = vunpack.c.l.b16 %v431
      %v455 = vunpack.c.l.b16 %v432
      %v456 = vunpack.c.l.b16 %v433
      %v457 = vpack.c.b16 %v450, %v449
      %v458 = vpack.c.b16 %v452, %v451
      %v459 = vpack.c.b16 %v454, %v453
      %v460 = vpack.c.b16 %v456, %v455
      %v466 = vsel %vm278, %v422, 0
      %v469 = vsel %vm278, %v423, 0
      %v472 = vsel %vm278, %v424, 0
      %v475 = vsel %vm278, %v425, 0
      %477 = vmatprep.subr.bf16.mxu0 0
      %478 = vmatpush1.bf16.msra.mxu0 %v457
      %479 = vmatprep.subr.bf16.mxu0 0
      %480 = vmatpush1.bf16.msra.mxu0 %v458
      %481 = vmatprep.subr.bf16.mxu0 0
      %482 = vmatpush1.bf16.msra.mxu0 %v459
      %483 = vmatprep.subr.bf16.mxu0 0
      %484 = vmatpush1.bf16.msra.mxu0 %v460
      %485 = vmatprep.subr.bf16.mxu0 0
      %486 = vmatpush1.bf16.msra.mxu0 0
      %487 = vmatprep.subr.bf16.mxu0 0
      %488 = vmatpush1.bf16.msra.mxu0 0
      %489 = vmatprep.subr.bf16.mxu0 0
      %490 = vmatpush1.bf16.msra.mxu0 0
      %491 = vmatprep.subr.bf16.mxu0 0
      %492 = vmatpush1.bf16.msra.mxu0 0
      %493 = vmatprep.subr.bf16.mxu0 0
      %494 = vmatpush1.bf16.msra.mxu0 0
      %495 = vmatprep.subr.bf16.mxu0 0
      %496 = vmatpush1.bf16.msra.mxu0 0
      %497 = vmatprep.subr.bf16.mxu0 0
      %498 = vmatpush1.bf16.msra.mxu0 0
      %499 = vmatprep.subr.bf16.mxu0 0
      %500 = vmatpush1.bf16.msra.mxu0 0
      %501 = vmatprep.subr.bf16.mxu0 0
      %502 = vmatpush1.bf16.msra.mxu0 0
      %503 = vmatprep.subr.bf16.mxu0 0
      %504 = vmatpush1.bf16.msra.mxu0 0
      %505 = vmatprep.subr.bf16.mxu0 0
      %506 = vmatpush1.bf16.msra.mxu0 0
      %507 = vmatprep.subr.bf16.mxu0 0
      %508 = vmatpush1.bf16.msra.mxu0 0
      %509 = vmatprep.mubr.bf16.mxu0 0
      %510 = vmatmul.mubr.bf16.gmra.mrb[0].mxu0 %v466
      %v511 = vpop.f32.mrb[0].mxu0
      %v512 = vadd.f32 %v439, %v511
      %v513 = vpop.f32.mrb[0].mxu0
      %v514 = vpop.f32.mrb[0].mxu0
      %v515 = vadd.f32 %v439, %v514
      %v516 = vpop.f32.mrb[0].mxu0
      %517 = vmatprep.mubr.bf16.mxu0 0
      %518 = vmatmul.mubr.bf16.gmra.mrb[0].mxu0 %v469
      %v519 = vpop.f32.mrb[0].mxu0
      %v520 = vadd.f32 %v439, %v519
      %v521 = vpop.f32.mrb[0].mxu0
      %v522 = vpop.f32.mrb[0].mxu0
      %v523 = vadd.f32 %v439, %v522
      %v524 = vpop.f32.mrb[0].mxu0
      %525 = vmatprep.mubr.bf16.mxu0 0
      %526 = vmatmul.mubr.bf16.gmra.mrb[0].mxu0 %v472
      %v527 = vpop.f32.mrb[0].mxu0
      %v528 = vadd.f32 %v439, %v527
      %v529 = vpop.f32.mrb[0].mxu0
      %v530 = vpop.f32.mrb[0].mxu0
      %v531 = vadd.f32 %v439, %v530
      %v532 = vpop.f32.mrb[0].mxu0
      %533 = vmatprep.mubr.bf16.mxu0 0
      %534 = vmatmul.mubr.bf16.gmra.mrb[0].mxu0 %v475
      %v535 = vpop.f32.mrb[0].mxu0
      %v536 = vadd.f32 %v439, %v535
      %v537 = vpop.f32.mrb[0].mxu0
      %v538 = vpop.f32.mrb[0].mxu0
      %v539 = vadd.f32 %v439, %v538
      %v540 = vpop.f32.mrb[0].mxu0
      %541 = vdwg.mxu0
      %v542 = vmul.f32 %v512, 0.17677669
      %v543 = vmul.f32 %v515, 0.17677669
      %v544 = vmul.f32 %v520, 0.17677669
      %v545 = vmul.f32 %v523, 0.17677669
      %v546 = vmul.f32 %v528, 0.17677669
      %v547 = vmul.f32 %v531, 0.17677669
      %v548 = vmul.f32 %v536, 0.17677669
      %v549 = vmul.f32 %v539, 0.17677669
      %v550 = vpack.c.bf16 %v543, %v542
      %v551 = vpack.c.bf16 %v545, %v544
      %v552 = vpack.c.bf16 %v547, %v546
      %v553 = vpack.c.bf16 %v549, %v548
      %v558 = vunpack.c.l.b16 %v550
      %v559 = vunpack.c.h.b16 %v550
      %v560 = vunpack.c.l.b16 %v551
      %v561 = vunpack.c.h.b16 %v551
      %v562 = vunpack.c.l.b16 %v552
      %v563 = vunpack.c.h.b16 %v552
      %v564 = vunpack.c.l.b16 %v553
      %v565 = vunpack.c.h.b16 %v553
      %v566 = vpack.c.b16 %v558, %v558
      %v567 = vpack.c.b16 %v559, %v559
      %v568 = vpack.c.b16 %v560, %v560
      %v569 = vpack.c.b16 %v561, %v561
      %v570 = vpack.c.b16 %v562, %v562
      %v571 = vpack.c.b16 %v563, %v563
      %v572 = vpack.c.b16 %v564, %v564
      %v573 = vpack.c.b16 %v565, %v565
      %vm582 = vcmask 519168
      %583 = vst.msk [vmem:[%s261] sm:$0xf] %vm582, %v566
      %584 = vst.msk [vmem:[%s261 + $0x4] sm:$0xf] %vm582, %v567
      %585 = vst.msk [vmem:[%s261 + $0x8] sm:$0xf] %vm582, %v568
      %586 = vst.msk [vmem:[%s261 + $0xc] sm:$0xf] %vm582, %v569
      %587 = vst.msk [vmem:[%s261 + $0x10] sm:$0xf] %vm582, %v570
      %588 = vst.msk [vmem:[%s261 + $0x14] sm:$0xf] %vm582, %v571
      %589 = vst.msk [vmem:[%s261 + $0x18] sm:$0xf] %vm582, %v572
      %590 = vst.msk [vmem:[%s261 + $0x1c] sm:$0xf] %vm582, %v573
      %s591 = smul.u32 8, %s18
      %p592 = scmp.lt.s32.totalorder %s591, 15
      %s593 = scalar_select %p592, %s591, 15
      %s594 = smul.addr %s593, 4
      %s595 = scalar_lea.vmem %s5, %s594
      %s596 = smul.u32 8, %s18
      %p597 = scmp.lt.s32.totalorder %s596, 15
      %s598 = scalar_select %p597, %s596, 15
      %s599 = smul.addr %s598, 8
      %s600 = scalar_lea.vmem %s6, %s599
      // Predicated region
      $region41: #{run.6} parent=39 // pred_check
        %p601 = pneg %p146
      $region42: #{run.6} parent=39 // pred_check_branch
        %603 = sbr.rel (%p601) target = $region44
      $region43: #{run.6} parent=39 // pred_region
        %s604 = smul.u32 8, %s18
      $region44: #{run.6} parent=39 // pred_fallthru
        _
      // Predicated region
      $region45: #{run.6} parent=39 // pred_check
        %p605 = pneg %p172
      $region46: #{run.6} parent=39 // pred_check_branch
        %607 = sbr.rel (%p605) target = $region48
      $region47: #{run.6} parent=39 // pred_region
        %s608 = smul.u32 8, %s18
      $region48: #{run.6} parent=39 // pred_fallthru
        _
    $region40: #{run.6} parent=5 // pred_fallthru
      _
    %p609 = scmp.le.s32.totalorder 2, %s13
    // Predicated region
    $region49: #{run.6} parent=5 // pred_check
      %p610 = pneg %p609
    $region50: #{run.6} parent=5 // pred_check_branch
      %612 = sbr.rel (%p610) target = $region52
    $region51: #{run.6} parent=5 // pred_region
      %s613 = ssub.s32 %s13, 2
      // Predicated region
      $region53: #{run.6} parent=51 // pred_check
        %p614 = pneg %p152
      $region54: #{run.6} parent=51 // pred_check_branch
        %616 = sbr.rel (%p614) target = $region56
      $region55: #{run.6} parent=51 // pred_region
        %s617 = smul.u32 8, %s19
        %p618 = scmp.lt.s32.totalorder %s617, 15
        %s619 = scalar_select %p618, %s617, 15
        %s620 = smul.addr %s619, 4
        %s621 = scalar_lea.vmem %s5, %s620
      $region56: #{run.6} parent=51 // pred_fallthru
        _
      // Predicated region
      $region57: #{run.6} parent=51 // pred_check
        %p622 = pneg %p178
      $region58: #{run.6} parent=51 // pred_check_branch
        %624 = sbr.rel (%p622) target = $region60
      $region59: #{run.6} parent=51 // pred_region
        %s625 = smul.u32 8, %s19
        %p626 = scmp.lt.s32.totalorder %s625, 15
        %s627 = scalar_select %p626, %s625, 15
        %s628 = smul.addr %s627, 8
        %s629 = scalar_lea.vmem %s6, %s628
      $region60: #{run.6} parent=51 // pred_fallthru
        _
    $region52: #{run.6} parent=5 // pred_fallthru
      _
  $region6: #{run.6} parent=0 // loop_footer
    %s17 = sadd.s32 1, %s13
  $region7: #{run.6} parent=0 // loop_footer_branch
    %12 = sbr.rel target = $region3
  $region8: #{run.6} parent=0 // loop_exit
    _

// kernel: div.21
$region0: #{div.21}
  #allocation0 [shape = 's32[1]{0}', space=sflag, size = 0x4, scoped, tag = 'scoped memory for div.21']
  %s0 = inlined_call_operand.vmem [shape: f32[2,256,1], index: 0, kind: input, shape index: {}]
  %s1 = inlined_call_operand.vmem [shape: f32[2,256,1], index: 1, kind: input, shape index: {}]
  %s2 = inlined_call_operand.vmem [shape: f32[2,256,1], index: 2, kind: output, shape index: {}]
  %v3 = vld [vmem:[%s0] sm:$0x1]
  %v4 = vld [vmem:[%s1] sm:$0x1]
  %5 = xla_tuple %v3, %v4
  %6 = xla_tuple %5
  %v7 = vrcp.pop %v4
  %v8 = vmul.f32 %v3, %v7
  %9 = xla_tuple %v8
  %10 = vst [vmem:[%s2] sm:$0x1] %v8
  %s11 = scalar_lea.vmem %s0, 2
  %v12 = vld [vmem:[%s11] sm:$0x1]
  %s13 = scalar_lea.vmem %s1, 2
  %v14 = vld [vmem:[%s13] sm:$0x1]
  %15 = xla_tuple %v12, %v14
  %16 = xla_tuple %15
  %v17 = vrcp.pop %v14
  %v18 = vmul.f32 %v12, %v17
  %19 = xla_tuple %v18
  %s20 = scalar_lea.vmem %s2, 2
  %21 = vst [vmem:[%s20] sm:$0x1] %v18
  %s22 = scalar_lea.vmem %s0, 1
  %v23 = vld [vmem:[%s22] sm:$0x1]
  %s24 = scalar_lea.vmem %s1, 1
  %v25 = vld [vmem:[%s24] sm:$0x1]
  %26 = xla_tuple %v23, %v25
  %27 = xla_tuple %26
  %v28 = vrcp.pop %v25
  %v29 = vmul.f32 %v23, %v28
  %30 = xla_tuple %v29
  %s31 = scalar_lea.vmem %s2, 1
  %32 = vst [vmem:[%s31] sm:$0x1] %v29
  %s33 = scalar_lea.vmem %s0, 3
  %v34 = vld [vmem:[%s33] sm:$0x1]
  %s35 = scalar_lea.vmem %s1, 3
  %v36 = vld [vmem:[%s35] sm:$0x1]
  %37 = xla_tuple %v34, %v36
  %38 = xla_tuple %37
  %v39 = vrcp.pop %v36
  %v40 = vmul.f32 %v34, %v39
  %41 = xla_tuple %v40
  %s42 = scalar_lea.vmem %s2, 3
  %43 = vst [vmem:[%s42] sm:$0x1] %v40

// kernel: run.7
$region0: #{run.7}
  #allocation0 [shape = 'u32[]', space=smem, size = 0x4, offset = 0x4, fixed_abs, tag = 'smem constant byte address 0x4 - core index']
  #allocation1 [shape = 'u32[144,128]{1,0:T(1,128)}', space=vmem, size = 0x12000, scoped, tag = 'internal scratch']
  %s0 = inlined_call_operand.vmem [shape: f32[128,256], index: 0, kind: input, shape index: {}]
  %s1 = inlined_call_operand.vmem [shape: bf16[256,64], index: 1, kind: input, shape index: {}]
  %s2 = inlined_call_operand.vmem [shape: f32[1,64], index: 2, kind: input, shape index: {}, may-alias: {2,4}]
  %s3 = inlined_call_operand.vmem [shape: f32[1,64], index: 3, kind: input, shape index: {}]
  %s4 = inlined_call_operand.vmem [shape: f32[1,64], index: 4, kind: input, shape index: {}, may-alias: {2,4}]
  %s5 = inlined_call_operand.vmem [shape: bf16[64,128], index: 5, kind: input, shape index: {}]
  %s6 = inlined_call_operand.vmem [shape: f32[1,128], index: 6, kind: input, shape index: {}]
  %s7 = inlined_call_operand.vmem [shape: bf16[128,128], index: 7, kind: output, shape index: {}]
  %s8 = sld [smem:[#allocation0]]
  $region61: #{run.7} parent=0
    _
  %s10 = ssub.s32 1, %s8
  %s11 = scalar_select 0, %s10, %s8
  loop: start=0, step=1, limit=4
  $region2: #{run.7} parent=0 // loop_pre_header
    _
  $region3: #{run.7} parent=0 // loop_header
    %s13 = sphi 0, %s17
    %p14 = scmp.ge.s32.totalorder %s13, 4
    %s23 = sphi 0, %s25
    %s26 = sphi 0, %s23
    %s27 = sphi 0, %s26
    %s43 = sphi 0, %s27
    %s47 = sphi 0, %s47
    %s49 = sphi 0, %s47
    %s50 = sphi 0, %s49
    %s64 = sphi 0, %s50
    %s68 = sphi 0, %s68
    %s70 = sphi 0, %s68
    %s71 = sphi 0, %s70
    %s85 = sphi 0, %s71
    %s89 = sphi 0, %s89
    %s91 = sphi 0, %s89
    %s92 = sphi 0, %s91
    %s106 = sphi 0, %s92
    %s110 = sphi 0, %s110
    %s112 = sphi 0, %s110
    %s113 = sphi 0, %s112
    %s127 = sphi 0, %s113
    %s131 = sphi 0, %s131
    %s133 = sphi 0, %s131
    %s134 = sphi 0, %s133
    %s148 = sphi 0, %s134
    %s152 = sphi 0, %s152
    %s154 = sphi 0, %s152
    %s155 = sphi 0, %s154
    %s169 = sphi 0, %s155
    %s175 = sphi 0, %s177
    %s178 = sphi 0, %s175
    %s179 = sphi 0, %s178
    %s195 = sphi 0, %s179
  $region4: #{run.7} parent=0 // loop_header_branch
    %16 = sbr.rel (%p14) target = $region8
  $region5: #{run.7} parent=0 // loop_body
    %s18 = ssub.s32 %s13, 1
    %s19 = ssub.s32 %s13, 2
    %s20 = sadd.s32 %s13, 1
    %s21 = ssub.s32 %s13, %s20
    %p22 = scmp.eq.s32.totalorder %s21, 0
    %s24 = sadd.s32 %s23, 1
    %s25 = scalar_select %p22, %s23, %s24
    %p28 = pneg %p22
    %p29 = scmp.eq.s32.totalorder %s13, 1
    %p30 = por %p28, %p29
    %p31 = scmp.ne.s32.totalorder %s23, %s26
    %p32 = scmp.eq.s32.totalorder %s13, 0
    %p33 = por %p31, %p32
    %p34 = scmp.ne.s32.totalorder %s23, %s26
    %p35 = scmp.eq.s32.totalorder %s18, 1
    %p36 = por %p34, %p35
    %p37 = scmp.ne.s32.totalorder %s26, %s27
    %p38 = scmp.eq.s32.totalorder %s18, 0
    %p39 = por %p37, %p38
    %p40 = scmp.ne.s32.totalorder %s26, %s27
    %p41 = scmp.eq.s32.totalorder %s19, 1
    %p42 = por %p40, %p41
    %p44 = scmp.ne.s32.totalorder %s27, %s43
    %p45 = scmp.eq.s32.totalorder %s19, 0
    %p46 = por %p44, %p45
    %s48 = sadd.s32 %s47, 1
    %p51 = scmp.eq.s32.totalorder %s13, 1
    %p52 = scmp.ne.s32.totalorder %s47, %s49
    %p53 = scmp.eq.s32.totalorder %s13, 0
    %p54 = por %p52, %p53
    %p55 = scmp.ne.s32.totalorder %s47, %s49
    %p56 = scmp.eq.s32.totalorder %s18, 1
    %p57 = por %p55, %p56
    %p58 = scmp.ne.s32.totalorder %s49, %s50
    %p59 = scmp.eq.s32.totalorder %s18, 0
    %p60 = por %p58, %p59
    %p61 = scmp.ne.s32.totalorder %s49, %s50
    %p62 = scmp.eq.s32.totalorder %s19, 1
    %p63 = por %p61, %p62
    %p65 = scmp.ne.s32.totalorder %s50, %s64
    %p66 = scmp.eq.s32.totalorder %s19, 0
    %p67 = por %p65, %p66
    %s69 = sadd.s32 %s68, 1
    %p72 = scmp.eq.s32.totalorder %s13, 1
    %p73 = scmp.ne.s32.totalorder %s68, %s70
    %p74 = scmp.eq.s32.totalorder %s13, 0
    %p75 = por %p73, %p74
    %p76 = scmp.ne.s32.totalorder %s68, %s70
    %p77 = scmp.eq.s32.totalorder %s18, 1
    %p78 = por %p76, %p77
    %p79 = scmp.ne.s32.totalorder %s70, %s71
    %p80 = scmp.eq.s32.totalorder %s18, 0
    %p81 = por %p79, %p80
    %p82 = scmp.ne.s32.totalorder %s70, %s71
    %p83 = scmp.eq.s32.totalorder %s19, 1
    %p84 = por %p82, %p83
    %p86 = scmp.ne.s32.totalorder %s71, %s85
    %p87 = scmp.eq.s32.totalorder %s19, 0
    %p88 = por %p86, %p87
    %s90 = sadd.s32 %s89, 1
    %p93 = scmp.eq.s32.totalorder %s13, 1
    %p94 = scmp.ne.s32.totalorder %s89, %s91
    %p95 = scmp.eq.s32.totalorder %s13, 0
    %p96 = por %p94, %p95
    %p97 = scmp.ne.s32.totalorder %s89, %s91
    %p98 = scmp.eq.s32.totalorder %s18, 1
    %p99 = por %p97, %p98
    %p100 = scmp.ne.s32.totalorder %s91, %s92
    %p101 = scmp.eq.s32.totalorder %s18, 0
    %p102 = por %p100, %p101
    %p103 = scmp.ne.s32.totalorder %s91, %s92
    %p104 = scmp.eq.s32.totalorder %s19, 1
    %p105 = por %p103, %p104
    %p107 = scmp.ne.s32.totalorder %s92, %s106
    %p108 = scmp.eq.s32.totalorder %s19, 0
    %p109 = por %p107, %p108
    %s111 = sadd.s32 %s110, 1
    %p114 = scmp.eq.s32.totalorder %s13, 1
    %p115 = scmp.ne.s32.totalorder %s110, %s112
    %p116 = scmp.eq.s32.totalorder %s13, 0
    %p117 = por %p115, %p116
    %p118 = scmp.ne.s32.totalorder %s110, %s112
    %p119 = scmp.eq.s32.totalorder %s18, 1
    %p120 = por %p118, %p119
    %p121 = scmp.ne.s32.totalorder %s112, %s113
    %p122 = scmp.eq.s32.totalorder %s18, 0
    %p123 = por %p121, %p122
    %p124 = scmp.ne.s32.totalorder %s112, %s113
    %p125 = scmp.eq.s32.totalorder %s19, 1
    %p126 = por %p124, %p125
    %p128 = scmp.ne.s32.totalorder %s113, %s127
    %p129 = scmp.eq.s32.totalorder %s19, 0
    %p130 = por %p128, %p129
    %s132 = sadd.s32 %s131, 1
    %p135 = scmp.eq.s32.totalorder %s13, 1
    %p136 = scmp.ne.s32.totalorder %s131, %s133
    %p137 = scmp.eq.s32.totalorder %s13, 0
    %p138 = por %p136, %p137
    %p139 = scmp.ne.s32.totalorder %s131, %s133
    %p140 = scmp.eq.s32.totalorder %s18, 1
    %p141 = por %p139, %p140
    %p142 = scmp.ne.s32.totalorder %s133, %s134
    %p143 = scmp.eq.s32.totalorder %s18, 0
    %p144 = por %p142, %p143
    %p145 = scmp.ne.s32.totalorder %s133, %s134
    %p146 = scmp.eq.s32.totalorder %s19, 1
    %p147 = por %p145, %p146
    %p149 = scmp.ne.s32.totalorder %s134, %s148
    %p150 = scmp.eq.s32.totalorder %s19, 0
    %p151 = por %p149, %p150
    %s153 = sadd.s32 %s152, 1
    %p156 = scmp.eq.s32.totalorder %s13, 1
    %p157 = scmp.ne.s32.totalorder %s152, %s154
    %p158 = scmp.eq.s32.totalorder %s13, 0
    %p159 = por %p157, %p158
    %p160 = scmp.ne.s32.totalorder %s152, %s154
    %p161 = scmp.eq.s32.totalorder %s18, 1
    %p162 = por %p160, %p161
    %p163 = scmp.ne.s32.totalorder %s154, %s155
    %p164 = scmp.eq.s32.totalorder %s18, 0
    %p165 = por %p163, %p164
    %p166 = scmp.ne.s32.totalorder %s154, %s155
    %p167 = scmp.eq.s32.totalorder %s19, 1
    %p168 = por %p166, %p167
    %p170 = scmp.ne.s32.totalorder %s155, %s169
    %p171 = scmp.eq.s32.totalorder %s19, 0
    %p172 = por %p170, %p171
    %s173 = ssub.s32 %s13, %s20
    %p174 = scmp.eq.s32.totalorder %s173, 0
    %s176 = sadd.s32 %s175, 1
    %s177 = scalar_select %p174, %s175, %s176
    %p180 = pneg %p174
    %p181 = scmp.eq.s32.totalorder %s13, 1
    %p182 = por %p180, %p181
    %p183 = scmp.ne.s32.totalorder %s175, %s178
    %p184 = scmp.eq.s32.totalorder %s13, 0
    %p185 = por %p183, %p184
    %p186 = scmp.ne.s32.totalorder %s175, %s178
    %p187 = scmp.eq.s32.totalorder %s18, 1
    %p188 = por %p186, %p187
    %p189 = scmp.ne.s32.totalorder %s178, %s179
    %p190 = scmp.eq.s32.totalorder %s18, 0
    %p191 = por %p189, %p190
    %p192 = scmp.ne.s32.totalorder %s178, %s179
    %p193 = scmp.eq.s32.totalorder %s19, 1
    %p194 = por %p192, %p193
    %p196 = scmp.ne.s32.totalorder %s179, %s195
    %p197 = scmp.eq.s32.totalorder %s19, 0
    %p198 = por %p196, %p197
    %p199 = scmp.le.s32.totalorder 1, %s13
    %p200 = scmp.lt.s32.totalorder %s13, 3
    %p201 = pnand %p199, %p200
    %p202 = pneg %p201
    // Predicated region
    $region9: #{run.7} parent=5 // pred_check
      _
    $region10: #{run.7} parent=5 // pred_check_branch
      %204 = sbr.rel (%p201) target = $region12
    $region11: #{run.7} parent=5 // pred_region
      %s205 = ssub.s32 %s13, 1
      // Predicated region
      $region13: #{run.7} parent=11 // pred_check
        %p206 = pneg %p60
      $region14: #{run.7} parent=11 // pred_check_branch
        %208 = sbr.rel (%p206) target = $region16
      $region15: #{run.7} parent=11 // pred_region
        _
      $region16: #{run.7} parent=11 // pred_fallthru
        _
      // Predicated region
      $region17: #{run.7} parent=11 // pred_check
        %p209 = pneg %p81
      $region18: #{run.7} parent=11 // pred_check_branch
        %211 = sbr.rel (%p209) target = $region20
      $region19: #{run.7} parent=11 // pred_region
        _
      $region20: #{run.7} parent=11 // pred_fallthru
        _
      // Predicated region
      $region21: #{run.7} parent=11 // pred_check
        %p212 = pneg %p102
      $region22: #{run.7} parent=11 // pred_check_branch
        %214 = sbr.rel (%p212) target = $region24
      $region23: #{run.7} parent=11 // pred_region
        _
      $region24: #{run.7} parent=11 // pred_fallthru
        _
      // Predicated region
      $region25: #{run.7} parent=11 // pred_check
        %p215 = pneg %p123
      $region26: #{run.7} parent=11 // pred_check_branch
        %217 = sbr.rel (%p215) target = $region28
      $region27: #{run.7} parent=11 // pred_region
        _
      $region28: #{run.7} parent=11 // pred_fallthru
        _
      // Predicated region
      $region29: #{run.7} parent=11 // pred_check
        %p218 = pneg %p144
      $region30: #{run.7} parent=11 // pred_check_branch
        %220 = sbr.rel (%p218) target = $region32
      $region31: #{run.7} parent=11 // pred_region
        _
      $region32: #{run.7} parent=11 // pred_fallthru
        _
      // Predicated region
      $region33: #{run.7} parent=11 // pred_check
        %p221 = pneg %p165
      $region34: #{run.7} parent=11 // pred_check_branch
        %223 = sbr.rel (%p221) target = $region36
      $region35: #{run.7} parent=11 // pred_region
        _
      $region36: #{run.7} parent=11 // pred_fallthru
        _
    $region12: #{run.7} parent=5 // pred_fallthru
      _
    %p224 = scmp.lt.s32.totalorder %s13, 2
    // Predicated region
    $region37: #{run.7} parent=5 // pred_check
      %p225 = pneg %p224
    $region38: #{run.7} parent=5 // pred_check_branch
      %227 = sbr.rel (%p225) target = $region40
    $region39: #{run.7} parent=5 // pred_region
      // Predicated region
      $region41: #{run.7} parent=39 // pred_check
        %p228 = pneg %p33
      $region42: #{run.7} parent=39 // pred_check_branch
        %230 = sbr.rel (%p228) target = $region44
      $region43: #{run.7} parent=39 // pred_region
        %s231 = smul.u32 8, %s13
        %p232 = scmp.lt.s32.totalorder %s231, 15
        %s233 = scalar_select %p232, %s231, 15
        %s234 = smul.addr %s233, 2
        %s235 = smul.addr %s234, 8
        %s236 = scalar_lea.vmem %s0, %s235
        %s237 = smul.u32 8, %s13
      $region44: #{run.7} parent=39 // pred_fallthru
        _
    $region40: #{run.7} parent=5 // pred_fallthru
      _
    %p238 = scmp.le.s32.totalorder 1, %s13
    %p239 = scmp.lt.s32.totalorder %s13, 3
    %p240 = pnand %p238, %p239
    %p241 = pneg %p240
    // Predicated region
    $region45: #{run.7} parent=5 // pred_check
      _
    $region46: #{run.7} parent=5 // pred_check_branch
      %243 = sbr.rel (%p240) target = $region48
    $region47: #{run.7} parent=5 // pred_region
      %s244 = ssub.s32 %s13, 1
      %s245 = smul.u32 8, %s18
      %p246 = scmp.lt.s32.totalorder %s245, 15
      %s247 = scalar_select %p246, %s245, 15
      %s248 = smul.addr %s247, 2
      %s249 = smul.addr %s248, 8
      %s250 = scalar_lea.vmem %s0, %s249
      %p251 = pneg %p39
      %p252 = pneg %p36
      %p253 = pneg %p60
      %p254 = pneg %p57
      %p255 = pneg %p81
      %p256 = pneg %p78
      %p257 = pneg %p102
      %p258 = pneg %p99
      %p259 = pneg %p123
      %p260 = pneg %p120
      %p261 = pneg %p144
      %p262 = pneg %p141
      %p263 = pneg %p165
      %p264 = pneg %p162
      %p265 = pneg %p191
      %p266 = pneg %p188
      %s267 = smul.u32 8, %s18
      %p268 = scmp.lt.s32.totalorder %s267, 15
      %s269 = scalar_select %p268, %s267, 15
      %s270 = smul.addr %s269, 4
      %s271 = scalar_lea.vmem %s7, %s270
      %s272 = smul.u32 8, %s18
      %p273 = scmp.lt.s32.totalorder %s272, 15
      %s274 = scalar_select %p273, %s272, 15
      %s275 = smul.addr %s274, 2
      %s276 = smul.addr %s275, 8
      %s277 = scalar_lea.vmem %s0, %s276
      %s278 = smul.u32 8, %s18
      %s279 = smul.u32 8, %s18
      %p280 = scmp.lt.s32.totalorder %s279, 15
      %s281 = scalar_select %p280, %s279, 15
      %s282 = smul.addr %s281, 4
      %s283 = scalar_lea.vmem %s7, %s282
      %s284 = smul.u32 8, %s18
      %v286 = vld [vmem:[%s277] sm:$0xff]
      %v287 = vld [vmem:[%s277 + $0x8] sm:$0xff]
      %v288 = vld [vmem:[%s277 + $0x10] sm:$0xff]
      %v289 = vld [vmem:[%s277 + $0x18] sm:$0xff]
      %v290 = vld [vmem:[%s277 + $0x20] sm:$0xff]
      %v291 = vld [vmem:[%s277 + $0x28] sm:$0xff]
      %v292 = vld [vmem:[%s277 + $0x30] sm:$0xff]
      %v293 = vld [vmem:[%s277 + $0x38] sm:$0xff]
      %v294 = vld [vmem:[%s277 + $0x40] sm:$0xff]
      %v295 = vld [vmem:[%s277 + $0x48] sm:$0xff]
      %v296 = vld [vmem:[%s277 + $0x50] sm:$0xff]
      %v297 = vld [vmem:[%s277 + $0x58] sm:$0xff]
      %v298 = vld [vmem:[%s277 + $0x60] sm:$0xff]
      %v299 = vld [vmem:[%s277 + $0x68] sm:$0xff]
      %v300 = vld [vmem:[%s277 + $0x70] sm:$0xff]
      %v301 = vld [vmem:[%s277 + $0x78] sm:$0xff]
      %v302 = vpack.c.bf16 %v288, %v286
      %v303 = vpack.c.bf16 %v289, %v287
      %v304 = vpack.c.bf16 %v292, %v290
      %v305 = vpack.c.bf16 %v293, %v291
      %v306 = vpack.c.bf16 %v296, %v294
      %v307 = vpack.c.bf16 %v297, %v295
      %v308 = vpack.c.bf16 %v300, %v298
      %v309 = vpack.c.bf16 %v301, %v299
      %v310 = vld [vmem:[%s1] sm:$0xf]
      %v311 = vld [vmem:[%s1 + $0x4] sm:$0xf]
      %v312 = vld [vmem:[%s1 + $0x8] sm:$0xf]
      %v313 = vld [vmem:[%s1 + $0xc] sm:$0xf]
      %v314 = vld [vmem:[%s1 + $0x10] sm:$0xf]
      %v315 = vld [vmem:[%s1 + $0x14] sm:$0xf]
      %v316 = vld [vmem:[%s1 + $0x18] sm:$0xf]
      %v317 = vld [vmem:[%s1 + $0x1c] sm:$0xf]
      %v318 = vld [vmem:[%s1 + $0x20] sm:$0xf]
      %v319 = vld [vmem:[%s1 + $0x24] sm:$0xf]
      %v320 = vld [vmem:[%s1 + $0x28] sm:$0xf]
      %v321 = vld [vmem:[%s1 + $0x2c] sm:$0xf]
      %v322 = vld [vmem:[%s1 + $0x30] sm:$0xf]
      %v323 = vld [vmem:[%s1 + $0x34] sm:$0xf]
      %v324 = vld [vmem:[%s1 + $0x38] sm:$0xf]
      %v325 = vld [vmem:[%s1 + $0x3c] sm:$0xf]
      %v326 = vld [vmem:[%s1 + $0x40] sm:$0xf]
      %v327 = vld [vmem:[%s1 + $0x44] sm:$0xf]
      %v328 = vld [vmem:[%s1 + $0x48] sm:$0xf]
      %v329 = vld [vmem:[%s1 + $0x4c] sm:$0xf]
      %v330 = vld [vmem:[%s1 + $0x50] sm:$0xf]
      %v331 = vld [vmem:[%s1 + $0x54] sm:$0xf]
      %v332 = vld [vmem:[%s1 + $0x58] sm:$0xf]
      %v333 = vld [vmem:[%s1 + $0x5c] sm:$0xf]
      %v334 = vld [vmem:[%s1 + $0x60] sm:$0xf]
      %v335 = vld [vmem:[%s1 + $0x64] sm:$0xf]
      %v336 = vld [vmem:[%s1 + $0x68] sm:$0xf]
      %v337 = vld [vmem:[%s1 + $0x6c] sm:$0xf]
      %v338 = vld [vmem:[%s1 + $0x70] sm:$0xf]
      %v339 = vld [vmem:[%s1 + $0x74] sm:$0xf]
      %v340 = vld [vmem:[%s1 + $0x78] sm:$0xf]
      %v341 = vld [vmem:[%s1 + $0x7c] sm:$0xf]
      %v342 = vld [vmem:[%s2] sm:$0x1]
      %v344 = vlaneseq
      %v345 = vshrl.u32 %v344, 7
      %v346 = vsub.s32 0, %v345
      %v347 = vrot.slane %v342, %v346
      %v381 = vunpack.c.l.b16 %v310
      %v382 = vunpack.c.l.b16 %v311
      %v383 = vunpack.c.l.b16 %v312
      %v384 = vunpack.c.l.b16 %v313
      %v385 = vunpack.c.l.b16 %v314
      %v386 = vunpack.c.l.b16 %v315
      %v387 = vunpack.c.l.b16 %v316
      %v388 = vunpack.c.l.b16 %v317
      %v389 = vunpack.c.l.b16 %v318
      %v390 = vunpack.c.l.b16 %v319
      %v391 = vunpack.c.l.b16 %v320
      %v392 = vunpack.c.l.b16 %v321
      %v393 = vunpack.c.l.b16 %v322
      %v394 = vunpack.c.l.b16 %v323
      %v395 = vunpack.c.l.b16 %v324
      %v396 = vunpack.c.l.b16 %v325
      %v397 = vunpack.c.l.b16 %v326
      %v398 = vunpack.c.l.b16 %v327
      %v399 = vunpack.c.l.b16 %v328
      %v400 = vunpack.c.l.b16 %v329
      %v401 = vunpack.c.l.b16 %v330
      %v402 = vunpack.c.l.b16 %v331
      %v403 = vunpack.c.l.b16 %v332
      %v404 = vunpack.c.l.b16 %v333
      %v405 = vunpack.c.l.b16 %v334
      %v406 = vunpack.c.l.b16 %v335
      %v407 = vunpack.c.l.b16 %v336
      %v408 = vunpack.c.l.b16 %v337
      %v409 = vunpack.c.l.b16 %v338
      %v410 = vunpack.c.l.b16 %v339
      %v411 = vunpack.c.l.b16 %v340
      %v412 = vunpack.c.l.b16 %v341
      %v413 = vpack.c.b16 %v382, %v381
      %v414 = vpack.c.b16 %v384, %v383
      %v415 = vpack.c.b16 %v386, %v385
      %v416 = vpack.c.b16 %v388, %v387
      %v417 = vpack.c.b16 %v390, %v389
      %v418 = vpack.c.b16 %v392, %v391
      %v419 = vpack.c.b16 %v394, %v393
      %v420 = vpack.c.b16 %v396, %v395
      %v421 = vpack.c.b16 %v398, %v397
      %v422 = vpack.c.b16 %v400, %v399
      %v423 = vpack.c.b16 %v402, %v401
      %v424 = vpack.c.b16 %v404, %v403
      %v425 = vpack.c.b16 %v406, %v405
      %v426 = vpack.c.b16 %v408, %v407
      %v427 = vpack.c.b16 %v410, %v409
      %v428 = vpack.c.b16 %v412, %v411
      %445 = vmatprep.subr.bf16.mxu0 0
      %446 = vmatpush1.bf16.msra.mxu0 %v413
      %447 = vmatprep.subr.bf16.mxu0 0
      %448 = vmatpush1.bf16.msra.mxu0 %v414
      %449 = vmatprep.subr.bf16.mxu0 0
      %450 = vmatpush1.bf16.msra.mxu0 %v415
      %451 = vmatprep.subr.bf16.mxu0 0
      %452 = vmatpush1.bf16.msra.mxu0 %v416
      %453 = vmatprep.subr.bf16.mxu0 0
      %454 = vmatpush1.bf16.msra.mxu0 %v417
      %455 = vmatprep.subr.bf16.mxu0 0
      %456 = vmatpush1.bf16.msra.mxu0 %v418
      %457 = vmatprep.subr.bf16.mxu0 0
      %458 = vmatpush1.bf16.msra.mxu0 %v419
      %459 = vmatprep.subr.bf16.mxu0 0
      %460 = vmatpush1.bf16.msra.mxu0 %v420
      %461 = vmatprep.subr.bf16.mxu0 0
      %462 = vmatpush1.bf16.msra.mxu0 %v421
      %463 = vmatprep.subr.bf16.mxu0 0
      %464 = vmatpush1.bf16.msra.mxu0 %v422
      %465 = vmatprep.subr.bf16.mxu0 0
      %466 = vmatpush1.bf16.msra.mxu0 %v423
      %467 = vmatprep.subr.bf16.mxu0 0
      %468 = vmatpush1.bf16.msra.mxu0 %v424
      %469 = vmatprep.subr.bf16.mxu0 0
      %470 = vmatpush1.bf16.msra.mxu0 %v425
      %471 = vmatprep.subr.bf16.mxu0 0
      %472 = vmatpush1.bf16.msra.mxu0 %v426
      %473 = vmatprep.subr.bf16.mxu0 0
      %474 = vmatpush1.bf16.msra.mxu0 %v427
      %475 = vmatprep.subr.bf16.mxu0 0
      %476 = vmatpush1.bf16.msra.mxu0 %v428
      %477 = vmatprep.mubr.bf16.mxu0 %v303
      %478 = vmatmul.mubr.bf16.gmra.mrb[0].mxu0 %v302
      %v479 = vpop.f32.mrb[0].mxu0
      %v480 = vadd.f32 %v347, %v479
      %v481 = vpop.f32.mrb[0].mxu0
      %v482 = vpop.f32.mrb[0].mxu0
      %v483 = vadd.f32 %v347, %v482
      %v484 = vpop.f32.mrb[0].mxu0
      %485 = vmatprep.mubr.bf16.mxu0 %v305
      %486 = vmatmul.mubr.bf16.gmra.mrb[0].mxu0 %v304
      %v487 = vpop.f32.mrb[0].mxu0
      %v488 = vadd.f32 %v347, %v487
      %v489 = vpop.f32.mrb[0].mxu0
      %v490 = vpop.f32.mrb[0].mxu0
      %v491 = vadd.f32 %v347, %v490
      %v492 = vpop.f32.mrb[0].mxu0
      %493 = vmatprep.mubr.bf16.mxu0 %v307
      %494 = vmatmul.mubr.bf16.gmra.mrb[0].mxu0 %v306
      %v495 = vpop.f32.mrb[0].mxu0
      %v496 = vadd.f32 %v347, %v495
      %v497 = vpop.f32.mrb[0].mxu0
      %v498 = vpop.f32.mrb[0].mxu0
      %v499 = vadd.f32 %v347, %v498
      %v500 = vpop.f32.mrb[0].mxu0
      %501 = vmatprep.mubr.bf16.mxu0 %v309
      %502 = vmatmul.mubr.bf16.gmra.mrb[0].mxu0 %v308
      %v503 = vpop.f32.mrb[0].mxu0
      %v504 = vadd.f32 %v347, %v503
      %v505 = vpop.f32.mrb[0].mxu0
      %v506 = vpop.f32.mrb[0].mxu0
      %v507 = vadd.f32 %v347, %v506
      %v508 = vpop.f32.mrb[0].mxu0
      %509 = vdwg.mxu0
      %vm510 = vcmask 523264
      %v511 = vsel %vm510, %v480, 0.0
      %512 = vadd.xlane.f32.xlu0 %v511
      %v513 = vpop.xlane.xlu0 %512
      %v514 = vsel %vm510, %v483, 0.0
      %515 = vadd.xlane.f32.xlu0 %v514
      %v516 = vpop.xlane.xlu0 %515
      %v517 = vsel %vm510, %v488, 0.0
      %518 = vadd.xlane.f32.xlu0 %v517
      %v519 = vpop.xlane.xlu0 %518
      %v520 = vsel %vm510, %v491, 0.0
      %521 = vadd.xlane.f32.xlu0 %v520
      %v522 = vpop.xlane.xlu0 %521
      %v523 = vsel %vm510, %v496, 0.0
      %524 = vadd.xlane.f32.xlu0 %v523
      %v525 = vpop.xlane.xlu0 %524
      %v526 = vsel %vm510, %v499, 0.0
      %527 = vadd.xlane.f32.xlu0 %v526
      %v528 = vpop.xlane.xlu0 %527
      %v529 = vsel %vm510, %v504, 0.0
      %530 = vadd.xlane.f32.xlu0 %v529
      %v531 = vpop.xlane.xlu0 %530
      %v532 = vsel %vm510, %v507, 0.0
      %533 = vadd.xlane.f32.xlu0 %v532
      %v534 = vpop.xlane.xlu0 %533
      %v535 = vrcp.pop 64.0
      %v536 = vmul.f32 %v513, %v535
      %v537 = vmul.f32 %v516, %v535
      %v538 = vmul.f32 %v519, %v535
      %v539 = vmul.f32 %v522, %v535
      %v540 = vmul.f32 %v525, %v535
      %v541 = vmul.f32 %v528, %v535
      %v542 = vmul.f32 %v531, %v535
      %v543 = vmul.f32 %v534, %v535
      %v544 = vsub.f32 %v480, %v536
      %v545 = vsub.f32 %v483, %v537
      %v546 = vsub.f32 %v488, %v538
      %v547 = vsub.f32 %v491, %v539
      %v548 = vsub.f32 %v496, %v540
      %v549 = vsub.f32 %v499, %v541
      %v550 = vsub.f32 %v504, %v542
      %v551 = vsub.f32 %v507, %v543
      %v552 = vmul.f32 %v544, %v544
      %v553 = vmul.f32 %v545, %v545
      %v554 = vmul.f32 %v546, %v546
      %v555 = vmul.f32 %v547, %v547
      %v556 = vmul.f32 %v548, %v548
      %v557 = vmul.f32 %v549, %v549
      %v558 = vmul.f32 %v550, %v550
      %v559 = vmul.f32 %v551, %v551
      %v560 = vsel %vm510, %v552, 0.0
      %561 = vadd.xlane.f32.xlu0 %v560
      %v562 = vpop.xlane.xlu0 %561
      %v563 = vsel %vm510, %v553, 0.0
      %564 = vadd.xlane.f32.xlu0 %v563
      %v565 = vpop.xlane.xlu0 %564
      %v566 = vsel %vm510, %v554, 0.0
      %567 = vadd.xlane.f32.xlu0 %v566
      %v568 = vpop.xlane.xlu0 %567
      %v569 = vsel %vm510, %v555, 0.0
      %570 = vadd.xlane.f32.xlu0 %v569
      %v571 = vpop.xlane.xlu0 %570
      %v572 = vsel %vm510, %v556, 0.0
      %573 = vadd.xlane.f32.xlu0 %v572
      %v574 = vpop.xlane.xlu0 %573
      %v575 = vsel %vm510, %v557, 0.0
      %576 = vadd.xlane.f32.xlu0 %v575
      %v577 = vpop.xlane.xlu0 %576
      %v578 = vsel %vm510, %v558, 0.0
      %579 = vadd.xlane.f32.xlu0 %v578
      %v580 = vpop.xlane.xlu0 %579
      %v581 = vsel %vm510, %v559, 0.0
      %582 = vadd.xlane.f32.xlu0 %v581
      %v583 = vpop.xlane.xlu0 %582
      %v584 = vmul.f32 %v562, %v535
      %v585 = vmul.f32 %v565, %v535
      %v586 = vmul.f32 %v568, %v535
      %v587 = vmul.f32 %v571, %v535
      %v588 = vmul.f32 %v574, %v535
      %v589 = vmul.f32 %v577, %v535
      %v590 = vmul.f32 %v580, %v535
      %v591 = vmul.f32 %v583, %v535
      %v592 = vadd.f32 %v584, 1e-05
      %v593 = vadd.f32 %v585, 1e-05
      %v594 = vadd.f32 %v586, 1e-05
      %v595 = vadd.f32 %v587, 1e-05
      %v596 = vadd.f32 %v588, 1e-05
      %v597 = vadd.f32 %v589, 1e-05
      %v598 = vadd.f32 %v590, 1e-05
      %v599 = vadd.f32 %v591, 1e-05
      %v600 = vrsqrt.pop %v592
      %v601 = vrsqrt.pop %v593
      %v602 = vrsqrt.pop %v594
      %v603 = vrsqrt.pop %v595
      %v604 = vrsqrt.pop %v596
      %v605 = vrsqrt.pop %v597
      %v606 = vrsqrt.pop %v598
      %v607 = vrsqrt.pop %v599
      %v608 = vmul.f32 %v544, %v600
      %v609 = vmul.f32 %v545, %v601
      %v610 = vmul.f32 %v546, %v602
      %v611 = vmul.f32 %v547, %v603
      %v612 = vmul.f32 %v548, %v604
      %v613 = vmul.f32 %v549, %v605
      %v614 = vmul.f32 %v550, %v606
      %v615 = vmul.f32 %v551, %v607
      %v616 = vld [vmem:[%s3] sm:$0x1]
      %v618 = vlaneseq
      %v619 = vshrl.u32 %v618, 7
      %v620 = vsub.s32 0, %v619
      %v621 = vrot.slane %v616, %v620
      %v623 = vmul.f32 %v608, %v621
      %v624 = vmul.f32 %v609, %v621
      %v625 = vmul.f32 %v610, %v621
      %v626 = vmul.f32 %v611, %v621
      %v627 = vmul.f32 %v612, %v621
      %v628 = vmul.f32 %v613, %v621
      %v629 = vmul.f32 %v614, %v621
      %v630 = vmul.f32 %v615, %v621
      %v631 = vld [vmem:[%s4] sm:$0x1]
      %v633 = vlaneseq
      %v634 = vshrl.u32 %v633, 7
      %v635 = vsub.s32 0, %v634
      %v636 = vrot.slane %v631, %v635
      %v638 = vadd.f32 %v623, %v636
      %v639 = vadd.f32 %v624, %v636
      %v640 = vadd.f32 %v625, %v636
      %v641 = vadd.f32 %v626, %v636
      %v642 = vadd.f32 %v627, %v636
      %v643 = vadd.f32 %v628, %v636
      %v644 = vadd.f32 %v629, %v636
      %v645 = vadd.f32 %v630, %v636
      %v646 = vpack.c.bf16 %v639, %v638
      %v647 = vpack.c.bf16 %v641, %v640
      %v648 = vpack.c.bf16 %v643, %v642
      %v649 = vpack.c.bf16 %v645, %v644
      %v650 = vld [vmem:[%s5] sm:$0xf]
      %v651 = vld [vmem:[%s5 + $0x4] sm:$0xf]
      %v652 = vld [vmem:[%s5 + $0x8] sm:$0xf]
      %v653 = vld [vmem:[%s5 + $0xc] sm:$0xf]
      %v654 = vld [vmem:[%s5 + $0x10] sm:$0xf]
      %v655 = vld [vmem:[%s5 + $0x14] sm:$0xf]
      %v656 = vld [vmem:[%s5 + $0x18] sm:$0xf]
      %v657 = vld [vmem:[%s5 + $0x1c] sm:$0xf]
      %v658 = vld [vmem:[%s6] sm:$0x1]
      %v660 = vlaneseq
      %v661 = vshrl.u32 %v660, 7
      %v662 = vsub.s32 0, %v661
      %v663 = vrot.slane %v658, %v662
      %v673 = vunpack.c.l.b16 %v650
      %v674 = vunpack.c.l.b16 %v651
      %v675 = vunpack.c.l.b16 %v652
      %v676 = vunpack.c.l.b16 %v653
      %v677 = vunpack.c.l.b16 %v654
      %v678 = vunpack.c.l.b16 %v655
      %v679 = vunpack.c.l.b16 %v656
      %v680 = vunpack.c.l.b16 %v657
      %v681 = vpack.c.b16 %v674, %v673
      %v682 = vpack.c.b16 %v676, %v675
      %v683 = vpack.c.b16 %v678, %v677
      %v684 = vpack.c.b16 %v680, %v679
      %v690 = vsel %vm510, %v646, 0
      %v693 = vsel %vm510, %v647, 0
      %v696 = vsel %vm510, %v648, 0
      %v699 = vsel %vm510, %v649, 0
      %701 = vmatprep.subr.bf16.mxu0 0
      %702 = vmatpush1.bf16.msra.mxu0 %v681
      %703 = vmatprep.subr.bf16.mxu0 0
      %704 = vmatpush1.bf16.msra.mxu0 %v682
      %705 = vmatprep.subr.bf16.mxu0 0
      %706 = vmatpush1.bf16.msra.mxu0 %v683
      %707 = vmatprep.subr.bf16.mxu0 0
      %708 = vmatpush1.bf16.msra.mxu0 %v684
      %709 = vmatprep.subr.bf16.mxu0 0
      %710 = vmatpush1.bf16.msra.mxu0 0
      %711 = vmatprep.subr.bf16.mxu0 0
      %712 = vmatpush1.bf16.msra.mxu0 0
      %713 = vmatprep.subr.bf16.mxu0 0
      %714 = vmatpush1.bf16.msra.mxu0 0
      %715 = vmatprep.subr.bf16.mxu0 0
      %716 = vmatpush1.bf16.msra.mxu0 0
      %717 = vmatprep.subr.bf16.mxu0 0
      %718 = vmatpush1.bf16.msra.mxu0 0
      %719 = vmatprep.subr.bf16.mxu0 0
      %720 = vmatpush1.bf16.msra.mxu0 0
      %721 = vmatprep.subr.bf16.mxu0 0
      %722 = vmatpush1.bf16.msra.mxu0 0
      %723 = vmatprep.subr.bf16.mxu0 0
      %724 = vmatpush1.bf16.msra.mxu0 0
      %725 = vmatprep.subr.bf16.mxu0 0
      %726 = vmatpush1.bf16.msra.mxu0 0
      %727 = vmatprep.subr.bf16.mxu0 0
      %728 = vmatpush1.bf16.msra.mxu0 0
      %729 = vmatprep.subr.bf16.mxu0 0
      %730 = vmatpush1.bf16.msra.mxu0 0
      %731 = vmatprep.subr.bf16.mxu0 0
      %732 = vmatpush1.bf16.msra.mxu0 0
      %733 = vmatprep.mubr.bf16.mxu0 0
      %734 = vmatmul.mubr.bf16.gmra.mrb[0].mxu0 %v690
      %v735 = vpop.f32.mrb[0].mxu0
      %v736 = vadd.f32 %v663, %v735
      %v737 = vpop.f32.mrb[0].mxu0
      %v738 = vpop.f32.mrb[0].mxu0
      %v739 = vadd.f32 %v663, %v738
      %v740 = vpop.f32.mrb[0].mxu0
      %741 = vmatprep.mubr.bf16.mxu0 0
      %742 = vmatmul.mubr.bf16.gmra.mrb[0].mxu0 %v693
      %v743 = vpop.f32.mrb[0].mxu0
      %v744 = vadd.f32 %v663, %v743
      %v745 = vpop.f32.mrb[0].mxu0
      %v746 = vpop.f32.mrb[0].mxu0
      %v747 = vadd.f32 %v663, %v746
      %v748 = vpop.f32.mrb[0].mxu0
      %749 = vmatprep.mubr.bf16.mxu0 0
      %750 = vmatmul.mubr.bf16.gmra.mrb[0].mxu0 %v696
      %v751 = vpop.f32.mrb[0].mxu0
      %v752 = vadd.f32 %v663, %v751
      %v753 = vpop.f32.mrb[0].mxu0
      %v754 = vpop.f32.mrb[0].mxu0
      %v755 = vadd.f32 %v663, %v754
      %v756 = vpop.f32.mrb[0].mxu0
      %757 = vmatprep.mubr.bf16.mxu0 0
      %758 = vmatmul.mubr.bf16.gmra.mrb[0].mxu0 %v699
      %v759 = vpop.f32.mrb[0].mxu0
      %v760 = vadd.f32 %v663, %v759
      %v761 = vpop.f32.mrb[0].mxu0
      %v762 = vpop.f32.mrb[0].mxu0
      %v763 = vadd.f32 %v663, %v762
      %v764 = vpop.f32.mrb[0].mxu0
      %765 = vdwg.mxu0
      %v766 = vpack.c.bf16 %v739, %v736
      %v767 = vpack.c.bf16 %v747, %v744
      %v768 = vpack.c.bf16 %v755, %v752
      %v769 = vpack.c.bf16 %v763, %v760
      %v774 = vunpack.c.l.b16 %v766
      %v775 = vunpack.c.h.b16 %v766
      %v776 = vunpack.c.l.b16 %v767
      %v777 = vunpack.c.h.b16 %v767
      %v778 = vunpack.c.l.b16 %v768
      %v779 = vunpack.c.h.b16 %v768
      %v780 = vunpack.c.l.b16 %v769
      %v781 = vunpack.c.h.b16 %v769
      %v782 = vpack.c.b16 %v774, %v774
      %v783 = vpack.c.b16 %v775, %v775
      %v784 = vpack.c.b16 %v776, %v776
      %v785 = vpack.c.b16 %v777, %v777
      %v786 = vpack.c.b16 %v778, %v778
      %v787 = vpack.c.b16 %v779, %v779
      %v788 = vpack.c.b16 %v780, %v780
      %v789 = vpack.c.b16 %v781, %v781
      %798 = vst [vmem:[%s283] sm:$0xf] %v782
      %799 = vst [vmem:[%s283 + $0x4] sm:$0xf] %v783
      %800 = vst [vmem:[%s283 + $0x8] sm:$0xf] %v784
      %801 = vst [vmem:[%s283 + $0xc] sm:$0xf] %v785
      %802 = vst [vmem:[%s283 + $0x10] sm:$0xf] %v786
      %803 = vst [vmem:[%s283 + $0x14] sm:$0xf] %v787
      %804 = vst [vmem:[%s283 + $0x18] sm:$0xf] %v788
      %805 = vst [vmem:[%s283 + $0x1c] sm:$0xf] %v789
      %s806 = smul.u32 8, %s18
      %p807 = scmp.lt.s32.totalorder %s806, 15
      %s808 = scalar_select %p807, %s806, 15
      %s809 = smul.addr %s808, 4
      %s810 = scalar_lea.vmem %s7, %s809
      // Predicated region
      $region49: #{run.7} parent=47 // pred_check
        %p811 = pneg %p188
      $region50: #{run.7} parent=47 // pred_check_branch
        %813 = sbr.rel (%p811) target = $region52
      $region51: #{run.7} parent=47 // pred_region
        %s814 = smul.u32 8, %s18
      $region52: #{run.7} parent=47 // pred_fallthru
        _
    $region48: #{run.7} parent=5 // pred_fallthru
      _
    %p815 = scmp.le.s32.totalorder 2, %s13
    // Predicated region
    $region53: #{run.7} parent=5 // pred_check
      %p816 = pneg %p815
    $region54: #{run.7} parent=5 // pred_check_branch
      %818 = sbr.rel (%p816) target = $region56
    $region55: #{run.7} parent=5 // pred_region
      %s819 = ssub.s32 %s13, 2
      // Predicated region
      $region57: #{run.7} parent=55 // pred_check
        %p820 = pneg %p194
      $region58: #{run.7} parent=55 // pred_check_branch
        %822 = sbr.rel (%p820) target = $region60
      $region59: #{run.7} parent=55 // pred_region
        %s823 = smul.u32 8, %s19
        %p824 = scmp.lt.s32.totalorder %s823, 15
        %s825 = scalar_select %p824, %s823, 15
        %s826 = smul.addr %s825, 4
        %s827 = scalar_lea.vmem %s7, %s826
      $region60: #{run.7} parent=55 // pred_fallthru
        _
    $region56: #{run.7} parent=5 // pred_fallthru
      _
  $region6: #{run.7} parent=0 // loop_footer
    %s17 = sadd.s32 1, %s13
  $region7: #{run.7} parent=0 // loop_footer_branch
    %12 = sbr.rel target = $region3
  $region8: #{run.7} parent=0 // loop_exit
    _

// kernel: run.8
$region0: #{run.8}
  #allocation0 [shape = 'u32[]', space=smem, size = 0x4, offset = 0x4, fixed_abs, tag = 'smem constant byte address 0x4 - core index']
  #allocation1 [shape = 'u32[144,128]{1,0:T(1,128)}', space=vmem, size = 0x12000, scoped, tag = 'internal scratch']
  %s0 = inlined_call_operand.vmem [shape: bf16[2,64,64], index: 0, kind: input, shape index: {}]
  %s1 = inlined_call_operand.vmem [shape: bf16[2,64,128], index: 1, kind: input, shape index: {}]
  %s2 = inlined_call_operand.vmem [shape: f32[2,1,64], index: 2, kind: input, shape index: {}]
  %s3 = inlined_call_operand.vmem [shape: bf16[64,64], index: 3, kind: input, shape index: {}]
  %s4 = inlined_call_operand.vmem [shape: f32[1,64], index: 4, kind: input, shape index: {}]
  %s5 = inlined_call_operand.vmem [shape: f32[2,64,64], index: 5, kind: input, shape index: {}]
  %s6 = inlined_call_operand.vmem [shape: f32[2,64,64], index: 6, kind: output, shape index: {}]
  %s7 = sld [smem:[#allocation0]]
  $region57: #{run.8} parent=0
    _
  %s9 = ssub.s32 1, %s7
  %s10 = scalar_select 0, %s9, %s7
  loop: start=0, step=1, limit=4
  $region2: #{run.8} parent=0 // loop_pre_header
    _
  $region3: #{run.8} parent=0 // loop_header
    %s12 = sphi 0, %s16
    %p13 = scmp.ge.s32.totalorder %s12, 4
    %s22 = sphi 0, %s24
    %s25 = sphi 0, %s22
    %s26 = sphi 0, %s25
    %s42 = sphi 0, %s26
    %s48 = sphi 0, %s50
    %s51 = sphi 0, %s48
    %s52 = sphi 0, %s51
    %s68 = sphi 0, %s52
    %s74 = sphi 0, %s76
    %s77 = sphi 0, %s74
    %s78 = sphi 0, %s77
    %s94 = sphi 0, %s78
    %s98 = sphi 0, %s98
    %s100 = sphi 0, %s98
    %s101 = sphi 0, %s100
    %s115 = sphi 0, %s101
    %s119 = sphi 0, %s119
    %s121 = sphi 0, %s119
    %s122 = sphi 0, %s121
    %s136 = sphi 0, %s122
    %s142 = sphi 0, %s144
    %s145 = sphi 0, %s142
    %s146 = sphi 0, %s145
    %s162 = sphi 0, %s146
    %s168 = sphi 0, %s170
    %s171 = sphi 0, %s168
    %s172 = sphi 0, %s171
    %s188 = sphi 0, %s172
  $region4: #{run.8} parent=0 // loop_header_branch
    %15 = sbr.rel (%p13) target = $region8
  $region5: #{run.8} parent=0 // loop_body
    %s17 = ssub.s32 %s12, 1
    %s18 = ssub.s32 %s12, 2
    %s19 = sadd.s32 %s12, 1
    %s20 = ssub.s32 %s12, %s19
    %p21 = scmp.eq.s32.totalorder %s20, 0
    %s23 = sadd.s32 %s22, 1
    %s24 = scalar_select %p21, %s22, %s23
    %p27 = pneg %p21
    %p28 = scmp.eq.s32.totalorder %s12, 1
    %p29 = por %p27, %p28
    %p30 = scmp.ne.s32.totalorder %s22, %s25
    %p31 = scmp.eq.s32.totalorder %s12, 0
    %p32 = por %p30, %p31
    %p33 = scmp.ne.s32.totalorder %s22, %s25
    %p34 = scmp.eq.s32.totalorder %s17, 1
    %p35 = por %p33, %p34
    %p36 = scmp.ne.s32.totalorder %s25, %s26
    %p37 = scmp.eq.s32.totalorder %s17, 0
    %p38 = por %p36, %p37
    %p39 = scmp.ne.s32.totalorder %s25, %s26
    %p40 = scmp.eq.s32.totalorder %s18, 1
    %p41 = por %p39, %p40
    %p43 = scmp.ne.s32.totalorder %s26, %s42
    %p44 = scmp.eq.s32.totalorder %s18, 0
    %p45 = por %p43, %p44
    %s46 = ssub.s32 %s12, %s19
    %p47 = scmp.eq.s32.totalorder %s46, 0
    %s49 = sadd.s32 %s48, 1
    %s50 = scalar_select %p47, %s48, %s49
    %p53 = pneg %p47
    %p54 = scmp.eq.s32.totalorder %s12, 1
    %p55 = por %p53, %p54
    %p56 = scmp.ne.s32.totalorder %s48, %s51
    %p57 = scmp.eq.s32.totalorder %s12, 0
    %p58 = por %p56, %p57
    %p59 = scmp.ne.s32.totalorder %s48, %s51
    %p60 = scmp.eq.s32.totalorder %s17, 1
    %p61 = por %p59, %p60
    %p62 = scmp.ne.s32.totalorder %s51, %s52
    %p63 = scmp.eq.s32.totalorder %s17, 0
    %p64 = por %p62, %p63
    %p65 = scmp.ne.s32.totalorder %s51, %s52
    %p66 = scmp.eq.s32.totalorder %s18, 1
    %p67 = por %p65, %p66
    %p69 = scmp.ne.s32.totalorder %s52, %s68
    %p70 = scmp.eq.s32.totalorder %s18, 0
    %p71 = por %p69, %p70
    %s72 = ssub.s32 %s12, %s19
    %p73 = scmp.eq.s32.totalorder %s72, 0
    %s75 = sadd.s32 %s74, 1
    %s76 = scalar_select %p73, %s74, %s75
    %p79 = pneg %p73
    %p80 = scmp.eq.s32.totalorder %s12, 1
    %p81 = por %p79, %p80
    %p82 = scmp.ne.s32.totalorder %s74, %s77
    %p83 = scmp.eq.s32.totalorder %s12, 0
    %p84 = por %p82, %p83
    %p85 = scmp.ne.s32.totalorder %s74, %s77
    %p86 = scmp.eq.s32.totalorder %s17, 1
    %p87 = por %p85, %p86
    %p88 = scmp.ne.s32.totalorder %s77, %s78
    %p89 = scmp.eq.s32.totalorder %s17, 0
    %p90 = por %p88, %p89
    %p91 = scmp.ne.s32.totalorder %s77, %s78
    %p92 = scmp.eq.s32.totalorder %s18, 1
    %p93 = por %p91, %p92
    %p95 = scmp.ne.s32.totalorder %s78, %s94
    %p96 = scmp.eq.s32.totalorder %s18, 0
    %p97 = por %p95, %p96
    %s99 = sadd.s32 %s98, 1
    %p102 = scmp.eq.s32.totalorder %s12, 1
    %p103 = scmp.ne.s32.totalorder %s98, %s100
    %p104 = scmp.eq.s32.totalorder %s12, 0
    %p105 = por %p103, %p104
    %p106 = scmp.ne.s32.totalorder %s98, %s100
    %p107 = scmp.eq.s32.totalorder %s17, 1
    %p108 = por %p106, %p107
    %p109 = scmp.ne.s32.totalorder %s100, %s101
    %p110 = scmp.eq.s32.totalorder %s17, 0
    %p111 = por %p109, %p110
    %p112 = scmp.ne.s32.totalorder %s100, %s101
    %p113 = scmp.eq.s32.totalorder %s18, 1
    %p114 = por %p112, %p113
    %p116 = scmp.ne.s32.totalorder %s101, %s115
    %p117 = scmp.eq.s32.totalorder %s18, 0
    %p118 = por %p116, %p117
    %s120 = sadd.s32 %s119, 1
    %p123 = scmp.eq.s32.totalorder %s12, 1
    %p124 = scmp.ne.s32.totalorder %s119, %s121
    %p125 = scmp.eq.s32.totalorder %s12, 0
    %p126 = por %p124, %p125
    %p127 = scmp.ne.s32.totalorder %s119, %s121
    %p128 = scmp.eq.s32.totalorder %s17, 1
    %p129 = por %p127, %p128
    %p130 = scmp.ne.s32.totalorder %s121, %s122
    %p131 = scmp.eq.s32.totalorder %s17, 0
    %p132 = por %p130, %p131
    %p133 = scmp.ne.s32.totalorder %s121, %s122
    %p134 = scmp.eq.s32.totalorder %s18, 1
    %p135 = por %p133, %p134
    %p137 = scmp.ne.s32.totalorder %s122, %s136
    %p138 = scmp.eq.s32.totalorder %s18, 0
    %p139 = por %p137, %p138
    %s140 = ssub.s32 %s12, %s19
    %p141 = scmp.eq.s32.totalorder %s140, 0
    %s143 = sadd.s32 %s142, 1
    %s144 = scalar_select %p141, %s142, %s143
    %p147 = pneg %p141
    %p148 = scmp.eq.s32.totalorder %s12, 1
    %p149 = por %p147, %p148
    %p150 = scmp.ne.s32.totalorder %s142, %s145
    %p151 = scmp.eq.s32.totalorder %s12, 0
    %p152 = por %p150, %p151
    %p153 = scmp.ne.s32.totalorder %s142, %s145
    %p154 = scmp.eq.s32.totalorder %s17, 1
    %p155 = por %p153, %p154
    %p156 = scmp.ne.s32.totalorder %s145, %s146
    %p157 = scmp.eq.s32.totalorder %s17, 0
    %p158 = por %p156, %p157
    %p159 = scmp.ne.s32.totalorder %s145, %s146
    %p160 = scmp.eq.s32.totalorder %s18, 1
    %p161 = por %p159, %p160
    %p163 = scmp.ne.s32.totalorder %s146, %s162
    %p164 = scmp.eq.s32.totalorder %s18, 0
    %p165 = por %p163, %p164
    %s166 = ssub.s32 %s12, %s19
    %p167 = scmp.eq.s32.totalorder %s166, 0
    %s169 = sadd.s32 %s168, 1
    %s170 = scalar_select %p167, %s168, %s169
    %p173 = pneg %p167
    %p174 = scmp.eq.s32.totalorder %s12, 1
    %p175 = por %p173, %p174
    %p176 = scmp.ne.s32.totalorder %s168, %s171
    %p177 = scmp.eq.s32.totalorder %s12, 0
    %p178 = por %p176, %p177
    %p179 = scmp.ne.s32.totalorder %s168, %s171
    %p180 = scmp.eq.s32.totalorder %s17, 1
    %p181 = por %p179, %p180
    %p182 = scmp.ne.s32.totalorder %s171, %s172
    %p183 = scmp.eq.s32.totalorder %s17, 0
    %p184 = por %p182, %p183
    %p185 = scmp.ne.s32.totalorder %s171, %s172
    %p186 = scmp.eq.s32.totalorder %s18, 1
    %p187 = por %p185, %p186
    %p189 = scmp.ne.s32.totalorder %s172, %s188
    %p190 = scmp.eq.s32.totalorder %s18, 0
    %p191 = por %p189, %p190
    %p192 = scmp.le.s32.totalorder 1, %s12
    %p193 = scmp.lt.s32.totalorder %s12, 3
    %p194 = pnand %p192, %p193
    %p195 = pneg %p194
    // Predicated region
    $region9: #{run.8} parent=5 // pred_check
      _
    $region10: #{run.8} parent=5 // pred_check_branch
      %197 = sbr.rel (%p194) target = $region12
    $region11: #{run.8} parent=5 // pred_region
      %s198 = ssub.s32 %s12, 1
      // Predicated region
      $region13: #{run.8} parent=11 // pred_check
        %p199 = pneg %p111
      $region14: #{run.8} parent=11 // pred_check_branch
        %201 = sbr.rel (%p199) target = $region16
      $region15: #{run.8} parent=11 // pred_region
        _
      $region16: #{run.8} parent=11 // pred_fallthru
        _
      // Predicated region
      $region17: #{run.8} parent=11 // pred_check
        %p202 = pneg %p132
      $region18: #{run.8} parent=11 // pred_check_branch
        %204 = sbr.rel (%p202) target = $region20
      $region19: #{run.8} parent=11 // pred_region
        _
      $region20: #{run.8} parent=11 // pred_fallthru
        _
    $region12: #{run.8} parent=5 // pred_fallthru
      _
    %p205 = scmp.lt.s32.totalorder %s12, 2
    // Predicated region
    $region21: #{run.8} parent=5 // pred_check
      %p206 = pneg %p205
    $region22: #{run.8} parent=5 // pred_check_branch
      %208 = sbr.rel (%p206) target = $region24
    $region23: #{run.8} parent=5 // pred_region
      // Predicated region
      $region25: #{run.8} parent=23 // pred_check
        %p209 = pneg %p32
      $region26: #{run.8} parent=23 // pred_check_branch
        %211 = sbr.rel (%p209) target = $region28
      $region27: #{run.8} parent=23 // pred_region
        %p212 = scmp.lt.s32.totalorder %s12, 1
        %s213 = scalar_select %p212, %s12, 1
        %s214 = smul.addr %s213, 8
        %s215 = smul.addr %s214, 4
        %s216 = scalar_lea.vmem %s0, %s215
      $region28: #{run.8} parent=23 // pred_fallthru
        _
      // Predicated region
      $region29: #{run.8} parent=23 // pred_check
        %p217 = pneg %p58
      $region30: #{run.8} parent=23 // pred_check_branch
        %219 = sbr.rel (%p217) target = $region32
      $region31: #{run.8} parent=23 // pred_region
        %p220 = scmp.lt.s32.totalorder %s12, 1
        %s221 = scalar_select %p220, %s12, 1
        %s222 = smul.addr %s221, 8
        %s223 = smul.addr %s222, 4
        %s224 = scalar_lea.vmem %s1, %s223
      $region32: #{run.8} parent=23 // pred_fallthru
        _
      // Predicated region
      $region33: #{run.8} parent=23 // pred_check
        %p225 = pneg %p84
      $region34: #{run.8} parent=23 // pred_check_branch
        %227 = sbr.rel (%p225) target = $region36
      $region35: #{run.8} parent=23 // pred_region
        %p228 = scmp.lt.s32.totalorder %s12, 1
        %s229 = scalar_select %p228, %s12, 1
        %s230 = scalar_lea.vmem %s2, %s229
      $region36: #{run.8} parent=23 // pred_fallthru
        _
      // Predicated region
      $region37: #{run.8} parent=23 // pred_check
        %p231 = pneg %p152
      $region38: #{run.8} parent=23 // pred_check_branch
        %233 = sbr.rel (%p231) target = $region40
      $region39: #{run.8} parent=23 // pred_region
        %p234 = scmp.lt.s32.totalorder %s12, 1
        %s235 = scalar_select %p234, %s12, 1
        %s236 = smul.addr %s235, 8
        %s237 = smul.addr %s236, 8
        %s238 = scalar_lea.vmem %s5, %s237
      $region40: #{run.8} parent=23 // pred_fallthru
        _
    $region24: #{run.8} parent=5 // pred_fallthru
      _
    %p239 = scmp.le.s32.totalorder 1, %s12
    %p240 = scmp.lt.s32.totalorder %s12, 3
    %p241 = pnand %p239, %p240
    %p242 = pneg %p241
    // Predicated region
    $region41: #{run.8} parent=5 // pred_check
      _
    $region42: #{run.8} parent=5 // pred_check_branch
      %244 = sbr.rel (%p241) target = $region44
    $region43: #{run.8} parent=5 // pred_region
      %s245 = ssub.s32 %s12, 1
      %p246 = scmp.lt.s32.totalorder %s17, 1
      %s247 = scalar_select %p246, %s17, 1
      %s248 = smul.addr %s247, 8
      %s249 = smul.addr %s248, 4
      %s250 = scalar_lea.vmem %s0, %s249
      %p251 = pneg %p38
      %p252 = pneg %p35
      %p253 = scmp.lt.s32.totalorder %s17, 1
      %s254 = scalar_select %p253, %s17, 1
      %s255 = smul.addr %s254, 8
      %s256 = smul.addr %s255, 4
      %s257 = scalar_lea.vmem %s1, %s256
      %p258 = pneg %p64
      %p259 = pneg %p61
      %p260 = scmp.lt.s32.totalorder %s17, 1
      %s261 = scalar_select %p260, %s17, 1
      %s262 = scalar_lea.vmem %s2, %s261
      %p263 = pneg %p90
      %p264 = pneg %p87
      %p265 = pneg %p111
      %p266 = pneg %p108
      %p267 = pneg %p132
      %p268 = pneg %p129
      %p269 = scmp.lt.s32.totalorder %s17, 1
      %s270 = scalar_select %p269, %s17, 1
      %s271 = smul.addr %s270, 8
      %s272 = smul.addr %s271, 8
      %s273 = scalar_lea.vmem %s5, %s272
      %p274 = pneg %p158
      %p275 = pneg %p155
      %p276 = pneg %p184
      %p277 = pneg %p181
      %p278 = scmp.lt.s32.totalorder %s17, 1
      %s279 = scalar_select %p278, %s17, 1
      %s280 = smul.addr %s279, 8
      %s281 = smul.addr %s280, 8
      %s282 = scalar_lea.vmem %s6, %s281
      %p283 = scmp.lt.s32.totalorder %s17, 1
      %s284 = scalar_select %p283, %s17, 1
      %s285 = smul.addr %s284, 8
      %s286 = smul.addr %s285, 4
      %s287 = scalar_lea.vmem %s0, %s286
      %p288 = scmp.lt.s32.totalorder %s17, 1
      %s289 = scalar_select %p288, %s17, 1
      %s290 = smul.addr %s289, 8
      %s291 = smul.addr %s290, 4
      %s292 = scalar_lea.vmem %s1, %s291
      %p293 = scmp.lt.s32.totalorder %s17, 1
      %s294 = scalar_select %p293, %s17, 1
      %s295 = scalar_lea.vmem %s2, %s294
      %p296 = scmp.lt.s32.totalorder %s17, 1
      %s297 = scalar_select %p296, %s17, 1
      %s298 = smul.addr %s297, 8
      %s299 = smul.addr %s298, 8
      %s300 = scalar_lea.vmem %s5, %s299
      %p301 = scmp.lt.s32.totalorder %s17, 1
      %s302 = scalar_select %p301, %s17, 1
      %s303 = smul.addr %s302, 8
      %s304 = smul.addr %s303, 8
      %s305 = scalar_lea.vmem %s6, %s304
      %v307 = vld [vmem:[%s4] sm:$0x1]
      %v308 = vld [vmem:[%s300] sm:$0xff]
      %v309 = vld [vmem:[%s300 + $0x8] sm:$0xff]
      %v310 = vld [vmem:[%s300 + $0x10] sm:$0xff]
      %v311 = vld [vmem:[%s300 + $0x18] sm:$0xff]
      %v312 = vld [vmem:[%s300 + $0x20] sm:$0xff]
      %v313 = vld [vmem:[%s300 + $0x28] sm:$0xff]
      %v314 = vld [vmem:[%s300 + $0x30] sm:$0xff]
      %v315 = vld [vmem:[%s300 + $0x38] sm:$0xff]
      %v317 = vlaneseq
      %v318 = vshrl.u32 %v317, 7
      %v319 = vsub.s32 0, %v318
      %v320 = vrot.slane %v307, %v319
      %v322 = vadd.f32 %v320, %v308
      %v323 = vadd.f32 %v320, %v309
      %v324 = vadd.f32 %v320, %v310
      %v325 = vadd.f32 %v320, %v311
      %v326 = vadd.f32 %v320, %v312
      %v327 = vadd.f32 %v320, %v313
      %v328 = vadd.f32 %v320, %v314
      %v329 = vadd.f32 %v320, %v315
      %v330 = vld [vmem:[%s287] sm:$0xf]
      %v331 = vld [vmem:[%s287 + $0x4] sm:$0xf]
      %v332 = vld [vmem:[%s287 + $0x8] sm:$0xf]
      %v333 = vld [vmem:[%s287 + $0xc] sm:$0xf]
      %v334 = vld [vmem:[%s287 + $0x10] sm:$0xf]
      %v335 = vld [vmem:[%s287 + $0x14] sm:$0xf]
      %v336 = vld [vmem:[%s287 + $0x18] sm:$0xf]
      %v337 = vld [vmem:[%s287 + $0x1c] sm:$0xf]
      %v338 = vld [vmem:[%s292] sm:$0xf]
      %v339 = vld [vmem:[%s292 + $0x4] sm:$0xf]
      %v340 = vld [vmem:[%s292 + $0x8] sm:$0xf]
      %v341 = vld [vmem:[%s292 + $0xc] sm:$0xf]
      %v342 = vld [vmem:[%s292 + $0x10] sm:$0xf]
      %v343 = vld [vmem:[%s292 + $0x14] sm:$0xf]
      %v344 = vld [vmem:[%s292 + $0x18] sm:$0xf]
      %v345 = vld [vmem:[%s292 + $0x1c] sm:$0xf]
      %v346 = vld [vmem:[%s295] sm:$0x1]
      %v348 = vlaneseq
      %v349 = vshrl.u32 %v348, 7
      %v350 = vsub.s32 0, %v349
      %v351 = vrot.slane %v346, %v350
      %v361 = vunpack.c.l.b16 %v330
      %v362 = vunpack.c.l.b16 %v331
      %v363 = vunpack.c.l.b16 %v332
      %v364 = vunpack.c.l.b16 %v333
      %v365 = vunpack.c.l.b16 %v334
      %v366 = vunpack.c.l.b16 %v335
      %v367 = vunpack.c.l.b16 %v336
      %v368 = vunpack.c.l.b16 %v337
      %v369 = vpack.c.b16 %v362, %v361
      %v370 = vpack.c.b16 %v364, %v363
      %v371 = vpack.c.b16 %v366, %v365
      %v372 = vpack.c.b16 %v368, %v367
      %v381 = vunpack.c.l.b16 %v338
      %v382 = vunpack.c.l.b16 %v339
      %v383 = vunpack.c.l.b16 %v340
      %v384 = vunpack.c.l.b16 %v341
      %v385 = vunpack.c.l.b16 %v342
      %v386 = vunpack.c.l.b16 %v343
      %v387 = vunpack.c.l.b16 %v344
      %v388 = vunpack.c.l.b16 %v345
      %v389 = vpack.c.b16 %v382, %v381
      %v390 = vpack.c.b16 %v384, %v383
      %v391 = vpack.c.b16 %v386, %v385
      %v392 = vpack.c.b16 %v388, %v387
      %vm393 = vcmask 261120
      %v395 = vsel %vm393, %v369, 0
      %v398 = vsel %vm393, %v370, 0
      %v401 = vsel %vm393, %v371, 0
      %v404 = vsel %vm393, %v372, 0
      %v407 = vsel %vm393, %v389, 0
      %v410 = vsel %vm393, %v390, 0
      %v413 = vsel %vm393, %v391, 0
      %v416 = vsel %vm393, %v392, 0
      %418 = vmatprep.subr.bf16.mxu0 0
      %419 = vmatpush1.bf16.xpose.msra.mxu0 %v407
      %420 = vmatprep.subr.bf16.mxu0 0
      %421 = vmatpush1.bf16.xpose.msra.mxu0 %v410
      %422 = vmatprep.subr.bf16.mxu0 0
      %423 = vmatpush1.bf16.xpose.msra.mxu0 %v413
      %424 = vmatprep.subr.bf16.mxu0 0
      %425 = vmatpush1.bf16.xpose.msra.mxu0 %v416
      %426 = vmatprep.subr.bf16.mxu0 0
      %427 = vmatpush1.bf16.xpose.msra.mxu0 0
      %428 = vmatprep.subr.bf16.mxu0 0
      %429 = vmatpush1.bf16.xpose.msra.mxu0 0
      %430 = vmatprep.subr.bf16.mxu0 0
      %431 = vmatpush1.bf16.xpose.msra.mxu0 0
      %432 = vmatprep.subr.bf16.mxu0 0
      %433 = vmatpush1.bf16.xpose.msra.mxu0 0
      %434 = vmatprep.subr.bf16.mxu0 0
      %435 = vmatpush1.bf16.xpose.msra.mxu0 0
      %436 = vmatprep.subr.bf16.mxu0 0
      %437 = vmatpush1.bf16.xpose.msra.mxu0 0
      %438 = vmatprep.subr.bf16.mxu0 0
      %439 = vmatpush1.bf16.xpose.msra.mxu0 0
      %440 = vmatprep.subr.bf16.mxu0 0
      %441 = vmatpush1.bf16.xpose.msra.mxu0 0
      %442 = vmatprep.subr.bf16.mxu0 0
      %443 = vmatpush1.bf16.xpose.msra.mxu0 0
      %444 = vmatprep.subr.bf16.mxu0 0
      %445 = vmatpush1.bf16.xpose.msra.mxu0 0
      %446 = vmatprep.subr.bf16.mxu0 0
      %447 = vmatpush1.bf16.xpose.msra.mxu0 0
      %448 = vmatprep.subr.bf16.mxu0 0
      %449 = vmatpush1.bf16.xpose.msra.mxu0 0
      %450 = vmatprep.mubr.bf16.mxu0 0
      %451 = vmatmul.mubr.bf16.gmra.mrb[0].mxu0 %v395
      %v452 = vpop.f32.mrb[0].mxu0
      %v453 = vadd.f32 %v351, %v452
      %v454 = vpop.f32.mrb[0].mxu0
      %v455 = vpop.f32.mrb[0].mxu0
      %v456 = vadd.f32 %v351, %v455
      %v457 = vpop.f32.mrb[0].mxu0
      %458 = vmatprep.mubr.bf16.mxu0 0
      %459 = vmatmul.mubr.bf16.gmra.mrb[0].mxu0 %v398
      %v460 = vpop.f32.mrb[0].mxu0
      %v461 = vadd.f32 %v351, %v460
      %v462 = vpop.f32.mrb[0].mxu0
      %v463 = vpop.f32.mrb[0].mxu0
      %v464 = vadd.f32 %v351, %v463
      %v465 = vpop.f32.mrb[0].mxu0
      %466 = vmatprep.mubr.bf16.mxu0 0
      %467 = vmatmul.mubr.bf16.gmra.mrb[0].mxu0 %v401
      %v468 = vpop.f32.mrb[0].mxu0
      %v469 = vadd.f32 %v351, %v468
      %v470 = vpop.f32.mrb[0].mxu0
      %v471 = vpop.f32.mrb[0].mxu0
      %v472 = vadd.f32 %v351, %v471
      %v473 = vpop.f32.mrb[0].mxu0
      %474 = vmatprep.mubr.bf16.mxu0 0
      %475 = vmatmul.mubr.bf16.gmra.mrb[0].mxu0 %v404
      %v476 = vpop.f32.mrb[0].mxu0
      %v477 = vadd.f32 %v351, %v476
      %v478 = vpop.f32.mrb[0].mxu0
      %v479 = vpop.f32.mrb[0].mxu0
      %v480 = vadd.f32 %v351, %v479
      %v481 = vpop.f32.mrb[0].mxu0
      %482 = vdwg.mxu0
      %vm483 = vcmask 523264
      %v484 = vsel %vm483, %v453, -inf
      %485 = vmax.xlane.f32.xlu0 %v484
      %v486 = vpop.xlane.xlu0 %485
      %v487 = vsel %vm483, %v456, -inf
      %488 = vmax.xlane.f32.xlu0 %v487
      %v489 = vpop.xlane.xlu0 %488
      %v490 = vsel %vm483, %v461, -inf
      %491 = vmax.xlane.f32.xlu0 %v490
      %v492 = vpop.xlane.xlu0 %491
      %v493 = vsel %vm483, %v464, -inf
      %494 = vmax.xlane.f32.xlu0 %v493
      %v495 = vpop.xlane.xlu0 %494
      %v496 = vsel %vm483, %v469, -inf
      %497 = vmax.xlane.f32.xlu0 %v496
      %v498 = vpop.xlane.xlu0 %497
      %v499 = vsel %vm483, %v472, -inf
      %500 = vmax.xlane.f32.xlu0 %v499
      %v501 = vpop.xlane.xlu0 %500
      %v502 = vsel %vm483, %v477, -inf
      %503 = vmax.xlane.f32.xlu0 %v502
      %v504 = vpop.xlane.xlu0 %503
      %v505 = vsel %vm483, %v480, -inf
      %506 = vmax.xlane.f32.xlu0 %v505
      %v507 = vpop.xlane.xlu0 %506
      %v508 = vsub.f32 %v453, %v486
      %v509 = vsub.f32 %v456, %v489
      %v510 = vsub.f32 %v461, %v492
      %v511 = vsub.f32 %v464, %v495
      %v512 = vsub.f32 %v469, %v498
      %v513 = vsub.f32 %v472, %v501
      %v514 = vsub.f32 %v477, %v504
      %v515 = vsub.f32 %v480, %v507
      %v516 = vmul.f32 %v508, 1.442695
      %v517 = vpow.pop %v516
      %v518 = vmul.f32 %v509, 1.442695
      %v519 = vpow.pop %v518
      %v520 = vmul.f32 %v510, 1.442695
      %v521 = vpow.pop %v520
      %v522 = vmul.f32 %v511, 1.442695
      %v523 = vpow.pop %v522
      %v524 = vmul.f32 %v512, 1.442695
      %v525 = vpow.pop %v524
      %v526 = vmul.f32 %v513, 1.442695
      %v527 = vpow.pop %v526
      %v528 = vmul.f32 %v514, 1.442695
      %v529 = vpow.pop %v528
      %v530 = vmul.f32 %v515, 1.442695
      %v531 = vpow.pop %v530
      %v532 = vsel %vm483, %v517, 0.0
      %533 = vadd.xlane.f32.xlu0 %v532
      %v534 = vpop.xlane.xlu0 %533
      %v535 = vsel %vm483, %v519, 0.0
      %536 = vadd.xlane.f32.xlu0 %v535
      %v537 = vpop.xlane.xlu0 %536
      %v538 = vsel %vm483, %v521, 0.0
      %539 = vadd.xlane.f32.xlu0 %v538
      %v540 = vpop.xlane.xlu0 %539
      %v541 = vsel %vm483, %v523, 0.0
      %542 = vadd.xlane.f32.xlu0 %v541
      %v543 = vpop.xlane.xlu0 %542
      %v544 = vsel %vm483, %v525, 0.0
      %545 = vadd.xlane.f32.xlu0 %v544
      %v546 = vpop.xlane.xlu0 %545
      %v547 = vsel %vm483, %v527, 0.0
      %548 = vadd.xlane.f32.xlu0 %v547
      %v549 = vpop.xlane.xlu0 %548
      %v550 = vsel %vm483, %v529, 0.0
      %551 = vadd.xlane.f32.xlu0 %v550
      %v552 = vpop.xlane.xlu0 %551
      %v553 = vsel %vm483, %v531, 0.0
      %554 = vadd.xlane.f32.xlu0 %v553
      %v555 = vpop.xlane.xlu0 %554
      %v556 = vrcp.pop %v534
      %v557 = vrcp.pop %v537
      %v558 = vrcp.pop %v540
      %v559 = vrcp.pop %v543
      %v560 = vrcp.pop %v546
      %v561 = vrcp.pop %v549
      %v562 = vrcp.pop %v552
      %v563 = vrcp.pop %v555
      %v564 = vmul.f32 %v517, %v556
      %v565 = vmul.f32 %v519, %v557
      %v566 = vmul.f32 %v521, %v558
      %v567 = vmul.f32 %v523, %v559
      %v568 = vmul.f32 %v525, %v560
      %v569 = vmul.f32 %v527, %v561
      %v570 = vmul.f32 %v529, %v562
      %v571 = vmul.f32 %v531, %v563
      %v572 = vpack.c.bf16 %v565, %v564
      %v573 = vpack.c.bf16 %v567, %v566
      %v574 = vpack.c.bf16 %v569, %v568
      %v575 = vpack.c.bf16 %v571, %v570
      %576 = vrot.lane.b32.xlu0 %v389, 64
      %v577 = vpop.permute.xlu0 %576
      %578 = vrot.lane.b32.xlu0 %v390, 64
      %v579 = vpop.permute.xlu0 %578
      %580 = vrot.lane.b32.xlu0 %v391, 64
      %v581 = vpop.permute.xlu0 %580
      %582 = vrot.lane.b32.xlu0 %v392, 64
      %v583 = vpop.permute.xlu0 %582
      %v589 = vsel %vm483, %v572, 0
      %v592 = vsel %vm483, %v573, 0
      %v595 = vsel %vm483, %v574, 0
      %v598 = vsel %vm483, %v575, 0
      %600 = vmatprep.subr.bf16.mxu0 0
      %601 = vmatpush1.bf16.msra.mxu0 %v577
      %602 = vmatprep.subr.bf16.mxu0 0
      %603 = vmatpush1.bf16.msra.mxu0 %v579
      %604 = vmatprep.subr.bf16.mxu0 0
      %605 = vmatpush1.bf16.msra.mxu0 %v581
      %606 = vmatprep.subr.bf16.mxu0 0
      %607 = vmatpush1.bf16.msra.mxu0 %v583
      %608 = vmatprep.subr.bf16.mxu0 0
      %609 = vmatpush1.bf16.msra.mxu0 0
      %610 = vmatprep.subr.bf16.mxu0 0
      %611 = vmatpush1.bf16.msra.mxu0 0
      %612 = vmatprep.subr.bf16.mxu0 0
      %613 = vmatpush1.bf16.msra.mxu0 0
      %614 = vmatprep.subr.bf16.mxu0 0
      %615 = vmatpush1.bf16.msra.mxu0 0
      %616 = vmatprep.subr.bf16.mxu0 0
      %617 = vmatpush1.bf16.msra.mxu0 0
      %618 = vmatprep.subr.bf16.mxu0 0
      %619 = vmatpush1.bf16.msra.mxu0 0
      %620 = vmatprep.subr.bf16.mxu0 0
      %621 = vmatpush1.bf16.msra.mxu0 0
      %622 = vmatprep.subr.bf16.mxu0 0
      %623 = vmatpush1.bf16.msra.mxu0 0
      %624 = vmatprep.subr.bf16.mxu0 0
      %625 = vmatpush1.bf16.msra.mxu0 0
      %626 = vmatprep.subr.bf16.mxu0 0
      %627 = vmatpush1.bf16.msra.mxu0 0
      %628 = vmatprep.subr.bf16.mxu0 0
      %629 = vmatpush1.bf16.msra.mxu0 0
      %630 = vmatprep.subr.bf16.mxu0 0
      %631 = vmatpush1.bf16.msra.mxu0 0
      %632 = vmatprep.mubr.bf16.mxu0 0
      %633 = vmatmul.mubr.bf16.gmra.mrb[0].mxu0 %v589
      %v634 = vpop.f32.mrb[0].mxu0
      %v635 = vadd.f32 0.0, %v634
      %v636 = vpop.f32.mrb[0].mxu0
      %v637 = vpop.f32.mrb[0].mxu0
      %v638 = vadd.f32 0.0, %v637
      %v639 = vpop.f32.mrb[0].mxu0
      %640 = vmatprep.mubr.bf16.mxu0 0
      %641 = vmatmul.mubr.bf16.gmra.mrb[0].mxu0 %v592
      %v642 = vpop.f32.mrb[0].mxu0
      %v643 = vadd.f32 0.0, %v642
      %v644 = vpop.f32.mrb[0].mxu0
      %v645 = vpop.f32.mrb[0].mxu0
      %v646 = vadd.f32 0.0, %v645
      %v647 = vpop.f32.mrb[0].mxu0
      %648 = vmatprep.mubr.bf16.mxu0 0
      %649 = vmatmul.mubr.bf16.gmra.mrb[0].mxu0 %v595
      %v650 = vpop.f32.mrb[0].mxu0
      %v651 = vadd.f32 0.0, %v650
      %v652 = vpop.f32.mrb[0].mxu0
      %v653 = vpop.f32.mrb[0].mxu0
      %v654 = vadd.f32 0.0, %v653
      %v655 = vpop.f32.mrb[0].mxu0
      %656 = vmatprep.mubr.bf16.mxu0 0
      %657 = vmatmul.mubr.bf16.gmra.mrb[0].mxu0 %v598
      %v658 = vpop.f32.mrb[0].mxu0
      %v659 = vadd.f32 0.0, %v658
      %v660 = vpop.f32.mrb[0].mxu0
      %v661 = vpop.f32.mrb[0].mxu0
      %v662 = vadd.f32 0.0, %v661
      %v663 = vpop.f32.mrb[0].mxu0
      %664 = vdwg.mxu0
      %v665 = vpack.c.bf16 %v638, %v635
      %v666 = vpack.c.bf16 %v646, %v643
      %v667 = vpack.c.bf16 %v654, %v651
      %v668 = vpack.c.bf16 %v662, %v659
      %v669 = vld [vmem:[%s3] sm:$0xf]
      %v670 = vld [vmem:[%s3 + $0x4] sm:$0xf]
      %v671 = vld [vmem:[%s3 + $0x8] sm:$0xf]
      %v672 = vld [vmem:[%s3 + $0xc] sm:$0xf]
      %v677 = vunpack.c.l.b16 %v669
      %v678 = vunpack.c.l.b16 %v670
      %v679 = vunpack.c.l.b16 %v671
      %v680 = vunpack.c.l.b16 %v672
      %v681 = vpack.c.b16 %v678, %v677
      %v682 = vpack.c.b16 %v680, %v679
      %v686 = vsel %vm393, %v665, 0
      %v689 = vsel %vm393, %v666, 0
      %v692 = vsel %vm393, %v667, 0
      %v695 = vsel %vm393, %v668, 0
      %697 = vmatprep.subr.bf16.mxu0 0
      %698 = vmatpush1.bf16.msra.mxu0 %v681
      %699 = vmatprep.subr.bf16.mxu0 0
      %700 = vmatpush1.bf16.msra.mxu0 %v682
      %701 = vmatprep.subr.bf16.mxu0 0
      %702 = vmatpush1.bf16.msra.mxu0 0
      %703 = vmatprep.subr.bf16.mxu0 0
      %704 = vmatpush1.bf16.msra.mxu0 0
      %705 = vmatprep.subr.bf16.mxu0 0
      %706 = vmatpush1.bf16.msra.mxu0 0
      %707 = vmatprep.subr.bf16.mxu0 0
      %708 = vmatpush1.bf16.msra.mxu0 0
      %709 = vmatprep.subr.bf16.mxu0 0
      %710 = vmatpush1.bf16.msra.mxu0 0
      %711 = vmatprep.subr.bf16.mxu0 0
      %712 = vmatpush1.bf16.msra.mxu0 0
      %713 = vmatprep.subr.bf16.mxu0 0
      %714 = vmatpush1.bf16.msra.mxu0 0
      %715 = vmatprep.subr.bf16.mxu0 0
      %716 = vmatpush1.bf16.msra.mxu0 0
      %717 = vmatprep.subr.bf16.mxu0 0
      %718 = vmatpush1.bf16.msra.mxu0 0
      %719 = vmatprep.subr.bf16.mxu0 0
      %720 = vmatpush1.bf16.msra.mxu0 0
      %721 = vmatprep.subr.bf16.mxu0 0
      %722 = vmatpush1.bf16.msra.mxu0 0
      %723 = vmatprep.subr.bf16.mxu0 0
      %724 = vmatpush1.bf16.msra.mxu0 0
      %725 = vmatprep.subr.bf16.mxu0 0
      %726 = vmatpush1.bf16.msra.mxu0 0
      %727 = vmatprep.subr.bf16.mxu0 0
      %728 = vmatpush1.bf16.msra.mxu0 0
      %729 = vmatprep.mubr.bf16.mxu0 0
      %730 = vmatmul.mubr.bf16.gmra.mrb[0].mxu0 %v686
      %v731 = vpop.f32.mrb[0].mxu0
      %v732 = vadd.f32 0.0, %v731
      %v733 = vpop.f32.mrb[0].mxu0
      %v734 = vpop.f32.mrb[0].mxu0
      %v735 = vadd.f32 0.0, %v734
      %v736 = vpop.f32.mrb[0].mxu0
      %737 = vmatprep.mubr.bf16.mxu0 0
      %738 = vmatmul.mubr.bf16.gmra.mrb[0].mxu0 %v689
      %v739 = vpop.f32.mrb[0].mxu0
      %v740 = vadd.f32 0.0, %v739
      %v741 = vpop.f32.mrb[0].mxu0
      %v742 = vpop.f32.mrb[0].mxu0
      %v743 = vadd.f32 0.0, %v742
      %v744 = vpop.f32.mrb[0].mxu0
      %745 = vmatprep.mubr.bf16.mxu0 0
      %746 = vmatmul.mubr.bf16.gmra.mrb[0].mxu0 %v692
      %v747 = vpop.f32.mrb[0].mxu0
      %v748 = vadd.f32 0.0, %v747
      %v749 = vpop.f32.mrb[0].mxu0
      %v750 = vpop.f32.mrb[0].mxu0
      %v751 = vadd.f32 0.0, %v750
      %v752 = vpop.f32.mrb[0].mxu0
      %753 = vmatprep.mubr.bf16.mxu0 0
      %754 = vmatmul.mubr.bf16.gmra.mrb[0].mxu0 %v695
      %v755 = vpop.f32.mrb[0].mxu0
      %v756 = vadd.f32 0.0, %v755
      %v757 = vpop.f32.mrb[0].mxu0
      %v758 = vpop.f32.mrb[0].mxu0
      %v759 = vadd.f32 0.0, %v758
      %v760 = vpop.f32.mrb[0].mxu0
      %761 = vdwg.mxu0
      %v762 = vadd.f32 %v322, %v732
      %v763 = vadd.f32 %v323, %v735
      %v764 = vadd.f32 %v324, %v740
      %v765 = vadd.f32 %v325, %v743
      %v766 = vadd.f32 %v326, %v748
      %v767 = vadd.f32 %v327, %v751
      %v768 = vadd.f32 %v328, %v756
      %v769 = vadd.f32 %v329, %v759
      %770 = vrot.lane.b32.xlu0 %v369, 96
      %v771 = vpop.permute.xlu0 %770
      %772 = vrot.lane.b32.xlu0 %v370, 96
      %v773 = vpop.permute.xlu0 %772
      %774 = vrot.lane.b32.xlu0 %v371, 96
      %v775 = vpop.permute.xlu0 %774
      %776 = vrot.lane.b32.xlu0 %v372, 96
      %v777 = vpop.permute.xlu0 %776
      %778 = vrot.lane.b32.xlu0 %v389, 96
      %v779 = vpop.permute.xlu0 %778
      %780 = vrot.lane.b32.xlu0 %v390, 96
      %v781 = vpop.permute.xlu0 %780
      %782 = vrot.lane.b32.xlu0 %v391, 96
      %v783 = vpop.permute.xlu0 %782
      %784 = vrot.lane.b32.xlu0 %v392, 96
      %v785 = vpop.permute.xlu0 %784
      %v787 = vsel %vm393, %v771, 0
      %v790 = vsel %vm393, %v773, 0
      %v793 = vsel %vm393, %v775, 0
      %v796 = vsel %vm393, %v777, 0
      %v799 = vsel %vm393, %v779, 0
      %v802 = vsel %vm393, %v781, 0
      %v805 = vsel %vm393, %v783, 0
      %v808 = vsel %vm393, %v785, 0
      %810 = vmatprep.subr.bf16.mxu0 0
      %811 = vmatpush1.bf16.xpose.msra.mxu0 %v799
      %812 = vmatprep.subr.bf16.mxu0 0
      %813 = vmatpush1.bf16.xpose.msra.mxu0 %v802
      %814 = vmatprep.subr.bf16.mxu0 0
      %815 = vmatpush1.bf16.xpose.msra.mxu0 %v805
      %816 = vmatprep.subr.bf16.mxu0 0
      %817 = vmatpush1.bf16.xpose.msra.mxu0 %v808
      %818 = vmatprep.subr.bf16.mxu0 0
      %819 = vmatpush1.bf16.xpose.msra.mxu0 0
      %820 = vmatprep.subr.bf16.mxu0 0
      %821 = vmatpush1.bf16.xpose.msra.mxu0 0
      %822 = vmatprep.subr.bf16.mxu0 0
      %823 = vmatpush1.bf16.xpose.msra.mxu0 0
      %824 = vmatprep.subr.bf16.mxu0 0
      %825 = vmatpush1.bf16.xpose.msra.mxu0 0
      %826 = vmatprep.subr.bf16.mxu0 0
      %827 = vmatpush1.bf16.xpose.msra.mxu0 0
      %828 = vmatprep.subr.bf16.mxu0 0
      %829 = vmatpush1.bf16.xpose.msra.mxu0 0
      %830 = vmatprep.subr.bf16.mxu0 0
      %831 = vmatpush1.bf16.xpose.msra.mxu0 0
      %832 = vmatprep.subr.bf16.mxu0 0
      %833 = vmatpush1.bf16.xpose.msra.mxu0 0
      %834 = vmatprep.subr.bf16.mxu0 0
      %835 = vmatpush1.bf16.xpose.msra.mxu0 0
      %836 = vmatprep.subr.bf16.mxu0 0
      %837 = vmatpush1.bf16.xpose.msra.mxu0 0
      %838 = vmatprep.subr.bf16.mxu0 0
      %839 = vmatpush1.bf16.xpose.msra.mxu0 0
      %840 = vmatprep.subr.bf16.mxu0 0
      %841 = vmatpush1.bf16.xpose.msra.mxu0 0
      %842 = vmatprep.mubr.bf16.mxu0 0
      %843 = vmatmul.mubr.bf16.gmra.mrb[0].mxu0 %v787
      %v844 = vpop.f32.mrb[0].mxu0
      %v845 = vadd.f32 %v351, %v844
      %v846 = vpop.f32.mrb[0].mxu0
      %v847 = vpop.f32.mrb[0].mxu0
      %v848 = vadd.f32 %v351, %v847
      %v849 = vpop.f32.mrb[0].mxu0
      %850 = vmatprep.mubr.bf16.mxu0 0
      %851 = vmatmul.mubr.bf16.gmra.mrb[0].mxu0 %v790
      %v852 = vpop.f32.mrb[0].mxu0
      %v853 = vadd.f32 %v351, %v852
      %v854 = vpop.f32.mrb[0].mxu0
      %v855 = vpop.f32.mrb[0].mxu0
      %v856 = vadd.f32 %v351, %v855
      %v857 = vpop.f32.mrb[0].mxu0
      %858 = vmatprep.mubr.bf16.mxu0 0
      %859 = vmatmul.mubr.bf16.gmra.mrb[0].mxu0 %v793
      %v860 = vpop.f32.mrb[0].mxu0
      %v861 = vadd.f32 %v351, %v860
      %v862 = vpop.f32.mrb[0].mxu0
      %v863 = vpop.f32.mrb[0].mxu0
      %v864 = vadd.f32 %v351, %v863
      %v865 = vpop.f32.mrb[0].mxu0
      %866 = vmatprep.mubr.bf16.mxu0 0
      %867 = vmatmul.mubr.bf16.gmra.mrb[0].mxu0 %v796
      %v868 = vpop.f32.mrb[0].mxu0
      %v869 = vadd.f32 %v351, %v868
      %v870 = vpop.f32.mrb[0].mxu0
      %v871 = vpop.f32.mrb[0].mxu0
      %v872 = vadd.f32 %v351, %v871
      %v873 = vpop.f32.mrb[0].mxu0
      %874 = vdwg.mxu0
      %v875 = vsel %vm483, %v845, -inf
      %876 = vmax.xlane.f32.xlu0 %v875
      %v877 = vpop.xlane.xlu0 %876
      %v878 = vsel %vm483, %v848, -inf
      %879 = vmax.xlane.f32.xlu0 %v878
      %v880 = vpop.xlane.xlu0 %879
      %v881 = vsel %vm483, %v853, -inf
      %882 = vmax.xlane.f32.xlu0 %v881
      %v883 = vpop.xlane.xlu0 %882
      %v884 = vsel %vm483, %v856, -inf
      %885 = vmax.xlane.f32.xlu0 %v884
      %v886 = vpop.xlane.xlu0 %885
      %v887 = vsel %vm483, %v861, -inf
      %888 = vmax.xlane.f32.xlu0 %v887
      %v889 = vpop.xlane.xlu0 %888
      %v890 = vsel %vm483, %v864, -inf
      %891 = vmax.xlane.f32.xlu0 %v890
      %v892 = vpop.xlane.xlu0 %891
      %v893 = vsel %vm483, %v869, -inf
      %894 = vmax.xlane.f32.xlu0 %v893
      %v895 = vpop.xlane.xlu0 %894
      %v896 = vsel %vm483, %v872, -inf
      %897 = vmax.xlane.f32.xlu0 %v896
      %v898 = vpop.xlane.xlu0 %897
      %v899 = vsub.f32 %v845, %v877
      %v900 = vsub.f32 %v848, %v880
      %v901 = vsub.f32 %v853, %v883
      %v902 = vsub.f32 %v856, %v886
      %v903 = vsub.f32 %v861, %v889
      %v904 = vsub.f32 %v864, %v892
      %v905 = vsub.f32 %v869, %v895
      %v906 = vsub.f32 %v872, %v898
      %v907 = vmul.f32 %v899, 1.442695
      %v908 = vpow.pop %v907
      %v909 = vmul.f32 %v900, 1.442695
      %v910 = vpow.pop %v909
      %v911 = vmul.f32 %v901, 1.442695
      %v912 = vpow.pop %v911
      %v913 = vmul.f32 %v902, 1.442695
      %v914 = vpow.pop %v913
      %v915 = vmul.f32 %v903, 1.442695
      %v916 = vpow.pop %v915
      %v917 = vmul.f32 %v904, 1.442695
      %v918 = vpow.pop %v917
      %v919 = vmul.f32 %v905, 1.442695
      %v920 = vpow.pop %v919
      %v921 = vmul.f32 %v906, 1.442695
      %v922 = vpow.pop %v921
      %v923 = vsel %vm483, %v908, 0.0
      %924 = vadd.xlane.f32.xlu0 %v923
      %v925 = vpop.xlane.xlu0 %924
      %v926 = vsel %vm483, %v910, 0.0
      %927 = vadd.xlane.f32.xlu0 %v926
      %v928 = vpop.xlane.xlu0 %927
      %v929 = vsel %vm483, %v912, 0.0
      %930 = vadd.xlane.f32.xlu0 %v929
      %v931 = vpop.xlane.xlu0 %930
      %v932 = vsel %vm483, %v914, 0.0
      %933 = vadd.xlane.f32.xlu0 %v932
      %v934 = vpop.xlane.xlu0 %933
      %v935 = vsel %vm483, %v916, 0.0
      %936 = vadd.xlane.f32.xlu0 %v935
      %v937 = vpop.xlane.xlu0 %936
      %v938 = vsel %vm483, %v918, 0.0
      %939 = vadd.xlane.f32.xlu0 %v938
      %v940 = vpop.xlane.xlu0 %939
      %v941 = vsel %vm483, %v920, 0.0
      %942 = vadd.xlane.f32.xlu0 %v941
      %v943 = vpop.xlane.xlu0 %942
      %v944 = vsel %vm483, %v922, 0.0
      %945 = vadd.xlane.f32.xlu0 %v944
      %v946 = vpop.xlane.xlu0 %945
      %v947 = vrcp.pop %v925
      %v948 = vrcp.pop %v928
      %v949 = vrcp.pop %v931
      %v950 = vrcp.pop %v934
      %v951 = vrcp.pop %v937
      %v952 = vrcp.pop %v940
      %v953 = vrcp.pop %v943
      %v954 = vrcp.pop %v946
      %v955 = vmul.f32 %v908, %v947
      %v956 = vmul.f32 %v910, %v948
      %v957 = vmul.f32 %v912, %v949
      %v958 = vmul.f32 %v914, %v950
      %v959 = vmul.f32 %v916, %v951
      %v960 = vmul.f32 %v918, %v952
      %v961 = vmul.f32 %v920, %v953
      %v962 = vmul.f32 %v922, %v954
      %v963 = vpack.c.bf16 %v956, %v955
      %v964 = vpack.c.bf16 %v958, %v957
      %v965 = vpack.c.bf16 %v960, %v959
      %v966 = vpack.c.bf16 %v962, %v961
      %967 = vrot.lane.b32.xlu0 %v389, 32
      %v968 = vpop.permute.xlu0 %967
      %969 = vrot.lane.b32.xlu0 %v390, 32
      %v970 = vpop.permute.xlu0 %969
      %971 = vrot.lane.b32.xlu0 %v391, 32
      %v972 = vpop.permute.xlu0 %971
      %973 = vrot.lane.b32.xlu0 %v392, 32
      %v974 = vpop.permute.xlu0 %973
      %v980 = vsel %vm483, %v963, 0
      %v983 = vsel %vm483, %v964, 0
      %v986 = vsel %vm483, %v965, 0
      %v989 = vsel %vm483, %v966, 0
      %991 = vmatprep.subr.bf16.mxu0 0
      %992 = vmatpush1.bf16.msra.mxu0 %v968
      %993 = vmatprep.subr.bf16.mxu0 0
      %994 = vmatpush1.bf16.msra.mxu0 %v970
      %995 = vmatprep.subr.bf16.mxu0 0
      %996 = vmatpush1.bf16.msra.mxu0 %v972
      %997 = vmatprep.subr.bf16.mxu0 0
      %998 = vmatpush1.bf16.msra.mxu0 %v974
      %999 = vmatprep.subr.bf16.mxu0 0
      %1000 = vmatpush1.bf16.msra.mxu0 0
      %1001 = vmatprep.subr.bf16.mxu0 0
      %1002 = vmatpush1.bf16.msra.mxu0 0
      %1003 = vmatprep.subr.bf16.mxu0 0
      %1004 = vmatpush1.bf16.msra.mxu0 0
      %1005 = vmatprep.subr.bf16.mxu0 0
      %1006 = vmatpush1.bf16.msra.mxu0 0
      %1007 = vmatprep.subr.bf16.mxu0 0
      %1008 = vmatpush1.bf16.msra.mxu0 0
      %1009 = vmatprep.subr.bf16.mxu0 0
      %1010 = vmatpush1.bf16.msra.mxu0 0
      %1011 = vmatprep.subr.bf16.mxu0 0
      %1012 = vmatpush1.bf16.msra.mxu0 0
      %1013 = vmatprep.subr.bf16.mxu0 0
      %1014 = vmatpush1.bf16.msra.mxu0 0
      %1015 = vmatprep.subr.bf16.mxu0 0
      %1016 = vmatpush1.bf16.msra.mxu0 0
      %1017 = vmatprep.subr.bf16.mxu0 0
      %1018 = vmatpush1.bf16.msra.mxu0 0
      %1019 = vmatprep.subr.bf16.mxu0 0
      %1020 = vmatpush1.bf16.msra.mxu0 0
      %1021 = vmatprep.subr.bf16.mxu0 0
      %1022 = vmatpush1.bf16.msra.mxu0 0
      %1023 = vmatprep.mubr.bf16.mxu0 0
      %1024 = vmatmul.mubr.bf16.gmra.mrb[0].mxu0 %v980
      %v1025 = vpop.f32.mrb[0].mxu0
      %v1026 = vadd.f32 0.0, %v1025
      %v1027 = vpop.f32.mrb[0].mxu0
      %v1028 = vpop.f32.mrb[0].mxu0
      %v1029 = vadd.f32 0.0, %v1028
      %v1030 = vpop.f32.mrb[0].mxu0
      %1031 = vmatprep.mubr.bf16.mxu0 0
      %1032 = vmatmul.mubr.bf16.gmra.mrb[0].mxu0 %v983
      %v1033 = vpop.f32.mrb[0].mxu0
      %v1034 = vadd.f32 0.0, %v1033
      %v1035 = vpop.f32.mrb[0].mxu0
      %v1036 = vpop.f32.mrb[0].mxu0
      %v1037 = vadd.f32 0.0, %v1036
      %v1038 = vpop.f32.mrb[0].mxu0
      %1039 = vmatprep.mubr.bf16.mxu0 0
      %1040 = vmatmul.mubr.bf16.gmra.mrb[0].mxu0 %v986
      %v1041 = vpop.f32.mrb[0].mxu0
      %v1042 = vadd.f32 0.0, %v1041
      %v1043 = vpop.f32.mrb[0].mxu0
      %v1044 = vpop.f32.mrb[0].mxu0
      %v1045 = vadd.f32 0.0, %v1044
      %v1046 = vpop.f32.mrb[0].mxu0
      %1047 = vmatprep.mubr.bf16.mxu0 0
      %1048 = vmatmul.mubr.bf16.gmra.mrb[0].mxu0 %v989
      %v1049 = vpop.f32.mrb[0].mxu0
      %v1050 = vadd.f32 0.0, %v1049
      %v1051 = vpop.f32.mrb[0].mxu0
      %v1052 = vpop.f32.mrb[0].mxu0
      %v1053 = vadd.f32 0.0, %v1052
      %v1054 = vpop.f32.mrb[0].mxu0
      %1055 = vdwg.mxu0
      %v1056 = vpack.c.bf16 %v1029, %v1026
      %v1057 = vpack.c.bf16 %v1037, %v1034
      %v1058 = vpack.c.bf16 %v1045, %v1042
      %v1059 = vpack.c.bf16 %v1053, %v1050
      %v1060 = vld [vmem:[%s3 + $0x10] sm:$0xf]
      %v1061 = vld [vmem:[%s3 + $0x14] sm:$0xf]
      %v1062 = vld [vmem:[%s3 + $0x18] sm:$0xf]
      %v1063 = vld [vmem:[%s3 + $0x1c] sm:$0xf]
      %v1068 = vunpack.c.l.b16 %v1060
      %v1069 = vunpack.c.l.b16 %v1061
      %v1070 = vunpack.c.l.b16 %v1062
      %v1071 = vunpack.c.l.b16 %v1063
      %v1072 = vpack.c.b16 %v1069, %v1068
      %v1073 = vpack.c.b16 %v1071, %v1070
      %v1077 = vsel %vm393, %v1056, 0
      %v1080 = vsel %vm393, %v1057, 0
      %v1083 = vsel %vm393, %v1058, 0
      %v1086 = vsel %vm393, %v1059, 0
      %1088 = vmatprep.subr.bf16.mxu0 0
      %1089 = vmatpush1.bf16.msra.mxu0 %v1072
      %1090 = vmatprep.subr.bf16.mxu0 0
      %1091 = vmatpush1.bf16.msra.mxu0 %v1073
      %1092 = vmatprep.subr.bf16.mxu0 0
      %1093 = vmatpush1.bf16.msra.mxu0 0
      %1094 = vmatprep.subr.bf16.mxu0 0
      %1095 = vmatpush1.bf16.msra.mxu0 0
      %1096 = vmatprep.subr.bf16.mxu0 0
      %1097 = vmatpush1.bf16.msra.mxu0 0
      %1098 = vmatprep.subr.bf16.mxu0 0
      %1099 = vmatpush1.bf16.msra.mxu0 0
      %1100 = vmatprep.subr.bf16.mxu0 0
      %1101 = vmatpush1.bf16.msra.mxu0 0
      %1102 = vmatprep.subr.bf16.mxu0 0
      %1103 = vmatpush1.bf16.msra.mxu0 0
      %1104 = vmatprep.subr.bf16.mxu0 0
      %1105 = vmatpush1.bf16.msra.mxu0 0
      %1106 = vmatprep.subr.bf16.mxu0 0
      %1107 = vmatpush1.bf16.msra.mxu0 0
      %1108 = vmatprep.subr.bf16.mxu0 0
      %1109 = vmatpush1.bf16.msra.mxu0 0
      %1110 = vmatprep.subr.bf16.mxu0 0
      %1111 = vmatpush1.bf16.msra.mxu0 0
      %1112 = vmatprep.subr.bf16.mxu0 0
      %1113 = vmatpush1.bf16.msra.mxu0 0
      %1114 = vmatprep.subr.bf16.mxu0 0
      %1115 = vmatpush1.bf16.msra.mxu0 0
      %1116 = vmatprep.subr.bf16.mxu0 0
      %1117 = vmatpush1.bf16.msra.mxu0 0
      %1118 = vmatprep.subr.bf16.mxu0 0
      %1119 = vmatpush1.bf16.msra.mxu0 0
      %1120 = vmatprep.mubr.bf16.mxu0 0
      %1121 = vmatmul.mubr.bf16.gmra.mrb[0].mxu0 %v1077
      %v1122 = vpop.f32.mrb[0].mxu0
      %v1123 = vadd.f32 0.0, %v1122
      %v1124 = vpop.f32.mrb[0].mxu0
      %v1125 = vpop.f32.mrb[0].mxu0
      %v1126 = vadd.f32 0.0, %v1125
      %v1127 = vpop.f32.mrb[0].mxu0
      %1128 = vmatprep.mubr.bf16.mxu0 0
      %1129 = vmatmul.mubr.bf16.gmra.mrb[0].mxu0 %v1080
      %v1130 = vpop.f32.mrb[0].mxu0
      %v1131 = vadd.f32 0.0, %v1130
      %v1132 = vpop.f32.mrb[0].mxu0
      %v1133 = vpop.f32.mrb[0].mxu0
      %v1134 = vadd.f32 0.0, %v1133
      %v1135 = vpop.f32.mrb[0].mxu0
      %1136 = vmatprep.mubr.bf16.mxu0 0
      %1137 = vmatmul.mubr.bf16.gmra.mrb[0].mxu0 %v1083
      %v1138 = vpop.f32.mrb[0].mxu0
      %v1139 = vadd.f32 0.0, %v1138
      %v1140 = vpop.f32.mrb[0].mxu0
      %v1141 = vpop.f32.mrb[0].mxu0
      %v1142 = vadd.f32 0.0, %v1141
      %v1143 = vpop.f32.mrb[0].mxu0
      %1144 = vmatprep.mubr.bf16.mxu0 0
      %1145 = vmatmul.mubr.bf16.gmra.mrb[0].mxu0 %v1086
      %v1146 = vpop.f32.mrb[0].mxu0
      %v1147 = vadd.f32 0.0, %v1146
      %v1148 = vpop.f32.mrb[0].mxu0
      %v1149 = vpop.f32.mrb[0].mxu0
      %v1150 = vadd.f32 0.0, %v1149
      %v1151 = vpop.f32.mrb[0].mxu0
      %1152 = vdwg.mxu0
      %v1153 = vadd.f32 %v762, %v1123
      %v1154 = vadd.f32 %v763, %v1126
      %v1155 = vadd.f32 %v764, %v1131
      %v1156 = vadd.f32 %v765, %v1134
      %v1157 = vadd.f32 %v766, %v1139
      %v1158 = vadd.f32 %v767, %v1142
      %v1159 = vadd.f32 %v768, %v1147
      %v1160 = vadd.f32 %v769, %v1150
      %1161 = vst.msk [vmem:[%s305] sm:$0xff] %vm483, %v1153
      %1162 = vst.msk [vmem:[%s305 + $0x8] sm:$0xff] %vm483, %v1154
      %1163 = vst.msk [vmem:[%s305 + $0x10] sm:$0xff] %vm483, %v1155
      %1164 = vst.msk [vmem:[%s305 + $0x18] sm:$0xff] %vm483, %v1156
      %1165 = vst.msk [vmem:[%s305 + $0x20] sm:$0xff] %vm483, %v1157
      %1166 = vst.msk [vmem:[%s305 + $0x28] sm:$0xff] %vm483, %v1158
      %1167 = vst.msk [vmem:[%s305 + $0x30] sm:$0xff] %vm483, %v1159
      %1168 = vst.msk [vmem:[%s305 + $0x38] sm:$0xff] %vm483, %v1160
      %p1169 = scmp.lt.s32.totalorder %s17, 1
      %s1170 = scalar_select %p1169, %s17, 1
      %s1171 = smul.addr %s1170, 8
      %s1172 = smul.addr %s1171, 8
      %s1173 = scalar_lea.vmem %s6, %s1172
      // Predicated region
      $region45: #{run.8} parent=43 // pred_check
        %p1174 = pneg %p181
      $region46: #{run.8} parent=43 // pred_check_branch
        %1176 = sbr.rel (%p1174) target = $region48
      $region47: #{run.8} parent=43 // pred_region
        _
      $region48: #{run.8} parent=43 // pred_fallthru
        _
    $region44: #{run.8} parent=5 // pred_fallthru
      _
    %p1177 = scmp.le.s32.totalorder 2, %s12
    // Predicated region
    $region49: #{run.8} parent=5 // pred_check
      %p1178 = pneg %p1177
    $region50: #{run.8} parent=5 // pred_check_branch
      %1180 = sbr.rel (%p1178) target = $region52
    $region51: #{run.8} parent=5 // pred_region
      %s1181 = ssub.s32 %s12, 2
      // Predicated region
      $region53: #{run.8} parent=51 // pred_check
        %p1182 = pneg %p187
      $region54: #{run.8} parent=51 // pred_check_branch
        %1184 = sbr.rel (%p1182) target = $region56
      $region55: #{run.8} parent=51 // pred_region
        %p1185 = scmp.lt.s32.totalorder %s18, 1
        %s1186 = scalar_select %p1185, %s18, 1
        %s1187 = smul.addr %s1186, 8
        %s1188 = smul.addr %s1187, 8
        %s1189 = scalar_lea.vmem %s6, %s1188
      $region56: #{run.8} parent=51 // pred_fallthru
        _
    $region52: #{run.8} parent=5 // pred_fallthru
      _
  $region6: #{run.8} parent=0 // loop_footer
    %s16 = sadd.s32 1, %s12
  $region7: #{run.8} parent=0 // loop_footer_branch
    %11 = sbr.rel target = $region3
  $region8: #{run.8} parent=0 // loop_exit
    _

// kernel: run.9
$region0: #{run.9}
  #allocation0 [shape = 'u32[]', space=smem, size = 0x4, offset = 0x4, fixed_abs, tag = 'smem constant byte address 0x4 - core index']
  #allocation1 [shape = 'u32[144,128]{1,0:T(1,128)}', space=vmem, size = 0x12000, scoped, tag = 'internal scratch']
  %s0 = inlined_call_operand.vmem [shape: f32[128,64], index: 0, kind: input, shape index: {}]
  %s1 = inlined_call_operand.vmem [shape: f32[1,64], index: 1, kind: input, shape index: {}]
  %s2 = inlined_call_operand.vmem [shape: f32[1,64], index: 2, kind: input, shape index: {}]
  %s3 = inlined_call_operand.vmem [shape: bf16[64,256], index: 3, kind: input, shape index: {}]
  %s4 = inlined_call_operand.vmem [shape: f32[1,256], index: 4, kind: input, shape index: {}]
  %s5 = inlined_call_operand.vmem [shape: f32[128,256], index: 5, kind: output, shape index: {}]
  %s6 = sld [smem:[#allocation0]]
  $region53: #{run.9} parent=0
    _
  %s8 = ssub.s32 1, %s6
  %s9 = scalar_select 0, %s8, %s6
  loop: start=0, step=1, limit=4
  $region2: #{run.9} parent=0 // loop_pre_header
    _
  $region3: #{run.9} parent=0 // loop_header
    %s11 = sphi 0, %s15
    %p12 = scmp.ge.s32.totalorder %s11, 4
    %s21 = sphi 0, %s23
    %s24 = sphi 0, %s21
    %s25 = sphi 0, %s24
    %s41 = sphi 0, %s25
    %s45 = sphi 0, %s45
    %s47 = sphi 0, %s45
    %s48 = sphi 0, %s47
    %s62 = sphi 0, %s48
    %s66 = sphi 0, %s66
    %s68 = sphi 0, %s66
    %s69 = sphi 0, %s68
    %s83 = sphi 0, %s69
    %s87 = sphi 0, %s87
    %s89 = sphi 0, %s87
    %s90 = sphi 0, %s89
    %s104 = sphi 0, %s90
    %s108 = sphi 0, %s108
    %s110 = sphi 0, %s108
    %s111 = sphi 0, %s110
    %s125 = sphi 0, %s111
    %s131 = sphi 0, %s133
    %s134 = sphi 0, %s131
    %s135 = sphi 0, %s134
    %s151 = sphi 0, %s135
  $region4: #{run.9} parent=0 // loop_header_branch
    %14 = sbr.rel (%p12) target = $region8
  $region5: #{run.9} parent=0 // loop_body
    %s16 = ssub.s32 %s11, 1
    %s17 = ssub.s32 %s11, 2
    %s18 = sadd.s32 %s11, 1
    %s19 = ssub.s32 %s11, %s18
    %p20 = scmp.eq.s32.totalorder %s19, 0
    %s22 = sadd.s32 %s21, 1
    %s23 = scalar_select %p20, %s21, %s22
    %p26 = pneg %p20
    %p27 = scmp.eq.s32.totalorder %s11, 1
    %p28 = por %p26, %p27
    %p29 = scmp.ne.s32.totalorder %s21, %s24
    %p30 = scmp.eq.s32.totalorder %s11, 0
    %p31 = por %p29, %p30
    %p32 = scmp.ne.s32.totalorder %s21, %s24
    %p33 = scmp.eq.s32.totalorder %s16, 1
    %p34 = por %p32, %p33
    %p35 = scmp.ne.s32.totalorder %s24, %s25
    %p36 = scmp.eq.s32.totalorder %s16, 0
    %p37 = por %p35, %p36
    %p38 = scmp.ne.s32.totalorder %s24, %s25
    %p39 = scmp.eq.s32.totalorder %s17, 1
    %p40 = por %p38, %p39
    %p42 = scmp.ne.s32.totalorder %s25, %s41
    %p43 = scmp.eq.s32.totalorder %s17, 0
    %p44 = por %p42, %p43
    %s46 = sadd.s32 %s45, 1
    %p49 = scmp.eq.s32.totalorder %s11, 1
    %p50 = scmp.ne.s32.totalorder %s45, %s47
    %p51 = scmp.eq.s32.totalorder %s11, 0
    %p52 = por %p50, %p51
    %p53 = scmp.ne.s32.totalorder %s45, %s47
    %p54 = scmp.eq.s32.totalorder %s16, 1
    %p55 = por %p53, %p54
    %p56 = scmp.ne.s32.totalorder %s47, %s48
    %p57 = scmp.eq.s32.totalorder %s16, 0
    %p58 = por %p56, %p57
    %p59 = scmp.ne.s32.totalorder %s47, %s48
    %p60 = scmp.eq.s32.totalorder %s17, 1
    %p61 = por %p59, %p60
    %p63 = scmp.ne.s32.totalorder %s48, %s62
    %p64 = scmp.eq.s32.totalorder %s17, 0
    %p65 = por %p63, %p64
    %s67 = sadd.s32 %s66, 1
    %p70 = scmp.eq.s32.totalorder %s11, 1
    %p71 = scmp.ne.s32.totalorder %s66, %s68
    %p72 = scmp.eq.s32.totalorder %s11, 0
    %p73 = por %p71, %p72
    %p74 = scmp.ne.s32.totalorder %s66, %s68
    %p75 = scmp.eq.s32.totalorder %s16, 1
    %p76 = por %p74, %p75
    %p77 = scmp.ne.s32.totalorder %s68, %s69
    %p78 = scmp.eq.s32.totalorder %s16, 0
    %p79 = por %p77, %p78
    %p80 = scmp.ne.s32.totalorder %s68, %s69
    %p81 = scmp.eq.s32.totalorder %s17, 1
    %p82 = por %p80, %p81
    %p84 = scmp.ne.s32.totalorder %s69, %s83
    %p85 = scmp.eq.s32.totalorder %s17, 0
    %p86 = por %p84, %p85
    %s88 = sadd.s32 %s87, 1
    %p91 = scmp.eq.s32.totalorder %s11, 1
    %p92 = scmp.ne.s32.totalorder %s87, %s89
    %p93 = scmp.eq.s32.totalorder %s11, 0
    %p94 = por %p92, %p93
    %p95 = scmp.ne.s32.totalorder %s87, %s89
    %p96 = scmp.eq.s32.totalorder %s16, 1
    %p97 = por %p95, %p96
    %p98 = scmp.ne.s32.totalorder %s89, %s90
    %p99 = scmp.eq.s32.totalorder %s16, 0
    %p100 = por %p98, %p99
    %p101 = scmp.ne.s32.totalorder %s89, %s90
    %p102 = scmp.eq.s32.totalorder %s17, 1
    %p103 = por %p101, %p102
    %p105 = scmp.ne.s32.totalorder %s90, %s104
    %p106 = scmp.eq.s32.totalorder %s17, 0
    %p107 = por %p105, %p106
    %s109 = sadd.s32 %s108, 1
    %p112 = scmp.eq.s32.totalorder %s11, 1
    %p113 = scmp.ne.s32.totalorder %s108, %s110
    %p114 = scmp.eq.s32.totalorder %s11, 0
    %p115 = por %p113, %p114
    %p116 = scmp.ne.s32.totalorder %s108, %s110
    %p117 = scmp.eq.s32.totalorder %s16, 1
    %p118 = por %p116, %p117
    %p119 = scmp.ne.s32.totalorder %s110, %s111
    %p120 = scmp.eq.s32.totalorder %s16, 0
    %p121 = por %p119, %p120
    %p122 = scmp.ne.s32.totalorder %s110, %s111
    %p123 = scmp.eq.s32.totalorder %s17, 1
    %p124 = por %p122, %p123
    %p126 = scmp.ne.s32.totalorder %s111, %s125
    %p127 = scmp.eq.s32.totalorder %s17, 0
    %p128 = por %p126, %p127
    %s129 = ssub.s32 %s11, %s18
    %p130 = scmp.eq.s32.totalorder %s129, 0
    %s132 = sadd.s32 %s131, 1
    %s133 = scalar_select %p130, %s131, %s132
    %p136 = pneg %p130
    %p137 = scmp.eq.s32.totalorder %s11, 1
    %p138 = por %p136, %p137
    %p139 = scmp.ne.s32.totalorder %s131, %s134
    %p140 = scmp.eq.s32.totalorder %s11, 0
    %p141 = por %p139, %p140
    %p142 = scmp.ne.s32.totalorder %s131, %s134
    %p143 = scmp.eq.s32.totalorder %s16, 1
    %p144 = por %p142, %p143
    %p145 = scmp.ne.s32.totalorder %s134, %s135
    %p146 = scmp.eq.s32.totalorder %s16, 0
    %p147 = por %p145, %p146
    %p148 = scmp.ne.s32.totalorder %s134, %s135
    %p149 = scmp.eq.s32.totalorder %s17, 1
    %p150 = por %p148, %p149
    %p152 = scmp.ne.s32.totalorder %s135, %s151
    %p153 = scmp.eq.s32.totalorder %s17, 0
    %p154 = por %p152, %p153
    %p155 = scmp.le.s32.totalorder 1, %s11
    %p156 = scmp.lt.s32.totalorder %s11, 3
    %p157 = pnand %p155, %p156
    %p158 = pneg %p157
    // Predicated region
    $region9: #{run.9} parent=5 // pred_check
      _
    $region10: #{run.9} parent=5 // pred_check_branch
      %160 = sbr.rel (%p157) target = $region12
    $region11: #{run.9} parent=5 // pred_region
      %s161 = ssub.s32 %s11, 1
      // Predicated region
      $region13: #{run.9} parent=11 // pred_check
        %p162 = pneg %p58
      $region14: #{run.9} parent=11 // pred_check_branch
        %164 = sbr.rel (%p162) target = $region16
      $region15: #{run.9} parent=11 // pred_region
        _
      $region16: #{run.9} parent=11 // pred_fallthru
        _
      // Predicated region
      $region17: #{run.9} parent=11 // pred_check
        %p165 = pneg %p79
      $region18: #{run.9} parent=11 // pred_check_branch
        %167 = sbr.rel (%p165) target = $region20
      $region19: #{run.9} parent=11 // pred_region
        _
      $region20: #{run.9} parent=11 // pred_fallthru
        _
      // Predicated region
      $region21: #{run.9} parent=11 // pred_check
        %p168 = pneg %p100
      $region22: #{run.9} parent=11 // pred_check_branch
        %170 = sbr.rel (%p168) target = $region24
      $region23: #{run.9} parent=11 // pred_region
        _
      $region24: #{run.9} parent=11 // pred_fallthru
        _
      // Predicated region
      $region25: #{run.9} parent=11 // pred_check
        %p171 = pneg %p121
      $region26: #{run.9} parent=11 // pred_check_branch
        %173 = sbr.rel (%p171) target = $region28
      $region27: #{run.9} parent=11 // pred_region
        _
      $region28: #{run.9} parent=11 // pred_fallthru
        _
    $region12: #{run.9} parent=5 // pred_fallthru
      _
    %p174 = scmp.lt.s32.totalorder %s11, 2
    // Predicated region
    $region29: #{run.9} parent=5 // pred_check
      %p175 = pneg %p174
    $region30: #{run.9} parent=5 // pred_check_branch
      %177 = sbr.rel (%p175) target = $region32
    $region31: #{run.9} parent=5 // pred_region
      // Predicated region
      $region33: #{run.9} parent=31 // pred_check
        %p178 = pneg %p31
      $region34: #{run.9} parent=31 // pred_check_branch
        %180 = sbr.rel (%p178) target = $region36
      $region35: #{run.9} parent=31 // pred_region
        %s181 = smul.u32 8, %s11
        %p182 = scmp.lt.s32.totalorder %s181, 15
        %s183 = scalar_select %p182, %s181, 15
        %s184 = smul.addr %s183, 8
        %s185 = scalar_lea.vmem %s0, %s184
        %s186 = smul.u32 8, %s11
      $region36: #{run.9} parent=31 // pred_fallthru
        _
    $region32: #{run.9} parent=5 // pred_fallthru
      _
    %p187 = scmp.le.s32.totalorder 1, %s11
    %p188 = scmp.lt.s32.totalorder %s11, 3
    %p189 = pnand %p187, %p188
    %p190 = pneg %p189
    // Predicated region
    $region37: #{run.9} parent=5 // pred_check
      _
    $region38: #{run.9} parent=5 // pred_check_branch
      %192 = sbr.rel (%p189) target = $region40
    $region39: #{run.9} parent=5 // pred_region
      %s193 = ssub.s32 %s11, 1
      %s194 = smul.u32 8, %s16
      %p195 = scmp.lt.s32.totalorder %s194, 15
      %s196 = scalar_select %p195, %s194, 15
      %s197 = smul.addr %s196, 8
      %s198 = scalar_lea.vmem %s0, %s197
      %p199 = pneg %p37
      %p200 = pneg %p34
      %p201 = pneg %p58
      %p202 = pneg %p55
      %p203 = pneg %p79
      %p204 = pneg %p76
      %p205 = pneg %p100
      %p206 = pneg %p97
      %p207 = pneg %p121
      %p208 = pneg %p118
      %p209 = pneg %p147
      %p210 = pneg %p144
      %s211 = smul.u32 8, %s16
      %p212 = scmp.lt.s32.totalorder %s211, 15
      %s213 = scalar_select %p212, %s211, 15
      %s214 = smul.addr %s213, 2
      %s215 = smul.addr %s214, 8
      %s216 = scalar_lea.vmem %s5, %s215
      %s217 = smul.u32 8, %s16
      %p218 = scmp.lt.s32.totalorder %s217, 15
      %s219 = scalar_select %p218, %s217, 15
      %s220 = smul.addr %s219, 8
      %s221 = scalar_lea.vmem %s0, %s220
      %s222 = smul.u32 8, %s16
      %s223 = smul.u32 8, %s16
      %p224 = scmp.lt.s32.totalorder %s223, 15
      %s225 = scalar_select %p224, %s223, 15
      %s226 = smul.addr %s225, 2
      %s227 = smul.addr %s226, 8
      %s228 = scalar_lea.vmem %s5, %s227
      %s229 = smul.u32 8, %s16
      %v231 = vld [vmem:[%s221] sm:$0xff]
      %v232 = vld [vmem:[%s221 + $0x8] sm:$0xff]
      %v233 = vld [vmem:[%s221 + $0x10] sm:$0xff]
      %v234 = vld [vmem:[%s221 + $0x18] sm:$0xff]
      %v235 = vld [vmem:[%s221 + $0x20] sm:$0xff]
      %v236 = vld [vmem:[%s221 + $0x28] sm:$0xff]
      %v237 = vld [vmem:[%s221 + $0x30] sm:$0xff]
      %v238 = vld [vmem:[%s221 + $0x38] sm:$0xff]
      %vm239 = vcmask 523264
      %v240 = vsel %vm239, %v231, 0.0
      %241 = vadd.xlane.f32.xlu0 %v240
      %v242 = vpop.xlane.xlu0 %241
      %v243 = vsel %vm239, %v232, 0.0
      %244 = vadd.xlane.f32.xlu0 %v243
      %v245 = vpop.xlane.xlu0 %244
      %v246 = vsel %vm239, %v233, 0.0
      %247 = vadd.xlane.f32.xlu0 %v246
      %v248 = vpop.xlane.xlu0 %247
      %v249 = vsel %vm239, %v234, 0.0
      %250 = vadd.xlane.f32.xlu0 %v249
      %v251 = vpop.xlane.xlu0 %250
      %v252 = vsel %vm239, %v235, 0.0
      %253 = vadd.xlane.f32.xlu0 %v252
      %v254 = vpop.xlane.xlu0 %253
      %v255 = vsel %vm239, %v236, 0.0
      %256 = vadd.xlane.f32.xlu0 %v255
      %v257 = vpop.xlane.xlu0 %256
      %v258 = vsel %vm239, %v237, 0.0
      %259 = vadd.xlane.f32.xlu0 %v258
      %v260 = vpop.xlane.xlu0 %259
      %v261 = vsel %vm239, %v238, 0.0
      %262 = vadd.xlane.f32.xlu0 %v261
      %v263 = vpop.xlane.xlu0 %262
      %v264 = vrcp.pop 64.0
      %v265 = vmul.f32 %v242, %v264
      %v266 = vmul.f32 %v245, %v264
      %v267 = vmul.f32 %v248, %v264
      %v268 = vmul.f32 %v251, %v264
      %v269 = vmul.f32 %v254, %v264
      %v270 = vmul.f32 %v257, %v264
      %v271 = vmul.f32 %v260, %v264
      %v272 = vmul.f32 %v263, %v264
      %v273 = vsub.f32 %v231, %v265
      %v274 = vsub.f32 %v232, %v266
      %v275 = vsub.f32 %v233, %v267
      %v276 = vsub.f32 %v234, %v268
      %v277 = vsub.f32 %v235, %v269
      %v278 = vsub.f32 %v236, %v270
      %v279 = vsub.f32 %v237, %v271
      %v280 = vsub.f32 %v238, %v272
      %v281 = vmul.f32 %v273, %v273
      %v282 = vmul.f32 %v274, %v274
      %v283 = vmul.f32 %v275, %v275
      %v284 = vmul.f32 %v276, %v276
      %v285 = vmul.f32 %v277, %v277
      %v286 = vmul.f32 %v278, %v278
      %v287 = vmul.f32 %v279, %v279
      %v288 = vmul.f32 %v280, %v280
      %v289 = vsel %vm239, %v281, 0.0
      %290 = vadd.xlane.f32.xlu0 %v289
      %v291 = vpop.xlane.xlu0 %290
      %v292 = vsel %vm239, %v282, 0.0
      %293 = vadd.xlane.f32.xlu0 %v292
      %v294 = vpop.xlane.xlu0 %293
      %v295 = vsel %vm239, %v283, 0.0
      %296 = vadd.xlane.f32.xlu0 %v295
      %v297 = vpop.xlane.xlu0 %296
      %v298 = vsel %vm239, %v284, 0.0
      %299 = vadd.xlane.f32.xlu0 %v298
      %v300 = vpop.xlane.xlu0 %299
      %v301 = vsel %vm239, %v285, 0.0
      %302 = vadd.xlane.f32.xlu0 %v301
      %v303 = vpop.xlane.xlu0 %302
      %v304 = vsel %vm239, %v286, 0.0
      %305 = vadd.xlane.f32.xlu0 %v304
      %v306 = vpop.xlane.xlu0 %305
      %v307 = vsel %vm239, %v287, 0.0
      %308 = vadd.xlane.f32.xlu0 %v307
      %v309 = vpop.xlane.xlu0 %308
      %v310 = vsel %vm239, %v288, 0.0
      %311 = vadd.xlane.f32.xlu0 %v310
      %v312 = vpop.xlane.xlu0 %311
      %v313 = vmul.f32 %v291, %v264
      %v314 = vmul.f32 %v294, %v264
      %v315 = vmul.f32 %v297, %v264
      %v316 = vmul.f32 %v300, %v264
      %v317 = vmul.f32 %v303, %v264
      %v318 = vmul.f32 %v306, %v264
      %v319 = vmul.f32 %v309, %v264
      %v320 = vmul.f32 %v312, %v264
      %v321 = vadd.f32 %v313, 1e-06
      %v322 = vadd.f32 %v314, 1e-06
      %v323 = vadd.f32 %v315, 1e-06
      %v324 = vadd.f32 %v316, 1e-06
      %v325 = vadd.f32 %v317, 1e-06
      %v326 = vadd.f32 %v318, 1e-06
      %v327 = vadd.f32 %v319, 1e-06
      %v328 = vadd.f32 %v320, 1e-06
      %v329 = vrsqrt.pop %v321
      %v330 = vrsqrt.pop %v322
      %v331 = vrsqrt.pop %v323
      %v332 = vrsqrt.pop %v324
      %v333 = vrsqrt.pop %v325
      %v334 = vrsqrt.pop %v326
      %v335 = vrsqrt.pop %v327
      %v336 = vrsqrt.pop %v328
      %v337 = vmul.f32 %v273, %v329
      %v338 = vmul.f32 %v274, %v330
      %v339 = vmul.f32 %v275, %v331
      %v340 = vmul.f32 %v276, %v332
      %v341 = vmul.f32 %v277, %v333
      %v342 = vmul.f32 %v278, %v334
      %v343 = vmul.f32 %v279, %v335
      %v344 = vmul.f32 %v280, %v336
      %v345 = vld [vmem:[%s1] sm:$0x1]
      %v347 = vlaneseq
      %v348 = vshrl.u32 %v347, 7
      %v349 = vsub.s32 0, %v348
      %v350 = vrot.slane %v345, %v349
      %v352 = vmul.f32 %v337, %v350
      %v353 = vmul.f32 %v338, %v350
      %v354 = vmul.f32 %v339, %v350
      %v355 = vmul.f32 %v340, %v350
      %v356 = vmul.f32 %v341, %v350
      %v357 = vmul.f32 %v342, %v350
      %v358 = vmul.f32 %v343, %v350
      %v359 = vmul.f32 %v344, %v350
      %v360 = vld [vmem:[%s2] sm:$0x1]
      %v362 = vlaneseq
      %v363 = vshrl.u32 %v362, 7
      %v364 = vsub.s32 0, %v363
      %v365 = vrot.slane %v360, %v364
      %v367 = vadd.f32 %v352, %v365
      %v368 = vadd.f32 %v353, %v365
      %v369 = vadd.f32 %v354, %v365
      %v370 = vadd.f32 %v355, %v365
      %v371 = vadd.f32 %v356, %v365
      %v372 = vadd.f32 %v357, %v365
      %v373 = vadd.f32 %v358, %v365
      %v374 = vadd.f32 %v359, %v365
      %v375 = vpack.c.bf16 %v368, %v367
      %v376 = vpack.c.bf16 %v370, %v369
      %v377 = vpack.c.bf16 %v372, %v371
      %v378 = vpack.c.bf16 %v374, %v373
      %v379 = vld [vmem:[%s3] sm:$0xff]
      %v380 = vld [vmem:[%s3 + $0x8] sm:$0xff]
      %v381 = vld [vmem:[%s3 + $0x10] sm:$0xff]
      %v382 = vld [vmem:[%s3 + $0x18] sm:$0xff]
      %v383 = vld [vmem:[%s3 + $0x20] sm:$0xff]
      %v384 = vld [vmem:[%s3 + $0x28] sm:$0xff]
      %v385 = vld [vmem:[%s3 + $0x30] sm:$0xff]
      %v386 = vld [vmem:[%s3 + $0x38] sm:$0xff]
      %v387 = vld [vmem:[%s4] sm:$0x3]
      %v389 = vlaneseq
      %v390 = vshrl.u32 %v389, 7
      %v391 = vsub.s32 0, %v390
      %v392 = vrot.slane %v387, %v391
      %v393 = vlaneseq
      %v394 = vshrl.u32 %v393, 7
      %v395 = vsub.s32 1, %v394
      %v396 = vrot.slane %v387, %v395
      %v407 = vunpack.c.l.b16 %v379
      %v408 = vunpack.c.h.b16 %v379
      %v409 = vunpack.c.l.b16 %v380
      %v410 = vunpack.c.h.b16 %v380
      %v411 = vunpack.c.l.b16 %v381
      %v412 = vunpack.c.h.b16 %v381
      %v413 = vunpack.c.l.b16 %v382
      %v414 = vunpack.c.h.b16 %v382
      %v415 = vunpack.c.l.b16 %v383
      %v416 = vunpack.c.h.b16 %v383
      %v417 = vunpack.c.l.b16 %v384
      %v418 = vunpack.c.h.b16 %v384
      %v419 = vunpack.c.l.b16 %v385
      %v420 = vunpack.c.h.b16 %v385
      %v421 = vunpack.c.l.b16 %v386
      %v422 = vunpack.c.h.b16 %v386
      %v423 = vpack.c.b16 %v409, %v407
      %v424 = vpack.c.b16 %v410, %v408
      %v425 = vpack.c.b16 %v413, %v411
      %v426 = vpack.c.b16 %v414, %v412
      %v427 = vpack.c.b16 %v417, %v415
      %v428 = vpack.c.b16 %v418, %v416
      %v429 = vpack.c.b16 %v421, %v419
      %v430 = vpack.c.b16 %v422, %v420
      %v440 = vsel %vm239, %v375, 0
      %v443 = vsel %vm239, %v376, 0
      %v446 = vsel %vm239, %v377, 0
      %v449 = vsel %vm239, %v378, 0
      %451 = vmatprep.subr.bf16.mxu0 %v424
      %452 = vmatpush1.bf16.msra.mxu0 %v423
      %453 = vmatprep.subr.bf16.mxu0 %v426
      %454 = vmatpush1.bf16.msra.mxu0 %v425
      %455 = vmatprep.subr.bf16.mxu0 %v428
      %456 = vmatpush1.bf16.msra.mxu0 %v427
      %457 = vmatprep.subr.bf16.mxu0 %v430
      %458 = vmatpush1.bf16.msra.mxu0 %v429
      %459 = vmatprep.subr.bf16.mxu0 0
      %460 = vmatpush1.bf16.msra.mxu0 0
      %461 = vmatprep.subr.bf16.mxu0 0
      %462 = vmatpush1.bf16.msra.mxu0 0
      %463 = vmatprep.subr.bf16.mxu0 0
      %464 = vmatpush1.bf16.msra.mxu0 0
      %465 = vmatprep.subr.bf16.mxu0 0
      %466 = vmatpush1.bf16.msra.mxu0 0
      %467 = vmatprep.subr.bf16.mxu0 0
      %468 = vmatpush1.bf16.msra.mxu0 0
      %469 = vmatprep.subr.bf16.mxu0 0
      %470 = vmatpush1.bf16.msra.mxu0 0
      %471 = vmatprep.subr.bf16.mxu0 0
      %472 = vmatpush1.bf16.msra.mxu0 0
      %473 = vmatprep.subr.bf16.mxu0 0
      %474 = vmatpush1.bf16.msra.mxu0 0
      %475 = vmatprep.subr.bf16.mxu0 0
      %476 = vmatpush1.bf16.msra.mxu0 0
      %477 = vmatprep.subr.bf16.mxu0 0
      %478 = vmatpush1.bf16.msra.mxu0 0
      %479 = vmatprep.subr.bf16.mxu0 0
      %480 = vmatpush1.bf16.msra.mxu0 0
      %481 = vmatprep.subr.bf16.mxu0 0
      %482 = vmatpush1.bf16.msra.mxu0 0
      %483 = vmatprep.mubr.bf16.mxu0 0
      %484 = vmatmul.mubr.bf16.gmra.mrb[0].mxu0 %v440
      %v485 = vpop.f32.mrb[0].mxu0
      %v486 = vadd.f32 %v392, %v485
      %v487 = vpop.f32.mrb[0].mxu0
      %v488 = vadd.f32 %v396, %v487
      %v489 = vpop.f32.mrb[0].mxu0
      %v490 = vadd.f32 %v392, %v489
      %v491 = vpop.f32.mrb[0].mxu0
      %v492 = vadd.f32 %v396, %v491
      %493 = vmatprep.mubr.bf16.mxu0 0
      %494 = vmatmul.mubr.bf16.gmra.mrb[0].mxu0 %v443
      %v495 = vpop.f32.mrb[0].mxu0
      %v496 = vadd.f32 %v392, %v495
      %v497 = vpop.f32.mrb[0].mxu0
      %v498 = vadd.f32 %v396, %v497
      %v499 = vpop.f32.mrb[0].mxu0
      %v500 = vadd.f32 %v392, %v499
      %v501 = vpop.f32.mrb[0].mxu0
      %v502 = vadd.f32 %v396, %v501
      %503 = vmatprep.mubr.bf16.mxu0 0
      %504 = vmatmul.mubr.bf16.gmra.mrb[0].mxu0 %v446
      %v505 = vpop.f32.mrb[0].mxu0
      %v506 = vadd.f32 %v392, %v505
      %v507 = vpop.f32.mrb[0].mxu0
      %v508 = vadd.f32 %v396, %v507
      %v509 = vpop.f32.mrb[0].mxu0
      %v510 = vadd.f32 %v392, %v509
      %v511 = vpop.f32.mrb[0].mxu0
      %v512 = vadd.f32 %v396, %v511
      %513 = vmatprep.mubr.bf16.mxu0 0
      %514 = vmatmul.mubr.bf16.gmra.mrb[0].mxu0 %v449
      %v515 = vpop.f32.mrb[0].mxu0
      %v516 = vadd.f32 %v392, %v515
      %v517 = vpop.f32.mrb[0].mxu0
      %v518 = vadd.f32 %v396, %v517
      %v519 = vpop.f32.mrb[0].mxu0
      %v520 = vadd.f32 %v392, %v519
      %v521 = vpop.f32.mrb[0].mxu0
      %v522 = vadd.f32 %v396, %v521
      %523 = vdwg.mxu0
      %524 = vst [vmem:[%s228] sm:$0xff] %v486
      %525 = vst [vmem:[%s228 + $0x8] sm:$0xff] %v488
      %526 = vst [vmem:[%s228 + $0x10] sm:$0xff] %v490
      %527 = vst [vmem:[%s228 + $0x18] sm:$0xff] %v492
      %528 = vst [vmem:[%s228 + $0x20] sm:$0xff] %v496
      %529 = vst [vmem:[%s228 + $0x28] sm:$0xff] %v498
      %530 = vst [vmem:[%s228 + $0x30] sm:$0xff] %v500
      %531 = vst [vmem:[%s228 + $0x38] sm:$0xff] %v502
      %532 = vst [vmem:[%s228 + $0x40] sm:$0xff] %v506
      %533 = vst [vmem:[%s228 + $0x48] sm:$0xff] %v508
      %534 = vst [vmem:[%s228 + $0x50] sm:$0xff] %v510
      %535 = vst [vmem:[%s228 + $0x58] sm:$0xff] %v512
      %536 = vst [vmem:[%s228 + $0x60] sm:$0xff] %v516
      %537 = vst [vmem:[%s228 + $0x68] sm:$0xff] %v518
      %538 = vst [vmem:[%s228 + $0x70] sm:$0xff] %v520
      %539 = vst [vmem:[%s228 + $0x78] sm:$0xff] %v522
      %s540 = smul.u32 8, %s16
      %p541 = scmp.lt.s32.totalorder %s540, 15
      %s542 = scalar_select %p541, %s540, 15
      %s543 = smul.addr %s542, 2
      %s544 = smul.addr %s543, 8
      %s545 = scalar_lea.vmem %s5, %s544
      // Predicated region
      $region41: #{run.9} parent=39 // pred_check
        %p546 = pneg %p144
      $region42: #{run.9} parent=39 // pred_check_branch
        %548 = sbr.rel (%p546) target = $region44
      $region43: #{run.9} parent=39 // pred_region
        %s549 = smul.u32 8, %s16
      $region44: #{run.9} parent=39 // pred_fallthru
        _
    $region40: #{run.9} parent=5 // pred_fallthru
      _
    %p550 = scmp.le.s32.totalorder 2, %s11
    // Predicated region
    $region45: #{run.9} parent=5 // pred_check
      %p551 = pneg %p550
    $region46: #{run.9} parent=5 // pred_check_branch
      %553 = sbr.rel (%p551) target = $region48
    $region47: #{run.9} parent=5 // pred_region
      %s554 = ssub.s32 %s11, 2
      // Predicated region
      $region49: #{run.9} parent=47 // pred_check
        %p555 = pneg %p150
      $region50: #{run.9} parent=47 // pred_check_branch
        %557 = sbr.rel (%p555) target = $region52
      $region51: #{run.9} parent=47 // pred_region
        %s558 = smul.u32 8, %s17
        %p559 = scmp.lt.s32.totalorder %s558, 15
        %s560 = scalar_select %p559, %s558, 15
        %s561 = smul.addr %s560, 2
        %s562 = smul.addr %s561, 8
        %s563 = scalar_lea.vmem %s5, %s562
      $region52: #{run.9} parent=47 // pred_fallthru
        _
    $region48: #{run.9} parent=5 // pred_fallthru
      _
  $region6: #{run.9} parent=0 // loop_footer
    %s15 = sadd.s32 1, %s11
  $region7: #{run.9} parent=0 // loop_footer_branch
    %10 = sbr.rel target = $region3
  $region8: #{run.9} parent=0 // loop_exit
    _

// kernel: run.10
$region0: #{run.10}
  #allocation0 [shape = 'u32[]', space=smem, size = 0x4, offset = 0x4, fixed_abs, tag = 'smem constant byte address 0x4 - core index']
  #allocation1 [shape = 'u32[144,128]{1,0:T(1,128)}', space=vmem, size = 0x12000, scoped, tag = 'internal scratch']
  %s0 = inlined_call_operand.vmem [shape: bf16[2,3,18,16,256], index: 0, kind: input, shape index: {}]
  %s1 = inlined_call_operand.vmem [shape: f32[9,256], index: 1, kind: input, shape index: {}]
  %s2 = inlined_call_operand.vmem [shape: f32[1,256], index: 2, kind: input, shape index: {}]
  %s3 = inlined_call_operand.vmem [shape: f32[2,16,16,256], index: 3, kind: output, shape index: {}]
  %s4 = sld [smem:[#allocation0]]
  $region45: #{run.10} parent=0
    _
  %s6 = ssub.s32 1, %s4
  %s7 = scalar_select 0, %s6, %s4
  loop: start=0, step=1, limit=4
  $region2: #{run.10} parent=0 // loop_pre_header
    _
  $region3: #{run.10} parent=0 // loop_header
    %s9 = sphi 0, %s13
    %p10 = scmp.ge.s32.totalorder %s9, 4
    %s19 = sphi 0, %s21
    %s22 = sphi 0, %s19
    %s23 = sphi 0, %s22
    %s39 = sphi 0, %s23
    %s43 = sphi 0, %s43
    %s45 = sphi 0, %s43
    %s46 = sphi 0, %s45
    %s60 = sphi 0, %s46
    %s64 = sphi 0, %s64
    %s66 = sphi 0, %s64
    %s67 = sphi 0, %s66
    %s81 = sphi 0, %s67
    %s87 = sphi 0, %s89
    %s90 = sphi 0, %s87
    %s91 = sphi 0, %s90
    %s107 = sphi 0, %s91
  $region4: #{run.10} parent=0 // loop_header_branch
    %12 = sbr.rel (%p10) target = $region8
  $region5: #{run.10} parent=0 // loop_body
    %s14 = ssub.s32 %s9, 1
    %s15 = ssub.s32 %s9, 2
    %s16 = sadd.s32 %s9, 1
    %s17 = ssub.s32 %s9, %s16
    %p18 = scmp.eq.s32.totalorder %s17, 0
    %s20 = sadd.s32 %s19, 1
    %s21 = scalar_select %p18, %s19, %s20
    %p24 = pneg %p18
    %p25 = scmp.eq.s32.totalorder %s9, 1
    %p26 = por %p24, %p25
    %p27 = scmp.ne.s32.totalorder %s19, %s22
    %p28 = scmp.eq.s32.totalorder %s9, 0
    %p29 = por %p27, %p28
    %p30 = scmp.ne.s32.totalorder %s19, %s22
    %p31 = scmp.eq.s32.totalorder %s14, 1
    %p32 = por %p30, %p31
    %p33 = scmp.ne.s32.totalorder %s22, %s23
    %p34 = scmp.eq.s32.totalorder %s14, 0
    %p35 = por %p33, %p34
    %p36 = scmp.ne.s32.totalorder %s22, %s23
    %p37 = scmp.eq.s32.totalorder %s15, 1
    %p38 = por %p36, %p37
    %p40 = scmp.ne.s32.totalorder %s23, %s39
    %p41 = scmp.eq.s32.totalorder %s15, 0
    %p42 = por %p40, %p41
    %s44 = sadd.s32 %s43, 1
    %p47 = scmp.eq.s32.totalorder %s9, 1
    %p48 = scmp.ne.s32.totalorder %s43, %s45
    %p49 = scmp.eq.s32.totalorder %s9, 0
    %p50 = por %p48, %p49
    %p51 = scmp.ne.s32.totalorder %s43, %s45
    %p52 = scmp.eq.s32.totalorder %s14, 1
    %p53 = por %p51, %p52
    %p54 = scmp.ne.s32.totalorder %s45, %s46
    %p55 = scmp.eq.s32.totalorder %s14, 0
    %p56 = por %p54, %p55
    %p57 = scmp.ne.s32.totalorder %s45, %s46
    %p58 = scmp.eq.s32.totalorder %s15, 1
    %p59 = por %p57, %p58
    %p61 = scmp.ne.s32.totalorder %s46, %s60
    %p62 = scmp.eq.s32.totalorder %s15, 0
    %p63 = por %p61, %p62
    %s65 = sadd.s32 %s64, 1
    %p68 = scmp.eq.s32.totalorder %s9, 1
    %p69 = scmp.ne.s32.totalorder %s64, %s66
    %p70 = scmp.eq.s32.totalorder %s9, 0
    %p71 = por %p69, %p70
    %p72 = scmp.ne.s32.totalorder %s64, %s66
    %p73 = scmp.eq.s32.totalorder %s14, 1
    %p74 = por %p72, %p73
    %p75 = scmp.ne.s32.totalorder %s66, %s67
    %p76 = scmp.eq.s32.totalorder %s14, 0
    %p77 = por %p75, %p76
    %p78 = scmp.ne.s32.totalorder %s66, %s67
    %p79 = scmp.eq.s32.totalorder %s15, 1
    %p80 = por %p78, %p79
    %p82 = scmp.ne.s32.totalorder %s67, %s81
    %p83 = scmp.eq.s32.totalorder %s15, 0
    %p84 = por %p82, %p83
    %s85 = ssub.s32 %s9, %s16
    %p86 = scmp.eq.s32.totalorder %s85, 0
    %s88 = sadd.s32 %s87, 1
    %s89 = scalar_select %p86, %s87, %s88
    %p92 = pneg %p86
    %p93 = scmp.eq.s32.totalorder %s9, 1
    %p94 = por %p92, %p93
    %p95 = scmp.ne.s32.totalorder %s87, %s90
    %p96 = scmp.eq.s32.totalorder %s9, 0
    %p97 = por %p95, %p96
    %p98 = scmp.ne.s32.totalorder %s87, %s90
    %p99 = scmp.eq.s32.totalorder %s14, 1
    %p100 = por %p98, %p99
    %p101 = scmp.ne.s32.totalorder %s90, %s91
    %p102 = scmp.eq.s32.totalorder %s14, 0
    %p103 = por %p101, %p102
    %p104 = scmp.ne.s32.totalorder %s90, %s91
    %p105 = scmp.eq.s32.totalorder %s15, 1
    %p106 = por %p104, %p105
    %p108 = scmp.ne.s32.totalorder %s91, %s107
    %p109 = scmp.eq.s32.totalorder %s15, 0
    %p110 = por %p108, %p109
    %p111 = scmp.le.s32.totalorder 1, %s9
    %p112 = scmp.lt.s32.totalorder %s9, 3
    %p113 = pnand %p111, %p112
    %p114 = pneg %p113
    // Predicated region
    $region9: #{run.10} parent=5 // pred_check
      _
    $region10: #{run.10} parent=5 // pred_check_branch
      %116 = sbr.rel (%p113) target = $region12
    $region11: #{run.10} parent=5 // pred_region
      %s117 = ssub.s32 %s9, 1
      // Predicated region
      $region13: #{run.10} parent=11 // pred_check
        %p118 = pneg %p56
      $region14: #{run.10} parent=11 // pred_check_branch
        %120 = sbr.rel (%p118) target = $region16
      $region15: #{run.10} parent=11 // pred_region
        _
      $region16: #{run.10} parent=11 // pred_fallthru
        _
      // Predicated region
      $region17: #{run.10} parent=11 // pred_check
        %p121 = pneg %p77
      $region18: #{run.10} parent=11 // pred_check_branch
        %123 = sbr.rel (%p121) target = $region20
      $region19: #{run.10} parent=11 // pred_region
        _
      $region20: #{run.10} parent=11 // pred_fallthru
        _
    $region12: #{run.10} parent=5 // pred_fallthru
      _
    %p124 = scmp.lt.s32.totalorder %s9, 2
    // Predicated region
    $region21: #{run.10} parent=5 // pred_check
      %p125 = pneg %p124
    $region22: #{run.10} parent=5 // pred_check_branch
      %127 = sbr.rel (%p125) target = $region24
    $region23: #{run.10} parent=5 // pred_region
      // Predicated region
      $region25: #{run.10} parent=23 // pred_check
        %p128 = pneg %p29
      $region26: #{run.10} parent=23 // pred_check_branch
        %130 = sbr.rel (%p128) target = $region28
      $region27: #{run.10} parent=23 // pred_region
        %p131 = scmp.lt.s32.totalorder %s9, 1
        %s132 = scalar_select %p131, %s9, 1
        %s133 = smul.addr %s132, 216
        %s134 = smul.addr %s133, 4
        %s135 = scalar_lea.vmem %s0, %s134
      $region28: #{run.10} parent=23 // pred_fallthru
        _
    $region24: #{run.10} parent=5 // pred_fallthru
      _
    %p136 = scmp.le.s32.totalorder 1, %s9
    %p137 = scmp.lt.s32.totalorder %s9, 3
    %p138 = pnand %p136, %p137
    %p139 = pneg %p138
    // Predicated region
    $region29: #{run.10} parent=5 // pred_check
      _
    $region30: #{run.10} parent=5 // pred_check_branch
      %141 = sbr.rel (%p138) target = $region32
    $region31: #{run.10} parent=5 // pred_region
      %s142 = ssub.s32 %s9, 1
      %p143 = scmp.lt.s32.totalorder %s14, 1
      %s144 = scalar_select %p143, %s14, 1
      %s145 = smul.addr %s144, 216
      %s146 = smul.addr %s145, 4
      %s147 = scalar_lea.vmem %s0, %s146
      %p148 = pneg %p35
      %p149 = pneg %p32
      %p150 = pneg %p56
      %p151 = pneg %p53
      %p152 = pneg %p77
      %p153 = pneg %p74
      %p154 = pneg %p103
      %p155 = pneg %p100
      %p156 = scmp.lt.s32.totalorder %s14, 1
      %s157 = scalar_select %p156, %s14, 1
      %s158 = smul.addr %s157, 64
      %s159 = smul.addr %s158, 8
      %s160 = scalar_lea.vmem %s3, %s159
      %p161 = scmp.lt.s32.totalorder %s14, 1
      %s162 = scalar_select %p161, %s14, 1
      %s163 = smul.addr %s162, 216
      %s164 = smul.addr %s163, 4
      %s165 = scalar_lea.vmem %s0, %s164
      %p166 = scmp.lt.s32.totalorder %s14, 1
      %s167 = scalar_select %p166, %s14, 1
      %s168 = smul.addr %s167, 64
      %s169 = smul.addr %s168, 8
      %s170 = scalar_lea.vmem %s3, %s169
      %v171 = vld [vmem:[%s1] sm:$0xff]
      %v172 = vld [vmem:[%s1 + $0x8] sm:$0xff]
      %v173 = vld [vmem:[%s1 + $0x10] sm:$0x1]
      %v174 = vld [vmem:[%s1 + $0x18] sm:$0x1]
      %v175 = vld [vmem:[%s2] sm:$0x3]
      %v176 = vld [vmem:[%s165] sm:$0xff]
      %v177 = vld [vmem:[%s165 + $0x8] sm:$0xff]
      %v178 = vld [vmem:[%s165 + $0x10] sm:$0xff]
      %v179 = vld [vmem:[%s165 + $0x18] sm:$0xff]
      %v180 = vld [vmem:[%s165 + $0x20] sm:$0xff]
      %v181 = vld [vmem:[%s165 + $0x28] sm:$0xff]
      %v182 = vld [vmem:[%s165 + $0x30] sm:$0xff]
      %v183 = vld [vmem:[%s165 + $0x38] sm:$0xff]
      %v184 = vunpack.c.l.bf16 %v176
      %v185 = vunpack.c.h.bf16 %v176
      %v186 = vunpack.c.l.bf16 %v177
      %v187 = vunpack.c.h.bf16 %v177
      %v188 = vunpack.c.l.bf16 %v178
      %v189 = vunpack.c.h.bf16 %v178
      %v190 = vunpack.c.l.bf16 %v179
      %v191 = vunpack.c.h.bf16 %v179
      %v192 = vunpack.c.l.bf16 %v180
      %v193 = vunpack.c.h.bf16 %v180
      %v194 = vunpack.c.l.bf16 %v181
      %v195 = vunpack.c.h.bf16 %v181
      %v196 = vunpack.c.l.bf16 %v182
      %v197 = vunpack.c.h.bf16 %v182
      %v198 = vunpack.c.l.bf16 %v183
      %v199 = vunpack.c.h.bf16 %v183
      %v200 = vlaneseq
      %v201 = vshrl.u32 %v200, 7
      %v202 = vsub.s32 0, %v201
      %v203 = vrot.slane %v171, %v202
      %v204 = vlaneseq
      %v205 = vshrl.u32 %v204, 7
      %v206 = vsub.s32 0, %v205
      %v207 = vrot.slane %v172, %v206
      %v208 = vmul.f32 %v184, %v203
      %v209 = vmul.f32 %v185, %v207
      %v210 = vmul.f32 %v186, %v203
      %v211 = vmul.f32 %v187, %v207
      %v212 = vmul.f32 %v188, %v203
      %v213 = vmul.f32 %v189, %v207
      %v214 = vmul.f32 %v190, %v203
      %v215 = vmul.f32 %v191, %v207
      %v216 = vmul.f32 %v192, %v203
      %v217 = vmul.f32 %v193, %v207
      %v218 = vmul.f32 %v194, %v203
      %v219 = vmul.f32 %v195, %v207
      %v220 = vmul.f32 %v196, %v203
      %v221 = vmul.f32 %v197, %v207
      %v222 = vmul.f32 %v198, %v203
      %v223 = vmul.f32 %v199, %v207
      %v224 = vadd.f32 %v208, 0.0
      %v225 = vadd.f32 %v209, 0.0
      %v226 = vadd.f32 %v210, 0.0
      %v227 = vadd.f32 %v211, 0.0
      %v228 = vadd.f32 %v212, 0.0
      %v229 = vadd.f32 %v213, 0.0
      %v230 = vadd.f32 %v214, 0.0
      %v231 = vadd.f32 %v215, 0.0
      %v232 = vadd.f32 %v216, 0.0
      %v233 = vadd.f32 %v217, 0.0
      %v234 = vadd.f32 %v218, 0.0
      %v235 = vadd.f32 %v219, 0.0
      %v236 = vadd.f32 %v220, 0.0
      %v237 = vadd.f32 %v221, 0.0
      %v238 = vadd.f32 %v222, 0.0
      %v239 = vadd.f32 %v223, 0.0
      %s240 = scalar_lea.vmem %s165, 16
      %v241 = vld [vmem:[%s240] sm:$0xff]
      %v242 = vld [vmem:[%s240 + $0x8] sm:$0xff]
      %v243 = vld [vmem:[%s240 + $0x10] sm:$0xff]
      %v244 = vld [vmem:[%s240 + $0x18] sm:$0xff]
      %v245 = vld [vmem:[%s240 + $0x20] sm:$0xff]
      %v246 = vld [vmem:[%s240 + $0x28] sm:$0xff]
      %v247 = vld [vmem:[%s240 + $0x30] sm:$0xff]
      %v248 = vld [vmem:[%s240 + $0x38] sm:$0xff]
      %v249 = vunpack.c.l.bf16 %v241
      %v250 = vunpack.c.h.bf16 %v241
      %v251 = vunpack.c.l.bf16 %v242
      %v252 = vunpack.c.h.bf16 %v242
      %v253 = vunpack.c.l.bf16 %v243
      %v254 = vunpack.c.h.bf16 %v243
      %v255 = vunpack.c.l.bf16 %v244
      %v256 = vunpack.c.h.bf16 %v244
      %v257 = vunpack.c.l.bf16 %v245
      %v258 = vunpack.c.h.bf16 %v245
      %v259 = vunpack.c.l.bf16 %v246
      %v260 = vunpack.c.h.bf16 %v246
      %v261 = vunpack.c.l.bf16 %v247
      %v262 = vunpack.c.h.bf16 %v247
      %v263 = vunpack.c.l.bf16 %v248
      %v264 = vunpack.c.h.bf16 %v248
      %v265 = vlaneseq
      %v266 = vshrl.u32 %v265, 7
      %v267 = vsub.s32 3, %v266
      %v268 = vrot.slane %v171, %v267
      %v269 = vlaneseq
      %v270 = vshrl.u32 %v269, 7
      %v271 = vsub.s32 3, %v270
      %v272 = vrot.slane %v172, %v271
      %v273 = vmul.f32 %v249, %v268
      %v274 = vmul.f32 %v250, %v272
      %v275 = vmul.f32 %v251, %v268
      %v276 = vmul.f32 %v252, %v272
      %v277 = vmul.f32 %v253, %v268
      %v278 = vmul.f32 %v254, %v272
      %v279 = vmul.f32 %v255, %v268
      %v280 = vmul.f32 %v256, %v272
      %v281 = vmul.f32 %v257, %v268
      %v282 = vmul.f32 %v258, %v272
      %v283 = vmul.f32 %v259, %v268
      %v284 = vmul.f32 %v260, %v272
      %v285 = vmul.f32 %v261, %v268
      %v286 = vmul.f32 %v262, %v272
      %v287 = vmul.f32 %v263, %v268
      %v288 = vmul.f32 %v264, %v272
      %v289 = vadd.f32 %v224, %v273
      %v290 = vadd.f32 %v225, %v274
      %v291 = vadd.f32 %v226, %v275
      %v292 = vadd.f32 %v227, %v276
      %v293 = vadd.f32 %v228, %v277
      %v294 = vadd.f32 %v229, %v278
      %v295 = vadd.f32 %v230, %v279
      %v296 = vadd.f32 %v231, %v280
      %v297 = vadd.f32 %v232, %v281
      %v298 = vadd.f32 %v233, %v282
      %v299 = vadd.f32 %v234, %v283
      %v300 = vadd.f32 %v235, %v284
      %v301 = vadd.f32 %v236, %v285
      %v302 = vadd.f32 %v237, %v286
      %v303 = vadd.f32 %v238, %v287
      %v304 = vadd.f32 %v239, %v288
      %s305 = scalar_lea.vmem %s165, 32
      %v306 = vld [vmem:[%s305] sm:$0xff]
      %v307 = vld [vmem:[%s305 + $0x8] sm:$0xff]
      %v308 = vld [vmem:[%s305 + $0x10] sm:$0xff]
      %v309 = vld [vmem:[%s305 + $0x18] sm:$0xff]
      %v310 = vld [vmem:[%s305 + $0x20] sm:$0xff]
      %v311 = vld [vmem:[%s305 + $0x28] sm:$0xff]
      %v312 = vld [vmem:[%s305 + $0x30] sm:$0xff]
      %v313 = vld [vmem:[%s305 + $0x38] sm:$0xff]
      %v314 = vunpack.c.l.bf16 %v306
      %v315 = vunpack.c.h.bf16 %v306
      %v316 = vunpack.c.l.bf16 %v307
      %v317 = vunpack.c.h.bf16 %v307
      %v318 = vunpack.c.l.bf16 %v308
      %v319 = vunpack.c.h.bf16 %v308
      %v320 = vunpack.c.l.bf16 %v309
      %v321 = vunpack.c.h.bf16 %v309
      %v322 = vunpack.c.l.bf16 %v310
      %v323 = vunpack.c.h.bf16 %v310
      %v324 = vunpack.c.l.bf16 %v311
      %v325 = vunpack.c.h.bf16 %v311
      %v326 = vunpack.c.l.bf16 %v312
      %v327 = vunpack.c.h.bf16 %v312
      %v328 = vunpack.c.l.bf16 %v313
      %v329 = vunpack.c.h.bf16 %v313
      %v330 = vlaneseq
      %v331 = vshrl.u32 %v330, 7
      %v332 = vsub.s32 6, %v331
      %v333 = vrot.slane %v171, %v332
      %v334 = vlaneseq
      %v335 = vshrl.u32 %v334, 7
      %v336 = vsub.s32 6, %v335
      %v337 = vrot.slane %v172, %v336
      %v338 = vmul.f32 %v314, %v333
      %v339 = vmul.f32 %v315, %v337
      %v340 = vmul.f32 %v316, %v333
      %v341 = vmul.f32 %v317, %v337
      %v342 = vmul.f32 %v318, %v333
      %v343 = vmul.f32 %v319, %v337
      %v344 = vmul.f32 %v320, %v333
      %v345 = vmul.f32 %v321, %v337
      %v346 = vmul.f32 %v322, %v333
      %v347 = vmul.f32 %v323, %v337
      %v348 = vmul.f32 %v324, %v333
      %v349 = vmul.f32 %v325, %v337
      %v350 = vmul.f32 %v326, %v333
      %v351 = vmul.f32 %v327, %v337
      %v352 = vmul.f32 %v328, %v333
      %v353 = vmul.f32 %v329, %v337
      %v354 = vadd.f32 %v289, %v338
      %v355 = vadd.f32 %v290, %v339
      %v356 = vadd.f32 %v291, %v340
      %v357 = vadd.f32 %v292, %v341
      %v358 = vadd.f32 %v293, %v342
      %v359 = vadd.f32 %v294, %v343
      %v360 = vadd.f32 %v295, %v344
      %v361 = vadd.f32 %v296, %v345
      %v362 = vadd.f32 %v297, %v346
      %v363 = vadd.f32 %v298, %v347
      %v364 = vadd.f32 %v299, %v348
      %v365 = vadd.f32 %v300, %v349
      %v366 = vadd.f32 %v301, %v350
      %v367 = vadd.f32 %v302, %v351
      %v368 = vadd.f32 %v303, %v352
      %v369 = vadd.f32 %v304, %v353
      %s370 = scalar_lea.vmem %s165, 288
      %v371 = vld [vmem:[%s370] sm:$0xff]
      %v372 = vld [vmem:[%s370 + $0x8] sm:$0xff]
      %v373 = vld [vmem:[%s370 + $0x10] sm:$0xff]
      %v374 = vld [vmem:[%s370 + $0x18] sm:$0xff]
      %v375 = vld [vmem:[%s370 + $0x20] sm:$0xff]
      %v376 = vld [vmem:[%s370 + $0x28] sm:$0xff]
      %v377 = vld [vmem:[%s370 + $0x30] sm:$0xff]
      %v378 = vld [vmem:[%s370 + $0x38] sm:$0xff]
      %v379 = vunpack.c.l.bf16 %v371
      %v380 = vunpack.c.h.bf16 %v371
      %v381 = vunpack.c.l.bf16 %v372
      %v382 = vunpack.c.h.bf16 %v372
      %v383 = vunpack.c.l.bf16 %v373
      %v384 = vunpack.c.h.bf16 %v373
      %v385 = vunpack.c.l.bf16 %v374
      %v386 = vunpack.c.h.bf16 %v374
      %v387 = vunpack.c.l.bf16 %v375
      %v388 = vunpack.c.h.bf16 %v375
      %v389 = vunpack.c.l.bf16 %v376
      %v390 = vunpack.c.h.bf16 %v376
      %v391 = vunpack.c.l.bf16 %v377
      %v392 = vunpack.c.h.bf16 %v377
      %v393 = vunpack.c.l.bf16 %v378
      %v394 = vunpack.c.h.bf16 %v378
      %v395 = vlaneseq
      %v396 = vshrl.u32 %v395, 7
      %v397 = vsub.s32 1, %v396
      %v398 = vrot.slane %v171, %v397
      %v399 = vlaneseq
      %v400 = vshrl.u32 %v399, 7
      %v401 = vsub.s32 1, %v400
      %v402 = vrot.slane %v172, %v401
      %v403 = vmul.f32 %v379, %v398
      %v404 = vmul.f32 %v380, %v402
      %v405 = vmul.f32 %v381, %v398
      %v406 = vmul.f32 %v382, %v402
      %v407 = vmul.f32 %v383, %v398
      %v408 = vmul.f32 %v384, %v402
      %v409 = vmul.f32 %v385, %v398
      %v410 = vmul.f32 %v386, %v402
      %v411 = vmul.f32 %v387, %v398
      %v412 = vmul.f32 %v388, %v402
      %v413 = vmul.f32 %v389, %v398
      %v414 = vmul.f32 %v390, %v402
      %v415 = vmul.f32 %v391, %v398
      %v416 = vmul.f32 %v392, %v402
      %v417 = vmul.f32 %v393, %v398
      %v418 = vmul.f32 %v394, %v402
      %v419 = vadd.f32 %v354, %v403
      %v420 = vadd.f32 %v355, %v404
      %v421 = vadd.f32 %v356, %v405
      %v422 = vadd.f32 %v357, %v406
      %v423 = vadd.f32 %v358, %v407
      %v424 = vadd.f32 %v359, %v408
      %v425 = vadd.f32 %v360, %v409
      %v426 = vadd.f32 %v361, %v410
      %v427 = vadd.f32 %v362, %v411
      %v428 = vadd.f32 %v363, %v412
      %v429 = vadd.f32 %v364, %v413
      %v430 = vadd.f32 %v365, %v414
      %v431 = vadd.f32 %v366, %v415
      %v432 = vadd.f32 %v367, %v416
      %v433 = vadd.f32 %v368, %v417
      %v434 = vadd.f32 %v369, %v418
      %s435 = scalar_lea.vmem %s165, 304
      %v436 = vld [vmem:[%s435] sm:$0xff]
      %v437 = vld [vmem:[%s435 + $0x8] sm:$0xff]
      %v438 = vld [vmem:[%s435 + $0x10] sm:$0xff]
      %v439 = vld [vmem:[%s435 + $0x18] sm:$0xff]
      %v440 = vld [vmem:[%s435 + $0x20] sm:$0xff]
      %v441 = vld [vmem:[%s435 + $0x28] sm:$0xff]
      %v442 = vld [vmem:[%s435 + $0x30] sm:$0xff]
      %v443 = vld [vmem:[%s435 + $0x38] sm:$0xff]
      %v444 = vunpack.c.l.bf16 %v436
      %v445 = vunpack.c.h.bf16 %v436
      %v446 = vunpack.c.l.bf16 %v437
      %v447 = vunpack.c.h.bf16 %v437
      %v448 = vunpack.c.l.bf16 %v438
      %v449 = vunpack.c.h.bf16 %v438
      %v450 = vunpack.c.l.bf16 %v439
      %v451 = vunpack.c.h.bf16 %v439
      %v452 = vunpack.c.l.bf16 %v440
      %v453 = vunpack.c.h.bf16 %v440
      %v454 = vunpack.c.l.bf16 %v441
      %v455 = vunpack.c.h.bf16 %v441
      %v456 = vunpack.c.l.bf16 %v442
      %v457 = vunpack.c.h.bf16 %v442
      %v458 = vunpack.c.l.bf16 %v443
      %v459 = vunpack.c.h.bf16 %v443
      %v460 = vlaneseq
      %v461 = vshrl.u32 %v460, 7
      %v462 = vsub.s32 4, %v461
      %v463 = vrot.slane %v171, %v462
      %v464 = vlaneseq
      %v465 = vshrl.u32 %v464, 7
      %v466 = vsub.s32 4, %v465
      %v467 = vrot.slane %v172, %v466
      %v468 = vmul.f32 %v444, %v463
      %v469 = vmul.f32 %v445, %v467
      %v470 = vmul.f32 %v446, %v463
      %v471 = vmul.f32 %v447, %v467
      %v472 = vmul.f32 %v448, %v463
      %v473 = vmul.f32 %v449, %v467
      %v474 = vmul.f32 %v450, %v463
      %v475 = vmul.f32 %v451, %v467
      %v476 = vmul.f32 %v452, %v463
      %v477 = vmul.f32 %v453, %v467
      %v478 = vmul.f32 %v454, %v463
      %v479 = vmul.f32 %v455, %v467
      %v480 = vmul.f32 %v456, %v463
      %v481 = vmul.f32 %v457, %v467
      %v482 = vmul.f32 %v458, %v463
      %v483 = vmul.f32 %v459, %v467
      %v484 = vadd.f32 %v419, %v468
      %v485 = vadd.f32 %v420, %v469
      %v486 = vadd.f32 %v421, %v470
      %v487 = vadd.f32 %v422, %v471
      %v488 = vadd.f32 %v423, %v472
      %v489 = vadd.f32 %v424, %v473
      %v490 = vadd.f32 %v425, %v474
      %v491 = vadd.f32 %v426, %v475
      %v492 = vadd.f32 %v427, %v476
      %v493 = vadd.f32 %v428, %v477
      %v494 = vadd.f32 %v429, %v478
      %v495 = vadd.f32 %v430, %v479
      %v496 = vadd.f32 %v431, %v480
      %v497 = vadd.f32 %v432, %v481
      %v498 = vadd.f32 %v433, %v482
      %v499 = vadd.f32 %v434, %v483
      %s500 = scalar_lea.vmem %s165, 320
      %v501 = vld [vmem:[%s500] sm:$0xff]
      %v502 = vld [vmem:[%s500 + $0x8] sm:$0xff]
      %v503 = vld [vmem:[%s500 + $0x10] sm:$0xff]
      %v504 = vld [vmem:[%s500 + $0x18] sm:$0xff]
      %v505 = vld [vmem:[%s500 + $0x20] sm:$0xff]
      %v506 = vld [vmem:[%s500 + $0x28] sm:$0xff]
      %v507 = vld [vmem:[%s500 + $0x30] sm:$0xff]
      %v508 = vld [vmem:[%s500 + $0x38] sm:$0xff]
      %v509 = vunpack.c.l.bf16 %v501
      %v510 = vunpack.c.h.bf16 %v501
      %v511 = vunpack.c.l.bf16 %v502
      %v512 = vunpack.c.h.bf16 %v502
      %v513 = vunpack.c.l.bf16 %v503
      %v514 = vunpack.c.h.bf16 %v503
      %v515 = vunpack.c.l.bf16 %v504
      %v516 = vunpack.c.h.bf16 %v504
      %v517 = vunpack.c.l.bf16 %v505
      %v518 = vunpack.c.h.bf16 %v505
      %v519 = vunpack.c.l.bf16 %v506
      %v520 = vunpack.c.h.bf16 %v506
      %v521 = vunpack.c.l.bf16 %v507
      %v522 = vunpack.c.h.bf16 %v507
      %v523 = vunpack.c.l.bf16 %v508
      %v524 = vunpack.c.h.bf16 %v508
      %v525 = vlaneseq
      %v526 = vshrl.u32 %v525, 7
      %v527 = vsub.s32 7, %v526
      %v528 = vrot.slane %v171, %v527
      %v529 = vlaneseq
      %v530 = vshrl.u32 %v529, 7
      %v531 = vsub.s32 7, %v530
      %v532 = vrot.slane %v172, %v531
      %v533 = vmul.f32 %v509, %v528
      %v534 = vmul.f32 %v510, %v532
      %v535 = vmul.f32 %v511, %v528
      %v536 = vmul.f32 %v512, %v532
      %v537 = vmul.f32 %v513, %v528
      %v538 = vmul.f32 %v514, %v532
      %v539 = vmul.f32 %v515, %v528
      %v540 = vmul.f32 %v516, %v532
      %v541 = vmul.f32 %v517, %v528
      %v542 = vmul.f32 %v518, %v532
      %v543 = vmul.f32 %v519, %v528
      %v544 = vmul.f32 %v520, %v532
      %v545 = vmul.f32 %v521, %v528
      %v546 = vmul.f32 %v522, %v532
      %v547 = vmul.f32 %v523, %v528
      %v548 = vmul.f32 %v524, %v532
      %v549 = vadd.f32 %v484, %v533
      %v550 = vadd.f32 %v485, %v534
      %v551 = vadd.f32 %v486, %v535
      %v552 = vadd.f32 %v487, %v536
      %v553 = vadd.f32 %v488, %v537
      %v554 = vadd.f32 %v489, %v538
      %v555 = vadd.f32 %v490, %v539
      %v556 = vadd.f32 %v491, %v540
      %v557 = vadd.f32 %v492, %v541
      %v558 = vadd.f32 %v493, %v542
      %v559 = vadd.f32 %v494, %v543
      %v560 = vadd.f32 %v495, %v544
      %v561 = vadd.f32 %v496, %v545
      %v562 = vadd.f32 %v497, %v546
      %v563 = vadd.f32 %v498, %v547
      %v564 = vadd.f32 %v499, %v548
      %s565 = scalar_lea.vmem %s165, 576
      %v566 = vld [vmem:[%s565] sm:$0xff]
      %v567 = vld [vmem:[%s565 + $0x8] sm:$0xff]
      %v568 = vld [vmem:[%s565 + $0x10] sm:$0xff]
      %v569 = vld [vmem:[%s565 + $0x18] sm:$0xff]
      %v570 = vld [vmem:[%s565 + $0x20] sm:$0xff]
      %v571 = vld [vmem:[%s565 + $0x28] sm:$0xff]
      %v572 = vld [vmem:[%s565 + $0x30] sm:$0xff]
      %v573 = vld [vmem:[%s565 + $0x38] sm:$0xff]
      %v574 = vunpack.c.l.bf16 %v566
      %v575 = vunpack.c.h.bf16 %v566
      %v576 = vunpack.c.l.bf16 %v567
      %v577 = vunpack.c.h.bf16 %v567
      %v578 = vunpack.c.l.bf16 %v568
      %v579 = vunpack.c.h.bf16 %v568
      %v580 = vunpack.c.l.bf16 %v569
      %v581 = vunpack.c.h.bf16 %v569
      %v582 = vunpack.c.l.bf16 %v570
      %v583 = vunpack.c.h.bf16 %v570
      %v584 = vunpack.c.l.bf16 %v571
      %v585 = vunpack.c.h.bf16 %v571
      %v586 = vunpack.c.l.bf16 %v572
      %v587 = vunpack.c.h.bf16 %v572
      %v588 = vunpack.c.l.bf16 %v573
      %v589 = vunpack.c.h.bf16 %v573
      %v590 = vlaneseq
      %v591 = vshrl.u32 %v590, 7
      %v592 = vsub.s32 2, %v591
      %v593 = vrot.slane %v171, %v592
      %v594 = vlaneseq
      %v595 = vshrl.u32 %v594, 7
      %v596 = vsub.s32 2, %v595
      %v597 = vrot.slane %v172, %v596
      %v598 = vmul.f32 %v574, %v593
      %v599 = vmul.f32 %v575, %v597
      %v600 = vmul.f32 %v576, %v593
      %v601 = vmul.f32 %v577, %v597
      %v602 = vmul.f32 %v578, %v593
      %v603 = vmul.f32 %v579, %v597
      %v604 = vmul.f32 %v580, %v593
      %v605 = vmul.f32 %v581, %v597
      %v606 = vmul.f32 %v582, %v593
      %v607 = vmul.f32 %v583, %v597
      %v608 = vmul.f32 %v584, %v593
      %v609 = vmul.f32 %v585, %v597
      %v610 = vmul.f32 %v586, %v593
      %v611 = vmul.f32 %v587, %v597
      %v612 = vmul.f32 %v588, %v593
      %v613 = vmul.f32 %v589, %v597
      %v614 = vadd.f32 %v549, %v598
      %v615 = vadd.f32 %v550, %v599
      %v616 = vadd.f32 %v551, %v600
      %v617 = vadd.f32 %v552, %v601
      %v618 = vadd.f32 %v553, %v602
      %v619 = vadd.f32 %v554, %v603
      %v620 = vadd.f32 %v555, %v604
      %v621 = vadd.f32 %v556, %v605
      %v622 = vadd.f32 %v557, %v606
      %v623 = vadd.f32 %v558, %v607
      %v624 = vadd.f32 %v559, %v608
      %v625 = vadd.f32 %v560, %v609
      %v626 = vadd.f32 %v561, %v610
      %v627 = vadd.f32 %v562, %v611
      %v628 = vadd.f32 %v563, %v612
      %v629 = vadd.f32 %v564, %v613
      %s630 = scalar_lea.vmem %s165, 592
      %v631 = vld [vmem:[%s630] sm:$0xff]
      %v632 = vld [vmem:[%s630 + $0x8] sm:$0xff]
      %v633 = vld [vmem:[%s630 + $0x10] sm:$0xff]
      %v634 = vld [vmem:[%s630 + $0x18] sm:$0xff]
      %v635 = vld [vmem:[%s630 + $0x20] sm:$0xff]
      %v636 = vld [vmem:[%s630 + $0x28] sm:$0xff]
      %v637 = vld [vmem:[%s630 + $0x30] sm:$0xff]
      %v638 = vld [vmem:[%s630 + $0x38] sm:$0xff]
      %v639 = vunpack.c.l.bf16 %v631
      %v640 = vunpack.c.h.bf16 %v631
      %v641 = vunpack.c.l.bf16 %v632
      %v642 = vunpack.c.h.bf16 %v632
      %v643 = vunpack.c.l.bf16 %v633
      %v644 = vunpack.c.h.bf16 %v633
      %v645 = vunpack.c.l.bf16 %v634
      %v646 = vunpack.c.h.bf16 %v634
      %v647 = vunpack.c.l.bf16 %v635
      %v648 = vunpack.c.h.bf16 %v635
      %v649 = vunpack.c.l.bf16 %v636
      %v650 = vunpack.c.h.bf16 %v636
      %v651 = vunpack.c.l.bf16 %v637
      %v652 = vunpack.c.h.bf16 %v637
      %v653 = vunpack.c.l.bf16 %v638
      %v654 = vunpack.c.h.bf16 %v638
      %v655 = vlaneseq
      %v656 = vshrl.u32 %v655, 7
      %v657 = vsub.s32 5, %v656
      %v658 = vrot.slane %v171, %v657
      %v659 = vlaneseq
      %v660 = vshrl.u32 %v659, 7
      %v661 = vsub.s32 5, %v660
      %v662 = vrot.slane %v172, %v661
      %v663 = vmul.f32 %v639, %v658
      %v664 = vmul.f32 %v640, %v662
      %v665 = vmul.f32 %v641, %v658
      %v666 = vmul.f32 %v642, %v662
      %v667 = vmul.f32 %v643, %v658
      %v668 = vmul.f32 %v644, %v662
      %v669 = vmul.f32 %v645, %v658
      %v670 = vmul.f32 %v646, %v662
      %v671 = vmul.f32 %v647, %v658
      %v672 = vmul.f32 %v648, %v662
      %v673 = vmul.f32 %v649, %v658
      %v674 = vmul.f32 %v650, %v662
      %v675 = vmul.f32 %v651, %v658
      %v676 = vmul.f32 %v652, %v662
      %v677 = vmul.f32 %v653, %v658
      %v678 = vmul.f32 %v654, %v662
      %v679 = vadd.f32 %v614, %v663
      %v680 = vadd.f32 %v615, %v664
      %v681 = vadd.f32 %v616, %v665
      %v682 = vadd.f32 %v617, %v666
      %v683 = vadd.f32 %v618, %v667
      %v684 = vadd.f32 %v619, %v668
      %v685 = vadd.f32 %v620, %v669
      %v686 = vadd.f32 %v621, %v670
      %v687 = vadd.f32 %v622, %v671
      %v688 = vadd.f32 %v623, %v672
      %v689 = vadd.f32 %v624, %v673
      %v690 = vadd.f32 %v625, %v674
      %v691 = vadd.f32 %v626, %v675
      %v692 = vadd.f32 %v627, %v676
      %v693 = vadd.f32 %v628, %v677
      %v694 = vadd.f32 %v629, %v678
      %s695 = scalar_lea.vmem %s165, 608
      %v696 = vld [vmem:[%s695] sm:$0xff]
      %v697 = vld [vmem:[%s695 + $0x8] sm:$0xff]
      %v698 = vld [vmem:[%s695 + $0x10] sm:$0xff]
      %v699 = vld [vmem:[%s695 + $0x18] sm:$0xff]
      %v700 = vld [vmem:[%s695 + $0x20] sm:$0xff]
      %v701 = vld [vmem:[%s695 + $0x28] sm:$0xff]
      %v702 = vld [vmem:[%s695 + $0x30] sm:$0xff]
      %v703 = vld [vmem:[%s695 + $0x38] sm:$0xff]
      %v704 = vunpack.c.l.bf16 %v696
      %v705 = vunpack.c.h.bf16 %v696
      %v706 = vunpack.c.l.bf16 %v697
      %v707 = vunpack.c.h.bf16 %v697
      %v708 = vunpack.c.l.bf16 %v698
      %v709 = vunpack.c.h.bf16 %v698
      %v710 = vunpack.c.l.bf16 %v699
      %v711 = vunpack.c.h.bf16 %v699
      %v712 = vunpack.c.l.bf16 %v700
      %v713 = vunpack.c.h.bf16 %v700
      %v714 = vunpack.c.l.bf16 %v701
      %v715 = vunpack.c.h.bf16 %v701
      %v716 = vunpack.c.l.bf16 %v702
      %v717 = vunpack.c.h.bf16 %v702
      %v718 = vunpack.c.l.bf16 %v703
      %v719 = vunpack.c.h.bf16 %v703
      %v720 = vlaneseq
      %v721 = vshrl.u32 %v720, 7
      %v722 = vsub.s32 0, %v721
      %v723 = vrot.slane %v173, %v722
      %v724 = vlaneseq
      %v725 = vshrl.u32 %v724, 7
      %v726 = vsub.s32 0, %v725
      %v727 = vrot.slane %v174, %v726
      %v728 = vmul.f32 %v704, %v723
      %v729 = vmul.f32 %v705, %v727
      %v730 = vmul.f32 %v706, %v723
      %v731 = vmul.f32 %v707, %v727
      %v732 = vmul.f32 %v708, %v723
      %v733 = vmul.f32 %v709, %v727
      %v734 = vmul.f32 %v710, %v723
      %v735 = vmul.f32 %v711, %v727
      %v736 = vmul.f32 %v712, %v723
      %v737 = vmul.f32 %v713, %v727
      %v738 = vmul.f32 %v714, %v723
      %v739 = vmul.f32 %v715, %v727
      %v740 = vmul.f32 %v716, %v723
      %v741 = vmul.f32 %v717, %v727
      %v742 = vmul.f32 %v718, %v723
      %v743 = vmul.f32 %v719, %v727
      %v744 = vadd.f32 %v679, %v728
      %v745 = vadd.f32 %v680, %v729
      %v746 = vadd.f32 %v681, %v730
      %v747 = vadd.f32 %v682, %v731
      %v748 = vadd.f32 %v683, %v732
      %v749 = vadd.f32 %v684, %v733
      %v750 = vadd.f32 %v685, %v734
      %v751 = vadd.f32 %v686, %v735
      %v752 = vadd.f32 %v687, %v736
      %v753 = vadd.f32 %v688, %v737
      %v754 = vadd.f32 %v689, %v738
      %v755 = vadd.f32 %v690, %v739
      %v756 = vadd.f32 %v691, %v740
      %v757 = vadd.f32 %v692, %v741
      %v758 = vadd.f32 %v693, %v742
      %v759 = vadd.f32 %v694, %v743
      %v761 = vlaneseq
      %v762 = vshrl.u32 %v761, 7
      %v763 = vsub.s32 0, %v762
      %v764 = vrot.slane %v175, %v763
      %v765 = vlaneseq
      %v766 = vshrl.u32 %v765, 7
      %v767 = vsub.s32 1, %v766
      %v768 = vrot.slane %v175, %v767
      %v771 = vadd.f32 %v744, %v764
      %v772 = vadd.f32 %v745, %v768
      %v773 = vadd.f32 %v746, %v764
      %v774 = vadd.f32 %v747, %v768
      %v775 = vadd.f32 %v748, %v764
      %v776 = vadd.f32 %v749, %v768
      %v777 = vadd.f32 %v750, %v764
      %v778 = vadd.f32 %v751, %v768
      %v779 = vadd.f32 %v752, %v764
      %v780 = vadd.f32 %v753, %v768
      %v781 = vadd.f32 %v754, %v764
      %v782 = vadd.f32 %v755, %v768
      %v783 = vadd.f32 %v756, %v764
      %v784 = vadd.f32 %v757, %v768
      %v785 = vadd.f32 %v758, %v764
      %v786 = vadd.f32 %v759, %v768
      %787 = vst [vmem:[%s170] sm:$0xff] %v771
      %788 = vst [vmem:[%s170 + $0x8] sm:$0xff] %v772
      %789 = vst [vmem:[%s170 + $0x10] sm:$0xff] %v773
      %790 = vst [vmem:[%s170 + $0x18] sm:$0xff] %v774
      %791 = vst [vmem:[%s170 + $0x20] sm:$0xff] %v775
      %792 = vst [vmem:[%s170 + $0x28] sm:$0xff] %v776
      %793 = vst [vmem:[%s170 + $0x30] sm:$0xff] %v777
      %794 = vst [vmem:[%s170 + $0x38] sm:$0xff] %v778
      %795 = vst [vmem:[%s170 + $0x40] sm:$0xff] %v779
      %796 = vst [vmem:[%s170 + $0x48] sm:$0xff] %v780
      %797 = vst [vmem:[%s170 + $0x50] sm:$0xff] %v781
      %798 = vst [vmem:[%s170 + $0x58] sm:$0xff] %v782
      %799 = vst [vmem:[%s170 + $0x60] sm:$0xff] %v783
      %800 = vst [vmem:[%s170 + $0x68] sm:$0xff] %v784
      %801 = vst [vmem:[%s170 + $0x70] sm:$0xff] %v785
      %802 = vst [vmem:[%s170 + $0x78] sm:$0xff] %v786
      %s803 = scalar_lea.vmem %s165, 64
      %v804 = vld [vmem:[%s803] sm:$0xff]
      %v805 = vld [vmem:[%s803 + $0x8] sm:$0xff]
      %v806 = vld [vmem:[%s803 + $0x10] sm:$0xff]
      %v807 = vld [vmem:[%s803 + $0x18] sm:$0xff]
      %v808 = vld [vmem:[%s803 + $0x20] sm:$0xff]
      %v809 = vld [vmem:[%s803 + $0x28] sm:$0xff]
      %v810 = vld [vmem:[%s803 + $0x30] sm:$0xff]
      %v811 = vld [vmem:[%s803 + $0x38] sm:$0xff]
      %v812 = vunpack.c.l.bf16 %v804
      %v813 = vunpack.c.h.bf16 %v804
      %v814 = vunpack.c.l.bf16 %v805
      %v815 = vunpack.c.h.bf16 %v805
      %v816 = vunpack.c.l.bf16 %v806
      %v817 = vunpack.c.h.bf16 %v806
      %v818 = vunpack.c.l.bf16 %v807
      %v819 = vunpack.c.h.bf16 %v807
      %v820 = vunpack.c.l.bf16 %v808
      %v821 = vunpack.c.h.bf16 %v808
      %v822 = vunpack.c.l.bf16 %v809
      %v823 = vunpack.c.h.bf16 %v809
      %v824 = vunpack.c.l.bf16 %v810
      %v825 = vunpack.c.h.bf16 %v810
      %v826 = vunpack.c.l.bf16 %v811
      %v827 = vunpack.c.h.bf16 %v811
      %v828 = vmul.f32 %v812, %v203
      %v829 = vmul.f32 %v813, %v207
      %v830 = vmul.f32 %v814, %v203
      %v831 = vmul.f32 %v815, %v207
      %v832 = vmul.f32 %v816, %v203
      %v833 = vmul.f32 %v817, %v207
      %v834 = vmul.f32 %v818, %v203
      %v835 = vmul.f32 %v819, %v207
      %v836 = vmul.f32 %v820, %v203
      %v837 = vmul.f32 %v821, %v207
      %v838 = vmul.f32 %v822, %v203
      %v839 = vmul.f32 %v823, %v207
      %v840 = vmul.f32 %v824, %v203
      %v841 = vmul.f32 %v825, %v207
      %v842 = vmul.f32 %v826, %v203
      %v843 = vmul.f32 %v827, %v207
      %v844 = vadd.f32 %v828, 0.0
      %v845 = vadd.f32 %v829, 0.0
      %v846 = vadd.f32 %v830, 0.0
      %v847 = vadd.f32 %v831, 0.0
      %v848 = vadd.f32 %v832, 0.0
      %v849 = vadd.f32 %v833, 0.0
      %v850 = vadd.f32 %v834, 0.0
      %v851 = vadd.f32 %v835, 0.0
      %v852 = vadd.f32 %v836, 0.0
      %v853 = vadd.f32 %v837, 0.0
      %v854 = vadd.f32 %v838, 0.0
      %v855 = vadd.f32 %v839, 0.0
      %v856 = vadd.f32 %v840, 0.0
      %v857 = vadd.f32 %v841, 0.0
      %v858 = vadd.f32 %v842, 0.0
      %v859 = vadd.f32 %v843, 0.0
      %s860 = scalar_lea.vmem %s165, 80
      %v861 = vld [vmem:[%s860] sm:$0xff]
      %v862 = vld [vmem:[%s860 + $0x8] sm:$0xff]
      %v863 = vld [vmem:[%s860 + $0x10] sm:$0xff]
      %v864 = vld [vmem:[%s860 + $0x18] sm:$0xff]
      %v865 = vld [vmem:[%s860 + $0x20] sm:$0xff]
      %v866 = vld [vmem:[%s860 + $0x28] sm:$0xff]
      %v867 = vld [vmem:[%s860 + $0x30] sm:$0xff]
      %v868 = vld [vmem:[%s860 + $0x38] sm:$0xff]
      %v869 = vunpack.c.l.bf16 %v861
      %v870 = vunpack.c.h.bf16 %v861
      %v871 = vunpack.c.l.bf16 %v862
      %v872 = vunpack.c.h.bf16 %v862
      %v873 = vunpack.c.l.bf16 %v863
      %v874 = vunpack.c.h.bf16 %v863
      %v875 = vunpack.c.l.bf16 %v864
      %v876 = vunpack.c.h.bf16 %v864
      %v877 = vunpack.c.l.bf16 %v865
      %v878 = vunpack.c.h.bf16 %v865
      %v879 = vunpack.c.l.bf16 %v866
      %v880 = vunpack.c.h.bf16 %v866
      %v881 = vunpack.c.l.bf16 %v867
      %v882 = vunpack.c.h.bf16 %v867
      %v883 = vunpack.c.l.bf16 %v868
      %v884 = vunpack.c.h.bf16 %v868
      %v885 = vmul.f32 %v869, %v268
      %v886 = vmul.f32 %v870, %v272
      %v887 = vmul.f32 %v871, %v268
      %v888 = vmul.f32 %v872, %v272
      %v889 = vmul.f32 %v873, %v268
      %v890 = vmul.f32 %v874, %v272
      %v891 = vmul.f32 %v875, %v268
      %v892 = vmul.f32 %v876, %v272
      %v893 = vmul.f32 %v877, %v268
      %v894 = vmul.f32 %v878, %v272
      %v895 = vmul.f32 %v879, %v268
      %v896 = vmul.f32 %v880, %v272
      %v897 = vmul.f32 %v881, %v268
      %v898 = vmul.f32 %v882, %v272
      %v899 = vmul.f32 %v883, %v268
      %v900 = vmul.f32 %v884, %v272
      %v901 = vadd.f32 %v844, %v885
      %v902 = vadd.f32 %v845, %v886
      %v903 = vadd.f32 %v846, %v887
      %v904 = vadd.f32 %v847, %v888
      %v905 = vadd.f32 %v848, %v889
      %v906 = vadd.f32 %v849, %v890
      %v907 = vadd.f32 %v850, %v891
      %v908 = vadd.f32 %v851, %v892
      %v909 = vadd.f32 %v852, %v893
      %v910 = vadd.f32 %v853, %v894
      %v911 = vadd.f32 %v854, %v895
      %v912 = vadd.f32 %v855, %v896
      %v913 = vadd.f32 %v856, %v897
      %v914 = vadd.f32 %v857, %v898
      %v915 = vadd.f32 %v858, %v899
      %v916 = vadd.f32 %v859, %v900
      %s917 = scalar_lea.vmem %s165, 96
      %v918 = vld [vmem:[%s917] sm:$0xff]
      %v919 = vld [vmem:[%s917 + $0x8] sm:$0xff]
      %v920 = vld [vmem:[%s917 + $0x10] sm:$0xff]
      %v921 = vld [vmem:[%s917 + $0x18] sm:$0xff]
      %v922 = vld [vmem:[%s917 + $0x20] sm:$0xff]
      %v923 = vld [vmem:[%s917 + $0x28] sm:$0xff]
      %v924 = vld [vmem:[%s917 + $0x30] sm:$0xff]
      %v925 = vld [vmem:[%s917 + $0x38] sm:$0xff]
      %v926 = vunpack.c.l.bf16 %v918
      %v927 = vunpack.c.h.bf16 %v918
      %v928 = vunpack.c.l.bf16 %v919
      %v929 = vunpack.c.h.bf16 %v919
      %v930 = vunpack.c.l.bf16 %v920
      %v931 = vunpack.c.h.bf16 %v920
      %v932 = vunpack.c.l.bf16 %v921
      %v933 = vunpack.c.h.bf16 %v921
      %v934 = vunpack.c.l.bf16 %v922
      %v935 = vunpack.c.h.bf16 %v922
      %v936 = vunpack.c.l.bf16 %v923
      %v937 = vunpack.c.h.bf16 %v923
      %v938 = vunpack.c.l.bf16 %v924
      %v939 = vunpack.c.h.bf16 %v924
      %v940 = vunpack.c.l.bf16 %v925
      %v941 = vunpack.c.h.bf16 %v925
      %v942 = vmul.f32 %v926, %v333
      %v943 = vmul.f32 %v927, %v337
      %v944 = vmul.f32 %v928, %v333
      %v945 = vmul.f32 %v929, %v337
      %v946 = vmul.f32 %v930, %v333
      %v947 = vmul.f32 %v931, %v337
      %v948 = vmul.f32 %v932, %v333
      %v949 = vmul.f32 %v933, %v337
      %v950 = vmul.f32 %v934, %v333
      %v951 = vmul.f32 %v935, %v337
      %v952 = vmul.f32 %v936, %v333
      %v953 = vmul.f32 %v937, %v337
      %v954 = vmul.f32 %v938, %v333
      %v955 = vmul.f32 %v939, %v337
      %v956 = vmul.f32 %v940, %v333
      %v957 = vmul.f32 %v941, %v337
      %v958 = vadd.f32 %v901, %v942
      %v959 = vadd.f32 %v902, %v943
      %v960 = vadd.f32 %v903, %v944
      %v961 = vadd.f32 %v904, %v945
      %v962 = vadd.f32 %v905, %v946
      %v963 = vadd.f32 %v906, %v947
      %v964 = vadd.f32 %v907, %v948
      %v965 = vadd.f32 %v908, %v949
      %v966 = vadd.f32 %v909, %v950
      %v967 = vadd.f32 %v910, %v951
      %v968 = vadd.f32 %v911, %v952
      %v969 = vadd.f32 %v912, %v953
      %v970 = vadd.f32 %v913, %v954
      %v971 = vadd.f32 %v914, %v955
      %v972 = vadd.f32 %v915, %v956
      %v973 = vadd.f32 %v916, %v957
      %s974 = scalar_lea.vmem %s165, 352
      %v975 = vld [vmem:[%s974] sm:$0xff]
      %v976 = vld [vmem:[%s974 + $0x8] sm:$0xff]
      %v977 = vld [vmem:[%s974 + $0x10] sm:$0xff]
      %v978 = vld [vmem:[%s974 + $0x18] sm:$0xff]
      %v979 = vld [vmem:[%s974 + $0x20] sm:$0xff]
      %v980 = vld [vmem:[%s974 + $0x28] sm:$0xff]
      %v981 = vld [vmem:[%s974 + $0x30] sm:$0xff]
      %v982 = vld [vmem:[%s974 + $0x38] sm:$0xff]
      %v983 = vunpack.c.l.bf16 %v975
      %v984 = vunpack.c.h.bf16 %v975
      %v985 = vunpack.c.l.bf16 %v976
      %v986 = vunpack.c.h.bf16 %v976
      %v987 = vunpack.c.l.bf16 %v977
      %v988 = vunpack.c.h.bf16 %v977
      %v989 = vunpack.c.l.bf16 %v978
      %v990 = vunpack.c.h.bf16 %v978
      %v991 = vunpack.c.l.bf16 %v979
      %v992 = vunpack.c.h.bf16 %v979
      %v993 = vunpack.c.l.bf16 %v980
      %v994 = vunpack.c.h.bf16 %v980
      %v995 = vunpack.c.l.bf16 %v981
      %v996 = vunpack.c.h.bf16 %v981
      %v997 = vunpack.c.l.bf16 %v982
      %v998 = vunpack.c.h.bf16 %v982
      %v999 = vmul.f32 %v983, %v398
      %v1000 = vmul.f32 %v984, %v402
      %v1001 = vmul.f32 %v985, %v398
      %v1002 = vmul.f32 %v986, %v402
      %v1003 = vmul.f32 %v987, %v398
      %v1004 = vmul.f32 %v988, %v402
      %v1005 = vmul.f32 %v989, %v398
      %v1006 = vmul.f32 %v990, %v402
      %v1007 = vmul.f32 %v991, %v398
      %v1008 = vmul.f32 %v992, %v402
      %v1009 = vmul.f32 %v993, %v398
      %v1010 = vmul.f32 %v994, %v402
      %v1011 = vmul.f32 %v995, %v398
      %v1012 = vmul.f32 %v996, %v402
      %v1013 = vmul.f32 %v997, %v398
      %v1014 = vmul.f32 %v998, %v402
      %v1015 = vadd.f32 %v958, %v999
      %v1016 = vadd.f32 %v959, %v1000
      %v1017 = vadd.f32 %v960, %v1001
      %v1018 = vadd.f32 %v961, %v1002
      %v1019 = vadd.f32 %v962, %v1003
      %v1020 = vadd.f32 %v963, %v1004
      %v1021 = vadd.f32 %v964, %v1005
      %v1022 = vadd.f32 %v965, %v1006
      %v1023 = vadd.f32 %v966, %v1007
      %v1024 = vadd.f32 %v967, %v1008
      %v1025 = vadd.f32 %v968, %v1009
      %v1026 = vadd.f32 %v969, %v1010
      %v1027 = vadd.f32 %v970, %v1011
      %v1028 = vadd.f32 %v971, %v1012
      %v1029 = vadd.f32 %v972, %v1013
      %v1030 = vadd.f32 %v973, %v1014
      %s1031 = scalar_lea.vmem %s165, 368
      %v1032 = vld [vmem:[%s1031] sm:$0xff]
      %v1033 = vld [vmem:[%s1031 + $0x8] sm:$0xff]
      %v1034 = vld [vmem:[%s1031 + $0x10] sm:$0xff]
      %v1035 = vld [vmem:[%s1031 + $0x18] sm:$0xff]
      %v1036 = vld [vmem:[%s1031 + $0x20] sm:$0xff]
      %v1037 = vld [vmem:[%s1031 + $0x28] sm:$0xff]
      %v1038 = vld [vmem:[%s1031 + $0x30] sm:$0xff]
      %v1039 = vld [vmem:[%s1031 + $0x38] sm:$0xff]
      %v1040 = vunpack.c.l.bf16 %v1032
      %v1041 = vunpack.c.h.bf16 %v1032
      %v1042 = vunpack.c.l.bf16 %v1033
      %v1043 = vunpack.c.h.bf16 %v1033
      %v1044 = vunpack.c.l.bf16 %v1034
      %v1045 = vunpack.c.h.bf16 %v1034
      %v1046 = vunpack.c.l.bf16 %v1035
      %v1047 = vunpack.c.h.bf16 %v1035
      %v1048 = vunpack.c.l.bf16 %v1036
      %v1049 = vunpack.c.h.bf16 %v1036
      %v1050 = vunpack.c.l.bf16 %v1037
      %v1051 = vunpack.c.h.bf16 %v1037
      %v1052 = vunpack.c.l.bf16 %v1038
      %v1053 = vunpack.c.h.bf16 %v1038
      %v1054 = vunpack.c.l.bf16 %v1039
      %v1055 = vunpack.c.h.bf16 %v1039
      %v1056 = vmul.f32 %v1040, %v463
      %v1057 = vmul.f32 %v1041, %v467
      %v1058 = vmul.f32 %v1042, %v463
      %v1059 = vmul.f32 %v1043, %v467
      %v1060 = vmul.f32 %v1044, %v463
      %v1061 = vmul.f32 %v1045, %v467
      %v1062 = vmul.f32 %v1046, %v463
      %v1063 = vmul.f32 %v1047, %v467
      %v1064 = vmul.f32 %v1048, %v463
      %v1065 = vmul.f32 %v1049, %v467
      %v1066 = vmul.f32 %v1050, %v463
      %v1067 = vmul.f32 %v1051, %v467
      %v1068 = vmul.f32 %v1052, %v463
      %v1069 = vmul.f32 %v1053, %v467
      %v1070 = vmul.f32 %v1054, %v463
      %v1071 = vmul.f32 %v1055, %v467
      %v1072 = vadd.f32 %v1015, %v1056
      %v1073 = vadd.f32 %v1016, %v1057
      %v1074 = vadd.f32 %v1017, %v1058
      %v1075 = vadd.f32 %v1018, %v1059
      %v1076 = vadd.f32 %v1019, %v1060
      %v1077 = vadd.f32 %v1020, %v1061
      %v1078 = vadd.f32 %v1021, %v1062
      %v1079 = vadd.f32 %v1022, %v1063
      %v1080 = vadd.f32 %v1023, %v1064
      %v1081 = vadd.f32 %v1024, %v1065
      %v1082 = vadd.f32 %v1025, %v1066
      %v1083 = vadd.f32 %v1026, %v1067
      %v1084 = vadd.f32 %v1027, %v1068
      %v1085 = vadd.f32 %v1028, %v1069
      %v1086 = vadd.f32 %v1029, %v1070
      %v1087 = vadd.f32 %v1030, %v1071
      %s1088 = scalar_lea.vmem %s165, 384
      %v1089 = vld [vmem:[%s1088] sm:$0xff]
      %v1090 = vld [vmem:[%s1088 + $0x8] sm:$0xff]
      %v1091 = vld [vmem:[%s1088 + $0x10] sm:$0xff]
      %v1092 = vld [vmem:[%s1088 + $0x18] sm:$0xff]
      %v1093 = vld [vmem:[%s1088 + $0x20] sm:$0xff]
      %v1094 = vld [vmem:[%s1088 + $0x28] sm:$0xff]
      %v1095 = vld [vmem:[%s1088 + $0x30] sm:$0xff]
      %v1096 = vld [vmem:[%s1088 + $0x38] sm:$0xff]
      %v1097 = vunpack.c.l.bf16 %v1089
      %v1098 = vunpack.c.h.bf16 %v1089
      %v1099 = vunpack.c.l.bf16 %v1090
      %v1100 = vunpack.c.h.bf16 %v1090
      %v1101 = vunpack.c.l.bf16 %v1091
      %v1102 = vunpack.c.h.bf16 %v1091
      %v1103 = vunpack.c.l.bf16 %v1092
      %v1104 = vunpack.c.h.bf16 %v1092
      %v1105 = vunpack.c.l.bf16 %v1093
      %v1106 = vunpack.c.h.bf16 %v1093
      %v1107 = vunpack.c.l.bf16 %v1094
      %v1108 = vunpack.c.h.bf16 %v1094
      %v1109 = vunpack.c.l.bf16 %v1095
      %v1110 = vunpack.c.h.bf16 %v1095
      %v1111 = vunpack.c.l.bf16 %v1096
      %v1112 = vunpack.c.h.bf16 %v1096
      %v1113 = vmul.f32 %v1097, %v528
      %v1114 = vmul.f32 %v1098, %v532
      %v1115 = vmul.f32 %v1099, %v528
      %v1116 = vmul.f32 %v1100, %v532
      %v1117 = vmul.f32 %v1101, %v528
      %v1118 = vmul.f32 %v1102, %v532
      %v1119 = vmul.f32 %v1103, %v528
      %v1120 = vmul.f32 %v1104, %v532
      %v1121 = vmul.f32 %v1105, %v528
      %v1122 = vmul.f32 %v1106, %v532
      %v1123 = vmul.f32 %v1107, %v528
      %v1124 = vmul.f32 %v1108, %v532
      %v1125 = vmul.f32 %v1109, %v528
      %v1126 = vmul.f32 %v1110, %v532
      %v1127 = vmul.f32 %v1111, %v528
      %v1128 = vmul.f32 %v1112, %v532
      %v1129 = vadd.f32 %v1072, %v1113
      %v1130 = vadd.f32 %v1073, %v1114
      %v1131 = vadd.f32 %v1074, %v1115
      %v1132 = vadd.f32 %v1075, %v1116
      %v1133 = vadd.f32 %v1076, %v1117
      %v1134 = vadd.f32 %v1077, %v1118
      %v1135 = vadd.f32 %v1078, %v1119
      %v1136 = vadd.f32 %v1079, %v1120
      %v1137 = vadd.f32 %v1080, %v1121
      %v1138 = vadd.f32 %v1081, %v1122
      %v1139 = vadd.f32 %v1082, %v1123
      %v1140 = vadd.f32 %v1083, %v1124
      %v1141 = vadd.f32 %v1084, %v1125
      %v1142 = vadd.f32 %v1085, %v1126
      %v1143 = vadd.f32 %v1086, %v1127
      %v1144 = vadd.f32 %v1087, %v1128
      %s1145 = scalar_lea.vmem %s165, 640
      %v1146 = vld [vmem:[%s1145] sm:$0xff]
      %v1147 = vld [vmem:[%s1145 + $0x8] sm:$0xff]
      %v1148 = vld [vmem:[%s1145 + $0x10] sm:$0xff]
      %v1149 = vld [vmem:[%s1145 + $0x18] sm:$0xff]
      %v1150 = vld [vmem:[%s1145 + $0x20] sm:$0xff]
      %v1151 = vld [vmem:[%s1145 + $0x28] sm:$0xff]
      %v1152 = vld [vmem:[%s1145 + $0x30] sm:$0xff]
      %v1153 = vld [vmem:[%s1145 + $0x38] sm:$0xff]
      %v1154 = vunpack.c.l.bf16 %v1146
      %v1155 = vunpack.c.h.bf16 %v1146
      %v1156 = vunpack.c.l.bf16 %v1147
      %v1157 = vunpack.c.h.bf16 %v1147
      %v1158 = vunpack.c.l.bf16 %v1148
      %v1159 = vunpack.c.h.bf16 %v1148
      %v1160 = vunpack.c.l.bf16 %v1149
      %v1161 = vunpack.c.h.bf16 %v1149
      %v1162 = vunpack.c.l.bf16 %v1150
      %v1163 = vunpack.c.h.bf16 %v1150
      %v1164 = vunpack.c.l.bf16 %v1151
      %v1165 = vunpack.c.h.bf16 %v1151
      %v1166 = vunpack.c.l.bf16 %v1152
      %v1167 = vunpack.c.h.bf16 %v1152
      %v1168 = vunpack.c.l.bf16 %v1153
      %v1169 = vunpack.c.h.bf16 %v1153
      %v1170 = vmul.f32 %v1154, %v593
      %v1171 = vmul.f32 %v1155, %v597
      %v1172 = vmul.f32 %v1156, %v593
      %v1173 = vmul.f32 %v1157, %v597
      %v1174 = vmul.f32 %v1158, %v593
      %v1175 = vmul.f32 %v1159, %v597
      %v1176 = vmul.f32 %v1160, %v593
      %v1177 = vmul.f32 %v1161, %v597
      %v1178 = vmul.f32 %v1162, %v593
      %v1179 = vmul.f32 %v1163, %v597
      %v1180 = vmul.f32 %v1164, %v593
      %v1181 = vmul.f32 %v1165, %v597
      %v1182 = vmul.f32 %v1166, %v593
      %v1183 = vmul.f32 %v1167, %v597
      %v1184 = vmul.f32 %v1168, %v593
      %v1185 = vmul.f32 %v1169, %v597
      %v1186 = vadd.f32 %v1129, %v1170
      %v1187 = vadd.f32 %v1130, %v1171
      %v1188 = vadd.f32 %v1131, %v1172
      %v1189 = vadd.f32 %v1132, %v1173
      %v1190 = vadd.f32 %v1133, %v1174
      %v1191 = vadd.f32 %v1134, %v1175
      %v1192 = vadd.f32 %v1135, %v1176
      %v1193 = vadd.f32 %v1136, %v1177
      %v1194 = vadd.f32 %v1137, %v1178
      %v1195 = vadd.f32 %v1138, %v1179
      %v1196 = vadd.f32 %v1139, %v1180
      %v1197 = vadd.f32 %v1140, %v1181
      %v1198 = vadd.f32 %v1141, %v1182
      %v1199 = vadd.f32 %v1142, %v1183
      %v1200 = vadd.f32 %v1143, %v1184
      %v1201 = vadd.f32 %v1144, %v1185
      %s1202 = scalar_lea.vmem %s165, 656
      %v1203 = vld [vmem:[%s1202] sm:$0xff]
      %v1204 = vld [vmem:[%s1202 + $0x8] sm:$0xff]
      %v1205 = vld [vmem:[%s1202 + $0x10] sm:$0xff]
      %v1206 = vld [vmem:[%s1202 + $0x18] sm:$0xff]
      %v1207 = vld [vmem:[%s1202 + $0x20] sm:$0xff]
      %v1208 = vld [vmem:[%s1202 + $0x28] sm:$0xff]
      %v1209 = vld [vmem:[%s1202 + $0x30] sm:$0xff]
      %v1210 = vld [vmem:[%s1202 + $0x38] sm:$0xff]
      %v1211 = vunpack.c.l.bf16 %v1203
      %v1212 = vunpack.c.h.bf16 %v1203
      %v1213 = vunpack.c.l.bf16 %v1204
      %v1214 = vunpack.c.h.bf16 %v1204
      %v1215 = vunpack.c.l.bf16 %v1205
      %v1216 = vunpack.c.h.bf16 %v1205
      %v1217 = vunpack.c.l.bf16 %v1206
      %v1218 = vunpack.c.h.bf16 %v1206
      %v1219 = vunpack.c.l.bf16 %v1207
      %v1220 = vunpack.c.h.bf16 %v1207
      %v1221 = vunpack.c.l.bf16 %v1208
      %v1222 = vunpack.c.h.bf16 %v1208
      %v1223 = vunpack.c.l.bf16 %v1209
      %v1224 = vunpack.c.h.bf16 %v1209
      %v1225 = vunpack.c.l.bf16 %v1210
      %v1226 = vunpack.c.h.bf16 %v1210
      %v1227 = vmul.f32 %v1211, %v658
      %v1228 = vmul.f32 %v1212, %v662
      %v1229 = vmul.f32 %v1213, %v658
      %v1230 = vmul.f32 %v1214, %v662
      %v1231 = vmul.f32 %v1215, %v658
      %v1232 = vmul.f32 %v1216, %v662
      %v1233 = vmul.f32 %v1217, %v658
      %v1234 = vmul.f32 %v1218, %v662
      %v1235 = vmul.f32 %v1219, %v658
      %v1236 = vmul.f32 %v1220, %v662
      %v1237 = vmul.f32 %v1221, %v658
      %v1238 = vmul.f32 %v1222, %v662
      %v1239 = vmul.f32 %v1223, %v658
      %v1240 = vmul.f32 %v1224, %v662
      %v1241 = vmul.f32 %v1225, %v658
      %v1242 = vmul.f32 %v1226, %v662
      %v1243 = vadd.f32 %v1186, %v1227
      %v1244 = vadd.f32 %v1187, %v1228
      %v1245 = vadd.f32 %v1188, %v1229
      %v1246 = vadd.f32 %v1189, %v1230
      %v1247 = vadd.f32 %v1190, %v1231
      %v1248 = vadd.f32 %v1191, %v1232
      %v1249 = vadd.f32 %v1192, %v1233
      %v1250 = vadd.f32 %v1193, %v1234
      %v1251 = vadd.f32 %v1194, %v1235
      %v1252 = vadd.f32 %v1195, %v1236
      %v1253 = vadd.f32 %v1196, %v1237
      %v1254 = vadd.f32 %v1197, %v1238
      %v1255 = vadd.f32 %v1198, %v1239
      %v1256 = vadd.f32 %v1199, %v1240
      %v1257 = vadd.f32 %v1200, %v1241
      %v1258 = vadd.f32 %v1201, %v1242
      %s1259 = scalar_lea.vmem %s165, 672
      %v1260 = vld [vmem:[%s1259] sm:$0xff]
      %v1261 = vld [vmem:[%s1259 + $0x8] sm:$0xff]
      %v1262 = vld [vmem:[%s1259 + $0x10] sm:$0xff]
      %v1263 = vld [vmem:[%s1259 + $0x18] sm:$0xff]
      %v1264 = vld [vmem:[%s1259 + $0x20] sm:$0xff]
      %v1265 = vld [vmem:[%s1259 + $0x28] sm:$0xff]
      %v1266 = vld [vmem:[%s1259 + $0x30] sm:$0xff]
      %v1267 = vld [vmem:[%s1259 + $0x38] sm:$0xff]
      %v1268 = vunpack.c.l.bf16 %v1260
      %v1269 = vunpack.c.h.bf16 %v1260
      %v1270 = vunpack.c.l.bf16 %v1261
      %v1271 = vunpack.c.h.bf16 %v1261
      %v1272 = vunpack.c.l.bf16 %v1262
      %v1273 = vunpack.c.h.bf16 %v1262
      %v1274 = vunpack.c.l.bf16 %v1263
      %v1275 = vunpack.c.h.bf16 %v1263
      %v1276 = vunpack.c.l.bf16 %v1264
      %v1277 = vunpack.c.h.bf16 %v1264
      %v1278 = vunpack.c.l.bf16 %v1265
      %v1279 = vunpack.c.h.bf16 %v1265
      %v1280 = vunpack.c.l.bf16 %v1266
      %v1281 = vunpack.c.h.bf16 %v1266
      %v1282 = vunpack.c.l.bf16 %v1267
      %v1283 = vunpack.c.h.bf16 %v1267
      %v1284 = vmul.f32 %v1268, %v723
      %v1285 = vmul.f32 %v1269, %v727
      %v1286 = vmul.f32 %v1270, %v723
      %v1287 = vmul.f32 %v1271, %v727
      %v1288 = vmul.f32 %v1272, %v723
      %v1289 = vmul.f32 %v1273, %v727
      %v1290 = vmul.f32 %v1274, %v723
      %v1291 = vmul.f32 %v1275, %v727
      %v1292 = vmul.f32 %v1276, %v723
      %v1293 = vmul.f32 %v1277, %v727
      %v1294 = vmul.f32 %v1278, %v723
      %v1295 = vmul.f32 %v1279, %v727
      %v1296 = vmul.f32 %v1280, %v723
      %v1297 = vmul.f32 %v1281, %v727
      %v1298 = vmul.f32 %v1282, %v723
      %v1299 = vmul.f32 %v1283, %v727
      %v1300 = vadd.f32 %v1243, %v1284
      %v1301 = vadd.f32 %v1244, %v1285
      %v1302 = vadd.f32 %v1245, %v1286
      %v1303 = vadd.f32 %v1246, %v1287
      %v1304 = vadd.f32 %v1247, %v1288
      %v1305 = vadd.f32 %v1248, %v1289
      %v1306 = vadd.f32 %v1249, %v1290
      %v1307 = vadd.f32 %v1250, %v1291
      %v1308 = vadd.f32 %v1251, %v1292
      %v1309 = vadd.f32 %v1252, %v1293
      %v1310 = vadd.f32 %v1253, %v1294
      %v1311 = vadd.f32 %v1254, %v1295
      %v1312 = vadd.f32 %v1255, %v1296
      %v1313 = vadd.f32 %v1256, %v1297
      %v1314 = vadd.f32 %v1257, %v1298
      %v1315 = vadd.f32 %v1258, %v1299
      %v1316 = vadd.f32 %v1300, %v764
      %v1317 = vadd.f32 %v1301, %v768
      %v1318 = vadd.f32 %v1302, %v764
      %v1319 = vadd.f32 %v1303, %v768
      %v1320 = vadd.f32 %v1304, %v764
      %v1321 = vadd.f32 %v1305, %v768
      %v1322 = vadd.f32 %v1306, %v764
      %v1323 = vadd.f32 %v1307, %v768
      %v1324 = vadd.f32 %v1308, %v764
      %v1325 = vadd.f32 %v1309, %v768
      %v1326 = vadd.f32 %v1310, %v764
      %v1327 = vadd.f32 %v1311, %v768
      %v1328 = vadd.f32 %v1312, %v764
      %v1329 = vadd.f32 %v1313, %v768
      %v1330 = vadd.f32 %v1314, %v764
      %v1331 = vadd.f32 %v1315, %v768
      %s1332 = scalar_lea.vmem %s170, 128
      %1333 = vst [vmem:[%s1332] sm:$0xff] %v1316
      %1334 = vst [vmem:[%s1332 + $0x8] sm:$0xff] %v1317
      %1335 = vst [vmem:[%s1332 + $0x10] sm:$0xff] %v1318
      %1336 = vst [vmem:[%s1332 + $0x18] sm:$0xff] %v1319
      %1337 = vst [vmem:[%s1332 + $0x20] sm:$0xff] %v1320
      %1338 = vst [vmem:[%s1332 + $0x28] sm:$0xff] %v1321
      %1339 = vst [vmem:[%s1332 + $0x30] sm:$0xff] %v1322
      %1340 = vst [vmem:[%s1332 + $0x38] sm:$0xff] %v1323
      %1341 = vst [vmem:[%s1332 + $0x40] sm:$0xff] %v1324
      %1342 = vst [vmem:[%s1332 + $0x48] sm:$0xff] %v1325
      %1343 = vst [vmem:[%s1332 + $0x50] sm:$0xff] %v1326
      %1344 = vst [vmem:[%s1332 + $0x58] sm:$0xff] %v1327
      %1345 = vst [vmem:[%s1332 + $0x60] sm:$0xff] %v1328
      %1346 = vst [vmem:[%s1332 + $0x68] sm:$0xff] %v1329
      %1347 = vst [vmem:[%s1332 + $0x70] sm:$0xff] %v1330
      %1348 = vst [vmem:[%s1332 + $0x78] sm:$0xff] %v1331
      %s1349 = scalar_lea.vmem %s165, 128
      %v1350 = vld [vmem:[%s1349] sm:$0xff]
      %v1351 = vld [vmem:[%s1349 + $0x8] sm:$0xff]
      %v1352 = vld [vmem:[%s1349 + $0x10] sm:$0xff]
      %v1353 = vld [vmem:[%s1349 + $0x18] sm:$0xff]
      %v1354 = vld [vmem:[%s1349 + $0x20] sm:$0xff]
      %v1355 = vld [vmem:[%s1349 + $0x28] sm:$0xff]
      %v1356 = vld [vmem:[%s1349 + $0x30] sm:$0xff]
      %v1357 = vld [vmem:[%s1349 + $0x38] sm:$0xff]
      %v1358 = vunpack.c.l.bf16 %v1350
      %v1359 = vunpack.c.h.bf16 %v1350
      %v1360 = vunpack.c.l.bf16 %v1351
      %v1361 = vunpack.c.h.bf16 %v1351
      %v1362 = vunpack.c.l.bf16 %v1352
      %v1363 = vunpack.c.h.bf16 %v1352
      %v1364 = vunpack.c.l.bf16 %v1353
      %v1365 = vunpack.c.h.bf16 %v1353
      %v1366 = vunpack.c.l.bf16 %v1354
      %v1367 = vunpack.c.h.bf16 %v1354
      %v1368 = vunpack.c.l.bf16 %v1355
      %v1369 = vunpack.c.h.bf16 %v1355
      %v1370 = vunpack.c.l.bf16 %v1356
      %v1371 = vunpack.c.h.bf16 %v1356
      %v1372 = vunpack.c.l.bf16 %v1357
      %v1373 = vunpack.c.h.bf16 %v1357
      %v1374 = vmul.f32 %v1358, %v203
      %v1375 = vmul.f32 %v1359, %v207
      %v1376 = vmul.f32 %v1360, %v203
      %v1377 = vmul.f32 %v1361, %v207
      %v1378 = vmul.f32 %v1362, %v203
      %v1379 = vmul.f32 %v1363, %v207
      %v1380 = vmul.f32 %v1364, %v203
      %v1381 = vmul.f32 %v1365, %v207
      %v1382 = vmul.f32 %v1366, %v203
      %v1383 = vmul.f32 %v1367, %v207
      %v1384 = vmul.f32 %v1368, %v203
      %v1385 = vmul.f32 %v1369, %v207
      %v1386 = vmul.f32 %v1370, %v203
      %v1387 = vmul.f32 %v1371, %v207
      %v1388 = vmul.f32 %v1372, %v203
      %v1389 = vmul.f32 %v1373, %v207
      %v1390 = vadd.f32 %v1374, 0.0
      %v1391 = vadd.f32 %v1375, 0.0
      %v1392 = vadd.f32 %v1376, 0.0
      %v1393 = vadd.f32 %v1377, 0.0
      %v1394 = vadd.f32 %v1378, 0.0
      %v1395 = vadd.f32 %v1379, 0.0
      %v1396 = vadd.f32 %v1380, 0.0
      %v1397 = vadd.f32 %v1381, 0.0
      %v1398 = vadd.f32 %v1382, 0.0
      %v1399 = vadd.f32 %v1383, 0.0
      %v1400 = vadd.f32 %v1384, 0.0
      %v1401 = vadd.f32 %v1385, 0.0
      %v1402 = vadd.f32 %v1386, 0.0
      %v1403 = vadd.f32 %v1387, 0.0
      %v1404 = vadd.f32 %v1388, 0.0
      %v1405 = vadd.f32 %v1389, 0.0
      %s1406 = scalar_lea.vmem %s165, 144
      %v1407 = vld [vmem:[%s1406] sm:$0xff]
      %v1408 = vld [vmem:[%s1406 + $0x8] sm:$0xff]
      %v1409 = vld [vmem:[%s1406 + $0x10] sm:$0xff]
      %v1410 = vld [vmem:[%s1406 + $0x18] sm:$0xff]
      %v1411 = vld [vmem:[%s1406 + $0x20] sm:$0xff]
      %v1412 = vld [vmem:[%s1406 + $0x28] sm:$0xff]
      %v1413 = vld [vmem:[%s1406 + $0x30] sm:$0xff]
      %v1414 = vld [vmem:[%s1406 + $0x38] sm:$0xff]
      %v1415 = vunpack.c.l.bf16 %v1407
      %v1416 = vunpack.c.h.bf16 %v1407
      %v1417 = vunpack.c.l.bf16 %v1408
      %v1418 = vunpack.c.h.bf16 %v1408
      %v1419 = vunpack.c.l.bf16 %v1409
      %v1420 = vunpack.c.h.bf16 %v1409
      %v1421 = vunpack.c.l.bf16 %v1410
      %v1422 = vunpack.c.h.bf16 %v1410
      %v1423 = vunpack.c.l.bf16 %v1411
      %v1424 = vunpack.c.h.bf16 %v1411
      %v1425 = vunpack.c.l.bf16 %v1412
      %v1426 = vunpack.c.h.bf16 %v1412
      %v1427 = vunpack.c.l.bf16 %v1413
      %v1428 = vunpack.c.h.bf16 %v1413
      %v1429 = vunpack.c.l.bf16 %v1414
      %v1430 = vunpack.c.h.bf16 %v1414
      %v1431 = vmul.f32 %v1415, %v268
      %v1432 = vmul.f32 %v1416, %v272
      %v1433 = vmul.f32 %v1417, %v268
      %v1434 = vmul.f32 %v1418, %v272
      %v1435 = vmul.f32 %v1419, %v268
      %v1436 = vmul.f32 %v1420, %v272
      %v1437 = vmul.f32 %v1421, %v268
      %v1438 = vmul.f32 %v1422, %v272
      %v1439 = vmul.f32 %v1423, %v268
      %v1440 = vmul.f32 %v1424, %v272
      %v1441 = vmul.f32 %v1425, %v268
      %v1442 = vmul.f32 %v1426, %v272
      %v1443 = vmul.f32 %v1427, %v268
      %v1444 = vmul.f32 %v1428, %v272
      %v1445 = vmul.f32 %v1429, %v268
      %v1446 = vmul.f32 %v1430, %v272
      %v1447 = vadd.f32 %v1390, %v1431
      %v1448 = vadd.f32 %v1391, %v1432
      %v1449 = vadd.f32 %v1392, %v1433
      %v1450 = vadd.f32 %v1393, %v1434
      %v1451 = vadd.f32 %v1394, %v1435
      %v1452 = vadd.f32 %v1395, %v1436
      %v1453 = vadd.f32 %v1396, %v1437
      %v1454 = vadd.f32 %v1397, %v1438
      %v1455 = vadd.f32 %v1398, %v1439
      %v1456 = vadd.f32 %v1399, %v1440
      %v1457 = vadd.f32 %v1400, %v1441
      %v1458 = vadd.f32 %v1401, %v1442
      %v1459 = vadd.f32 %v1402, %v1443
      %v1460 = vadd.f32 %v1403, %v1444
      %v1461 = vadd.f32 %v1404, %v1445
      %v1462 = vadd.f32 %v1405, %v1446
      %s1463 = scalar_lea.vmem %s165, 160
      %v1464 = vld [vmem:[%s1463] sm:$0xff]
      %v1465 = vld [vmem:[%s1463 + $0x8] sm:$0xff]
      %v1466 = vld [vmem:[%s1463 + $0x10] sm:$0xff]
      %v1467 = vld [vmem:[%s1463 + $0x18] sm:$0xff]
      %v1468 = vld [vmem:[%s1463 + $0x20] sm:$0xff]
      %v1469 = vld [vmem:[%s1463 + $0x28] sm:$0xff]
      %v1470 = vld [vmem:[%s1463 + $0x30] sm:$0xff]
      %v1471 = vld [vmem:[%s1463 + $0x38] sm:$0xff]
      %v1472 = vunpack.c.l.bf16 %v1464
      %v1473 = vunpack.c.h.bf16 %v1464
      %v1474 = vunpack.c.l.bf16 %v1465
      %v1475 = vunpack.c.h.bf16 %v1465
      %v1476 = vunpack.c.l.bf16 %v1466
      %v1477 = vunpack.c.h.bf16 %v1466
      %v1478 = vunpack.c.l.bf16 %v1467
      %v1479 = vunpack.c.h.bf16 %v1467
      %v1480 = vunpack.c.l.bf16 %v1468
      %v1481 = vunpack.c.h.bf16 %v1468
      %v1482 = vunpack.c.l.bf16 %v1469
      %v1483 = vunpack.c.h.bf16 %v1469
      %v1484 = vunpack.c.l.bf16 %v1470
      %v1485 = vunpack.c.h.bf16 %v1470
      %v1486 = vunpack.c.l.bf16 %v1471
      %v1487 = vunpack.c.h.bf16 %v1471
      %v1488 = vmul.f32 %v1472, %v333
      %v1489 = vmul.f32 %v1473, %v337
      %v1490 = vmul.f32 %v1474, %v333
      %v1491 = vmul.f32 %v1475, %v337
      %v1492 = vmul.f32 %v1476, %v333
      %v1493 = vmul.f32 %v1477, %v337
      %v1494 = vmul.f32 %v1478, %v333
      %v1495 = vmul.f32 %v1479, %v337
      %v1496 = vmul.f32 %v1480, %v333
      %v1497 = vmul.f32 %v1481, %v337
      %v1498 = vmul.f32 %v1482, %v333
      %v1499 = vmul.f32 %v1483, %v337
      %v1500 = vmul.f32 %v1484, %v333
      %v1501 = vmul.f32 %v1485, %v337
      %v1502 = vmul.f32 %v1486, %v333
      %v1503 = vmul.f32 %v1487, %v337
      %v1504 = vadd.f32 %v1447, %v1488
      %v1505 = vadd.f32 %v1448, %v1489
      %v1506 = vadd.f32 %v1449, %v1490
      %v1507 = vadd.f32 %v1450, %v1491
      %v1508 = vadd.f32 %v1451, %v1492
      %v1509 = vadd.f32 %v1452, %v1493
      %v1510 = vadd.f32 %v1453, %v1494
      %v1511 = vadd.f32 %v1454, %v1495
      %v1512 = vadd.f32 %v1455, %v1496
      %v1513 = vadd.f32 %v1456, %v1497
      %v1514 = vadd.f32 %v1457, %v1498
      %v1515 = vadd.f32 %v1458, %v1499
      %v1516 = vadd.f32 %v1459, %v1500
      %v1517 = vadd.f32 %v1460, %v1501
      %v1518 = vadd.f32 %v1461, %v1502
      %v1519 = vadd.f32 %v1462, %v1503
      %s1520 = scalar_lea.vmem %s165, 416
      %v1521 = vld [vmem:[%s1520] sm:$0xff]
      %v1522 = vld [vmem:[%s1520 + $0x8] sm:$0xff]
      %v1523 = vld [vmem:[%s1520 + $0x10] sm:$0xff]
      %v1524 = vld [vmem:[%s1520 + $0x18] sm:$0xff]
      %v1525 = vld [vmem:[%s1520 + $0x20] sm:$0xff]
      %v1526 = vld [vmem:[%s1520 + $0x28] sm:$0xff]
      %v1527 = vld [vmem:[%s1520 + $0x30] sm:$0xff]
      %v1528 = vld [vmem:[%s1520 + $0x38] sm:$0xff]
      %v1529 = vunpack.c.l.bf16 %v1521
      %v1530 = vunpack.c.h.bf16 %v1521
      %v1531 = vunpack.c.l.bf16 %v1522
      %v1532 = vunpack.c.h.bf16 %v1522
      %v1533 = vunpack.c.l.bf16 %v1523
      %v1534 = vunpack.c.h.bf16 %v1523
      %v1535 = vunpack.c.l.bf16 %v1524
      %v1536 = vunpack.c.h.bf16 %v1524
      %v1537 = vunpack.c.l.bf16 %v1525
      %v1538 = vunpack.c.h.bf16 %v1525
      %v1539 = vunpack.c.l.bf16 %v1526
      %v1540 = vunpack.c.h.bf16 %v1526
      %v1541 = vunpack.c.l.bf16 %v1527
      %v1542 = vunpack.c.h.bf16 %v1527
      %v1543 = vunpack.c.l.bf16 %v1528
      %v1544 = vunpack.c.h.bf16 %v1528
      %v1545 = vmul.f32 %v1529, %v398
      %v1546 = vmul.f32 %v1530, %v402
      %v1547 = vmul.f32 %v1531, %v398
      %v1548 = vmul.f32 %v1532, %v402
      %v1549 = vmul.f32 %v1533, %v398
      %v1550 = vmul.f32 %v1534, %v402
      %v1551 = vmul.f32 %v1535, %v398
      %v1552 = vmul.f32 %v1536, %v402
      %v1553 = vmul.f32 %v1537, %v398
      %v1554 = vmul.f32 %v1538, %v402
      %v1555 = vmul.f32 %v1539, %v398
      %v1556 = vmul.f32 %v1540, %v402
      %v1557 = vmul.f32 %v1541, %v398
      %v1558 = vmul.f32 %v1542, %v402
      %v1559 = vmul.f32 %v1543, %v398
      %v1560 = vmul.f32 %v1544, %v402
      %v1561 = vadd.f32 %v1504, %v1545
      %v1562 = vadd.f32 %v1505, %v1546
      %v1563 = vadd.f32 %v1506, %v1547
      %v1564 = vadd.f32 %v1507, %v1548
      %v1565 = vadd.f32 %v1508, %v1549
      %v1566 = vadd.f32 %v1509, %v1550
      %v1567 = vadd.f32 %v1510, %v1551
      %v1568 = vadd.f32 %v1511, %v1552
      %v1569 = vadd.f32 %v1512, %v1553
      %v1570 = vadd.f32 %v1513, %v1554
      %v1571 = vadd.f32 %v1514, %v1555
      %v1572 = vadd.f32 %v1515, %v1556
      %v1573 = vadd.f32 %v1516, %v1557
      %v1574 = vadd.f32 %v1517, %v1558
      %v1575 = vadd.f32 %v1518, %v1559
      %v1576 = vadd.f32 %v1519, %v1560
      %s1577 = scalar_lea.vmem %s165, 432
      %v1578 = vld [vmem:[%s1577] sm:$0xff]
      %v1579 = vld [vmem:[%s1577 + $0x8] sm:$0xff]
      %v1580 = vld [vmem:[%s1577 + $0x10] sm:$0xff]
      %v1581 = vld [vmem:[%s1577 + $0x18] sm:$0xff]
      %v1582 = vld [vmem:[%s1577 + $0x20] sm:$0xff]
      %v1583 = vld [vmem:[%s1577 + $0x28] sm:$0xff]
      %v1584 = vld [vmem:[%s1577 + $0x30] sm:$0xff]
      %v1585 = vld [vmem:[%s1577 + $0x38] sm:$0xff]
      %v1586 = vunpack.c.l.bf16 %v1578
      %v1587 = vunpack.c.h.bf16 %v1578
      %v1588 = vunpack.c.l.bf16 %v1579
      %v1589 = vunpack.c.h.bf16 %v1579
      %v1590 = vunpack.c.l.bf16 %v1580
      %v1591 = vunpack.c.h.bf16 %v1580
      %v1592 = vunpack.c.l.bf16 %v1581
      %v1593 = vunpack.c.h.bf16 %v1581
      %v1594 = vunpack.c.l.bf16 %v1582
      %v1595 = vunpack.c.h.bf16 %v1582
      %v1596 = vunpack.c.l.bf16 %v1583
      %v1597 = vunpack.c.h.bf16 %v1583
      %v1598 = vunpack.c.l.bf16 %v1584
      %v1599 = vunpack.c.h.bf16 %v1584
      %v1600 = vunpack.c.l.bf16 %v1585
      %v1601 = vunpack.c.h.bf16 %v1585
      %v1602 = vmul.f32 %v1586, %v463
      %v1603 = vmul.f32 %v1587, %v467
      %v1604 = vmul.f32 %v1588, %v463
      %v1605 = vmul.f32 %v1589, %v467
      %v1606 = vmul.f32 %v1590, %v463
      %v1607 = vmul.f32 %v1591, %v467
      %v1608 = vmul.f32 %v1592, %v463
      %v1609 = vmul.f32 %v1593, %v467
      %v1610 = vmul.f32 %v1594, %v463
      %v1611 = vmul.f32 %v1595, %v467
      %v1612 = vmul.f32 %v1596, %v463
      %v1613 = vmul.f32 %v1597, %v467
      %v1614 = vmul.f32 %v1598, %v463
      %v1615 = vmul.f32 %v1599, %v467
      %v1616 = vmul.f32 %v1600, %v463
      %v1617 = vmul.f32 %v1601, %v467
      %v1618 = vadd.f32 %v1561, %v1602
      %v1619 = vadd.f32 %v1562, %v1603
      %v1620 = vadd.f32 %v1563, %v1604
      %v1621 = vadd.f32 %v1564, %v1605
      %v1622 = vadd.f32 %v1565, %v1606
      %v1623 = vadd.f32 %v1566, %v1607
      %v1624 = vadd.f32 %v1567, %v1608
      %v1625 = vadd.f32 %v1568, %v1609
      %v1626 = vadd.f32 %v1569, %v1610
      %v1627 = vadd.f32 %v1570, %v1611
      %v1628 = vadd.f32 %v1571, %v1612
      %v1629 = vadd.f32 %v1572, %v1613
      %v1630 = vadd.f32 %v1573, %v1614
      %v1631 = vadd.f32 %v1574, %v1615
      %v1632 = vadd.f32 %v1575, %v1616
      %v1633 = vadd.f32 %v1576, %v1617
      %s1634 = scalar_lea.vmem %s165, 448
      %v1635 = vld [vmem:[%s1634] sm:$0xff]
      %v1636 = vld [vmem:[%s1634 + $0x8] sm:$0xff]
      %v1637 = vld [vmem:[%s1634 + $0x10] sm:$0xff]
      %v1638 = vld [vmem:[%s1634 + $0x18] sm:$0xff]
      %v1639 = vld [vmem:[%s1634 + $0x20] sm:$0xff]
      %v1640 = vld [vmem:[%s1634 + $0x28] sm:$0xff]
      %v1641 = vld [vmem:[%s1634 + $0x30] sm:$0xff]
      %v1642 = vld [vmem:[%s1634 + $0x38] sm:$0xff]
      %v1643 = vunpack.c.l.bf16 %v1635
      %v1644 = vunpack.c.h.bf16 %v1635
      %v1645 = vunpack.c.l.bf16 %v1636
      %v1646 = vunpack.c.h.bf16 %v1636
      %v1647 = vunpack.c.l.bf16 %v1637
      %v1648 = vunpack.c.h.bf16 %v1637
      %v1649 = vunpack.c.l.bf16 %v1638
      %v1650 = vunpack.c.h.bf16 %v1638
      %v1651 = vunpack.c.l.bf16 %v1639
      %v1652 = vunpack.c.h.bf16 %v1639
      %v1653 = vunpack.c.l.bf16 %v1640
      %v1654 = vunpack.c.h.bf16 %v1640
      %v1655 = vunpack.c.l.bf16 %v1641
      %v1656 = vunpack.c.h.bf16 %v1641
      %v1657 = vunpack.c.l.bf16 %v1642
      %v1658 = vunpack.c.h.bf16 %v1642
      %v1659 = vmul.f32 %v1643, %v528
      %v1660 = vmul.f32 %v1644, %v532
      %v1661 = vmul.f32 %v1645, %v528
      %v1662 = vmul.f32 %v1646, %v532
      %v1663 = vmul.f32 %v1647, %v528
      %v1664 = vmul.f32 %v1648, %v532
      %v1665 = vmul.f32 %v1649, %v528
      %v1666 = vmul.f32 %v1650, %v532
      %v1667 = vmul.f32 %v1651, %v528
      %v1668 = vmul.f32 %v1652, %v532
      %v1669 = vmul.f32 %v1653, %v528
      %v1670 = vmul.f32 %v1654, %v532
      %v1671 = vmul.f32 %v1655, %v528
      %v1672 = vmul.f32 %v1656, %v532
      %v1673 = vmul.f32 %v1657, %v528
      %v1674 = vmul.f32 %v1658, %v532
      %v1675 = vadd.f32 %v1618, %v1659
      %v1676 = vadd.f32 %v1619, %v1660
      %v1677 = vadd.f32 %v1620, %v1661
      %v1678 = vadd.f32 %v1621, %v1662
      %v1679 = vadd.f32 %v1622, %v1663
      %v1680 = vadd.f32 %v1623, %v1664
      %v1681 = vadd.f32 %v1624, %v1665
      %v1682 = vadd.f32 %v1625, %v1666
      %v1683 = vadd.f32 %v1626, %v1667
      %v1684 = vadd.f32 %v1627, %v1668
      %v1685 = vadd.f32 %v1628, %v1669
      %v1686 = vadd.f32 %v1629, %v1670
      %v1687 = vadd.f32 %v1630, %v1671
      %v1688 = vadd.f32 %v1631, %v1672
      %v1689 = vadd.f32 %v1632, %v1673
      %v1690 = vadd.f32 %v1633, %v1674
      %s1691 = scalar_lea.vmem %s165, 704
      %v1692 = vld [vmem:[%s1691] sm:$0xff]
      %v1693 = vld [vmem:[%s1691 + $0x8] sm:$0xff]
      %v1694 = vld [vmem:[%s1691 + $0x10] sm:$0xff]
      %v1695 = vld [vmem:[%s1691 + $0x18] sm:$0xff]
      %v1696 = vld [vmem:[%s1691 + $0x20] sm:$0xff]
      %v1697 = vld [vmem:[%s1691 + $0x28] sm:$0xff]
      %v1698 = vld [vmem:[%s1691 + $0x30] sm:$0xff]
      %v1699 = vld [vmem:[%s1691 + $0x38] sm:$0xff]
      %v1700 = vunpack.c.l.bf16 %v1692
      %v1701 = vunpack.c.h.bf16 %v1692
      %v1702 = vunpack.c.l.bf16 %v1693
      %v1703 = vunpack.c.h.bf16 %v1693
      %v1704 = vunpack.c.l.bf16 %v1694
      %v1705 = vunpack.c.h.bf16 %v1694
      %v1706 = vunpack.c.l.bf16 %v1695
      %v1707 = vunpack.c.h.bf16 %v1695
      %v1708 = vunpack.c.l.bf16 %v1696
      %v1709 = vunpack.c.h.bf16 %v1696
      %v1710 = vunpack.c.l.bf16 %v1697
      %v1711 = vunpack.c.h.bf16 %v1697
      %v1712 = vunpack.c.l.bf16 %v1698
      %v1713 = vunpack.c.h.bf16 %v1698
      %v1714 = vunpack.c.l.bf16 %v1699
      %v1715 = vunpack.c.h.bf16 %v1699
      %v1716 = vmul.f32 %v1700, %v593
      %v1717 = vmul.f32 %v1701, %v597
      %v1718 = vmul.f32 %v1702, %v593
      %v1719 = vmul.f32 %v1703, %v597
      %v1720 = vmul.f32 %v1704, %v593
      %v1721 = vmul.f32 %v1705, %v597
      %v1722 = vmul.f32 %v1706, %v593
      %v1723 = vmul.f32 %v1707, %v597
      %v1724 = vmul.f32 %v1708, %v593
      %v1725 = vmul.f32 %v1709, %v597
      %v1726 = vmul.f32 %v1710, %v593
      %v1727 = vmul.f32 %v1711, %v597
      %v1728 = vmul.f32 %v1712, %v593
      %v1729 = vmul.f32 %v1713, %v597
      %v1730 = vmul.f32 %v1714, %v593
      %v1731 = vmul.f32 %v1715, %v597
      %v1732 = vadd.f32 %v1675, %v1716
      %v1733 = vadd.f32 %v1676, %v1717
      %v1734 = vadd.f32 %v1677, %v1718
      %v1735 = vadd.f32 %v1678, %v1719
      %v1736 = vadd.f32 %v1679, %v1720
      %v1737 = vadd.f32 %v1680, %v1721
      %v1738 = vadd.f32 %v1681, %v1722
      %v1739 = vadd.f32 %v1682, %v1723
      %v1740 = vadd.f32 %v1683, %v1724
      %v1741 = vadd.f32 %v1684, %v1725
      %v1742 = vadd.f32 %v1685, %v1726
      %v1743 = vadd.f32 %v1686, %v1727
      %v1744 = vadd.f32 %v1687, %v1728
      %v1745 = vadd.f32 %v1688, %v1729
      %v1746 = vadd.f32 %v1689, %v1730
      %v1747 = vadd.f32 %v1690, %v1731
      %s1748 = scalar_lea.vmem %s165, 720
      %v1749 = vld [vmem:[%s1748] sm:$0xff]
      %v1750 = vld [vmem:[%s1748 + $0x8] sm:$0xff]
      %v1751 = vld [vmem:[%s1748 + $0x10] sm:$0xff]
      %v1752 = vld [vmem:[%s1748 + $0x18] sm:$0xff]
      %v1753 = vld [vmem:[%s1748 + $0x20] sm:$0xff]
      %v1754 = vld [vmem:[%s1748 + $0x28] sm:$0xff]
      %v1755 = vld [vmem:[%s1748 + $0x30] sm:$0xff]
      %v1756 = vld [vmem:[%s1748 + $0x38] sm:$0xff]
      %v1757 = vunpack.c.l.bf16 %v1749
      %v1758 = vunpack.c.h.bf16 %v1749
      %v1759 = vunpack.c.l.bf16 %v1750
      %v1760 = vunpack.c.h.bf16 %v1750
      %v1761 = vunpack.c.l.bf16 %v1751
      %v1762 = vunpack.c.h.bf16 %v1751
      %v1763 = vunpack.c.l.bf16 %v1752
      %v1764 = vunpack.c.h.bf16 %v1752
      %v1765 = vunpack.c.l.bf16 %v1753
      %v1766 = vunpack.c.h.bf16 %v1753
      %v1767 = vunpack.c.l.bf16 %v1754
      %v1768 = vunpack.c.h.bf16 %v1754
      %v1769 = vunpack.c.l.bf16 %v1755
      %v1770 = vunpack.c.h.bf16 %v1755
      %v1771 = vunpack.c.l.bf16 %v1756
      %v1772 = vunpack.c.h.bf16 %v1756
      %v1773 = vmul.f32 %v1757, %v658
      %v1774 = vmul.f32 %v1758, %v662
      %v1775 = vmul.f32 %v1759, %v658
      %v1776 = vmul.f32 %v1760, %v662
      %v1777 = vmul.f32 %v1761, %v658
      %v1778 = vmul.f32 %v1762, %v662
      %v1779 = vmul.f32 %v1763, %v658
      %v1780 = vmul.f32 %v1764, %v662
      %v1781 = vmul.f32 %v1765, %v658
      %v1782 = vmul.f32 %v1766, %v662
      %v1783 = vmul.f32 %v1767, %v658
      %v1784 = vmul.f32 %v1768, %v662
      %v1785 = vmul.f32 %v1769, %v658
      %v1786 = vmul.f32 %v1770, %v662
      %v1787 = vmul.f32 %v1771, %v658
      %v1788 = vmul.f32 %v1772, %v662
      %v1789 = vadd.f32 %v1732, %v1773
      %v1790 = vadd.f32 %v1733, %v1774
      %v1791 = vadd.f32 %v1734, %v1775
      %v1792 = vadd.f32 %v1735, %v1776
      %v1793 = vadd.f32 %v1736, %v1777
      %v1794 = vadd.f32 %v1737, %v1778
      %v1795 = vadd.f32 %v1738, %v1779
      %v1796 = vadd.f32 %v1739, %v1780
      %v1797 = vadd.f32 %v1740, %v1781
      %v1798 = vadd.f32 %v1741, %v1782
      %v1799 = vadd.f32 %v1742, %v1783
      %v1800 = vadd.f32 %v1743, %v1784
      %v1801 = vadd.f32 %v1744, %v1785
      %v1802 = vadd.f32 %v1745, %v1786
      %v1803 = vadd.f32 %v1746, %v1787
      %v1804 = vadd.f32 %v1747, %v1788
      %s1805 = scalar_lea.vmem %s165, 736
      %v1806 = vld [vmem:[%s1805] sm:$0xff]
      %v1807 = vld [vmem:[%s1805 + $0x8] sm:$0xff]
      %v1808 = vld [vmem:[%s1805 + $0x10] sm:$0xff]
      %v1809 = vld [vmem:[%s1805 + $0x18] sm:$0xff]
      %v1810 = vld [vmem:[%s1805 + $0x20] sm:$0xff]
      %v1811 = vld [vmem:[%s1805 + $0x28] sm:$0xff]
      %v1812 = vld [vmem:[%s1805 + $0x30] sm:$0xff]
      %v1813 = vld [vmem:[%s1805 + $0x38] sm:$0xff]
      %v1814 = vunpack.c.l.bf16 %v1806
      %v1815 = vunpack.c.h.bf16 %v1806
      %v1816 = vunpack.c.l.bf16 %v1807
      %v1817 = vunpack.c.h.bf16 %v1807
      %v1818 = vunpack.c.l.bf16 %v1808
      %v1819 = vunpack.c.h.bf16 %v1808
      %v1820 = vunpack.c.l.bf16 %v1809
      %v1821 = vunpack.c.h.bf16 %v1809
      %v1822 = vunpack.c.l.bf16 %v1810
      %v1823 = vunpack.c.h.bf16 %v1810
      %v1824 = vunpack.c.l.bf16 %v1811
      %v1825 = vunpack.c.h.bf16 %v1811
      %v1826 = vunpack.c.l.bf16 %v1812
      %v1827 = vunpack.c.h.bf16 %v1812
      %v1828 = vunpack.c.l.bf16 %v1813
      %v1829 = vunpack.c.h.bf16 %v1813
      %v1830 = vmul.f32 %v1814, %v723
      %v1831 = vmul.f32 %v1815, %v727
      %v1832 = vmul.f32 %v1816, %v723
      %v1833 = vmul.f32 %v1817, %v727
      %v1834 = vmul.f32 %v1818, %v723
      %v1835 = vmul.f32 %v1819, %v727
      %v1836 = vmul.f32 %v1820, %v723
      %v1837 = vmul.f32 %v1821, %v727
      %v1838 = vmul.f32 %v1822, %v723
      %v1839 = vmul.f32 %v1823, %v727
      %v1840 = vmul.f32 %v1824, %v723
      %v1841 = vmul.f32 %v1825, %v727
      %v1842 = vmul.f32 %v1826, %v723
      %v1843 = vmul.f32 %v1827, %v727
      %v1844 = vmul.f32 %v1828, %v723
      %v1845 = vmul.f32 %v1829, %v727
      %v1846 = vadd.f32 %v1789, %v1830
      %v1847 = vadd.f32 %v1790, %v1831
      %v1848 = vadd.f32 %v1791, %v1832
      %v1849 = vadd.f32 %v1792, %v1833
      %v1850 = vadd.f32 %v1793, %v1834
      %v1851 = vadd.f32 %v1794, %v1835
      %v1852 = vadd.f32 %v1795, %v1836
      %v1853 = vadd.f32 %v1796, %v1837
      %v1854 = vadd.f32 %v1797, %v1838
      %v1855 = vadd.f32 %v1798, %v1839
      %v1856 = vadd.f32 %v1799, %v1840
      %v1857 = vadd.f32 %v1800, %v1841
      %v1858 = vadd.f32 %v1801, %v1842
      %v1859 = vadd.f32 %v1802, %v1843
      %v1860 = vadd.f32 %v1803, %v1844
      %v1861 = vadd.f32 %v1804, %v1845
      %v1862 = vadd.f32 %v1846, %v764
      %v1863 = vadd.f32 %v1847, %v768
      %v1864 = vadd.f32 %v1848, %v764
      %v1865 = vadd.f32 %v1849, %v768
      %v1866 = vadd.f32 %v1850, %v764
      %v1867 = vadd.f32 %v1851, %v768
      %v1868 = vadd.f32 %v1852, %v764
      %v1869 = vadd.f32 %v1853, %v768
      %v1870 = vadd.f32 %v1854, %v764
      %v1871 = vadd.f32 %v1855, %v768
      %v1872 = vadd.f32 %v1856, %v764
      %v1873 = vadd.f32 %v1857, %v768
      %v1874 = vadd.f32 %v1858, %v764
      %v1875 = vadd.f32 %v1859, %v768
      %v1876 = vadd.f32 %v1860, %v764
      %v1877 = vadd.f32 %v1861, %v768
      %s1878 = scalar_lea.vmem %s170, 256
      %1879 = vst [vmem:[%s1878] sm:$0xff] %v1862
      %1880 = vst [vmem:[%s1878 + $0x8] sm:$0xff] %v1863
      %1881 = vst [vmem:[%s1878 + $0x10] sm:$0xff] %v1864
      %1882 = vst [vmem:[%s1878 + $0x18] sm:$0xff] %v1865
      %1883 = vst [vmem:[%s1878 + $0x20] sm:$0xff] %v1866
      %1884 = vst [vmem:[%s1878 + $0x28] sm:$0xff] %v1867
      %1885 = vst [vmem:[%s1878 + $0x30] sm:$0xff] %v1868
      %1886 = vst [vmem:[%s1878 + $0x38] sm:$0xff] %v1869
      %1887 = vst [vmem:[%s1878 + $0x40] sm:$0xff] %v1870
      %1888 = vst [vmem:[%s1878 + $0x48] sm:$0xff] %v1871
      %1889 = vst [vmem:[%s1878 + $0x50] sm:$0xff] %v1872
      %1890 = vst [vmem:[%s1878 + $0x58] sm:$0xff] %v1873
      %1891 = vst [vmem:[%s1878 + $0x60] sm:$0xff] %v1874
      %1892 = vst [vmem:[%s1878 + $0x68] sm:$0xff] %v1875
      %1893 = vst [vmem:[%s1878 + $0x70] sm:$0xff] %v1876
      %1894 = vst [vmem:[%s1878 + $0x78] sm:$0xff] %v1877
      %s1895 = scalar_lea.vmem %s165, 192
      %v1896 = vld [vmem:[%s1895] sm:$0xff]
      %v1897 = vld [vmem:[%s1895 + $0x8] sm:$0xff]
      %v1898 = vld [vmem:[%s1895 + $0x10] sm:$0xff]
      %v1899 = vld [vmem:[%s1895 + $0x18] sm:$0xff]
      %v1900 = vld [vmem:[%s1895 + $0x20] sm:$0xff]
      %v1901 = vld [vmem:[%s1895 + $0x28] sm:$0xff]
      %v1902 = vld [vmem:[%s1895 + $0x30] sm:$0xff]
      %v1903 = vld [vmem:[%s1895 + $0x38] sm:$0xff]
      %v1904 = vunpack.c.l.bf16 %v1896
      %v1905 = vunpack.c.h.bf16 %v1896
      %v1906 = vunpack.c.l.bf16 %v1897
      %v1907 = vunpack.c.h.bf16 %v1897
      %v1908 = vunpack.c.l.bf16 %v1898
      %v1909 = vunpack.c.h.bf16 %v1898
      %v1910 = vunpack.c.l.bf16 %v1899
      %v1911 = vunpack.c.h.bf16 %v1899
      %v1912 = vunpack.c.l.bf16 %v1900
      %v1913 = vunpack.c.h.bf16 %v1900
      %v1914 = vunpack.c.l.bf16 %v1901
      %v1915 = vunpack.c.h.bf16 %v1901
      %v1916 = vunpack.c.l.bf16 %v1902
      %v1917 = vunpack.c.h.bf16 %v1902
      %v1918 = vunpack.c.l.bf16 %v1903
      %v1919 = vunpack.c.h.bf16 %v1903
      %v1920 = vmul.f32 %v1904, %v203
      %v1921 = vmul.f32 %v1905, %v207
      %v1922 = vmul.f32 %v1906, %v203
      %v1923 = vmul.f32 %v1907, %v207
      %v1924 = vmul.f32 %v1908, %v203
      %v1925 = vmul.f32 %v1909, %v207
      %v1926 = vmul.f32 %v1910, %v203
      %v1927 = vmul.f32 %v1911, %v207
      %v1928 = vmul.f32 %v1912, %v203
      %v1929 = vmul.f32 %v1913, %v207
      %v1930 = vmul.f32 %v1914, %v203
      %v1931 = vmul.f32 %v1915, %v207
      %v1932 = vmul.f32 %v1916, %v203
      %v1933 = vmul.f32 %v1917, %v207
      %v1934 = vmul.f32 %v1918, %v203
      %v1935 = vmul.f32 %v1919, %v207
      %v1936 = vadd.f32 %v1920, 0.0
      %v1937 = vadd.f32 %v1921, 0.0
      %v1938 = vadd.f32 %v1922, 0.0
      %v1939 = vadd.f32 %v1923, 0.0
      %v1940 = vadd.f32 %v1924, 0.0
      %v1941 = vadd.f32 %v1925, 0.0
      %v1942 = vadd.f32 %v1926, 0.0
      %v1943 = vadd.f32 %v1927, 0.0
      %v1944 = vadd.f32 %v1928, 0.0
      %v1945 = vadd.f32 %v1929, 0.0
      %v1946 = vadd.f32 %v1930, 0.0
      %v1947 = vadd.f32 %v1931, 0.0
      %v1948 = vadd.f32 %v1932, 0.0
      %v1949 = vadd.f32 %v1933, 0.0
      %v1950 = vadd.f32 %v1934, 0.0
      %v1951 = vadd.f32 %v1935, 0.0
      %s1952 = scalar_lea.vmem %s165, 208
      %v1953 = vld [vmem:[%s1952] sm:$0xff]
      %v1954 = vld [vmem:[%s1952 + $0x8] sm:$0xff]
      %v1955 = vld [vmem:[%s1952 + $0x10] sm:$0xff]
      %v1956 = vld [vmem:[%s1952 + $0x18] sm:$0xff]
      %v1957 = vld [vmem:[%s1952 + $0x20] sm:$0xff]
      %v1958 = vld [vmem:[%s1952 + $0x28] sm:$0xff]
      %v1959 = vld [vmem:[%s1952 + $0x30] sm:$0xff]
      %v1960 = vld [vmem:[%s1952 + $0x38] sm:$0xff]
      %v1961 = vunpack.c.l.bf16 %v1953
      %v1962 = vunpack.c.h.bf16 %v1953
      %v1963 = vunpack.c.l.bf16 %v1954
      %v1964 = vunpack.c.h.bf16 %v1954
      %v1965 = vunpack.c.l.bf16 %v1955
      %v1966 = vunpack.c.h.bf16 %v1955
      %v1967 = vunpack.c.l.bf16 %v1956
      %v1968 = vunpack.c.h.bf16 %v1956
      %v1969 = vunpack.c.l.bf16 %v1957
      %v1970 = vunpack.c.h.bf16 %v1957
      %v1971 = vunpack.c.l.bf16 %v1958
      %v1972 = vunpack.c.h.bf16 %v1958
      %v1973 = vunpack.c.l.bf16 %v1959
      %v1974 = vunpack.c.h.bf16 %v1959
      %v1975 = vunpack.c.l.bf16 %v1960
      %v1976 = vunpack.c.h.bf16 %v1960
      %v1977 = vmul.f32 %v1961, %v268
      %v1978 = vmul.f32 %v1962, %v272
      %v1979 = vmul.f32 %v1963, %v268
      %v1980 = vmul.f32 %v1964, %v272
      %v1981 = vmul.f32 %v1965, %v268
      %v1982 = vmul.f32 %v1966, %v272
      %v1983 = vmul.f32 %v1967, %v268
      %v1984 = vmul.f32 %v1968, %v272
      %v1985 = vmul.f32 %v1969, %v268
      %v1986 = vmul.f32 %v1970, %v272
      %v1987 = vmul.f32 %v1971, %v268
      %v1988 = vmul.f32 %v1972, %v272
      %v1989 = vmul.f32 %v1973, %v268
      %v1990 = vmul.f32 %v1974, %v272
      %v1991 = vmul.f32 %v1975, %v268
      %v1992 = vmul.f32 %v1976, %v272
      %v1993 = vadd.f32 %v1936, %v1977
      %v1994 = vadd.f32 %v1937, %v1978
      %v1995 = vadd.f32 %v1938, %v1979
      %v1996 = vadd.f32 %v1939, %v1980
      %v1997 = vadd.f32 %v1940, %v1981
      %v1998 = vadd.f32 %v1941, %v1982
      %v1999 = vadd.f32 %v1942, %v1983
      %v2000 = vadd.f32 %v1943, %v1984
      %v2001 = vadd.f32 %v1944, %v1985
      %v2002 = vadd.f32 %v1945, %v1986
      %v2003 = vadd.f32 %v1946, %v1987
      %v2004 = vadd.f32 %v1947, %v1988
      %v2005 = vadd.f32 %v1948, %v1989
      %v2006 = vadd.f32 %v1949, %v1990
      %v2007 = vadd.f32 %v1950, %v1991
      %v2008 = vadd.f32 %v1951, %v1992
      %s2009 = scalar_lea.vmem %s165, 224
      %v2010 = vld [vmem:[%s2009] sm:$0xff]
      %v2011 = vld [vmem:[%s2009 + $0x8] sm:$0xff]
      %v2012 = vld [vmem:[%s2009 + $0x10] sm:$0xff]
      %v2013 = vld [vmem:[%s2009 + $0x18] sm:$0xff]
      %v2014 = vld [vmem:[%s2009 + $0x20] sm:$0xff]
      %v2015 = vld [vmem:[%s2009 + $0x28] sm:$0xff]
      %v2016 = vld [vmem:[%s2009 + $0x30] sm:$0xff]
      %v2017 = vld [vmem:[%s2009 + $0x38] sm:$0xff]
      %v2018 = vunpack.c.l.bf16 %v2010
      %v2019 = vunpack.c.h.bf16 %v2010
      %v2020 = vunpack.c.l.bf16 %v2011
      %v2021 = vunpack.c.h.bf16 %v2011
      %v2022 = vunpack.c.l.bf16 %v2012
      %v2023 = vunpack.c.h.bf16 %v2012
      %v2024 = vunpack.c.l.bf16 %v2013
      %v2025 = vunpack.c.h.bf16 %v2013
      %v2026 = vunpack.c.l.bf16 %v2014
      %v2027 = vunpack.c.h.bf16 %v2014
      %v2028 = vunpack.c.l.bf16 %v2015
      %v2029 = vunpack.c.h.bf16 %v2015
      %v2030 = vunpack.c.l.bf16 %v2016
      %v2031 = vunpack.c.h.bf16 %v2016
      %v2032 = vunpack.c.l.bf16 %v2017
      %v2033 = vunpack.c.h.bf16 %v2017
      %v2034 = vmul.f32 %v2018, %v333
      %v2035 = vmul.f32 %v2019, %v337
      %v2036 = vmul.f32 %v2020, %v333
      %v2037 = vmul.f32 %v2021, %v337
      %v2038 = vmul.f32 %v2022, %v333
      %v2039 = vmul.f32 %v2023, %v337
      %v2040 = vmul.f32 %v2024, %v333
      %v2041 = vmul.f32 %v2025, %v337
      %v2042 = vmul.f32 %v2026, %v333
      %v2043 = vmul.f32 %v2027, %v337
      %v2044 = vmul.f32 %v2028, %v333
      %v2045 = vmul.f32 %v2029, %v337
      %v2046 = vmul.f32 %v2030, %v333
      %v2047 = vmul.f32 %v2031, %v337
      %v2048 = vmul.f32 %v2032, %v333
      %v2049 = vmul.f32 %v2033, %v337
      %v2050 = vadd.f32 %v1993, %v2034
      %v2051 = vadd.f32 %v1994, %v2035
      %v2052 = vadd.f32 %v1995, %v2036
      %v2053 = vadd.f32 %v1996, %v2037
      %v2054 = vadd.f32 %v1997, %v2038
      %v2055 = vadd.f32 %v1998, %v2039
      %v2056 = vadd.f32 %v1999, %v2040
      %v2057 = vadd.f32 %v2000, %v2041
      %v2058 = vadd.f32 %v2001, %v2042
      %v2059 = vadd.f32 %v2002, %v2043
      %v2060 = vadd.f32 %v2003, %v2044
      %v2061 = vadd.f32 %v2004, %v2045
      %v2062 = vadd.f32 %v2005, %v2046
      %v2063 = vadd.f32 %v2006, %v2047
      %v2064 = vadd.f32 %v2007, %v2048
      %v2065 = vadd.f32 %v2008, %v2049
      %s2066 = scalar_lea.vmem %s165, 480
      %v2067 = vld [vmem:[%s2066] sm:$0xff]
      %v2068 = vld [vmem:[%s2066 + $0x8] sm:$0xff]
      %v2069 = vld [vmem:[%s2066 + $0x10] sm:$0xff]
      %v2070 = vld [vmem:[%s2066 + $0x18] sm:$0xff]
      %v2071 = vld [vmem:[%s2066 + $0x20] sm:$0xff]
      %v2072 = vld [vmem:[%s2066 + $0x28] sm:$0xff]
      %v2073 = vld [vmem:[%s2066 + $0x30] sm:$0xff]
      %v2074 = vld [vmem:[%s2066 + $0x38] sm:$0xff]
      %v2075 = vunpack.c.l.bf16 %v2067
      %v2076 = vunpack.c.h.bf16 %v2067
      %v2077 = vunpack.c.l.bf16 %v2068
      %v2078 = vunpack.c.h.bf16 %v2068
      %v2079 = vunpack.c.l.bf16 %v2069
      %v2080 = vunpack.c.h.bf16 %v2069
      %v2081 = vunpack.c.l.bf16 %v2070
      %v2082 = vunpack.c.h.bf16 %v2070
      %v2083 = vunpack.c.l.bf16 %v2071
      %v2084 = vunpack.c.h.bf16 %v2071
      %v2085 = vunpack.c.l.bf16 %v2072
      %v2086 = vunpack.c.h.bf16 %v2072
      %v2087 = vunpack.c.l.bf16 %v2073
      %v2088 = vunpack.c.h.bf16 %v2073
      %v2089 = vunpack.c.l.bf16 %v2074
      %v2090 = vunpack.c.h.bf16 %v2074
      %v2091 = vmul.f32 %v2075, %v398
      %v2092 = vmul.f32 %v2076, %v402
      %v2093 = vmul.f32 %v2077, %v398
      %v2094 = vmul.f32 %v2078, %v402
      %v2095 = vmul.f32 %v2079, %v398
      %v2096 = vmul.f32 %v2080, %v402
      %v2097 = vmul.f32 %v2081, %v398
      %v2098 = vmul.f32 %v2082, %v402
      %v2099 = vmul.f32 %v2083, %v398
      %v2100 = vmul.f32 %v2084, %v402
      %v2101 = vmul.f32 %v2085, %v398
      %v2102 = vmul.f32 %v2086, %v402
      %v2103 = vmul.f32 %v2087, %v398
      %v2104 = vmul.f32 %v2088, %v402
      %v2105 = vmul.f32 %v2089, %v398
      %v2106 = vmul.f32 %v2090, %v402
      %v2107 = vadd.f32 %v2050, %v2091
      %v2108 = vadd.f32 %v2051, %v2092
      %v2109 = vadd.f32 %v2052, %v2093
      %v2110 = vadd.f32 %v2053, %v2094
      %v2111 = vadd.f32 %v2054, %v2095
      %v2112 = vadd.f32 %v2055, %v2096
      %v2113 = vadd.f32 %v2056, %v2097
      %v2114 = vadd.f32 %v2057, %v2098
      %v2115 = vadd.f32 %v2058, %v2099
      %v2116 = vadd.f32 %v2059, %v2100
      %v2117 = vadd.f32 %v2060, %v2101
      %v2118 = vadd.f32 %v2061, %v2102
      %v2119 = vadd.f32 %v2062, %v2103
      %v2120 = vadd.f32 %v2063, %v2104
      %v2121 = vadd.f32 %v2064, %v2105
      %v2122 = vadd.f32 %v2065, %v2106
      %s2123 = scalar_lea.vmem %s165, 496
      %v2124 = vld [vmem:[%s2123] sm:$0xff]
      %v2125 = vld [vmem:[%s2123 + $0x8] sm:$0xff]
      %v2126 = vld [vmem:[%s2123 + $0x10] sm:$0xff]
      %v2127 = vld [vmem:[%s2123 + $0x18] sm:$0xff]
      %v2128 = vld [vmem:[%s2123 + $0x20] sm:$0xff]
      %v2129 = vld [vmem:[%s2123 + $0x28] sm:$0xff]
      %v2130 = vld [vmem:[%s2123 + $0x30] sm:$0xff]
      %v2131 = vld [vmem:[%s2123 + $0x38] sm:$0xff]
      %v2132 = vunpack.c.l.bf16 %v2124
      %v2133 = vunpack.c.h.bf16 %v2124
      %v2134 = vunpack.c.l.bf16 %v2125
      %v2135 = vunpack.c.h.bf16 %v2125
      %v2136 = vunpack.c.l.bf16 %v2126
      %v2137 = vunpack.c.h.bf16 %v2126
      %v2138 = vunpack.c.l.bf16 %v2127
      %v2139 = vunpack.c.h.bf16 %v2127
      %v2140 = vunpack.c.l.bf16 %v2128
      %v2141 = vunpack.c.h.bf16 %v2128
      %v2142 = vunpack.c.l.bf16 %v2129
      %v2143 = vunpack.c.h.bf16 %v2129
      %v2144 = vunpack.c.l.bf16 %v2130
      %v2145 = vunpack.c.h.bf16 %v2130
      %v2146 = vunpack.c.l.bf16 %v2131
      %v2147 = vunpack.c.h.bf16 %v2131
      %v2148 = vmul.f32 %v2132, %v463
      %v2149 = vmul.f32 %v2133, %v467
      %v2150 = vmul.f32 %v2134, %v463
      %v2151 = vmul.f32 %v2135, %v467
      %v2152 = vmul.f32 %v2136, %v463
      %v2153 = vmul.f32 %v2137, %v467
      %v2154 = vmul.f32 %v2138, %v463
      %v2155 = vmul.f32 %v2139, %v467
      %v2156 = vmul.f32 %v2140, %v463
      %v2157 = vmul.f32 %v2141, %v467
      %v2158 = vmul.f32 %v2142, %v463
      %v2159 = vmul.f32 %v2143, %v467
      %v2160 = vmul.f32 %v2144, %v463
      %v2161 = vmul.f32 %v2145, %v467
      %v2162 = vmul.f32 %v2146, %v463
      %v2163 = vmul.f32 %v2147, %v467
      %v2164 = vadd.f32 %v2107, %v2148
      %v2165 = vadd.f32 %v2108, %v2149
      %v2166 = vadd.f32 %v2109, %v2150
      %v2167 = vadd.f32 %v2110, %v2151
      %v2168 = vadd.f32 %v2111, %v2152
      %v2169 = vadd.f32 %v2112, %v2153
      %v2170 = vadd.f32 %v2113, %v2154
      %v2171 = vadd.f32 %v2114, %v2155
      %v2172 = vadd.f32 %v2115, %v2156
      %v2173 = vadd.f32 %v2116, %v2157
      %v2174 = vadd.f32 %v2117, %v2158
      %v2175 = vadd.f32 %v2118, %v2159
      %v2176 = vadd.f32 %v2119, %v2160
      %v2177 = vadd.f32 %v2120, %v2161
      %v2178 = vadd.f32 %v2121, %v2162
      %v2179 = vadd.f32 %v2122, %v2163
      %s2180 = scalar_lea.vmem %s165, 512
      %v2181 = vld [vmem:[%s2180] sm:$0xff]
      %v2182 = vld [vmem:[%s2180 + $0x8] sm:$0xff]
      %v2183 = vld [vmem:[%s2180 + $0x10] sm:$0xff]
      %v2184 = vld [vmem:[%s2180 + $0x18] sm:$0xff]
      %v2185 = vld [vmem:[%s2180 + $0x20] sm:$0xff]
      %v2186 = vld [vmem:[%s2180 + $0x28] sm:$0xff]
      %v2187 = vld [vmem:[%s2180 + $0x30] sm:$0xff]
      %v2188 = vld [vmem:[%s2180 + $0x38] sm:$0xff]
      %v2189 = vunpack.c.l.bf16 %v2181
      %v2190 = vunpack.c.h.bf16 %v2181
      %v2191 = vunpack.c.l.bf16 %v2182
      %v2192 = vunpack.c.h.bf16 %v2182
      %v2193 = vunpack.c.l.bf16 %v2183
      %v2194 = vunpack.c.h.bf16 %v2183
      %v2195 = vunpack.c.l.bf16 %v2184
      %v2196 = vunpack.c.h.bf16 %v2184
      %v2197 = vunpack.c.l.bf16 %v2185
      %v2198 = vunpack.c.h.bf16 %v2185
      %v2199 = vunpack.c.l.bf16 %v2186
      %v2200 = vunpack.c.h.bf16 %v2186
      %v2201 = vunpack.c.l.bf16 %v2187
      %v2202 = vunpack.c.h.bf16 %v2187
      %v2203 = vunpack.c.l.bf16 %v2188
      %v2204 = vunpack.c.h.bf16 %v2188
      %v2205 = vmul.f32 %v2189, %v528
      %v2206 = vmul.f32 %v2190, %v532
      %v2207 = vmul.f32 %v2191, %v528
      %v2208 = vmul.f32 %v2192, %v532
      %v2209 = vmul.f32 %v2193, %v528
      %v2210 = vmul.f32 %v2194, %v532
      %v2211 = vmul.f32 %v2195, %v528
      %v2212 = vmul.f32 %v2196, %v532
      %v2213 = vmul.f32 %v2197, %v528
      %v2214 = vmul.f32 %v2198, %v532
      %v2215 = vmul.f32 %v2199, %v528
      %v2216 = vmul.f32 %v2200, %v532
      %v2217 = vmul.f32 %v2201, %v528
      %v2218 = vmul.f32 %v2202, %v532
      %v2219 = vmul.f32 %v2203, %v528
      %v2220 = vmul.f32 %v2204, %v532
      %v2221 = vadd.f32 %v2164, %v2205
      %v2222 = vadd.f32 %v2165, %v2206
      %v2223 = vadd.f32 %v2166, %v2207
      %v2224 = vadd.f32 %v2167, %v2208
      %v2225 = vadd.f32 %v2168, %v2209
      %v2226 = vadd.f32 %v2169, %v2210
      %v2227 = vadd.f32 %v2170, %v2211
      %v2228 = vadd.f32 %v2171, %v2212
      %v2229 = vadd.f32 %v2172, %v2213
      %v2230 = vadd.f32 %v2173, %v2214
      %v2231 = vadd.f32 %v2174, %v2215
      %v2232 = vadd.f32 %v2175, %v2216
      %v2233 = vadd.f32 %v2176, %v2217
      %v2234 = vadd.f32 %v2177, %v2218
      %v2235 = vadd.f32 %v2178, %v2219
      %v2236 = vadd.f32 %v2179, %v2220
      %s2237 = scalar_lea.vmem %s165, 768
      %v2238 = vld [vmem:[%s2237] sm:$0xff]
      %v2239 = vld [vmem:[%s2237 + $0x8] sm:$0xff]
      %v2240 = vld [vmem:[%s2237 + $0x10] sm:$0xff]
      %v2241 = vld [vmem:[%s2237 + $0x18] sm:$0xff]
      %v2242 = vld [vmem:[%s2237 + $0x20] sm:$0xff]
      %v2243 = vld [vmem:[%s2237 + $0x28] sm:$0xff]
      %v2244 = vld [vmem:[%s2237 + $0x30] sm:$0xff]
      %v2245 = vld [vmem:[%s2237 + $0x38] sm:$0xff]
      %v2246 = vunpack.c.l.bf16 %v2238
      %v2247 = vunpack.c.h.bf16 %v2238
      %v2248 = vunpack.c.l.bf16 %v2239
      %v2249 = vunpack.c.h.bf16 %v2239
      %v2250 = vunpack.c.l.bf16 %v2240
      %v2251 = vunpack.c.h.bf16 %v2240
      %v2252 = vunpack.c.l.bf16 %v2241
      %v2253 = vunpack.c.h.bf16 %v2241
      %v2254 = vunpack.c.l.bf16 %v2242
      %v2255 = vunpack.c.h.bf16 %v2242
      %v2256 = vunpack.c.l.bf16 %v2243
      %v2257 = vunpack.c.h.bf16 %v2243
      %v2258 = vunpack.c.l.bf16 %v2244
      %v2259 = vunpack.c.h.bf16 %v2244
      %v2260 = vunpack.c.l.bf16 %v2245
      %v2261 = vunpack.c.h.bf16 %v2245
      %v2262 = vmul.f32 %v2246, %v593
      %v2263 = vmul.f32 %v2247, %v597
      %v2264 = vmul.f32 %v2248, %v593
      %v2265 = vmul.f32 %v2249, %v597
      %v2266 = vmul.f32 %v2250, %v593
      %v2267 = vmul.f32 %v2251, %v597
      %v2268 = vmul.f32 %v2252, %v593
      %v2269 = vmul.f32 %v2253, %v597
      %v2270 = vmul.f32 %v2254, %v593
      %v2271 = vmul.f32 %v2255, %v597
      %v2272 = vmul.f32 %v2256, %v593
      %v2273 = vmul.f32 %v2257, %v597
      %v2274 = vmul.f32 %v2258, %v593
      %v2275 = vmul.f32 %v2259, %v597
      %v2276 = vmul.f32 %v2260, %v593
      %v2277 = vmul.f32 %v2261, %v597
      %v2278 = vadd.f32 %v2221, %v2262
      %v2279 = vadd.f32 %v2222, %v2263
      %v2280 = vadd.f32 %v2223, %v2264
      %v2281 = vadd.f32 %v2224, %v2265
      %v2282 = vadd.f32 %v2225, %v2266
      %v2283 = vadd.f32 %v2226, %v2267
      %v2284 = vadd.f32 %v2227, %v2268
      %v2285 = vadd.f32 %v2228, %v2269
      %v2286 = vadd.f32 %v2229, %v2270
      %v2287 = vadd.f32 %v2230, %v2271
      %v2288 = vadd.f32 %v2231, %v2272
      %v2289 = vadd.f32 %v2232, %v2273
      %v2290 = vadd.f32 %v2233, %v2274
      %v2291 = vadd.f32 %v2234, %v2275
      %v2292 = vadd.f32 %v2235, %v2276
      %v2293 = vadd.f32 %v2236, %v2277
      %s2294 = scalar_lea.vmem %s165, 784
      %v2295 = vld [vmem:[%s2294] sm:$0xff]
      %v2296 = vld [vmem:[%s2294 + $0x8] sm:$0xff]
      %v2297 = vld [vmem:[%s2294 + $0x10] sm:$0xff]
      %v2298 = vld [vmem:[%s2294 + $0x18] sm:$0xff]
      %v2299 = vld [vmem:[%s2294 + $0x20] sm:$0xff]
      %v2300 = vld [vmem:[%s2294 + $0x28] sm:$0xff]
      %v2301 = vld [vmem:[%s2294 + $0x30] sm:$0xff]
      %v2302 = vld [vmem:[%s2294 + $0x38] sm:$0xff]
      %v2303 = vunpack.c.l.bf16 %v2295
      %v2304 = vunpack.c.h.bf16 %v2295
      %v2305 = vunpack.c.l.bf16 %v2296
      %v2306 = vunpack.c.h.bf16 %v2296
      %v2307 = vunpack.c.l.bf16 %v2297
      %v2308 = vunpack.c.h.bf16 %v2297
      %v2309 = vunpack.c.l.bf16 %v2298
      %v2310 = vunpack.c.h.bf16 %v2298
      %v2311 = vunpack.c.l.bf16 %v2299
      %v2312 = vunpack.c.h.bf16 %v2299
      %v2313 = vunpack.c.l.bf16 %v2300
      %v2314 = vunpack.c.h.bf16 %v2300
      %v2315 = vunpack.c.l.bf16 %v2301
      %v2316 = vunpack.c.h.bf16 %v2301
      %v2317 = vunpack.c.l.bf16 %v2302
      %v2318 = vunpack.c.h.bf16 %v2302
      %v2319 = vmul.f32 %v2303, %v658
      %v2320 = vmul.f32 %v2304, %v662
      %v2321 = vmul.f32 %v2305, %v658
      %v2322 = vmul.f32 %v2306, %v662
      %v2323 = vmul.f32 %v2307, %v658
      %v2324 = vmul.f32 %v2308, %v662
      %v2325 = vmul.f32 %v2309, %v658
      %v2326 = vmul.f32 %v2310, %v662
      %v2327 = vmul.f32 %v2311, %v658
      %v2328 = vmul.f32 %v2312, %v662
      %v2329 = vmul.f32 %v2313, %v658
      %v2330 = vmul.f32 %v2314, %v662
      %v2331 = vmul.f32 %v2315, %v658
      %v2332 = vmul.f32 %v2316, %v662
      %v2333 = vmul.f32 %v2317, %v658
      %v2334 = vmul.f32 %v2318, %v662
      %v2335 = vadd.f32 %v2278, %v2319
      %v2336 = vadd.f32 %v2279, %v2320
      %v2337 = vadd.f32 %v2280, %v2321
      %v2338 = vadd.f32 %v2281, %v2322
      %v2339 = vadd.f32 %v2282, %v2323
      %v2340 = vadd.f32 %v2283, %v2324
      %v2341 = vadd.f32 %v2284, %v2325
      %v2342 = vadd.f32 %v2285, %v2326
      %v2343 = vadd.f32 %v2286, %v2327
      %v2344 = vadd.f32 %v2287, %v2328
      %v2345 = vadd.f32 %v2288, %v2329
      %v2346 = vadd.f32 %v2289, %v2330
      %v2347 = vadd.f32 %v2290, %v2331
      %v2348 = vadd.f32 %v2291, %v2332
      %v2349 = vadd.f32 %v2292, %v2333
      %v2350 = vadd.f32 %v2293, %v2334
      %s2351 = scalar_lea.vmem %s165, 800
      %v2352 = vld [vmem:[%s2351] sm:$0xff]
      %v2353 = vld [vmem:[%s2351 + $0x8] sm:$0xff]
      %v2354 = vld [vmem:[%s2351 + $0x10] sm:$0xff]
      %v2355 = vld [vmem:[%s2351 + $0x18] sm:$0xff]
      %v2356 = vld [vmem:[%s2351 + $0x20] sm:$0xff]
      %v2357 = vld [vmem:[%s2351 + $0x28] sm:$0xff]
      %v2358 = vld [vmem:[%s2351 + $0x30] sm:$0xff]
      %v2359 = vld [vmem:[%s2351 + $0x38] sm:$0xff]
      %v2360 = vunpack.c.l.bf16 %v2352
      %v2361 = vunpack.c.h.bf16 %v2352
      %v2362 = vunpack.c.l.bf16 %v2353
      %v2363 = vunpack.c.h.bf16 %v2353
      %v2364 = vunpack.c.l.bf16 %v2354
      %v2365 = vunpack.c.h.bf16 %v2354
      %v2366 = vunpack.c.l.bf16 %v2355
      %v2367 = vunpack.c.h.bf16 %v2355
      %v2368 = vunpack.c.l.bf16 %v2356
      %v2369 = vunpack.c.h.bf16 %v2356
      %v2370 = vunpack.c.l.bf16 %v2357
      %v2371 = vunpack.c.h.bf16 %v2357
      %v2372 = vunpack.c.l.bf16 %v2358
      %v2373 = vunpack.c.h.bf16 %v2358
      %v2374 = vunpack.c.l.bf16 %v2359
      %v2375 = vunpack.c.h.bf16 %v2359
      %v2376 = vmul.f32 %v2360, %v723
      %v2377 = vmul.f32 %v2361, %v727
      %v2378 = vmul.f32 %v2362, %v723
      %v2379 = vmul.f32 %v2363, %v727
      %v2380 = vmul.f32 %v2364, %v723
      %v2381 = vmul.f32 %v2365, %v727
      %v2382 = vmul.f32 %v2366, %v723
      %v2383 = vmul.f32 %v2367, %v727
      %v2384 = vmul.f32 %v2368, %v723
      %v2385 = vmul.f32 %v2369, %v727
      %v2386 = vmul.f32 %v2370, %v723
      %v2387 = vmul.f32 %v2371, %v727
      %v2388 = vmul.f32 %v2372, %v723
      %v2389 = vmul.f32 %v2373, %v727
      %v2390 = vmul.f32 %v2374, %v723
      %v2391 = vmul.f32 %v2375, %v727
      %v2392 = vadd.f32 %v2335, %v2376
      %v2393 = vadd.f32 %v2336, %v2377
      %v2394 = vadd.f32 %v2337, %v2378
      %v2395 = vadd.f32 %v2338, %v2379
      %v2396 = vadd.f32 %v2339, %v2380
      %v2397 = vadd.f32 %v2340, %v2381
      %v2398 = vadd.f32 %v2341, %v2382
      %v2399 = vadd.f32 %v2342, %v2383
      %v2400 = vadd.f32 %v2343, %v2384
      %v2401 = vadd.f32 %v2344, %v2385
      %v2402 = vadd.f32 %v2345, %v2386
      %v2403 = vadd.f32 %v2346, %v2387
      %v2404 = vadd.f32 %v2347, %v2388
      %v2405 = vadd.f32 %v2348, %v2389
      %v2406 = vadd.f32 %v2349, %v2390
      %v2407 = vadd.f32 %v2350, %v2391
      %v2408 = vadd.f32 %v2392, %v764
      %v2409 = vadd.f32 %v2393, %v768
      %v2410 = vadd.f32 %v2394, %v764
      %v2411 = vadd.f32 %v2395, %v768
      %v2412 = vadd.f32 %v2396, %v764
      %v2413 = vadd.f32 %v2397, %v768
      %v2414 = vadd.f32 %v2398, %v764
      %v2415 = vadd.f32 %v2399, %v768
      %v2416 = vadd.f32 %v2400, %v764
      %v2417 = vadd.f32 %v2401, %v768
      %v2418 = vadd.f32 %v2402, %v764
      %v2419 = vadd.f32 %v2403, %v768
      %v2420 = vadd.f32 %v2404, %v764
      %v2421 = vadd.f32 %v2405, %v768
      %v2422 = vadd.f32 %v2406, %v764
      %v2423 = vadd.f32 %v2407, %v768
      %s2424 = scalar_lea.vmem %s170, 384
      %2425 = vst [vmem:[%s2424] sm:$0xff] %v2408
      %2426 = vst [vmem:[%s2424 + $0x8] sm:$0xff] %v2409
      %2427 = vst [vmem:[%s2424 + $0x10] sm:$0xff] %v2410
      %2428 = vst [vmem:[%s2424 + $0x18] sm:$0xff] %v2411
      %2429 = vst [vmem:[%s2424 + $0x20] sm:$0xff] %v2412
      %2430 = vst [vmem:[%s2424 + $0x28] sm:$0xff] %v2413
      %2431 = vst [vmem:[%s2424 + $0x30] sm:$0xff] %v2414
      %2432 = vst [vmem:[%s2424 + $0x38] sm:$0xff] %v2415
      %2433 = vst [vmem:[%s2424 + $0x40] sm:$0xff] %v2416
      %2434 = vst [vmem:[%s2424 + $0x48] sm:$0xff] %v2417
      %2435 = vst [vmem:[%s2424 + $0x50] sm:$0xff] %v2418
      %2436 = vst [vmem:[%s2424 + $0x58] sm:$0xff] %v2419
      %2437 = vst [vmem:[%s2424 + $0x60] sm:$0xff] %v2420
      %2438 = vst [vmem:[%s2424 + $0x68] sm:$0xff] %v2421
      %2439 = vst [vmem:[%s2424 + $0x70] sm:$0xff] %v2422
      %2440 = vst [vmem:[%s2424 + $0x78] sm:$0xff] %v2423
      %p2441 = scmp.lt.s32.totalorder %s14, 1
      %s2442 = scalar_select %p2441, %s14, 1
      %s2443 = smul.addr %s2442, 64
      %s2444 = smul.addr %s2443, 8
      %s2445 = scalar_lea.vmem %s3, %s2444
      // Predicated region
      $region33: #{run.10} parent=31 // pred_check
        %p2446 = pneg %p100
      $region34: #{run.10} parent=31 // pred_check_branch
        %2448 = sbr.rel (%p2446) target = $region36
      $region35: #{run.10} parent=31 // pred_region
        _
      $region36: #{run.10} parent=31 // pred_fallthru
        _
    $region32: #{run.10} parent=5 // pred_fallthru
      _
    %p2449 = scmp.le.s32.totalorder 2, %s9
    // Predicated region
    $region37: #{run.10} parent=5 // pred_check
      %p2450 = pneg %p2449
    $region38: #{run.10} parent=5 // pred_check_branch
      %2452 = sbr.rel (%p2450) target = $region40
    $region39: #{run.10} parent=5 // pred_region
      %s2453 = ssub.s32 %s9, 2
      // Predicated region
      $region41: #{run.10} parent=39 // pred_check
        %p2454 = pneg %p106
      $region42: #{run.10} parent=39 // pred_check_branch
        %2456 = sbr.rel (%p2454) target = $region44
      $region43: #{run.10} parent=39 // pred_region
        %p2457 = scmp.lt.s32.totalorder %s15, 1
        %s2458 = scalar_select %p2457, %s15, 1
        %s2459 = smul.addr %s2458, 64
        %s2460 = smul.addr %s2459, 8
        %s2461 = scalar_lea.vmem %s3, %s2460
      $region44: #{run.10} parent=39 // pred_fallthru
        _
    $region40: #{run.10} parent=5 // pred_fallthru
      _
  $region6: #{run.10} parent=0 // loop_footer
    %s13 = sadd.s32 1, %s9
  $region7: #{run.10} parent=0 // loop_footer_branch
    %8 = sbr.rel target = $region3
  $region8: #{run.10} parent=0 // loop_exit
    _

// kernel: run.11
$region0: #{run.11}
  #allocation0 [shape = 'u32[]', space=smem, size = 0x4, offset = 0x4, fixed_abs, tag = 'smem constant byte address 0x4 - core index']
  #allocation1 [shape = 'u32[144,128]{1,0:T(1,128)}', space=vmem, size = 0x12000, scoped, tag = 'internal scratch']
  %s0 = inlined_call_operand.vmem [shape: f32[128,256], index: 0, kind: input, shape index: {}]
  %s1 = inlined_call_operand.vmem [shape: bf16[256,64], index: 1, kind: input, shape index: {}]
  %s2 = inlined_call_operand.vmem [shape: f32[1,64], index: 2, kind: input, shape index: {}]
  %s3 = inlined_call_operand.vmem [shape: f32[128,64], index: 3, kind: input, shape index: {}]
  %s4 = inlined_call_operand.hbm [shape: f32[128,64], index: 4, kind: output, shape index: {}]
  %s5 = sld [smem:[#allocation0]]
  $region49: #{run.11} parent=0
    _
  %s7 = ssub.s32 1, %s5
  %s8 = scalar_select 0, %s7, %s5
  $region1: #{run.11} parent=0
    #allocation2 [shape = 'u8[65536]{0}', space=vmem, size = 0x10000, scoped, tag = 'output window, operand 0']
    #allocation3 [shape = 's32[2]{0}', space=sflag, size = 0x8, scoped, tag = 'scoped memory for run.11']
    %9 = vsyncpa [#allocation3], 0
    %s10 = scalar_lea.sflag [#allocation3], 1
    %11 = vsyncpa %s10, 0
    loop: start=0, step=1, limit=4
    $region2: #{run.11} parent=1 // loop_pre_header
      _
    $region3: #{run.11} parent=1 // loop_header
      %s13 = sphi 0, %s17
      %p14 = scmp.ge.s32.totalorder %s13, 4
      %s23 = sphi 0, %s25
      %s26 = sphi 0, %s23
      %s27 = sphi 0, %s26
      %s43 = sphi 0, %s27
      %s47 = sphi 0, %s47
      %s49 = sphi 0, %s47
      %s50 = sphi 0, %s49
      %s64 = sphi 0, %s50
      %s68 = sphi 0, %s68
      %s70 = sphi 0, %s68
      %s71 = sphi 0, %s70
      %s85 = sphi 0, %s71
      %s91 = sphi 0, %s93
      %s94 = sphi 0, %s91
      %s95 = sphi 0, %s94
      %s111 = sphi 0, %s95
      %s117 = sphi 0, %s119
      %s120 = sphi 0, %s117
      %s121 = sphi 0, %s120
      %s137 = sphi 0, %s121
    $region4: #{run.11} parent=1 // loop_header_branch
      %16 = sbr.rel (%p14) target = $region8
    $region5: #{run.11} parent=1 // loop_body
      %s18 = ssub.s32 %s13, 1
      %s19 = ssub.s32 %s13, 2
      %s20 = sadd.s32 %s13, 1
      %s21 = ssub.s32 %s13, %s20
      %p22 = scmp.eq.s32.totalorder %s21, 0
      %s24 = sadd.s32 %s23, 1
      %s25 = scalar_select %p22, %s23, %s24
      %p28 = pneg %p22
      %p29 = scmp.eq.s32.totalorder %s13, 1
      %p30 = por %p28, %p29
      %p31 = scmp.ne.s32.totalorder %s23, %s26
      %p32 = scmp.eq.s32.totalorder %s13, 0
      %p33 = por %p31, %p32
      %p34 = scmp.ne.s32.totalorder %s23, %s26
      %p35 = scmp.eq.s32.totalorder %s18, 1
      %p36 = por %p34, %p35
      %p37 = scmp.ne.s32.totalorder %s26, %s27
      %p38 = scmp.eq.s32.totalorder %s18, 0
      %p39 = por %p37, %p38
      %p40 = scmp.ne.s32.totalorder %s26, %s27
      %p41 = scmp.eq.s32.totalorder %s19, 1
      %p42 = por %p40, %p41
      %p44 = scmp.ne.s32.totalorder %s27, %s43
      %p45 = scmp.eq.s32.totalorder %s19, 0
      %p46 = por %p44, %p45
      %s48 = sadd.s32 %s47, 1
      %p51 = scmp.eq.s32.totalorder %s13, 1
      %p52 = scmp.ne.s32.totalorder %s47, %s49
      %p53 = scmp.eq.s32.totalorder %s13, 0
      %p54 = por %p52, %p53
      %p55 = scmp.ne.s32.totalorder %s47, %s49
      %p56 = scmp.eq.s32.totalorder %s18, 1
      %p57 = por %p55, %p56
      %p58 = scmp.ne.s32.totalorder %s49, %s50
      %p59 = scmp.eq.s32.totalorder %s18, 0
      %p60 = por %p58, %p59
      %p61 = scmp.ne.s32.totalorder %s49, %s50
      %p62 = scmp.eq.s32.totalorder %s19, 1
      %p63 = por %p61, %p62
      %p65 = scmp.ne.s32.totalorder %s50, %s64
      %p66 = scmp.eq.s32.totalorder %s19, 0
      %p67 = por %p65, %p66
      %s69 = sadd.s32 %s68, 1
      %p72 = scmp.eq.s32.totalorder %s13, 1
      %p73 = scmp.ne.s32.totalorder %s68, %s70
      %p74 = scmp.eq.s32.totalorder %s13, 0
      %p75 = por %p73, %p74
      %p76 = scmp.ne.s32.totalorder %s68, %s70
      %p77 = scmp.eq.s32.totalorder %s18, 1
      %p78 = por %p76, %p77
      %p79 = scmp.ne.s32.totalorder %s70, %s71
      %p80 = scmp.eq.s32.totalorder %s18, 0
      %p81 = por %p79, %p80
      %p82 = scmp.ne.s32.totalorder %s70, %s71
      %p83 = scmp.eq.s32.totalorder %s19, 1
      %p84 = por %p82, %p83
      %p86 = scmp.ne.s32.totalorder %s71, %s85
      %p87 = scmp.eq.s32.totalorder %s19, 0
      %p88 = por %p86, %p87
      %s89 = ssub.s32 %s13, %s20
      %p90 = scmp.eq.s32.totalorder %s89, 0
      %s92 = sadd.s32 %s91, 1
      %s93 = scalar_select %p90, %s91, %s92
      %p96 = pneg %p90
      %p97 = scmp.eq.s32.totalorder %s13, 1
      %p98 = por %p96, %p97
      %p99 = scmp.ne.s32.totalorder %s91, %s94
      %p100 = scmp.eq.s32.totalorder %s13, 0
      %p101 = por %p99, %p100
      %p102 = scmp.ne.s32.totalorder %s91, %s94
      %p103 = scmp.eq.s32.totalorder %s18, 1
      %p104 = por %p102, %p103
      %p105 = scmp.ne.s32.totalorder %s94, %s95
      %p106 = scmp.eq.s32.totalorder %s18, 0
      %p107 = por %p105, %p106
      %p108 = scmp.ne.s32.totalorder %s94, %s95
      %p109 = scmp.eq.s32.totalorder %s19, 1
      %p110 = por %p108, %p109
      %p112 = scmp.ne.s32.totalorder %s95, %s111
      %p113 = scmp.eq.s32.totalorder %s19, 0
      %p114 = por %p112, %p113
      %s115 = ssub.s32 %s13, %s20
      %p116 = scmp.eq.s32.totalorder %s115, 0
      %s118 = sadd.s32 %s117, 1
      %s119 = scalar_select %p116, %s117, %s118
      %p122 = pneg %p116
      %p123 = scmp.eq.s32.totalorder %s13, 1
      %p124 = por %p122, %p123
      %p125 = scmp.ne.s32.totalorder %s117, %s120
      %p126 = scmp.eq.s32.totalorder %s13, 0
      %p127 = por %p125, %p126
      %p128 = scmp.ne.s32.totalorder %s117, %s120
      %p129 = scmp.eq.s32.totalorder %s18, 1
      %p130 = por %p128, %p129
      %p131 = scmp.ne.s32.totalorder %s120, %s121
      %p132 = scmp.eq.s32.totalorder %s18, 0
      %p133 = por %p131, %p132
      %p134 = scmp.ne.s32.totalorder %s120, %s121
      %p135 = scmp.eq.s32.totalorder %s19, 1
      %p136 = por %p134, %p135
      %p138 = scmp.ne.s32.totalorder %s121, %s137
      %p139 = scmp.eq.s32.totalorder %s19, 0
      %p140 = por %p138, %p139
      %p141 = scmp.le.s32.totalorder 1, %s13
      %p142 = scmp.lt.s32.totalorder %s13, 3
      %p143 = pnand %p141, %p142
      %p144 = pneg %p143
      // Predicated region
      $region9: #{run.11} parent=5 // pred_check
        _
      $region10: #{run.11} parent=5 // pred_check_branch
        %146 = sbr.rel (%p143) target = $region12
      $region11: #{run.11} parent=5 // pred_region
        %s147 = ssub.s32 %s13, 1
        // Predicated region
        $region13: #{run.11} parent=11 // pred_check
          %p148 = pneg %p60
        $region14: #{run.11} parent=11 // pred_check_branch
          %150 = sbr.rel (%p148) target = $region16
        $region15: #{run.11} parent=11 // pred_region
          _
        $region16: #{run.11} parent=11 // pred_fallthru
          _
        // Predicated region
        $region17: #{run.11} parent=11 // pred_check
          %p151 = pneg %p81
        $region18: #{run.11} parent=11 // pred_check_branch
          %153 = sbr.rel (%p151) target = $region20
        $region19: #{run.11} parent=11 // pred_region
          _
        $region20: #{run.11} parent=11 // pred_fallthru
          _
      $region12: #{run.11} parent=5 // pred_fallthru
        _
      %p154 = scmp.lt.s32.totalorder %s13, 2
      // Predicated region
      $region21: #{run.11} parent=5 // pred_check
        %p155 = pneg %p154
      $region22: #{run.11} parent=5 // pred_check_branch
        %157 = sbr.rel (%p155) target = $region24
      $region23: #{run.11} parent=5 // pred_region
        // Predicated region
        $region25: #{run.11} parent=23 // pred_check
          %p158 = pneg %p33
        $region26: #{run.11} parent=23 // pred_check_branch
          %160 = sbr.rel (%p158) target = $region28
        $region27: #{run.11} parent=23 // pred_region
          %s161 = smul.u32 8, %s13
          %p162 = scmp.lt.s32.totalorder %s161, 15
          %s163 = scalar_select %p162, %s161, 15
          %s164 = smul.addr %s163, 2
          %s165 = smul.addr %s164, 8
          %s166 = scalar_lea.vmem %s0, %s165
          %s167 = smul.u32 8, %s13
        $region28: #{run.11} parent=23 // pred_fallthru
          _
        // Predicated region
        $region29: #{run.11} parent=23 // pred_check
          %p168 = pneg %p101
        $region30: #{run.11} parent=23 // pred_check_branch
          %170 = sbr.rel (%p168) target = $region32
        $region31: #{run.11} parent=23 // pred_region
          %s171 = smul.u32 8, %s13
          %p172 = scmp.lt.s32.totalorder %s171, 15
          %s173 = scalar_select %p172, %s171, 15
          %s174 = smul.addr %s173, 8
          %s175 = scalar_lea.vmem %s3, %s174
          %s176 = smul.u32 8, %s13
        $region32: #{run.11} parent=23 // pred_fallthru
          _
      $region24: #{run.11} parent=5 // pred_fallthru
        _
      %p177 = scmp.le.s32.totalorder 1, %s13
      %p178 = scmp.lt.s32.totalorder %s13, 3
      %p179 = pnand %p177, %p178
      %p180 = pneg %p179
      // Predicated region
      $region33: #{run.11} parent=5 // pred_check
        _
      $region34: #{run.11} parent=5 // pred_check_branch
        %182 = sbr.rel (%p179) target = $region36
      $region35: #{run.11} parent=5 // pred_region
        %s183 = ssub.s32 %s13, 1
        %s184 = smul.u32 8, %s18
        %p185 = scmp.lt.s32.totalorder %s184, 15
        %s186 = scalar_select %p185, %s184, 15
        %s187 = smul.addr %s186, 2
        %s188 = smul.addr %s187, 8
        %s189 = scalar_lea.vmem %s0, %s188
        %p190 = pneg %p39
        %p191 = pneg %p36
        %p192 = pneg %p60
        %p193 = pneg %p57
        %p194 = pneg %p81
        %p195 = pneg %p78
        %s196 = smul.u32 8, %s18
        %p197 = scmp.lt.s32.totalorder %s196, 15
        %s198 = scalar_select %p197, %s196, 15
        %s199 = smul.addr %s198, 8
        %s200 = scalar_lea.vmem %s3, %s199
        %p201 = pneg %p107
        %p202 = pneg %p104
        %p203 = pneg %p133
        %p204 = pneg %p130
        %s205 = sand.u32 %s120, 1
        %s206 = scalar_lea.sflag [#allocation3], %s205
        %s207 = sand.u32 %s120, 1
        %s208 = smul.addr %s207, 64
        %s209 = scalar_lea.vmem [#allocation2], %s208
        %s210 = smul.u32 8, %s18
        %p211 = scmp.lt.s32.totalorder %s210, 15
        %s212 = scalar_select %p211, %s210, 15
        %s213 = smul.addr %s212, 2
        %s214 = smul.addr %s213, 8
        %s215 = scalar_lea.vmem %s0, %s214
        %s216 = smul.u32 8, %s18
        %s217 = smul.u32 8, %s18
        %p218 = scmp.lt.s32.totalorder %s217, 15
        %s219 = scalar_select %p218, %s217, 15
        %s220 = smul.addr %s219, 8
        %s221 = scalar_lea.vmem %s3, %s220
        %s222 = smul.u32 8, %s18
        %s223 = smul.u32 8, %s18
        %v225 = vld [vmem:[%s215] sm:$0xff]
        %v226 = vld [vmem:[%s215 + $0x8] sm:$0xff]
        %v227 = vld [vmem:[%s215 + $0x10] sm:$0xff]
        %v228 = vld [vmem:[%s215 + $0x18] sm:$0xff]
        %v229 = vld [vmem:[%s215 + $0x20] sm:$0xff]
        %v230 = vld [vmem:[%s215 + $0x28] sm:$0xff]
        %v231 = vld [vmem:[%s215 + $0x30] sm:$0xff]
        %v232 = vld [vmem:[%s215 + $0x38] sm:$0xff]
        %v233 = vld [vmem:[%s215 + $0x40] sm:$0xff]
        %v234 = vld [vmem:[%s215 + $0x48] sm:$0xff]
        %v235 = vld [vmem:[%s215 + $0x50] sm:$0xff]
        %v236 = vld [vmem:[%s215 + $0x58] sm:$0xff]
        %v237 = vld [vmem:[%s215 + $0x60] sm:$0xff]
        %v238 = vld [vmem:[%s215 + $0x68] sm:$0xff]
        %v239 = vld [vmem:[%s215 + $0x70] sm:$0xff]
        %v240 = vld [vmem:[%s215 + $0x78] sm:$0xff]
        %v241 = vpack.c.bf16 %v227, %v225
        %v242 = vpack.c.bf16 %v228, %v226
        %v243 = vpack.c.bf16 %v231, %v229
        %v244 = vpack.c.bf16 %v232, %v230
        %v245 = vpack.c.bf16 %v235, %v233
        %v246 = vpack.c.bf16 %v236, %v234
        %v247 = vpack.c.bf16 %v239, %v237
        %v248 = vpack.c.bf16 %v240, %v238
        %v249 = vld [vmem:[%s1] sm:$0xf]
        %v250 = vld [vmem:[%s1 + $0x4] sm:$0xf]
        %v251 = vld [vmem:[%s1 + $0x8] sm:$0xf]
        %v252 = vld [vmem:[%s1 + $0xc] sm:$0xf]
        %v253 = vld [vmem:[%s1 + $0x10] sm:$0xf]
        %v254 = vld [vmem:[%s1 + $0x14] sm:$0xf]
        %v255 = vld [vmem:[%s1 + $0x18] sm:$0xf]
        %v256 = vld [vmem:[%s1 + $0x1c] sm:$0xf]
        %v257 = vld [vmem:[%s1 + $0x20] sm:$0xf]
        %v258 = vld [vmem:[%s1 + $0x24] sm:$0xf]
        %v259 = vld [vmem:[%s1 + $0x28] sm:$0xf]
        %v260 = vld [vmem:[%s1 + $0x2c] sm:$0xf]
        %v261 = vld [vmem:[%s1 + $0x30] sm:$0xf]
        %v262 = vld [vmem:[%s1 + $0x34] sm:$0xf]
        %v263 = vld [vmem:[%s1 + $0x38] sm:$0xf]
        %v264 = vld [vmem:[%s1 + $0x3c] sm:$0xf]
        %v265 = vld [vmem:[%s1 + $0x40] sm:$0xf]
        %v266 = vld [vmem:[%s1 + $0x44] sm:$0xf]
        %v267 = vld [vmem:[%s1 + $0x48] sm:$0xf]
        %v268 = vld [vmem:[%s1 + $0x4c] sm:$0xf]
        %v269 = vld [vmem:[%s1 + $0x50] sm:$0xf]
        %v270 = vld [vmem:[%s1 + $0x54] sm:$0xf]
        %v271 = vld [vmem:[%s1 + $0x58] sm:$0xf]
        %v272 = vld [vmem:[%s1 + $0x5c] sm:$0xf]
        %v273 = vld [vmem:[%s1 + $0x60] sm:$0xf]
        %v274 = vld [vmem:[%s1 + $0x64] sm:$0xf]
        %v275 = vld [vmem:[%s1 + $0x68] sm:$0xf]
        %v276 = vld [vmem:[%s1 + $0x6c] sm:$0xf]
        %v277 = vld [vmem:[%s1 + $0x70] sm:$0xf]
        %v278 = vld [vmem:[%s1 + $0x74] sm:$0xf]
        %v279 = vld [vmem:[%s1 + $0x78] sm:$0xf]
        %v280 = vld [vmem:[%s1 + $0x7c] sm:$0xf]
        %v281 = vld [vmem:[%s2] sm:$0x1]
        %v283 = vlaneseq
        %v284 = vshrl.u32 %v283, 7
        %v285 = vsub.s32 0, %v284
        %v286 = vrot.slane %v281, %v285
        %v320 = vunpack.c.l.b16 %v249
        %v321 = vunpack.c.l.b16 %v250
        %v322 = vunpack.c.l.b16 %v251
        %v323 = vunpack.c.l.b16 %v252
        %v324 = vunpack.c.l.b16 %v253
        %v325 = vunpack.c.l.b16 %v254
        %v326 = vunpack.c.l.b16 %v255
        %v327 = vunpack.c.l.b16 %v256
        %v328 = vunpack.c.l.b16 %v257
        %v329 = vunpack.c.l.b16 %v258
        %v330 = vunpack.c.l.b16 %v259
        %v331 = vunpack.c.l.b16 %v260
        %v332 = vunpack.c.l.b16 %v261
        %v333 = vunpack.c.l.b16 %v262
        %v334 = vunpack.c.l.b16 %v263
        %v335 = vunpack.c.l.b16 %v264
        %v336 = vunpack.c.l.b16 %v265
        %v337 = vunpack.c.l.b16 %v266
        %v338 = vunpack.c.l.b16 %v267
        %v339 = vunpack.c.l.b16 %v268
        %v340 = vunpack.c.l.b16 %v269
        %v341 = vunpack.c.l.b16 %v270
        %v342 = vunpack.c.l.b16 %v271
        %v343 = vunpack.c.l.b16 %v272
        %v344 = vunpack.c.l.b16 %v273
        %v345 = vunpack.c.l.b16 %v274
        %v346 = vunpack.c.l.b16 %v275
        %v347 = vunpack.c.l.b16 %v276
        %v348 = vunpack.c.l.b16 %v277
        %v349 = vunpack.c.l.b16 %v278
        %v350 = vunpack.c.l.b16 %v279
        %v351 = vunpack.c.l.b16 %v280
        %v352 = vpack.c.b16 %v321, %v320
        %v353 = vpack.c.b16 %v323, %v322
        %v354 = vpack.c.b16 %v325, %v324
        %v355 = vpack.c.b16 %v327, %v326
        %v356 = vpack.c.b16 %v329, %v328
        %v357 = vpack.c.b16 %v331, %v330
        %v358 = vpack.c.b16 %v333, %v332
        %v359 = vpack.c.b16 %v335, %v334
        %v360 = vpack.c.b16 %v337, %v336
        %v361 = vpack.c.b16 %v339, %v338
        %v362 = vpack.c.b16 %v341, %v340
        %v363 = vpack.c.b16 %v343, %v342
        %v364 = vpack.c.b16 %v345, %v344
        %v365 = vpack.c.b16 %v347, %v346
        %v366 = vpack.c.b16 %v349, %v348
        %v367 = vpack.c.b16 %v351, %v350
        %384 = vmatprep.subr.bf16.mxu0 0
        %385 = vmatpush1.bf16.msra.mxu0 %v352
        %386 = vmatprep.subr.bf16.mxu0 0
        %387 = vmatpush1.bf16.msra.mxu0 %v353
        %388 = vmatprep.subr.bf16.mxu0 0
        %389 = vmatpush1.bf16.msra.mxu0 %v354
        %390 = vmatprep.subr.bf16.mxu0 0
        %391 = vmatpush1.bf16.msra.mxu0 %v355
        %392 = vmatprep.subr.bf16.mxu0 0
        %393 = vmatpush1.bf16.msra.mxu0 %v356
        %394 = vmatprep.subr.bf16.mxu0 0
        %395 = vmatpush1.bf16.msra.mxu0 %v357
        %396 = vmatprep.subr.bf16.mxu0 0
        %397 = vmatpush1.bf16.msra.mxu0 %v358
        %398 = vmatprep.subr.bf16.mxu0 0
        %399 = vmatpush1.bf16.msra.mxu0 %v359
        %400 = vmatprep.subr.bf16.mxu0 0
        %401 = vmatpush1.bf16.msra.mxu0 %v360
        %402 = vmatprep.subr.bf16.mxu0 0
        %403 = vmatpush1.bf16.msra.mxu0 %v361
        %404 = vmatprep.subr.bf16.mxu0 0
        %405 = vmatpush1.bf16.msra.mxu0 %v362
        %406 = vmatprep.subr.bf16.mxu0 0
        %407 = vmatpush1.bf16.msra.mxu0 %v363
        %408 = vmatprep.subr.bf16.mxu0 0
        %409 = vmatpush1.bf16.msra.mxu0 %v364
        %410 = vmatprep.subr.bf16.mxu0 0
        %411 = vmatpush1.bf16.msra.mxu0 %v365
        %412 = vmatprep.subr.bf16.mxu0 0
        %413 = vmatpush1.bf16.msra.mxu0 %v366
        %414 = vmatprep.subr.bf16.mxu0 0
        %415 = vmatpush1.bf16.msra.mxu0 %v367
        %416 = vmatprep.mubr.bf16.mxu0 %v242
        %417 = vmatmul.mubr.bf16.gmra.mrb[0].mxu0 %v241
        %v418 = vpop.f32.mrb[0].mxu0
        %v419 = vadd.f32 %v286, %v418
        %v420 = vpop.f32.mrb[0].mxu0
        %v421 = vpop.f32.mrb[0].mxu0
        %v422 = vadd.f32 %v286, %v421
        %v423 = vpop.f32.mrb[0].mxu0
        %424 = vmatprep.mubr.bf16.mxu0 %v244
        %425 = vmatmul.mubr.bf16.gmra.mrb[0].mxu0 %v243
        %v426 = vpop.f32.mrb[0].mxu0
        %v427 = vadd.f32 %v286, %v426
        %v428 = vpop.f32.mrb[0].mxu0
        %v429 = vpop.f32.mrb[0].mxu0
        %v430 = vadd.f32 %v286, %v429
        %v431 = vpop.f32.mrb[0].mxu0
        %432 = vmatprep.mubr.bf16.mxu0 %v246
        %433 = vmatmul.mubr.bf16.gmra.mrb[0].mxu0 %v245
        %v434 = vpop.f32.mrb[0].mxu0
        %v435 = vadd.f32 %v286, %v434
        %v436 = vpop.f32.mrb[0].mxu0
        %v437 = vpop.f32.mrb[0].mxu0
        %v438 = vadd.f32 %v286, %v437
        %v439 = vpop.f32.mrb[0].mxu0
        %440 = vmatprep.mubr.bf16.mxu0 %v248
        %441 = vmatmul.mubr.bf16.gmra.mrb[0].mxu0 %v247
        %v442 = vpop.f32.mrb[0].mxu0
        %v443 = vadd.f32 %v286, %v442
        %v444 = vpop.f32.mrb[0].mxu0
        %v445 = vpop.f32.mrb[0].mxu0
        %v446 = vadd.f32 %v286, %v445
        %v447 = vpop.f32.mrb[0].mxu0
        %448 = vdwg.mxu0
        %v449 = vld [vmem:[%s221] sm:$0xff]
        %v450 = vld [vmem:[%s221 + $0x8] sm:$0xff]
        %v451 = vld [vmem:[%s221 + $0x10] sm:$0xff]
        %v452 = vld [vmem:[%s221 + $0x18] sm:$0xff]
        %v453 = vld [vmem:[%s221 + $0x20] sm:$0xff]
        %v454 = vld [vmem:[%s221 + $0x28] sm:$0xff]
        %v455 = vld [vmem:[%s221 + $0x30] sm:$0xff]
        %v456 = vld [vmem:[%s221 + $0x38] sm:$0xff]
        %v457 = vadd.f32 %v419, %v449
        %v458 = vadd.f32 %v422, %v450
        %v459 = vadd.f32 %v427, %v451
        %v460 = vadd.f32 %v430, %v452
        %v461 = vadd.f32 %v435, %v453
        %v462 = vadd.f32 %v438, %v454
        %v463 = vadd.f32 %v443, %v455
        %v464 = vadd.f32 %v446, %v456
        %vm465 = vcmask 523264
        %466 = vst.msk [vmem:[%s209] sm:$0xff] %vm465, %v457
        %467 = vst.msk [vmem:[%s209 + $0x8] sm:$0xff] %vm465, %v458
        %468 = vst.msk [vmem:[%s209 + $0x10] sm:$0xff] %vm465, %v459
        %469 = vst.msk [vmem:[%s209 + $0x18] sm:$0xff] %vm465, %v460
        %470 = vst.msk [vmem:[%s209 + $0x20] sm:$0xff] %vm465, %v461
        %471 = vst.msk [vmem:[%s209 + $0x28] sm:$0xff] %vm465, %v462
        %472 = vst.msk [vmem:[%s209 + $0x30] sm:$0xff] %vm465, %v463
        %473 = vst.msk [vmem:[%s209 + $0x38] sm:$0xff] %vm465, %v464
        %s474 = sand.u32 %s120, 1
        %s475 = scalar_lea.sflag [#allocation3], %s474
        %s476 = sand.u32 %s120, 1
        %s477 = smul.addr %s476, 64
        %s478 = scalar_lea.vmem [#allocation2], %s477
        // Predicated region
        $region37: #{run.11} parent=35 // pred_check
          %p479 = pneg %p130
        $region38: #{run.11} parent=35 // pred_check_branch
          %481 = sbr.rel (%p479) target = $region40
        $region39: #{run.11} parent=35 // pred_region
          %s482 = smul.u32 8, %s18
          %s484 = ssub.s32 1024, 1024
          %485 = vsyncadd %s475, %s484
          %s486 = smul.addr %s482, 128
          %s487 = scalar_lea.hbm %s4, %s486
          %s488 = sshll.u32 %s478, 4
          %s489 = int_to_ptr.vmem [resolvable:$true] %s488
          %494 = dma.vmem_to_hbm [thread:$0]  %s489, 1024, %s487, %s475, 128, 128, 8
        $region40: #{run.11} parent=35 // pred_fallthru
          _
      $region36: #{run.11} parent=5 // pred_fallthru
        _
      %p495 = scmp.le.s32.totalorder 2, %s13
      // Predicated region
      $region41: #{run.11} parent=5 // pred_check
        %p496 = pneg %p495
      $region42: #{run.11} parent=5 // pred_check_branch
        %498 = sbr.rel (%p496) target = $region44
      $region43: #{run.11} parent=5 // pred_region
        %s499 = ssub.s32 %s13, 2
        // Predicated region
        $region45: #{run.11} parent=43 // pred_check
          %p500 = pneg %p136
        $region46: #{run.11} parent=43 // pred_check_branch
          %502 = sbr.rel (%p500) target = $region48
        $region47: #{run.11} parent=43 // pred_region
          %s503 = sand.u32 %s121, 1
          %s504 = scalar_lea.sflag [#allocation3], %s503
          %s505 = sand.u32 %s121, 1
          %s506 = smul.addr %s505, 64
          %s507 = scalar_lea.vmem [#allocation2], %s506
          %508 = dma.done %s504, 1024
        $region48: #{run.11} parent=43 // pred_fallthru
          _
      $region44: #{run.11} parent=5 // pred_fallthru
        _
    $region6: #{run.11} parent=1 // loop_footer
      %s17 = sadd.s32 1, %s13
    $region7: #{run.11} parent=1 // loop_footer_branch
      %12 = sbr.rel target = $region3
    $region8: #{run.11} parent=1 // loop_exit
      _
    %509 = vsyncpa [#allocation3], 1
    %s510 = scalar_lea.sflag [#allocation3], 1
    %511 = vsyncpa %s510, 1

</llo_original>
